<compile_context>
chip_gen: v7x
topology: tpu7x:2x2x1
jax: 0.10.0
libtpu: 0.0.40
codegen_flags: <defaults>
</compile_context>

<pallas_src>
import jax
import jax.numpy as jnp
import numpy as np
from jax import lax
from jax.experimental import pallas as pl
from jax.experimental.pallas import tpu as pltpu


def _resblock_kernel(x_ref, w1_ref, b1_ref, alpha_ref, w2_ref, b2_ref,
                     out_ref, xpad_ref, col_ref):
    """One grid step = Bt batch elements.

    x_ref    : (Bt, H, W, C)        input block, NHWC, f32 (true C, no pad)
    w1_ref   : (9*C, C)             conv1 weight, (tap,ci)-major rows, bf16
    b1_ref   : (1, C)               conv1 bias, f32
    alpha_ref: (1, 1)  SMEM         PReLU slope (single shared parameter)
    w2_ref   : (9*C, C)             conv2 weight, bf16
    b2_ref   : (1, C)               conv2 bias, f32
    out_ref  : (Bt, H, W, C)        f32
    xpad_ref : (Bt, H+2, Wpad, C)   bf16 scratch, spatially padded activations
    col_ref  : (Bt*H*W, 9*C)        bf16 scratch, im2col buffer
    """
    Bt, H, W, C = out_ref.shape
    Hp, Wpad = xpad_ref.shape[1], xpad_ref.shape[2]
    M = Bt * H * W

    # Zero ONLY the halo strips (+ sublane-alignment tail columns); the
    # interior is fully overwritten before every use.  Done each step so it
    # stays correct when the batch axis is sharded across TensorCores.
    xpad_ref[:, 0:1, :, :] = jnp.zeros((Bt, 1, Wpad, C), xpad_ref.dtype)
    xpad_ref[:, Hp - 1:Hp, :, :] = jnp.zeros((Bt, 1, Wpad, C), xpad_ref.dtype)
    xpad_ref[:, :, 0:1, :] = jnp.zeros((Bt, Hp, 1, C), xpad_ref.dtype)
    xpad_ref[:, :, W + 1:Wpad, :] = jnp.zeros((Bt, Hp, Wpad - W - 1, C),
                                              xpad_ref.dtype)

    def conv3x3(w_ref, b_ref):
        # im2col: 9 narrow bf16 copies into col_ref, then a SINGLE
        # (M, 9C) @ (9C, C) matmul with f32 accumulation
        # (vs. 9 shallow K=C matmuls + 8 f32 accumulator adds before).
        for dy in range(3):
            for dx in range(3):
                t = dy * 3 + dx
                patch = xpad_ref[:, dy:dy + H, dx:dx + W, :]
                col_ref[:, t * C:(t + 1) * C] = patch.reshape(M, C)
        acc = jnp.dot(col_ref[...], w_ref[...],
                      preferred_element_type=jnp.float32)
        return acc + b_ref[...]                      # (M, C) f32

    # ---- conv1 : one f32->bf16 cast of the interior (operands stay bf16) ----
    xpad_ref[:, 1:H + 1, 1:W + 1, :] = x_ref[...].astype(xpad_ref.dtype)
    h = conv3x3(w1_ref, b1_ref)

    # ---- PReLU (PyTorch nn.PReLU() default: one shared alpha) ----
    alpha = alpha_ref[0, 0]
    h = jnp.where(h > 0, h, alpha * h)

    # ---- conv2 : reuse the SAME padded scratch (halo already zero) ----
    xpad_ref[:, 1:H + 1, 1:W + 1, :] = h.reshape(Bt, H, W, C).astype(
        xpad_ref.dtype)
    y = conv3x3(w2_ref, b2_ref)

    # ---- residual add: re-read the exact f32 input from VMEM ----
    out_ref[...] = (x_ref[...] + y.reshape(Bt, H, W, C)).astype(out_ref.dtype)


def _tile_padded_bytes(shape, dtype):
    """Approximate VMEM footprint of an array including (sublane,lane) tiling."""
    itemsize = jnp.dtype(dtype).itemsize
    if len(shape) == 0:
        return itemsize
    if len(shape) == 1:
        return (-(-shape[0] // 128) * 128) * itemsize
    sub_mult = max(8, 32 // itemsize)
    lead = 1
    for d in shape[:-2]:
        lead *= int(d)
    sub = -(-shape[-2] // sub_mult) * sub_mult
    lane = -(-shape[-1] // 128) * 128
    return lead * sub * lane * itemsize


def residual_block(x_nchw, w1, b1, alpha, w2, b2):
    """x_nchw: (B, C, H, W) float32.  Conv weights are HWIO (3,3,C,C).
    Returns (B, C, H, W) float32."""
    x_nchw = x_nchw.astype(jnp.float32)
    B, C, H, W = x_nchw.shape
    K9 = 9 * C

    x = jnp.transpose(x_nchw, (0, 2, 3, 1))          # -> NHWC, true C kept

    def prep_w(w):
        # HWIO (3,3,C,C) -> (9C, C): row index = (dy*3+dx)*C + ci, matching
        # the im2col column order in the kernel.  bf16 MXU operands.
        return w.astype(jnp.float32).reshape(K9, C).astype(jnp.bfloat16)

    def prep_b(b):
        return b.astype(jnp.float32).reshape(1, C)

    w1p, w2p = prep_w(w1), prep_w(w2)
    b1p, b2p = prep_b(b1), prep_b(b2)
    alpha_s = jnp.asarray(alpha, jnp.float32).reshape(1, 1)

    # ---- batch blocking: fold Bt images into the matmul M dim, but keep at
    # least a few grid steps (pipelining / v7x 2-TC split) when B allows.
    target_steps = min(B, 4)
    Bt = 1
    for cand in range(1, B + 1):
        if B % cand == 0 and (B // cand) >= target_steps and cand * H * W <= 4096:
            Bt = cand
    nsteps = B // Bt

    Hp = H + 2
    Wpad = -(-(W + 2) // 8) * 8                      # sublane-aligned scratch W
    M = Bt * H * W

    # ---- VMEM budget computed from actual (tile-padded) block/scratch bytes.
    vmem_need = (
        2 * _tile_padded_bytes((Bt, H, W, C), jnp.float32)       # x (dbl buf)
        + 2 * _tile_padded_bytes((Bt, H, W, C), jnp.float32)     # out (dbl buf)
        + 2 * 2 * (_tile_padded_bytes((K9, C), jnp.bfloat16)
                   + _tile_padded_bytes((1, C), jnp.float32))    # w1,b1,w2,b2
        + _tile_padded_bytes((Bt, Hp, Wpad, C), jnp.bfloat16)    # xpad scratch
        + _tile_padded_bytes((M, K9), jnp.bfloat16)              # im2col scratch
    )
    vmem_limit = int(min(64 * 2**20, max(8 * 2**20, 2 * vmem_need + (1 << 20))))

    out = pl.pallas_call(
        _resblock_kernel,
        out_shape=jax.ShapeDtypeStruct((B, H, W, C), jnp.float32),
        grid_spec=pltpu.PrefetchScalarGridSpec(
            num_scalar_prefetch=0,
            grid=(nsteps,),
            in_specs=[
                pl.BlockSpec((Bt, H, W, C), lambda i: (i, 0, 0, 0)),
                pl.BlockSpec((K9, C), lambda i: (0, 0)),
                pl.BlockSpec((1, C), lambda i: (0, 0)),
                pl.BlockSpec(memory_space=pltpu.MemorySpace.SMEM),
                pl.BlockSpec((K9, C), lambda i: (0, 0)),
                pl.BlockSpec((1, C), lambda i: (0, 0)),
            ],
            out_specs=pl.BlockSpec((Bt, H, W, C), lambda i: (i, 0, 0, 0)),
            scratch_shapes=[
                pltpu.VMEM((Bt, Hp, Wpad, C), jnp.bfloat16),
                pltpu.VMEM((M, K9), jnp.bfloat16),
            ],
        ),
        compiler_params=pltpu.CompilerParams(
            dimension_semantics=("parallel",),       # batch steps independent
            vmem_limit_bytes=vmem_limit,
        ),
    )(x, w1p, b1p, alpha_s, w2p, b2p)

    return jnp.transpose(out, (0, 3, 1, 2))          # back to NCHW


def reference(x_nchw, w1, b1, alpha, w2, b2):
    """Pure-JAX f32 reference (lax.conv) for correctness checking."""
    x = jnp.transpose(x_nchw, (0, 2, 3, 1)).astype(jnp.float32)
    dn = lax.conv_dimension_numbers(x.shape, w1.shape, ('NHWC', 'HWIO', 'NHWC'))
    h = lax.conv_general_dilated(x, w1, (1, 1), 'SAME',
                                 dimension_numbers=dn) + b1.reshape(1, 1, 1, -1)
    h = jnp.where(h > 0, h, alpha * h)
    y = lax.conv_general_dilated(h, w2, (1, 1), 'SAME',
                                 dimension_numbers=dn) + b2.reshape(1, 1, 1, -1)
    return jnp.transpose(x + y, (0, 3, 1, 2))


if __name__ == "__main__":
    B, C, H, W = 2, 4, 16, 16
    key = jax.random.PRNGKey(0)
    kx, kw1, kb1, kw2, kb2 = jax.random.split(key, 5)

    x = jax.random.normal(kx, (B, C, H, W), jnp.float32)

    # Deterministic synthetic parameters (PyTorch Conv2d weight (O,I,3,3) -> HWIO here)
    fan_in = C * 3 * 3
    bound = 1.0 / np.sqrt(fan_in)
    w1 = jax.random.uniform(kw1, (3, 3, C, C), jnp.float32, -bound, bound)
    b1 = jax.random.uniform(kb1, (C,), jnp.float32, -bound, bound)
    w2 = jax.random.uniform(kw2, (3, 3, C, C), jnp.float32, -bound, bound)
    b2 = jax.random.uniform(kb2, (C,), jnp.float32, -bound, bound)
    alpha = jnp.float32(0.25)  # PReLU default init

    out = jax.block_until_ready(residual_block(x, w1, b1, alpha, w2, b2))
    ref = jax.block_until_ready(reference(x, w1, b1, alpha, w2, b2))

    # bf16 MXU operands with f32 accumulation -> loosened tolerance.
    np.testing.assert_allclose(np.asarray(out), np.asarray(ref),
                               rtol=2e-2, atol=2e-2)

    print("KERNEL_OK")
</pallas_src>

<mosaic_0001>
module attributes {stable_mosaic.version = 11 : i64} {
  func.func @_resblock_kernel(%arg0: i32, %arg1: memref<1x16x16x4xf32, #tpu.memory_space<vmem>>, %arg2: memref<36x4xbf16, #tpu.memory_space<vmem>>, %arg3: memref<1x4xf32, #tpu.memory_space<vmem>>, %arg4: memref<1x1xf32, #tpu.memory_space<smem>>, %arg5: memref<36x4xbf16, #tpu.memory_space<vmem>>, %arg6: memref<1x4xf32, #tpu.memory_space<vmem>>, %arg7: memref<1x16x16x4xf32, #tpu.memory_space<vmem>>, %arg8: memref<1x18x24x4xbf16, #tpu.memory_space<vmem>>, %arg9: memref<256x36xbf16, #tpu.memory_space<vmem>>) attributes {dimension_semantics = [#tpu.dimension_semantics<parallel>], iteration_bounds = array<i64: 2>, scalar_prefetch = 0 : i64, scratch_operands = 2 : i64, tpu.core_type = #tpu.core_type<tc>, window_params = [{transform_indices = @transform_0, window_bounds = array<i64: 1, 16, 16, 4>}, {pipeline_mode = #tpu.pipeline_mode<synchronous>, transform_indices = @transform_1, window_bounds = array<i64: 36, 4>}, {pipeline_mode = #tpu.pipeline_mode<synchronous>, transform_indices = @transform_2, window_bounds = array<i64: 1, 4>}, {transform_indices = @transform_3, window_bounds = array<i64: 1, 1>}, {pipeline_mode = #tpu.pipeline_mode<synchronous>, transform_indices = @transform_4, window_bounds = array<i64: 36, 4>}, {pipeline_mode = #tpu.pipeline_mode<synchronous>, transform_indices = @transform_5, window_bounds = array<i64: 1, 4>}, {transform_indices = @transform_6, window_bounds = array<i64: 1, 16, 16, 4>}]} {
    %cst = arith.constant 0.000000e+00 : bf16
    %0 = vector.broadcast %cst : bf16 to vector<1x1x24x4xbf16>
    %c0 = arith.constant 0 : index
    %c0_0 = arith.constant 0 : index
    %c0_1 = arith.constant 0 : index
    %c0_2 = arith.constant 0 : index
    %1 = vector.load %arg8[%c0, %c0_0, %c0_1, %c0_2] : memref<1x18x24x4xbf16, #tpu.memory_space<vmem>>, vector<1x1x24x4xbf16>
    tpu.vector_store %arg8[%c0, %c0_0, %c0_1, %c0_2], %0 {strides = array<i32>} : memref<1x18x24x4xbf16, #tpu.memory_space<vmem>>, vector<1x1x24x4xbf16>,
    %cst_3 = arith.constant 0.000000e+00 : bf16
    %2 = vector.broadcast %cst_3 : bf16 to vector<1x1x24x4xbf16>
    %c0_4 = arith.constant 0 : index
    %c17 = arith.constant 17 : index
    %c0_5 = arith.constant 0 : index
    %c0_6 = arith.constant 0 : index
    %3 = vector.load %arg8[%c0_4, %c17, %c0_5, %c0_6] : memref<1x18x24x4xbf16, #tpu.memory_space<vmem>>, vector<1x1x24x4xbf16>
    tpu.vector_store %arg8[%c0_4, %c17, %c0_5, %c0_6], %2 {strides = array<i32>} : memref<1x18x24x4xbf16, #tpu.memory_space<vmem>>, vector<1x1x24x4xbf16>,
    %cst_7 = arith.constant 0.000000e+00 : bf16
    %4 = vector.broadcast %cst_7 : bf16 to vector<1x18x1x4xbf16>
    %c0_8 = arith.constant 0 : index
    %c0_9 = arith.constant 0 : index
    %c0_10 = arith.constant 0 : index
    %c0_11 = arith.constant 0 : index
    %5 = vector.load %arg8[%c0_8, %c0_9, %c0_10, %c0_11] : memref<1x18x24x4xbf16, #tpu.memory_space<vmem>>, vector<1x18x1x4xbf16>
    tpu.vector_store %arg8[%c0_8, %c0_9, %c0_10, %c0_11], %4 {strides = array<i32>} : memref<1x18x24x4xbf16, #tpu.memory_space<vmem>>, vector<1x18x1x4xbf16>,
    %cst_12 = arith.constant 0.000000e+00 : bf16
    %6 = vector.broadcast %cst_12 : bf16 to vector<1x18x7x4xbf16>
    %c0_13 = arith.constant 0 : index
    %c0_14 = arith.constant 0 : index
    %c17_15 = arith.constant 17 : index
    %c0_16 = arith.constant 0 : index
    %7 = vector.load %arg8[%c0_13, %c0_14, %c17_15, %c0_16] : memref<1x18x24x4xbf16, #tpu.memory_space<vmem>>, vector<1x18x7x4xbf16>
    tpu.vector_store %arg8[%c0_13, %c0_14, %c17_15, %c0_16], %6 {strides = array<i32>} : memref<1x18x24x4xbf16, #tpu.memory_space<vmem>>, vector<1x18x7x4xbf16>,
    %c0_17 = arith.constant 0 : index
    %c0_18 = arith.constant 0 : index
    %c0_19 = arith.constant 0 : index
    %c0_20 = arith.constant 0 : index
    %8 = vector.load %arg1[%c0_17, %c0_18, %c0_19, %c0_20] : memref<1x16x16x4xf32, #tpu.memory_space<vmem>>, vector<1x16x16x4xf32>
    %9 = arith.truncf %8 : vector<1x16x16x4xf32> to vector<1x16x16x4xbf16>
    %c0_21 = arith.constant 0 : index
    %c1 = arith.constant 1 : index
    %c1_22 = arith.constant 1 : index
    %c0_23 = arith.constant 0 : index
    %10 = vector.load %arg8[%c0_21, %c1, %c1_22, %c0_23] : memref<1x18x24x4xbf16, #tpu.memory_space<vmem>>, vector<1x16x16x4xbf16>
    tpu.vector_store %arg8[%c0_21, %c1, %c1_22, %c0_23], %9 {strides = array<i32>} : memref<1x18x24x4xbf16, #tpu.memory_space<vmem>>, vector<1x16x16x4xbf16>,
    %c0_24 = arith.constant 0 : index
    %c0_25 = arith.constant 0 : index
    %c0_26 = arith.constant 0 : index
    %c0_27 = arith.constant 0 : index
    %11 = vector.load %arg8[%c0_24, %c0_25, %c0_26, %c0_27] : memref<1x18x24x4xbf16, #tpu.memory_space<vmem>>, vector<1x16x16x4xbf16>
    %12 = vector.shape_cast %11 : vector<1x16x16x4xbf16> to vector<256x4xbf16>
    %c0_28 = arith.constant 0 : index
    %c0_29 = arith.constant 0 : index
    %13 = vector.load %arg9[%c0_28, %c0_29] : memref<256x36xbf16, #tpu.memory_space<vmem>>, vector<256x4xbf16>
    tpu.vector_store %arg9[%c0_28, %c0_29], %12 {strides = array<i32>} : memref<256x36xbf16, #tpu.memory_space<vmem>>, vector<256x4xbf16>,
    %c0_30 = arith.constant 0 : index
    %c0_31 = arith.constant 0 : index
    %c1_32 = arith.constant 1 : index
    %c0_33 = arith.constant 0 : index
    %14 = vector.load %arg8[%c0_30, %c0_31, %c1_32, %c0_33] : memref<1x18x24x4xbf16, #tpu.memory_space<vmem>>, vector<1x16x16x4xbf16>
    %15 = vector.shape_cast %14 : vector<1x16x16x4xbf16> to vector<256x4xbf16>
    %c0_34 = arith.constant 0 : index
    %c4 = arith.constant 4 : index
    %16 = vector.load %arg9[%c0_34, %c4] : memref<256x36xbf16, #tpu.memory_space<vmem>>, vector<256x4xbf16>
    tpu.vector_store %arg9[%c0_34, %c4], %15 {strides = array<i32>} : memref<256x36xbf16, #tpu.memory_space<vmem>>, vector<256x4xbf16>,
    %c0_35 = arith.constant 0 : index
    %c0_36 = arith.constant 0 : index
    %c2 = arith.constant 2 : index
    %c0_37 = arith.constant 0 : index
    %17 = vector.load %arg8[%c0_35, %c0_36, %c2, %c0_37] : memref<1x18x24x4xbf16, #tpu.memory_space<vmem>>, vector<1x16x16x4xbf16>
    %18 = vector.shape_cast %17 : vector<1x16x16x4xbf16> to vector<256x4xbf16>
    %c0_38 = arith.constant 0 : index
    %c8 = arith.constant 8 : index
    %19 = vector.load %arg9[%c0_38, %c8] : memref<256x36xbf16, #tpu.memory_space<vmem>>, vector<256x4xbf16>
    tpu.vector_store %arg9[%c0_38, %c8], %18 {strides = array<i32>} : memref<256x36xbf16, #tpu.memory_space<vmem>>, vector<256x4xbf16>,
    %c0_39 = arith.constant 0 : index
    %c1_40 = arith.constant 1 : index
    %c0_41 = arith.constant 0 : index
    %c0_42 = arith.constant 0 : index
    %20 = vector.load %arg8[%c0_39, %c1_40, %c0_41, %c0_42] : memref<1x18x24x4xbf16, #tpu.memory_space<vmem>>, vector<1x16x16x4xbf16>
    %21 = vector.shape_cast %20 : vector<1x16x16x4xbf16> to vector<256x4xbf16>
    %c0_43 = arith.constant 0 : index
    %c12 = arith.constant 12 : index
    %22 = vector.load %arg9[%c0_43, %c12] : memref<256x36xbf16, #tpu.memory_space<vmem>>, vector<256x4xbf16>
    tpu.vector_store %arg9[%c0_43, %c12], %21 {strides = array<i32>} : memref<256x36xbf16, #tpu.memory_space<vmem>>, vector<256x4xbf16>,
    %c0_44 = arith.constant 0 : index
    %c1_45 = arith.constant 1 : index
    %c1_46 = arith.constant 1 : index
    %c0_47 = arith.constant 0 : index
    %23 = vector.load %arg8[%c0_44, %c1_45, %c1_46, %c0_47] : memref<1x18x24x4xbf16, #tpu.memory_space<vmem>>, vector<1x16x16x4xbf16>
    %24 = vector.shape_cast %23 : vector<1x16x16x4xbf16> to vector<256x4xbf16>
    %c0_48 = arith.constant 0 : index
    %c16 = arith.constant 16 : index
    %25 = vector.load %arg9[%c0_48, %c16] : memref<256x36xbf16, #tpu.memory_space<vmem>>, vector<256x4xbf16>
    tpu.vector_store %arg9[%c0_48, %c16], %24 {strides = array<i32>} : memref<256x36xbf16, #tpu.memory_space<vmem>>, vector<256x4xbf16>,
    %c0_49 = arith.constant 0 : index
    %c1_50 = arith.constant 1 : index
    %c2_51 = arith.constant 2 : index
    %c0_52 = arith.constant 0 : index
    %26 = vector.load %arg8[%c0_49, %c1_50, %c2_51, %c0_52] : memref<1x18x24x4xbf16, #tpu.memory_space<vmem>>, vector<1x16x16x4xbf16>
    %27 = vector.shape_cast %26 : vector<1x16x16x4xbf16> to vector<256x4xbf16>
    %c0_53 = arith.constant 0 : index
    %c20 = arith.constant 20 : index
    %28 = vector.load %arg9[%c0_53, %c20] : memref<256x36xbf16, #tpu.memory_space<vmem>>, vector<256x4xbf16>
    tpu.vector_store %arg9[%c0_53, %c20], %27 {strides = array<i32>} : memref<256x36xbf16, #tpu.memory_space<vmem>>, vector<256x4xbf16>,
    %c0_54 = arith.constant 0 : index
    %c2_55 = arith.constant 2 : index
    %c0_56 = arith.constant 0 : index
    %c0_57 = arith.constant 0 : index
    %29 = vector.load %arg8[%c0_54, %c2_55, %c0_56, %c0_57] : memref<1x18x24x4xbf16, #tpu.memory_space<vmem>>, vector<1x16x16x4xbf16>
    %30 = vector.shape_cast %29 : vector<1x16x16x4xbf16> to vector<256x4xbf16>
    %c0_58 = arith.constant 0 : index
    %c24 = arith.constant 24 : index
    %31 = vector.load %arg9[%c0_58, %c24] : memref<256x36xbf16, #tpu.memory_space<vmem>>, vector<256x4xbf16>
    tpu.vector_store %arg9[%c0_58, %c24], %30 {strides = array<i32>} : memref<256x36xbf16, #tpu.memory_space<vmem>>, vector<256x4xbf16>,
    %c0_59 = arith.constant 0 : index
    %c2_60 = arith.constant 2 : index
    %c1_61 = arith.constant 1 : index
    %c0_62 = arith.constant 0 : index
    %32 = vector.load %arg8[%c0_59, %c2_60, %c1_61, %c0_62] : memref<1x18x24x4xbf16, #tpu.memory_space<vmem>>, vector<1x16x16x4xbf16>
    %33 = vector.shape_cast %32 : vector<1x16x16x4xbf16> to vector<256x4xbf16>
    %c0_63 = arith.constant 0 : index
    %c28 = arith.constant 28 : index
    %34 = vector.load %arg9[%c0_63, %c28] : memref<256x36xbf16, #tpu.memory_space<vmem>>, vector<256x4xbf16>
    tpu.vector_store %arg9[%c0_63, %c28], %33 {strides = array<i32>} : memref<256x36xbf16, #tpu.memory_space<vmem>>, vector<256x4xbf16>,
    %c0_64 = arith.constant 0 : index
    %c2_65 = arith.constant 2 : index
    %c2_66 = arith.constant 2 : index
    %c0_67 = arith.constant 0 : index
    %35 = vector.load %arg8[%c0_64, %c2_65, %c2_66, %c0_67] : memref<1x18x24x4xbf16, #tpu.memory_space<vmem>>, vector<1x16x16x4xbf16>
    %36 = vector.shape_cast %35 : vector<1x16x16x4xbf16> to vector<256x4xbf16>
    %c0_68 = arith.constant 0 : index
    %c32 = arith.constant 32 : index
    %37 = vector.load %arg9[%c0_68, %c32] : memref<256x36xbf16, #tpu.memory_space<vmem>>, vector<256x4xbf16>
    tpu.vector_store %arg9[%c0_68, %c32], %36 {strides = array<i32>} : memref<256x36xbf16, #tpu.memory_space<vmem>>, vector<256x4xbf16>,
    %c0_69 = arith.constant 0 : index
    %c0_70 = arith.constant 0 : index
    %38 = vector.load %arg9[%c0_69, %c0_70] : memref<256x36xbf16, #tpu.memory_space<vmem>>, vector<256x36xbf16>
    %c0_71 = arith.constant 0 : index
    %c0_72 = arith.constant 0 : index
    %39 = vector.load %arg2[%c0_71, %c0_72] : memref<36x4xbf16, #tpu.memory_space<vmem>>, vector<36x4xbf16>
    %cst_73 = arith.constant dense<0.000000e+00> : vector<256x4xf32>
    %40 = tpu.matmul %38, %39, %cst_73 {dimension_numbers = #tpu.dot_dimension_numbers<[1], [0], [0], [1], [0, 0, 1, 1], [], []>} : vector<256x36xbf16>, vector<36x4xbf16>, vector<256x4xf32> -> vector<256x4xf32>
    %c0_74 = arith.constant 0 : index
    %c0_75 = arith.constant 0 : index
    %41 = vector.load %arg3[%c0_74, %c0_75] : memref<1x4xf32, #tpu.memory_space<vmem>>, vector<1x4xf32>
    %42 = vector.broadcast %41 : vector<1x4xf32> to vector<256x4xf32>
    %43 = arith.addf %40, %42 : vector<256x4xf32>
    %c0_76 = arith.constant 0 : index
    %c0_77 = arith.constant 0 : index
    %44 = memref.load %arg4[%c0_76, %c0_77] : memref<1x1xf32, #tpu.memory_space<smem>>
    %cst_78 = arith.constant 0.000000e+00 : f32
    %45 = vector.broadcast %cst_78 : f32 to vector<256x4xf32>
    %46 = arith.cmpf ogt, %43, %45 : vector<256x4xf32>
    %47 = vector.broadcast %44 : f32 to vector<256x4xf32>
    %48 = arith.mulf %47, %43 : vector<256x4xf32>
    %49 = arith.select %46, %43, %48 : vector<256x4xi1>, vector<256x4xf32>
    %50 = vector.shape_cast %49 : vector<256x4xf32> to vector<1x16x16x4xf32>
    %51 = arith.truncf %50 : vector<1x16x16x4xf32> to vector<1x16x16x4xbf16>
    %c0_79 = arith.constant 0 : index
    %c1_80 = arith.constant 1 : index
    %c1_81 = arith.constant 1 : index
    %c0_82 = arith.constant 0 : index
    %52 = vector.load %arg8[%c0_79, %c1_80, %c1_81, %c0_82] : memref<1x18x24x4xbf16, #tpu.memory_space<vmem>>, vector<1x16x16x4xbf16>
    tpu.vector_store %arg8[%c0_79, %c1_80, %c1_81, %c0_82], %51 {strides = array<i32>} : memref<1x18x24x4xbf16, #tpu.memory_space<vmem>>, vector<1x16x16x4xbf16>,
    %c0_83 = arith.constant 0 : index
    %c0_84 = arith.constant 0 : index
    %c0_85 = arith.constant 0 : index
    %c0_86 = arith.constant 0 : index
    %53 = vector.load %arg8[%c0_83, %c0_84, %c0_85, %c0_86] : memref<1x18x24x4xbf16, #tpu.memory_space<vmem>>, vector<1x16x16x4xbf16>
    %54 = vector.shape_cast %53 : vector<1x16x16x4xbf16> to vector<256x4xbf16>
    %c0_87 = arith.constant 0 : index
    %c0_88 = arith.constant 0 : index
    %55 = vector.load %arg9[%c0_87, %c0_88] : memref<256x36xbf16, #tpu.memory_space<vmem>>, vector<256x4xbf16>
    tpu.vector_store %arg9[%c0_87, %c0_88], %54 {strides = array<i32>} : memref<256x36xbf16, #tpu.memory_space<vmem>>, vector<256x4xbf16>,
    %c0_89 = arith.constant 0 : index
    %c0_90 = arith.constant 0 : index
    %c1_91 = arith.constant 1 : index
    %c0_92 = arith.constant 0 : index
    %56 = vector.load %arg8[%c0_89, %c0_90, %c1_91, %c0_92] : memref<1x18x24x4xbf16, #tpu.memory_space<vmem>>, vector<1x16x16x4xbf16>
    %57 = vector.shape_cast %56 : vector<1x16x16x4xbf16> to vector<256x4xbf16>
    %c0_93 = arith.constant 0 : index
    %c4_94 = arith.constant 4 : index
    %58 = vector.load %arg9[%c0_93, %c4_94] : memref<256x36xbf16, #tpu.memory_space<vmem>>, vector<256x4xbf16>
    tpu.vector_store %arg9[%c0_93, %c4_94], %57 {strides = array<i32>} : memref<256x36xbf16, #tpu.memory_space<vmem>>, vector<256x4xbf16>,
    %c0_95 = arith.constant 0 : index
    %c0_96 = arith.constant 0 : index
    %c2_97 = arith.constant 2 : index
    %c0_98 = arith.constant 0 : index
    %59 = vector.load %arg8[%c0_95, %c0_96, %c2_97, %c0_98] : memref<1x18x24x4xbf16, #tpu.memory_space<vmem>>, vector<1x16x16x4xbf16>
    %60 = vector.shape_cast %59 : vector<1x16x16x4xbf16> to vector<256x4xbf16>
    %c0_99 = arith.constant 0 : index
    %c8_100 = arith.constant 8 : index
    %61 = vector.load %arg9[%c0_99, %c8_100] : memref<256x36xbf16, #tpu.memory_space<vmem>>, vector<256x4xbf16>
    tpu.vector_store %arg9[%c0_99, %c8_100], %60 {strides = array<i32>} : memref<256x36xbf16, #tpu.memory_space<vmem>>, vector<256x4xbf16>,
    %c0_101 = arith.constant 0 : index
    %c1_102 = arith.constant 1 : index
    %c0_103 = arith.constant 0 : index
    %c0_104 = arith.constant 0 : index
    %62 = vector.load %arg8[%c0_101, %c1_102, %c0_103, %c0_104] : memref<1x18x24x4xbf16, #tpu.memory_space<vmem>>, vector<1x16x16x4xbf16>
    %63 = vector.shape_cast %62 : vector<1x16x16x4xbf16> to vector<256x4xbf16>
    %c0_105 = arith.constant 0 : index
    %c12_106 = arith.constant 12 : index
    %64 = vector.load %arg9[%c0_105, %c12_106] : memref<256x36xbf16, #tpu.memory_space<vmem>>, vector<256x4xbf16>
    tpu.vector_store %arg9[%c0_105, %c12_106], %63 {strides = array<i32>} : memref<256x36xbf16, #tpu.memory_space<vmem>>, vector<256x4xbf16>,
    %c0_107 = arith.constant 0 : index
    %c1_108 = arith.constant 1 : index
    %c1_109 = arith.constant 1 : index
    %c0_110 = arith.constant 0 : index
    %65 = vector.load %arg8[%c0_107, %c1_108, %c1_109, %c0_110] : memref<1x18x24x4xbf16, #tpu.memory_space<vmem>>, vector<1x16x16x4xbf16>
    %66 = vector.shape_cast %65 : vector<1x16x16x4xbf16> to vector<256x4xbf16>
    %c0_111 = arith.constant 0 : index
    %c16_112 = arith.constant 16 : index
    %67 = vector.load %arg9[%c0_111, %c16_112] : memref<256x36xbf16, #tpu.memory_space<vmem>>, vector<256x4xbf16>
    tpu.vector_store %arg9[%c0_111, %c16_112], %66 {strides = array<i32>} : memref<256x36xbf16, #tpu.memory_space<vmem>>, vector<256x4xbf16>,
    %c0_113 = arith.constant 0 : index
    %c1_114 = arith.constant 1 : index
    %c2_115 = arith.constant 2 : index
    %c0_116 = arith.constant 0 : index
    %68 = vector.load %arg8[%c0_113, %c1_114, %c2_115, %c0_116] : memref<1x18x24x4xbf16, #tpu.memory_space<vmem>>, vector<1x16x16x4xbf16>
    %69 = vector.shape_cast %68 : vector<1x16x16x4xbf16> to vector<256x4xbf16>
    %c0_117 = arith.constant 0 : index
    %c20_118 = arith.constant 20 : index
    %70 = vector.load %arg9[%c0_117, %c20_118] : memref<256x36xbf16, #tpu.memory_space<vmem>>, vector<256x4xbf16>
    tpu.vector_store %arg9[%c0_117, %c20_118], %69 {strides = array<i32>} : memref<256x36xbf16, #tpu.memory_space<vmem>>, vector<256x4xbf16>,
    %c0_119 = arith.constant 0 : index
    %c2_120 = arith.constant 2 : index
    %c0_121 = arith.constant 0 : index
    %c0_122 = arith.constant 0 : index
    %71 = vector.load %arg8[%c0_119, %c2_120, %c0_121, %c0_122] : memref<1x18x24x4xbf16, #tpu.memory_space<vmem>>, vector<1x16x16x4xbf16>
    %72 = vector.shape_cast %71 : vector<1x16x16x4xbf16> to vector<256x4xbf16>
    %c0_123 = arith.constant 0 : index
    %c24_124 = arith.constant 24 : index
    %73 = vector.load %arg9[%c0_123, %c24_124] : memref<256x36xbf16, #tpu.memory_space<vmem>>, vector<256x4xbf16>
    tpu.vector_store %arg9[%c0_123, %c24_124], %72 {strides = array<i32>} : memref<256x36xbf16, #tpu.memory_space<vmem>>, vector<256x4xbf16>,
    %c0_125 = arith.constant 0 : index
    %c2_126 = arith.constant 2 : index
    %c1_127 = arith.constant 1 : index
    %c0_128 = arith.constant 0 : index
    %74 = vector.load %arg8[%c0_125, %c2_126, %c1_127, %c0_128] : memref<1x18x24x4xbf16, #tpu.memory_space<vmem>>, vector<1x16x16x4xbf16>
    %75 = vector.shape_cast %74 : vector<1x16x16x4xbf16> to vector<256x4xbf16>
    %c0_129 = arith.constant 0 : index
    %c28_130 = arith.constant 28 : index
    %76 = vector.load %arg9[%c0_129, %c28_130] : memref<256x36xbf16, #tpu.memory_space<vmem>>, vector<256x4xbf16>
    tpu.vector_store %arg9[%c0_129, %c28_130], %75 {strides = array<i32>} : memref<256x36xbf16, #tpu.memory_space<vmem>>, vector<256x4xbf16>,
    %c0_131 = arith.constant 0 : index
    %c2_132 = arith.constant 2 : index
    %c2_133 = arith.constant 2 : index
    %c0_134 = arith.constant 0 : index
    %77 = vector.load %arg8[%c0_131, %c2_132, %c2_133, %c0_134] : memref<1x18x24x4xbf16, #tpu.memory_space<vmem>>, vector<1x16x16x4xbf16>
    %78 = vector.shape_cast %77 : vector<1x16x16x4xbf16> to vector<256x4xbf16>
    %c0_135 = arith.constant 0 : index
    %c32_136 = arith.constant 32 : index
    %79 = vector.load %arg9[%c0_135, %c32_136] : memref<256x36xbf16, #tpu.memory_space<vmem>>, vector<256x4xbf16>
    tpu.vector_store %arg9[%c0_135, %c32_136], %78 {strides = array<i32>} : memref<256x36xbf16, #tpu.memory_space<vmem>>, vector<256x4xbf16>,
    %c0_137 = arith.constant 0 : index
    %c0_138 = arith.constant 0 : index
    %80 = vector.load %arg9[%c0_137, %c0_138] : memref<256x36xbf16, #tpu.memory_space<vmem>>, vector<256x36xbf16>
    %c0_139 = arith.constant 0 : index
    %c0_140 = arith.constant 0 : index
    %81 = vector.load %arg5[%c0_139, %c0_140] : memref<36x4xbf16, #tpu.memory_space<vmem>>, vector<36x4xbf16>
    %cst_141 = arith.constant dense<0.000000e+00> : vector<256x4xf32>
    %82 = tpu.matmul %80, %81, %cst_141 {dimension_numbers = #tpu.dot_dimension_numbers<[1], [0], [0], [1], [0, 0, 1, 1], [], []>} : vector<256x36xbf16>, vector<36x4xbf16>, vector<256x4xf32> -> vector<256x4xf32>
    %c0_142 = arith.constant 0 : index
    %c0_143 = arith.constant 0 : index
    %83 = vector.load %arg6[%c0_142, %c0_143] : memref<1x4xf32, #tpu.memory_space<vmem>>, vector<1x4xf32>
    %84 = vector.broadcast %83 : vector<1x4xf32> to vector<256x4xf32>
    %85 = arith.addf %82, %84 : vector<256x4xf32>
    %c0_144 = arith.constant 0 : index
    %c0_145 = arith.constant 0 : index
    %c0_146 = arith.constant 0 : index
    %c0_147 = arith.constant 0 : index
    %86 = vector.load %arg1[%c0_144, %c0_145, %c0_146, %c0_147] : memref<1x16x16x4xf32, #tpu.memory_space<vmem>>, vector<1x16x16x4xf32>
    %87 = vector.shape_cast %85 : vector<256x4xf32> to vector<1x16x16x4xf32>
    %88 = arith.addf %86, %87 : vector<1x16x16x4xf32>
    %c0_148 = arith.constant 0 : index
    %c0_149 = arith.constant 0 : index
    %c0_150 = arith.constant 0 : index
    %c0_151 = arith.constant 0 : index
    %89 = vector.load %arg7[%c0_148, %c0_149, %c0_150, %c0_151] : memref<1x16x16x4xf32, #tpu.memory_space<vmem>>, vector<1x16x16x4xf32>
    tpu.vector_store %arg7[%c0_148, %c0_149, %c0_150, %c0_151], %88 {strides = array<i32>} : memref<1x16x16x4xf32, #tpu.memory_space<vmem>>, vector<1x16x16x4xf32>,
    return
  }
  func.func @transform_0(%arg0: i32) -> (i32, i32, i32, i32) {
    %c0_i32 = arith.constant 0 : i32
    %c0_i32_0 = arith.constant 0 : i32
    %c0_i32_1 = arith.constant 0 : i32
    %c0_i32_2 = arith.constant 0 : i32
    return %arg0, %c0_i32, %c0_i32_0, %c0_i32_1 : i32, i32, i32, i32
  }
  func.func @transform_1(%arg0: i32) -> (i32, i32) {
    %c0_i32 = arith.constant 0 : i32
    %c0_i32_0 = arith.constant 0 : i32
    %c0_i32_1 = arith.constant 0 : i32
    return %c0_i32, %c0_i32_0 : i32, i32
  }
  func.func @transform_2(%arg0: i32) -> (i32, i32) {
    %c0_i32 = arith.constant 0 : i32
    %c0_i32_0 = arith.constant 0 : i32
    %c0_i32_1 = arith.constant 0 : i32
    return %c0_i32, %c0_i32_0 : i32, i32
  }
  func.func @transform_3(%arg0: i32) -> (i32, i32) {
    %c0_i32 = arith.constant 0 : i32
    %c0_i32_0 = arith.constant 0 : i32
    %c0_i32_1 = arith.constant 0 : i32
    return %c0_i32, %c0_i32_0 : i32, i32
  }
  func.func @transform_4(%arg0: i32) -> (i32, i32) {
    %c0_i32 = arith.constant 0 : i32
    %c0_i32_0 = arith.constant 0 : i32
    %c0_i32_1 = arith.constant 0 : i32
    return %c0_i32, %c0_i32_0 : i32, i32
  }
  func.func @transform_5(%arg0: i32) -> (i32, i32) {
    %c0_i32 = arith.constant 0 : i32
    %c0_i32_0 = arith.constant 0 : i32
    %c0_i32_1 = arith.constant 0 : i32
    return %c0_i32, %c0_i32_0 : i32, i32
  }
  func.func @transform_6(%arg0: i32) -> (i32, i32, i32, i32) {
    %c0_i32 = arith.constant 0 : i32
    %c0_i32_0 = arith.constant 0 : i32
    %c0_i32_1 = arith.constant 0 : i32
    %c0_i32_2 = arith.constant 0 : i32
    return %arg0, %c0_i32, %c0_i32_0, %c0_i32_1 : i32, i32, i32, i32
  }
}

</mosaic_0001>

<llo_original>
// kernel: tpu_custom_call.1
$region0: #{tpu_custom_call.1}
  #allocation0 [shape = 'u32[]', space=smem, size = 0x4, offset = 0x4, fixed_abs, tag = 'smem constant byte address 0x4 - core index']
  #allocation1 [shape = 'u32[144,128]{1,0:T(1,128)}', space=vmem, size = 0x12000, scoped, tag = 'internal scratch']
  #allocation2 [shape = 'bf16[1,18,24,4]{3,2,1,0:T(8,128)(2,1)}', space=vmem, size = 0x1b000, scoped, tag = 'scratch operand']
  #allocation3 [shape = 'bf16[256,36]{1,0:T(16,128)(2,1)}', space=vmem, size = 0x10000, scoped, tag = 'scratch operand']
  #allocation4 [shape = 'f32[1,1]{1,0:T(1,128)S(6)}', space=smem, size = 0x200, scoped, tag = 'scoped memory for tpu_custom_call.1']
  %s0 = inlined_call_operand.vmem [shape: f32[2,16,16,4], index: 0, kind: input, shape index: {}]
  %s1 = inlined_call_operand.vmem [shape: bf16[36,4], index: 1, kind: input, shape index: {}]
  %s2 = inlined_call_operand.vmem [shape: f32[1,4], index: 2, kind: input, shape index: {}]
  %s3 = inlined_call_operand.<no memory space> [shape: f32[1,1], index: 3, kind: input, shape index: {}]
  %s4 = inlined_call_operand.vmem [shape: bf16[36,4], index: 4, kind: input, shape index: {}]
  %s5 = inlined_call_operand.vmem [shape: f32[1,4], index: 5, kind: input, shape index: {}]
  %s6 = inlined_call_operand.vmem [shape: f32[2,16,16,4], index: 6, kind: output, shape index: {}]
  %s7 = sld [smem:[#allocation0]]
  $region57: #{tpu_custom_call.1} parent=0
    _
  %s9 = ssub.s32 1, %s7
  %s10 = scalar_select 0, %s9, %s7
  %11 = sst [smem:[#allocation4]] %s3
  loop: start=0, step=1, limit=4
  $region2: #{tpu_custom_call.1} parent=0 // loop_pre_header
    _
  $region3: #{tpu_custom_call.1} parent=0 // loop_header
    %s13 = sphi 0, %s17
    %p14 = scmp.ge.s32.totalorder %s13, 4
    %s23 = sphi 0, %s25
    %s26 = sphi 0, %s23
    %s27 = sphi 0, %s26
    %s43 = sphi 0, %s27
    %s47 = sphi 0, %s47
    %s49 = sphi 0, %s47
    %s50 = sphi 0, %s49
    %s64 = sphi 0, %s50
    %s68 = sphi 0, %s68
    %s70 = sphi 0, %s68
    %s71 = sphi 0, %s70
    %s85 = sphi 0, %s71
    %s89 = sphi 0, %s89
    %s91 = sphi 0, %s89
    %s92 = sphi 0, %s91
    %s106 = sphi 0, %s92
    %s110 = sphi 0, %s110
    %s112 = sphi 0, %s110
    %s113 = sphi 0, %s112
    %s127 = sphi 0, %s113
    %s131 = sphi 0, %s131
    %s133 = sphi 0, %s131
    %s134 = sphi 0, %s133
    %s148 = sphi 0, %s134
    %s154 = sphi 0, %s156
    %s157 = sphi 0, %s154
    %s158 = sphi 0, %s157
    %s174 = sphi 0, %s158
  $region4: #{tpu_custom_call.1} parent=0 // loop_header_branch
    %16 = sbr.rel (%p14) target = $region8
  $region5: #{tpu_custom_call.1} parent=0 // loop_body
    %s18 = ssub.s32 %s13, 1
    %s19 = ssub.s32 %s13, 2
    %s20 = sadd.s32 %s13, 1
    %s21 = ssub.s32 %s13, %s20
    %p22 = scmp.eq.s32.totalorder %s21, 0
    %s24 = sadd.s32 %s23, 1
    %s25 = scalar_select %p22, %s23, %s24
    %p28 = pneg %p22
    %p29 = scmp.eq.s32.totalorder %s13, 1
    %p30 = por %p28, %p29
    %p31 = scmp.ne.s32.totalorder %s23, %s26
    %p32 = scmp.eq.s32.totalorder %s13, 0
    %p33 = por %p31, %p32
    %p34 = scmp.ne.s32.totalorder %s23, %s26
    %p35 = scmp.eq.s32.totalorder %s18, 1
    %p36 = por %p34, %p35
    %p37 = scmp.ne.s32.totalorder %s26, %s27
    %p38 = scmp.eq.s32.totalorder %s18, 0
    %p39 = por %p37, %p38
    %p40 = scmp.ne.s32.totalorder %s26, %s27
    %p41 = scmp.eq.s32.totalorder %s19, 1
    %p42 = por %p40, %p41
    %p44 = scmp.ne.s32.totalorder %s27, %s43
    %p45 = scmp.eq.s32.totalorder %s19, 0
    %p46 = por %p44, %p45
    %s48 = sadd.s32 %s47, 1
    %p51 = scmp.eq.s32.totalorder %s13, 1
    %p52 = scmp.ne.s32.totalorder %s47, %s49
    %p53 = scmp.eq.s32.totalorder %s13, 0
    %p54 = por %p52, %p53
    %p55 = scmp.ne.s32.totalorder %s47, %s49
    %p56 = scmp.eq.s32.totalorder %s18, 1
    %p57 = por %p55, %p56
    %p58 = scmp.ne.s32.totalorder %s49, %s50
    %p59 = scmp.eq.s32.totalorder %s18, 0
    %p60 = por %p58, %p59
    %p61 = scmp.ne.s32.totalorder %s49, %s50
    %p62 = scmp.eq.s32.totalorder %s19, 1
    %p63 = por %p61, %p62
    %p65 = scmp.ne.s32.totalorder %s50, %s64
    %p66 = scmp.eq.s32.totalorder %s19, 0
    %p67 = por %p65, %p66
    %s69 = sadd.s32 %s68, 1
    %p72 = scmp.eq.s32.totalorder %s13, 1
    %p73 = scmp.ne.s32.totalorder %s68, %s70
    %p74 = scmp.eq.s32.totalorder %s13, 0
    %p75 = por %p73, %p74
    %p76 = scmp.ne.s32.totalorder %s68, %s70
    %p77 = scmp.eq.s32.totalorder %s18, 1
    %p78 = por %p76, %p77
    %p79 = scmp.ne.s32.totalorder %s70, %s71
    %p80 = scmp.eq.s32.totalorder %s18, 0
    %p81 = por %p79, %p80
    %p82 = scmp.ne.s32.totalorder %s70, %s71
    %p83 = scmp.eq.s32.totalorder %s19, 1
    %p84 = por %p82, %p83
    %p86 = scmp.ne.s32.totalorder %s71, %s85
    %p87 = scmp.eq.s32.totalorder %s19, 0
    %p88 = por %p86, %p87
    %s90 = sadd.s32 %s89, 1
    %p93 = scmp.eq.s32.totalorder %s13, 1
    %p94 = scmp.ne.s32.totalorder %s89, %s91
    %p95 = scmp.eq.s32.totalorder %s13, 0
    %p96 = por %p94, %p95
    %p97 = scmp.ne.s32.totalorder %s89, %s91
    %p98 = scmp.eq.s32.totalorder %s18, 1
    %p99 = por %p97, %p98
    %p100 = scmp.ne.s32.totalorder %s91, %s92
    %p101 = scmp.eq.s32.totalorder %s18, 0
    %p102 = por %p100, %p101
    %p103 = scmp.ne.s32.totalorder %s91, %s92
    %p104 = scmp.eq.s32.totalorder %s19, 1
    %p105 = por %p103, %p104
    %p107 = scmp.ne.s32.totalorder %s92, %s106
    %p108 = scmp.eq.s32.totalorder %s19, 0
    %p109 = por %p107, %p108
    %s111 = sadd.s32 %s110, 1
    %p114 = scmp.eq.s32.totalorder %s13, 1
    %p115 = scmp.ne.s32.totalorder %s110, %s112
    %p116 = scmp.eq.s32.totalorder %s13, 0
    %p117 = por %p115, %p116
    %p118 = scmp.ne.s32.totalorder %s110, %s112
    %p119 = scmp.eq.s32.totalorder %s18, 1
    %p120 = por %p118, %p119
    %p121 = scmp.ne.s32.totalorder %s112, %s113
    %p122 = scmp.eq.s32.totalorder %s18, 0
    %p123 = por %p121, %p122
    %p124 = scmp.ne.s32.totalorder %s112, %s113
    %p125 = scmp.eq.s32.totalorder %s19, 1
    %p126 = por %p124, %p125
    %p128 = scmp.ne.s32.totalorder %s113, %s127
    %p129 = scmp.eq.s32.totalorder %s19, 0
    %p130 = por %p128, %p129
    %s132 = sadd.s32 %s131, 1
    %p135 = scmp.eq.s32.totalorder %s13, 1
    %p136 = scmp.ne.s32.totalorder %s131, %s133
    %p137 = scmp.eq.s32.totalorder %s13, 0
    %p138 = por %p136, %p137
    %p139 = scmp.ne.s32.totalorder %s131, %s133
    %p140 = scmp.eq.s32.totalorder %s18, 1
    %p141 = por %p139, %p140
    %p142 = scmp.ne.s32.totalorder %s133, %s134
    %p143 = scmp.eq.s32.totalorder %s18, 0
    %p144 = por %p142, %p143
    %p145 = scmp.ne.s32.totalorder %s133, %s134
    %p146 = scmp.eq.s32.totalorder %s19, 1
    %p147 = por %p145, %p146
    %p149 = scmp.ne.s32.totalorder %s134, %s148
    %p150 = scmp.eq.s32.totalorder %s19, 0
    %p151 = por %p149, %p150
    %s152 = ssub.s32 %s13, %s20
    %p153 = scmp.eq.s32.totalorder %s152, 0
    %s155 = sadd.s32 %s154, 1
    %s156 = scalar_select %p153, %s154, %s155
    %p159 = pneg %p153
    %p160 = scmp.eq.s32.totalorder %s13, 1
    %p161 = por %p159, %p160
    %p162 = scmp.ne.s32.totalorder %s154, %s157
    %p163 = scmp.eq.s32.totalorder %s13, 0
    %p164 = por %p162, %p163
    %p165 = scmp.ne.s32.totalorder %s154, %s157
    %p166 = scmp.eq.s32.totalorder %s18, 1
    %p167 = por %p165, %p166
    %p168 = scmp.ne.s32.totalorder %s157, %s158
    %p169 = scmp.eq.s32.totalorder %s18, 0
    %p170 = por %p168, %p169
    %p171 = scmp.ne.s32.totalorder %s157, %s158
    %p172 = scmp.eq.s32.totalorder %s19, 1
    %p173 = por %p171, %p172
    %p175 = scmp.ne.s32.totalorder %s158, %s174
    %p176 = scmp.eq.s32.totalorder %s19, 0
    %p177 = por %p175, %p176
    %p178 = scmp.le.s32.totalorder 1, %s13
    %p179 = scmp.lt.s32.totalorder %s13, 3
    %p180 = pnand %p178, %p179
    %p181 = pneg %p180
    // Predicated region
    $region9: #{tpu_custom_call.1} parent=5 // pred_check
      _
    $region10: #{tpu_custom_call.1} parent=5 // pred_check_branch
      %183 = sbr.rel (%p180) target = $region12
    $region11: #{tpu_custom_call.1} parent=5 // pred_region
      %s184 = ssub.s32 %s13, 1
      // Predicated region
      $region13: #{tpu_custom_call.1} parent=11 // pred_check
        %p185 = pneg %p60
      $region14: #{tpu_custom_call.1} parent=11 // pred_check_branch
        %187 = sbr.rel (%p185) target = $region16
      $region15: #{tpu_custom_call.1} parent=11 // pred_region
        _
      $region16: #{tpu_custom_call.1} parent=11 // pred_fallthru
        _
      // Predicated region
      $region17: #{tpu_custom_call.1} parent=11 // pred_check
        %p188 = pneg %p81
      $region18: #{tpu_custom_call.1} parent=11 // pred_check_branch
        %190 = sbr.rel (%p188) target = $region20
      $region19: #{tpu_custom_call.1} parent=11 // pred_region
        _
      $region20: #{tpu_custom_call.1} parent=11 // pred_fallthru
        _
      // Predicated region
      $region21: #{tpu_custom_call.1} parent=11 // pred_check
        %p191 = pneg %p102
      $region22: #{tpu_custom_call.1} parent=11 // pred_check_branch
        %193 = sbr.rel (%p191) target = $region24
      $region23: #{tpu_custom_call.1} parent=11 // pred_region
        _
      $region24: #{tpu_custom_call.1} parent=11 // pred_fallthru
        _
      // Predicated region
      $region25: #{tpu_custom_call.1} parent=11 // pred_check
        %p194 = pneg %p123
      $region26: #{tpu_custom_call.1} parent=11 // pred_check_branch
        %196 = sbr.rel (%p194) target = $region28
      $region27: #{tpu_custom_call.1} parent=11 // pred_region
        _
      $region28: #{tpu_custom_call.1} parent=11 // pred_fallthru
        _
      // Predicated region
      $region29: #{tpu_custom_call.1} parent=11 // pred_check
        %p197 = pneg %p144
      $region30: #{tpu_custom_call.1} parent=11 // pred_check_branch
        %199 = sbr.rel (%p197) target = $region32
      $region31: #{tpu_custom_call.1} parent=11 // pred_region
        _
      $region32: #{tpu_custom_call.1} parent=11 // pred_fallthru
        _
    $region12: #{tpu_custom_call.1} parent=5 // pred_fallthru
      _
    %p200 = scmp.lt.s32.totalorder %s13, 2
    // Predicated region
    $region33: #{tpu_custom_call.1} parent=5 // pred_check
      %p201 = pneg %p200
    $region34: #{tpu_custom_call.1} parent=5 // pred_check_branch
      %203 = sbr.rel (%p201) target = $region36
    $region35: #{tpu_custom_call.1} parent=5 // pred_region
      // Predicated region
      $region37: #{tpu_custom_call.1} parent=35 // pred_check
        %p204 = pneg %p33
      $region38: #{tpu_custom_call.1} parent=35 // pred_check_branch
        %206 = sbr.rel (%p204) target = $region40
      $region39: #{tpu_custom_call.1} parent=35 // pred_region
        %p207 = scmp.lt.s32.totalorder %s13, 1
        %s208 = scalar_select %p207, %s13, 1
        %s209 = smul.addr %s208, 32
        %s210 = smul.addr %s209, 8
        %s211 = scalar_lea.vmem %s0, %s210
      $region40: #{tpu_custom_call.1} parent=35 // pred_fallthru
        _
    $region36: #{tpu_custom_call.1} parent=5 // pred_fallthru
      _
    %p212 = scmp.le.s32.totalorder 1, %s13
    %p213 = scmp.lt.s32.totalorder %s13, 3
    %p214 = pnand %p212, %p213
    %p215 = pneg %p214
    // Predicated region
    $region41: #{tpu_custom_call.1} parent=5 // pred_check
      _
    $region42: #{tpu_custom_call.1} parent=5 // pred_check_branch
      %217 = sbr.rel (%p214) target = $region44
    $region43: #{tpu_custom_call.1} parent=5 // pred_region
      %s218 = ssub.s32 %s13, 1
      %p219 = scmp.lt.s32.totalorder %s18, 1
      %s220 = scalar_select %p219, %s18, 1
      %s221 = smul.addr %s220, 32
      %s222 = smul.addr %s221, 8
      %s223 = scalar_lea.vmem %s0, %s222
      %p224 = pneg %p39
      %p225 = pneg %p36
      %p226 = pneg %p60
      %p227 = pneg %p57
      %p228 = pneg %p81
      %p229 = pneg %p78
      %p230 = pneg %p102
      %p231 = pneg %p99
      %p232 = pneg %p123
      %p233 = pneg %p120
      %p234 = pneg %p144
      %p235 = pneg %p141
      %p236 = pneg %p170
      %p237 = pneg %p167
      %p238 = scmp.lt.s32.totalorder %s18, 1
      %s239 = scalar_select %p238, %s18, 1
      %s240 = smul.addr %s239, 32
      %s241 = smul.addr %s240, 8
      %s242 = scalar_lea.vmem %s6, %s241
      %p243 = scmp.lt.s32.totalorder %s18, 1
      %s244 = scalar_select %p243, %s18, 1
      %s245 = smul.addr %s244, 32
      %s246 = smul.addr %s245, 8
      %s247 = scalar_lea.vmem %s0, %s246
      %p248 = scmp.lt.s32.totalorder %s18, 1
      %s249 = scalar_select %p248, %s18, 1
      %s250 = smul.addr %s249, 32
      %s251 = smul.addr %s250, 8
      %s252 = scalar_lea.vmem %s6, %s251
      %vm254 = vcmask 27648
      %255 = vst.msk [vmem:[#allocation2] sm:$0xf] %vm254, 0
      %256 = vst.msk [vmem:[#allocation2 + $0x4] sm:$0xf] %vm254, 0
      %257 = vst.msk [vmem:[#allocation2 + $0x8] sm:$0xf] %vm254, 0
      %s258 = scalar_lea.vmem [#allocation2], 204
      %259 = vst.msk [vmem:[%s258] sm:$0xf] %vm254, 0
      %260 = vst.msk [vmem:[%s258 + $0x4] sm:$0xf] %vm254, 0
      %261 = vst.msk [vmem:[%s258 + $0x8] sm:$0xf] %vm254, 0
      %vm262 = vcmask 24576
      %vm263 = vsmask.f32 256
      %vm264 = vmand %vm262, %vm263
      %v265 = vld [vmem:[#allocation2] sm:$0x1]
      %v266 = vsel %vm264, 0, %v265
      %267 = vst [vmem:[#allocation2] sm:$0x1] %v266
      %v268 = vld [vmem:[#allocation2 + $0xc] sm:$0x1]
      %v269 = vsel %vm264, 0, %v268
      %270 = vst [vmem:[#allocation2 + $0xc] sm:$0x1] %v269
      %v271 = vld [vmem:[#allocation2 + $0x18] sm:$0x1]
      %v272 = vsel %vm264, 0, %v271
      %273 = vst [vmem:[#allocation2 + $0x18] sm:$0x1] %v272
      %v274 = vld [vmem:[#allocation2 + $0x24] sm:$0x1]
      %v275 = vsel %vm264, 0, %v274
      %276 = vst [vmem:[#allocation2 + $0x24] sm:$0x1] %v275
      %v277 = vld [vmem:[#allocation2 + $0x30] sm:$0x1]
      %v278 = vsel %vm264, 0, %v277
      %279 = vst [vmem:[#allocation2 + $0x30] sm:$0x1] %v278
      %v280 = vld [vmem:[#allocation2 + $0x3c] sm:$0x1]
      %v281 = vsel %vm264, 0, %v280
      %282 = vst [vmem:[#allocation2 + $0x3c] sm:$0x1] %v281
      %v283 = vld [vmem:[#allocation2 + $0x48] sm:$0x1]
      %v284 = vsel %vm264, 0, %v283
      %285 = vst [vmem:[#allocation2 + $0x48] sm:$0x1] %v284
      %v286 = vld [vmem:[#allocation2 + $0x54] sm:$0x1]
      %v287 = vsel %vm264, 0, %v286
      %288 = vst [vmem:[#allocation2 + $0x54] sm:$0x1] %v287
      %v289 = vld [vmem:[#allocation2 + $0x60] sm:$0x1]
      %v290 = vsel %vm264, 0, %v289
      %291 = vst [vmem:[#allocation2 + $0x60] sm:$0x1] %v290
      %v292 = vld [vmem:[#allocation2 + $0x6c] sm:$0x1]
      %v293 = vsel %vm264, 0, %v292
      %294 = vst [vmem:[#allocation2 + $0x6c] sm:$0x1] %v293
      %v295 = vld [vmem:[#allocation2 + $0x78] sm:$0x1]
      %v296 = vsel %vm264, 0, %v295
      %297 = vst [vmem:[#allocation2 + $0x78] sm:$0x1] %v296
      %v298 = vld [vmem:[#allocation2 + $0x84] sm:$0x1]
      %v299 = vsel %vm264, 0, %v298
      %300 = vst [vmem:[#allocation2 + $0x84] sm:$0x1] %v299
      %v301 = vld [vmem:[#allocation2 + $0x90] sm:$0x1]
      %v302 = vsel %vm264, 0, %v301
      %303 = vst [vmem:[#allocation2 + $0x90] sm:$0x1] %v302
      %v304 = vld [vmem:[#allocation2 + $0x9c] sm:$0x1]
      %v305 = vsel %vm264, 0, %v304
      %306 = vst [vmem:[#allocation2 + $0x9c] sm:$0x1] %v305
      %v307 = vld [vmem:[#allocation2 + $0xa8] sm:$0x1]
      %v308 = vsel %vm264, 0, %v307
      %309 = vst [vmem:[#allocation2 + $0xa8] sm:$0x1] %v308
      %v310 = vld [vmem:[#allocation2 + $0xb4] sm:$0x1]
      %v311 = vsel %vm264, 0, %v310
      %312 = vst [vmem:[#allocation2 + $0xb4] sm:$0x1] %v311
      %v313 = vld [vmem:[#allocation2 + $0xc0] sm:$0x1]
      %v314 = vsel %vm264, 0, %v313
      %315 = vst [vmem:[#allocation2 + $0xc0] sm:$0x1] %v314
      %v316 = vld [vmem:[#allocation2 + $0xcc] sm:$0x1]
      %v317 = vsel %vm264, 0, %v316
      %318 = vst [vmem:[#allocation2 + $0xcc] sm:$0x1] %v317
      %vm319 = vcmask 27648
      %vm320 = vsmask.f32 7938
      %vm321 = vmand %vm319, %vm320
      %v322 = vld [vmem:[#allocation2 + $0x8] sm:$0xf]
      %v323 = vsel %vm321, 0, %v322
      %324 = vst [vmem:[#allocation2 + $0x8] sm:$0xf] %v323
      %v325 = vld [vmem:[#allocation2 + $0x14] sm:$0xf]
      %v326 = vsel %vm321, 0, %v325
      %327 = vst [vmem:[#allocation2 + $0x14] sm:$0xf] %v326
      %v328 = vld [vmem:[#allocation2 + $0x20] sm:$0xf]
      %v329 = vsel %vm321, 0, %v328
      %330 = vst [vmem:[#allocation2 + $0x20] sm:$0xf] %v329
      %v331 = vld [vmem:[#allocation2 + $0x2c] sm:$0xf]
      %v332 = vsel %vm321, 0, %v331
      %333 = vst [vmem:[#allocation2 + $0x2c] sm:$0xf] %v332
      %v334 = vld [vmem:[#allocation2 + $0x38] sm:$0xf]
      %v335 = vsel %vm321, 0, %v334
      %336 = vst [vmem:[#allocation2 + $0x38] sm:$0xf] %v335
      %v337 = vld [vmem:[#allocation2 + $0x44] sm:$0xf]
      %v338 = vsel %vm321, 0, %v337
      %339 = vst [vmem:[#allocation2 + $0x44] sm:$0xf] %v338
      %v340 = vld [vmem:[#allocation2 + $0x50] sm:$0xf]
      %v341 = vsel %vm321, 0, %v340
      %342 = vst [vmem:[#allocation2 + $0x50] sm:$0xf] %v341
      %v343 = vld [vmem:[#allocation2 + $0x5c] sm:$0xf]
      %v344 = vsel %vm321, 0, %v343
      %345 = vst [vmem:[#allocation2 + $0x5c] sm:$0xf] %v344
      %v346 = vld [vmem:[#allocation2 + $0x68] sm:$0xf]
      %v347 = vsel %vm321, 0, %v346
      %348 = vst [vmem:[#allocation2 + $0x68] sm:$0xf] %v347
      %v349 = vld [vmem:[#allocation2 + $0x74] sm:$0xf]
      %v350 = vsel %vm321, 0, %v349
      %351 = vst [vmem:[#allocation2 + $0x74] sm:$0xf] %v350
      %v352 = vld [vmem:[#allocation2 + $0x80] sm:$0xf]
      %v353 = vsel %vm321, 0, %v352
      %354 = vst [vmem:[#allocation2 + $0x80] sm:$0xf] %v353
      %v355 = vld [vmem:[#allocation2 + $0x8c] sm:$0xf]
      %v356 = vsel %vm321, 0, %v355
      %357 = vst [vmem:[#allocation2 + $0x8c] sm:$0xf] %v356
      %v358 = vld [vmem:[#allocation2 + $0x98] sm:$0xf]
      %v359 = vsel %vm321, 0, %v358
      %360 = vst [vmem:[#allocation2 + $0x98] sm:$0xf] %v359
      %v361 = vld [vmem:[#allocation2 + $0xa4] sm:$0xf]
      %v362 = vsel %vm321, 0, %v361
      %363 = vst [vmem:[#allocation2 + $0xa4] sm:$0xf] %v362
      %v364 = vld [vmem:[#allocation2 + $0xb0] sm:$0xf]
      %v365 = vsel %vm321, 0, %v364
      %366 = vst [vmem:[#allocation2 + $0xb0] sm:$0xf] %v365
      %v367 = vld [vmem:[#allocation2 + $0xbc] sm:$0xf]
      %v368 = vsel %vm321, 0, %v367
      %369 = vst [vmem:[#allocation2 + $0xbc] sm:$0xf] %v368
      %v370 = vld [vmem:[#allocation2 + $0xc8] sm:$0xf]
      %v371 = vsel %vm321, 0, %v370
      %372 = vst [vmem:[#allocation2 + $0xc8] sm:$0xf] %v371
      %v373 = vld [vmem:[#allocation2 + $0xd4] sm:$0xf]
      %v374 = vsel %vm321, 0, %v373
      %375 = vst [vmem:[#allocation2 + $0xd4] sm:$0xf] %v374
      %v376 = vld [vmem:[%s247] sm:$0xff]
      %v377 = vld [vmem:[%s247 + $0x8] sm:$0xff]
      %v378 = vld [vmem:[%s247 + $0x10] sm:$0xff]
      %v379 = vld [vmem:[%s247 + $0x18] sm:$0xff]
      %v380 = vld [vmem:[%s247 + $0x20] sm:$0xff]
      %v381 = vld [vmem:[%s247 + $0x28] sm:$0xff]
      %v382 = vld [vmem:[%s247 + $0x30] sm:$0xff]
      %v383 = vld [vmem:[%s247 + $0x38] sm:$0xff]
      %v384 = vld [vmem:[%s247 + $0x40] sm:$0xff]
      %v385 = vld [vmem:[%s247 + $0x48] sm:$0xff]
      %v386 = vld [vmem:[%s247 + $0x50] sm:$0xff]
      %v387 = vld [vmem:[%s247 + $0x58] sm:$0xff]
      %v388 = vld [vmem:[%s247 + $0x60] sm:$0xff]
      %v389 = vld [vmem:[%s247 + $0x68] sm:$0xff]
      %v390 = vld [vmem:[%s247 + $0x70] sm:$0xff]
      %v391 = vld [vmem:[%s247 + $0x78] sm:$0xff]
      %v392 = vld [vmem:[%s247 + $0x80] sm:$0xff]
      %v393 = vld [vmem:[%s247 + $0x88] sm:$0xff]
      %v394 = vld [vmem:[%s247 + $0x90] sm:$0xff]
      %v395 = vld [vmem:[%s247 + $0x98] sm:$0xff]
      %v396 = vld [vmem:[%s247 + $0xa0] sm:$0xff]
      %v397 = vld [vmem:[%s247 + $0xa8] sm:$0xff]
      %v398 = vld [vmem:[%s247 + $0xb0] sm:$0xff]
      %v399 = vld [vmem:[%s247 + $0xb8] sm:$0xff]
      %v400 = vld [vmem:[%s247 + $0xc0] sm:$0xff]
      %v401 = vld [vmem:[%s247 + $0xc8] sm:$0xff]
      %v402 = vld [vmem:[%s247 + $0xd0] sm:$0xff]
      %v403 = vld [vmem:[%s247 + $0xd8] sm:$0xff]
      %v404 = vld [vmem:[%s247 + $0xe0] sm:$0xff]
      %v405 = vld [vmem:[%s247 + $0xe8] sm:$0xff]
      %v406 = vld [vmem:[%s247 + $0xf0] sm:$0xff]
      %v407 = vld [vmem:[%s247 + $0xf8] sm:$0xff]
      %v408 = vpack.c.bf16 %v377, %v376
      %v409 = vpack.c.bf16 %v379, %v378
      %v410 = vpack.c.bf16 %v381, %v380
      %v411 = vpack.c.bf16 %v383, %v382
      %v412 = vpack.c.bf16 %v385, %v384
      %v413 = vpack.c.bf16 %v387, %v386
      %v414 = vpack.c.bf16 %v389, %v388
      %v415 = vpack.c.bf16 %v391, %v390
      %v416 = vpack.c.bf16 %v393, %v392
      %v417 = vpack.c.bf16 %v395, %v394
      %v418 = vpack.c.bf16 %v397, %v396
      %v419 = vpack.c.bf16 %v399, %v398
      %v420 = vpack.c.bf16 %v401, %v400
      %v421 = vpack.c.bf16 %v403, %v402
      %v422 = vpack.c.bf16 %v405, %v404
      %v423 = vpack.c.bf16 %v407, %v406
      %v440 = vunpack.c.l.b16 %v408
      %v441 = vunpack.c.h.b16 %v408
      %v442 = vunpack.c.l.b16 %v409
      %v443 = vunpack.c.h.b16 %v409
      %v444 = vunpack.c.l.b16 %v410
      %v445 = vunpack.c.h.b16 %v410
      %v446 = vunpack.c.l.b16 %v411
      %v447 = vunpack.c.h.b16 %v411
      %v448 = vunpack.c.l.b16 %v412
      %v449 = vunpack.c.h.b16 %v412
      %v450 = vunpack.c.l.b16 %v413
      %v451 = vunpack.c.h.b16 %v413
      %v452 = vunpack.c.l.b16 %v414
      %v453 = vunpack.c.h.b16 %v414
      %v454 = vunpack.c.l.b16 %v415
      %v455 = vunpack.c.h.b16 %v415
      %v456 = vunpack.c.l.b16 %v416
      %v457 = vunpack.c.h.b16 %v416
      %v458 = vunpack.c.l.b16 %v417
      %v459 = vunpack.c.h.b16 %v417
      %v460 = vunpack.c.l.b16 %v418
      %v461 = vunpack.c.h.b16 %v418
      %v462 = vunpack.c.l.b16 %v419
      %v463 = vunpack.c.h.b16 %v419
      %v464 = vunpack.c.l.b16 %v420
      %v465 = vunpack.c.h.b16 %v420
      %v466 = vunpack.c.l.b16 %v421
      %v467 = vunpack.c.h.b16 %v421
      %v468 = vunpack.c.l.b16 %v422
      %v469 = vunpack.c.h.b16 %v422
      %v470 = vunpack.c.l.b16 %v423
      %v471 = vunpack.c.h.b16 %v423
      %v472 = vpack.c.b16 %v440, %v440
      %v473 = vpack.c.b16 %v441, %v441
      %v474 = vpack.c.b16 %v442, %v442
      %v475 = vpack.c.b16 %v443, %v443
      %v476 = vpack.c.b16 %v444, %v444
      %v477 = vpack.c.b16 %v445, %v445
      %v478 = vpack.c.b16 %v446, %v446
      %v479 = vpack.c.b16 %v447, %v447
      %v480 = vpack.c.b16 %v448, %v448
      %v481 = vpack.c.b16 %v449, %v449
      %v482 = vpack.c.b16 %v450, %v450
      %v483 = vpack.c.b16 %v451, %v451
      %v484 = vpack.c.b16 %v452, %v452
      %v485 = vpack.c.b16 %v453, %v453
      %v486 = vpack.c.b16 %v454, %v454
      %v487 = vpack.c.b16 %v455, %v455
      %v488 = vpack.c.b16 %v456, %v456
      %v489 = vpack.c.b16 %v457, %v457
      %v490 = vpack.c.b16 %v458, %v458
      %v491 = vpack.c.b16 %v459, %v459
      %v492 = vpack.c.b16 %v460, %v460
      %v493 = vpack.c.b16 %v461, %v461
      %v494 = vpack.c.b16 %v462, %v462
      %v495 = vpack.c.b16 %v463, %v463
      %v496 = vpack.c.b16 %v464, %v464
      %v497 = vpack.c.b16 %v465, %v465
      %v498 = vpack.c.b16 %v466, %v466
      %v499 = vpack.c.b16 %v467, %v467
      %v500 = vpack.c.b16 %v468, %v468
      %v501 = vpack.c.b16 %v469, %v469
      %v502 = vpack.c.b16 %v470, %v470
      %v503 = vpack.c.b16 %v471, %v471
      %vm504 = vsmask.f32 4368
      %vm505 = vmor %vm263, %vm504
      %v507 = vshrl.u32 %v472, 16
      %v509 = vrot.slane %v507, 7
      %v510 = vshll.u32 %v472, 16
      %v512 = vor.u32 %v509, %v510
      %v513 = vrot.slane %v509, 4
      %v515 = vshrl.u32 %v473, 16
      %v517 = vrot.slane %v515, 7
      %v518 = vshll.u32 %v473, 16
      %v520 = vor.u32 %v517, %v518
      %v521 = vsel %vm505, %v513, %v520
      %v522 = vrot.slane %v517, 4
      %v524 = vshrl.u32 %v474, 16
      %v526 = vrot.slane %v524, 7
      %v527 = vshll.u32 %v474, 16
      %v529 = vor.u32 %v526, %v527
      %v530 = vrot.slane %v526, 4
      %v532 = vshrl.u32 %v475, 16
      %v534 = vrot.slane %v532, 7
      %v535 = vshll.u32 %v475, 16
      %v537 = vor.u32 %v534, %v535
      %v538 = vsel %vm505, %v530, %v537
      %v539 = vrot.slane %v534, 4
      %v541 = vshrl.u32 %v476, 16
      %v543 = vrot.slane %v541, 7
      %v544 = vshll.u32 %v476, 16
      %v546 = vor.u32 %v543, %v544
      %v547 = vrot.slane %v543, 4
      %v549 = vshrl.u32 %v477, 16
      %v551 = vrot.slane %v549, 7
      %v552 = vshll.u32 %v477, 16
      %v554 = vor.u32 %v551, %v552
      %v555 = vsel %vm505, %v547, %v554
      %v556 = vrot.slane %v551, 4
      %v558 = vshrl.u32 %v478, 16
      %v560 = vrot.slane %v558, 7
      %v561 = vshll.u32 %v478, 16
      %v563 = vor.u32 %v560, %v561
      %v564 = vrot.slane %v560, 4
      %v566 = vshrl.u32 %v479, 16
      %v568 = vrot.slane %v566, 7
      %v569 = vshll.u32 %v479, 16
      %v571 = vor.u32 %v568, %v569
      %v572 = vsel %vm505, %v564, %v571
      %v573 = vrot.slane %v568, 4
      %v575 = vshrl.u32 %v480, 16
      %v577 = vrot.slane %v575, 7
      %v578 = vshll.u32 %v480, 16
      %v580 = vor.u32 %v577, %v578
      %v581 = vrot.slane %v577, 4
      %v583 = vshrl.u32 %v481, 16
      %v585 = vrot.slane %v583, 7
      %v586 = vshll.u32 %v481, 16
      %v588 = vor.u32 %v585, %v586
      %v589 = vsel %vm505, %v581, %v588
      %v590 = vrot.slane %v585, 4
      %v592 = vshrl.u32 %v482, 16
      %v594 = vrot.slane %v592, 7
      %v595 = vshll.u32 %v482, 16
      %v597 = vor.u32 %v594, %v595
      %v598 = vrot.slane %v594, 4
      %v600 = vshrl.u32 %v483, 16
      %v602 = vrot.slane %v600, 7
      %v603 = vshll.u32 %v483, 16
      %v605 = vor.u32 %v602, %v603
      %v606 = vsel %vm505, %v598, %v605
      %v607 = vrot.slane %v602, 4
      %v609 = vshrl.u32 %v484, 16
      %v611 = vrot.slane %v609, 7
      %v612 = vshll.u32 %v484, 16
      %v614 = vor.u32 %v611, %v612
      %v615 = vrot.slane %v611, 4
      %v617 = vshrl.u32 %v485, 16
      %v619 = vrot.slane %v617, 7
      %v620 = vshll.u32 %v485, 16
      %v622 = vor.u32 %v619, %v620
      %v623 = vsel %vm505, %v615, %v622
      %v624 = vrot.slane %v619, 4
      %v626 = vshrl.u32 %v486, 16
      %v628 = vrot.slane %v626, 7
      %v629 = vshll.u32 %v486, 16
      %v631 = vor.u32 %v628, %v629
      %v632 = vrot.slane %v628, 4
      %v634 = vshrl.u32 %v487, 16
      %v636 = vrot.slane %v634, 7
      %v637 = vshll.u32 %v487, 16
      %v639 = vor.u32 %v636, %v637
      %v640 = vsel %vm505, %v632, %v639
      %v641 = vrot.slane %v636, 4
      %v643 = vshrl.u32 %v488, 16
      %v645 = vrot.slane %v643, 7
      %v646 = vshll.u32 %v488, 16
      %v648 = vor.u32 %v645, %v646
      %v649 = vrot.slane %v645, 4
      %v651 = vshrl.u32 %v489, 16
      %v653 = vrot.slane %v651, 7
      %v654 = vshll.u32 %v489, 16
      %v656 = vor.u32 %v653, %v654
      %v657 = vsel %vm505, %v649, %v656
      %v658 = vrot.slane %v653, 4
      %v660 = vshrl.u32 %v490, 16
      %v662 = vrot.slane %v660, 7
      %v663 = vshll.u32 %v490, 16
      %v665 = vor.u32 %v662, %v663
      %v666 = vrot.slane %v662, 4
      %v668 = vshrl.u32 %v491, 16
      %v670 = vrot.slane %v668, 7
      %v671 = vshll.u32 %v491, 16
      %v673 = vor.u32 %v670, %v671
      %v674 = vsel %vm505, %v666, %v673
      %v675 = vrot.slane %v670, 4
      %v677 = vshrl.u32 %v492, 16
      %v679 = vrot.slane %v677, 7
      %v680 = vshll.u32 %v492, 16
      %v682 = vor.u32 %v679, %v680
      %v683 = vrot.slane %v679, 4
      %v685 = vshrl.u32 %v493, 16
      %v687 = vrot.slane %v685, 7
      %v688 = vshll.u32 %v493, 16
      %v690 = vor.u32 %v687, %v688
      %v691 = vsel %vm505, %v683, %v690
      %v692 = vrot.slane %v687, 4
      %v694 = vshrl.u32 %v494, 16
      %v696 = vrot.slane %v694, 7
      %v697 = vshll.u32 %v494, 16
      %v699 = vor.u32 %v696, %v697
      %v700 = vrot.slane %v696, 4
      %v702 = vshrl.u32 %v495, 16
      %v704 = vrot.slane %v702, 7
      %v705 = vshll.u32 %v495, 16
      %v707 = vor.u32 %v704, %v705
      %v708 = vsel %vm505, %v700, %v707
      %v709 = vrot.slane %v704, 4
      %v711 = vshrl.u32 %v496, 16
      %v713 = vrot.slane %v711, 7
      %v714 = vshll.u32 %v496, 16
      %v716 = vor.u32 %v713, %v714
      %v717 = vrot.slane %v713, 4
      %v719 = vshrl.u32 %v497, 16
      %v721 = vrot.slane %v719, 7
      %v722 = vshll.u32 %v497, 16
      %v724 = vor.u32 %v721, %v722
      %v725 = vsel %vm505, %v717, %v724
      %v726 = vrot.slane %v721, 4
      %v728 = vshrl.u32 %v498, 16
      %v730 = vrot.slane %v728, 7
      %v731 = vshll.u32 %v498, 16
      %v733 = vor.u32 %v730, %v731
      %v734 = vrot.slane %v730, 4
      %v736 = vshrl.u32 %v499, 16
      %v738 = vrot.slane %v736, 7
      %v739 = vshll.u32 %v499, 16
      %v741 = vor.u32 %v738, %v739
      %v742 = vsel %vm505, %v734, %v741
      %v743 = vrot.slane %v738, 4
      %v745 = vshrl.u32 %v500, 16
      %v747 = vrot.slane %v745, 7
      %v748 = vshll.u32 %v500, 16
      %v750 = vor.u32 %v747, %v748
      %v751 = vrot.slane %v747, 4
      %v753 = vshrl.u32 %v501, 16
      %v755 = vrot.slane %v753, 7
      %v756 = vshll.u32 %v501, 16
      %v758 = vor.u32 %v755, %v756
      %v759 = vsel %vm505, %v751, %v758
      %v760 = vrot.slane %v755, 4
      %v762 = vshrl.u32 %v502, 16
      %v764 = vrot.slane %v762, 7
      %v765 = vshll.u32 %v502, 16
      %v767 = vor.u32 %v764, %v765
      %v768 = vrot.slane %v764, 4
      %v770 = vshrl.u32 %v503, 16
      %v772 = vrot.slane %v770, 7
      %v773 = vshll.u32 %v503, 16
      %v775 = vor.u32 %v772, %v773
      %v776 = vsel %vm505, %v768, %v775
      %v777 = vrot.slane %v772, 4
      %s826 = scalar_lea.vmem [#allocation2], 12
      %v827 = vld [vmem:[%s826] sm:$0xf]
      %v828 = vsel %vm321, %v512, %v827
      %829 = vst [vmem:[%s826] sm:$0xf] %v828
      %830 = vst.msk [vmem:[%s826 + $0x4] sm:$0xf] %vm254, %v521
      %v831 = vld [vmem:[%s826 + $0x8] sm:$0x1]
      %v832 = vsel %vm264, %v522, %v831
      %833 = vst [vmem:[%s826 + $0x8] sm:$0x1] %v832
      %v834 = vld [vmem:[%s826 + $0xc] sm:$0xf]
      %v835 = vsel %vm321, %v529, %v834
      %836 = vst [vmem:[%s826 + $0xc] sm:$0xf] %v835
      %837 = vst.msk [vmem:[%s826 + $0x10] sm:$0xf] %vm254, %v538
      %v838 = vld [vmem:[%s826 + $0x14] sm:$0x1]
      %v839 = vsel %vm264, %v539, %v838
      %840 = vst [vmem:[%s826 + $0x14] sm:$0x1] %v839
      %v841 = vld [vmem:[%s826 + $0x18] sm:$0xf]
      %v842 = vsel %vm321, %v546, %v841
      %843 = vst [vmem:[%s826 + $0x18] sm:$0xf] %v842
      %844 = vst.msk [vmem:[%s826 + $0x1c] sm:$0xf] %vm254, %v555
      %v845 = vld [vmem:[%s826 + $0x20] sm:$0x1]
      %v846 = vsel %vm264, %v556, %v845
      %847 = vst [vmem:[%s826 + $0x20] sm:$0x1] %v846
      %v848 = vld [vmem:[%s826 + $0x24] sm:$0xf]
      %v849 = vsel %vm321, %v563, %v848
      %850 = vst [vmem:[%s826 + $0x24] sm:$0xf] %v849
      %851 = vst.msk [vmem:[%s826 + $0x28] sm:$0xf] %vm254, %v572
      %v852 = vld [vmem:[%s826 + $0x2c] sm:$0x1]
      %v853 = vsel %vm264, %v573, %v852
      %854 = vst [vmem:[%s826 + $0x2c] sm:$0x1] %v853
      %v855 = vld [vmem:[%s826 + $0x30] sm:$0xf]
      %v856 = vsel %vm321, %v580, %v855
      %857 = vst [vmem:[%s826 + $0x30] sm:$0xf] %v856
      %858 = vst.msk [vmem:[%s826 + $0x34] sm:$0xf] %vm254, %v589
      %v859 = vld [vmem:[%s826 + $0x38] sm:$0x1]
      %v860 = vsel %vm264, %v590, %v859
      %861 = vst [vmem:[%s826 + $0x38] sm:$0x1] %v860
      %v862 = vld [vmem:[%s826 + $0x3c] sm:$0xf]
      %v863 = vsel %vm321, %v597, %v862
      %864 = vst [vmem:[%s826 + $0x3c] sm:$0xf] %v863
      %865 = vst.msk [vmem:[%s826 + $0x40] sm:$0xf] %vm254, %v606
      %v866 = vld [vmem:[%s826 + $0x44] sm:$0x1]
      %v867 = vsel %vm264, %v607, %v866
      %868 = vst [vmem:[%s826 + $0x44] sm:$0x1] %v867
      %v869 = vld [vmem:[%s826 + $0x48] sm:$0xf]
      %v870 = vsel %vm321, %v614, %v869
      %871 = vst [vmem:[%s826 + $0x48] sm:$0xf] %v870
      %872 = vst.msk [vmem:[%s826 + $0x4c] sm:$0xf] %vm254, %v623
      %v873 = vld [vmem:[%s826 + $0x50] sm:$0x1]
      %v874 = vsel %vm264, %v624, %v873
      %875 = vst [vmem:[%s826 + $0x50] sm:$0x1] %v874
      %v876 = vld [vmem:[%s826 + $0x54] sm:$0xf]
      %v877 = vsel %vm321, %v631, %v876
      %878 = vst [vmem:[%s826 + $0x54] sm:$0xf] %v877
      %879 = vst.msk [vmem:[%s826 + $0x58] sm:$0xf] %vm254, %v640
      %v880 = vld [vmem:[%s826 + $0x5c] sm:$0x1]
      %v881 = vsel %vm264, %v641, %v880
      %882 = vst [vmem:[%s826 + $0x5c] sm:$0x1] %v881
      %v883 = vld [vmem:[%s826 + $0x60] sm:$0xf]
      %v884 = vsel %vm321, %v648, %v883
      %885 = vst [vmem:[%s826 + $0x60] sm:$0xf] %v884
      %886 = vst.msk [vmem:[%s826 + $0x64] sm:$0xf] %vm254, %v657
      %v887 = vld [vmem:[%s826 + $0x68] sm:$0x1]
      %v888 = vsel %vm264, %v658, %v887
      %889 = vst [vmem:[%s826 + $0x68] sm:$0x1] %v888
      %v890 = vld [vmem:[%s826 + $0x6c] sm:$0xf]
      %v891 = vsel %vm321, %v665, %v890
      %892 = vst [vmem:[%s826 + $0x6c] sm:$0xf] %v891
      %893 = vst.msk [vmem:[%s826 + $0x70] sm:$0xf] %vm254, %v674
      %v894 = vld [vmem:[%s826 + $0x74] sm:$0x1]
      %v895 = vsel %vm264, %v675, %v894
      %896 = vst [vmem:[%s826 + $0x74] sm:$0x1] %v895
      %v897 = vld [vmem:[%s826 + $0x78] sm:$0xf]
      %v898 = vsel %vm321, %v682, %v897
      %899 = vst [vmem:[%s826 + $0x78] sm:$0xf] %v898
      %900 = vst.msk [vmem:[%s826 + $0x7c] sm:$0xf] %vm254, %v691
      %v901 = vld [vmem:[%s826 + $0x80] sm:$0x1]
      %v902 = vsel %vm264, %v692, %v901
      %903 = vst [vmem:[%s826 + $0x80] sm:$0x1] %v902
      %v904 = vld [vmem:[%s826 + $0x84] sm:$0xf]
      %v905 = vsel %vm321, %v699, %v904
      %906 = vst [vmem:[%s826 + $0x84] sm:$0xf] %v905
      %907 = vst.msk [vmem:[%s826 + $0x88] sm:$0xf] %vm254, %v708
      %v908 = vld [vmem:[%s826 + $0x8c] sm:$0x1]
      %v909 = vsel %vm264, %v709, %v908
      %910 = vst [vmem:[%s826 + $0x8c] sm:$0x1] %v909
      %v911 = vld [vmem:[%s826 + $0x90] sm:$0xf]
      %v912 = vsel %vm321, %v716, %v911
      %913 = vst [vmem:[%s826 + $0x90] sm:$0xf] %v912
      %914 = vst.msk [vmem:[%s826 + $0x94] sm:$0xf] %vm254, %v725
      %v915 = vld [vmem:[%s826 + $0x98] sm:$0x1]
      %v916 = vsel %vm264, %v726, %v915
      %917 = vst [vmem:[%s826 + $0x98] sm:$0x1] %v916
      %v918 = vld [vmem:[%s826 + $0x9c] sm:$0xf]
      %v919 = vsel %vm321, %v733, %v918
      %920 = vst [vmem:[%s826 + $0x9c] sm:$0xf] %v919
      %921 = vst.msk [vmem:[%s826 + $0xa0] sm:$0xf] %vm254, %v742
      %v922 = vld [vmem:[%s826 + $0xa4] sm:$0x1]
      %v923 = vsel %vm264, %v743, %v922
      %924 = vst [vmem:[%s826 + $0xa4] sm:$0x1] %v923
      %v925 = vld [vmem:[%s826 + $0xa8] sm:$0xf]
      %v926 = vsel %vm321, %v750, %v925
      %927 = vst [vmem:[%s826 + $0xa8] sm:$0xf] %v926
      %928 = vst.msk [vmem:[%s826 + $0xac] sm:$0xf] %vm254, %v759
      %v929 = vld [vmem:[%s826 + $0xb0] sm:$0x1]
      %v930 = vsel %vm264, %v760, %v929
      %931 = vst [vmem:[%s826 + $0xb0] sm:$0x1] %v930
      %v932 = vld [vmem:[%s826 + $0xb4] sm:$0xf]
      %v933 = vsel %vm321, %v767, %v932
      %934 = vst [vmem:[%s826 + $0xb4] sm:$0xf] %v933
      %935 = vst.msk [vmem:[%s826 + $0xb8] sm:$0xf] %vm254, %v776
      %v936 = vld [vmem:[%s826 + $0xbc] sm:$0x1]
      %v937 = vsel %vm264, %v777, %v936
      %938 = vst [vmem:[%s826 + $0xbc] sm:$0x1] %v937
      %v939 = vld [vmem:[#allocation2] sm:$0xf]
      %v940 = vld [vmem:[#allocation2 + $0x4] sm:$0xf]
      %v941 = vld [vmem:[#allocation2 + $0xc] sm:$0xf]
      %v942 = vld [vmem:[#allocation2 + $0x10] sm:$0xf]
      %v943 = vld [vmem:[#allocation2 + $0x18] sm:$0xf]
      %v944 = vld [vmem:[#allocation2 + $0x1c] sm:$0xf]
      %v945 = vld [vmem:[#allocation2 + $0x24] sm:$0xf]
      %v946 = vld [vmem:[#allocation2 + $0x28] sm:$0xf]
      %v947 = vld [vmem:[#allocation2 + $0x30] sm:$0xf]
      %v948 = vld [vmem:[#allocation2 + $0x34] sm:$0xf]
      %v949 = vld [vmem:[#allocation2 + $0x3c] sm:$0xf]
      %v950 = vld [vmem:[#allocation2 + $0x40] sm:$0xf]
      %v951 = vld [vmem:[#allocation2 + $0x48] sm:$0xf]
      %v952 = vld [vmem:[#allocation2 + $0x4c] sm:$0xf]
      %v953 = vld [vmem:[#allocation2 + $0x54] sm:$0xf]
      %v954 = vld [vmem:[#allocation2 + $0x58] sm:$0xf]
      %v955 = vld [vmem:[#allocation2 + $0x60] sm:$0xf]
      %v956 = vld [vmem:[#allocation2 + $0x64] sm:$0xf]
      %v957 = vld [vmem:[#allocation2 + $0x6c] sm:$0xf]
      %v958 = vld [vmem:[#allocation2 + $0x70] sm:$0xf]
      %v959 = vld [vmem:[#allocation2 + $0x78] sm:$0xf]
      %v960 = vld [vmem:[#allocation2 + $0x7c] sm:$0xf]
      %v961 = vld [vmem:[#allocation2 + $0x84] sm:$0xf]
      %v962 = vld [vmem:[#allocation2 + $0x88] sm:$0xf]
      %v963 = vld [vmem:[#allocation2 + $0x90] sm:$0xf]
      %v964 = vld [vmem:[#allocation2 + $0x94] sm:$0xf]
      %v965 = vld [vmem:[#allocation2 + $0x9c] sm:$0xf]
      %v966 = vld [vmem:[#allocation2 + $0xa0] sm:$0xf]
      %v967 = vld [vmem:[#allocation2 + $0xa8] sm:$0xf]
      %v968 = vld [vmem:[#allocation2 + $0xac] sm:$0xf]
      %v969 = vld [vmem:[#allocation2 + $0xb4] sm:$0xf]
      %v970 = vld [vmem:[#allocation2 + $0xb8] sm:$0xf]
      %v1003 = vunpack.c.l.b16 %v939
      %v1004 = vunpack.c.l.b16 %v940
      %v1005 = vunpack.c.l.b16 %v941
      %v1006 = vunpack.c.l.b16 %v942
      %v1007 = vunpack.c.l.b16 %v943
      %v1008 = vunpack.c.l.b16 %v944
      %v1009 = vunpack.c.l.b16 %v945
      %v1010 = vunpack.c.l.b16 %v946
      %v1011 = vunpack.c.l.b16 %v947
      %v1012 = vunpack.c.l.b16 %v948
      %v1013 = vunpack.c.l.b16 %v949
      %v1014 = vunpack.c.l.b16 %v950
      %v1015 = vunpack.c.l.b16 %v951
      %v1016 = vunpack.c.l.b16 %v952
      %v1017 = vunpack.c.l.b16 %v953
      %v1018 = vunpack.c.l.b16 %v954
      %v1019 = vunpack.c.l.b16 %v955
      %v1020 = vunpack.c.l.b16 %v956
      %v1021 = vunpack.c.l.b16 %v957
      %v1022 = vunpack.c.l.b16 %v958
      %v1023 = vunpack.c.l.b16 %v959
      %v1024 = vunpack.c.l.b16 %v960
      %v1025 = vunpack.c.l.b16 %v961
      %v1026 = vunpack.c.l.b16 %v962
      %v1027 = vunpack.c.l.b16 %v963
      %v1028 = vunpack.c.l.b16 %v964
      %v1029 = vunpack.c.l.b16 %v965
      %v1030 = vunpack.c.l.b16 %v966
      %v1031 = vunpack.c.l.b16 %v967
      %v1032 = vunpack.c.l.b16 %v968
      %v1033 = vunpack.c.l.b16 %v969
      %v1034 = vunpack.c.l.b16 %v970
      %v1035 = vpack.c.b16 %v1004, %v1003
      %v1036 = vpack.c.b16 %v1006, %v1005
      %v1037 = vpack.c.b16 %v1008, %v1007
      %v1038 = vpack.c.b16 %v1010, %v1009
      %v1039 = vpack.c.b16 %v1012, %v1011
      %v1040 = vpack.c.b16 %v1014, %v1013
      %v1041 = vpack.c.b16 %v1016, %v1015
      %v1042 = vpack.c.b16 %v1018, %v1017
      %v1043 = vpack.c.b16 %v1020, %v1019
      %v1044 = vpack.c.b16 %v1022, %v1021
      %v1045 = vpack.c.b16 %v1024, %v1023
      %v1046 = vpack.c.b16 %v1026, %v1025
      %v1047 = vpack.c.b16 %v1028, %v1027
      %v1048 = vpack.c.b16 %v1030, %v1029
      %v1049 = vpack.c.b16 %v1032, %v1031
      %v1050 = vpack.c.b16 %v1034, %v1033
      %vm1067 = vcmask 31744
      %1068 = vst.msk [vmem:[#allocation3] sm:$0xff] %vm1067, %v1035
      %1069 = vst.msk [vmem:[#allocation3 + $0x8] sm:$0xff] %vm1067, %v1036
      %1070 = vst.msk [vmem:[#allocation3 + $0x10] sm:$0xff] %vm1067, %v1037
      %1071 = vst.msk [vmem:[#allocation3 + $0x18] sm:$0xff] %vm1067, %v1038
      %1072 = vst.msk [vmem:[#allocation3 + $0x20] sm:$0xff] %vm1067, %v1039
      %1073 = vst.msk [vmem:[#allocation3 + $0x28] sm:$0xff] %vm1067, %v1040
      %1074 = vst.msk [vmem:[#allocation3 + $0x30] sm:$0xff] %vm1067, %v1041
      %1075 = vst.msk [vmem:[#allocation3 + $0x38] sm:$0xff] %vm1067, %v1042
      %1076 = vst.msk [vmem:[#allocation3 + $0x40] sm:$0xff] %vm1067, %v1043
      %1077 = vst.msk [vmem:[#allocation3 + $0x48] sm:$0xff] %vm1067, %v1044
      %1078 = vst.msk [vmem:[#allocation3 + $0x50] sm:$0xff] %vm1067, %v1045
      %1079 = vst.msk [vmem:[#allocation3 + $0x58] sm:$0xff] %vm1067, %v1046
      %1080 = vst.msk [vmem:[#allocation3 + $0x60] sm:$0xff] %vm1067, %v1047
      %1081 = vst.msk [vmem:[#allocation3 + $0x68] sm:$0xff] %vm1067, %v1048
      %1082 = vst.msk [vmem:[#allocation3 + $0x70] sm:$0xff] %vm1067, %v1049
      %1083 = vst.msk [vmem:[#allocation3 + $0x78] sm:$0xff] %vm1067, %v1050
      %v1084 = vld [vmem:[#allocation2] sm:$0xf]
      %v1085 = vld [vmem:[#allocation2 + $0x4] sm:$0xf]
      %v1086 = vld [vmem:[#allocation2 + $0x8] sm:$0x1]
      %v1087 = vld [vmem:[#allocation2 + $0xc] sm:$0xf]
      %v1088 = vld [vmem:[#allocation2 + $0x10] sm:$0xf]
      %v1089 = vld [vmem:[#allocation2 + $0x14] sm:$0x1]
      %v1090 = vld [vmem:[#allocation2 + $0x18] sm:$0xf]
      %v1091 = vld [vmem:[#allocation2 + $0x1c] sm:$0xf]
      %v1092 = vld [vmem:[#allocation2 + $0x20] sm:$0x1]
      %v1093 = vld [vmem:[#allocation2 + $0x24] sm:$0xf]
      %v1094 = vld [vmem:[#allocation2 + $0x28] sm:$0xf]
      %v1095 = vld [vmem:[#allocation2 + $0x2c] sm:$0x1]
      %v1096 = vld [vmem:[#allocation2 + $0x30] sm:$0xf]
      %v1097 = vld [vmem:[#allocation2 + $0x34] sm:$0xf]
      %v1098 = vld [vmem:[#allocation2 + $0x38] sm:$0x1]
      %v1099 = vld [vmem:[#allocation2 + $0x3c] sm:$0xf]
      %v1100 = vld [vmem:[#allocation2 + $0x40] sm:$0xf]
      %v1101 = vld [vmem:[#allocation2 + $0x44] sm:$0x1]
      %v1102 = vld [vmem:[#allocation2 + $0x48] sm:$0xf]
      %v1103 = vld [vmem:[#allocation2 + $0x4c] sm:$0xf]
      %v1104 = vld [vmem:[#allocation2 + $0x50] sm:$0x1]
      %v1105 = vld [vmem:[#allocation2 + $0x54] sm:$0xf]
      %v1106 = vld [vmem:[#allocation2 + $0x58] sm:$0xf]
      %v1107 = vld [vmem:[#allocation2 + $0x5c] sm:$0x1]
      %v1108 = vld [vmem:[#allocation2 + $0x60] sm:$0xf]
      %v1109 = vld [vmem:[#allocation2 + $0x64] sm:$0xf]
      %v1110 = vld [vmem:[#allocation2 + $0x68] sm:$0x1]
      %v1111 = vld [vmem:[#allocation2 + $0x6c] sm:$0xf]
      %v1112 = vld [vmem:[#allocation2 + $0x70] sm:$0xf]
      %v1113 = vld [vmem:[#allocation2 + $0x74] sm:$0x1]
      %v1114 = vld [vmem:[#allocation2 + $0x78] sm:$0xf]
      %v1115 = vld [vmem:[#allocation2 + $0x7c] sm:$0xf]
      %v1116 = vld [vmem:[#allocation2 + $0x80] sm:$0x1]
      %v1117 = vld [vmem:[#allocation2 + $0x84] sm:$0xf]
      %v1118 = vld [vmem:[#allocation2 + $0x88] sm:$0xf]
      %v1119 = vld [vmem:[#allocation2 + $0x8c] sm:$0x1]
      %v1120 = vld [vmem:[#allocation2 + $0x90] sm:$0xf]
      %v1121 = vld [vmem:[#allocation2 + $0x94] sm:$0xf]
      %v1122 = vld [vmem:[#allocation2 + $0x98] sm:$0x1]
      %v1123 = vld [vmem:[#allocation2 + $0x9c] sm:$0xf]
      %v1124 = vld [vmem:[#allocation2 + $0xa0] sm:$0xf]
      %v1125 = vld [vmem:[#allocation2 + $0xa4] sm:$0x1]
      %v1126 = vld [vmem:[#allocation2 + $0xa8] sm:$0xf]
      %v1127 = vld [vmem:[#allocation2 + $0xac] sm:$0xf]
      %v1128 = vld [vmem:[#allocation2 + $0xb0] sm:$0x1]
      %v1129 = vld [vmem:[#allocation2 + $0xb4] sm:$0xf]
      %v1130 = vld [vmem:[#allocation2 + $0xb8] sm:$0xf]
      %v1131 = vld [vmem:[#allocation2 + $0xbc] sm:$0x1]
      %vm1132 = vsmask.f32 3328
      %vm1133 = vsmask.f32 7440
      %vm1134 = vmor %vm1132, %vm1133
      %v1136 = vshrl.u32 %v1084, 16
      %v1138 = vrot.slane %v1136, 4
      %v1139 = vshll.u32 %v1084, 16
      %v1141 = vrot.slane %v1139, 5
      %v1142 = vor.u32 %v1138, %v1141
      %v1143 = vrot.slane %v1142, 4
      %v1145 = vshll.u32 %v1085, 16
      %v1147 = vrot.slane %v1145, 5
      %v1148 = vsel %vm1134, %v1143, %v1147
      %v1149 = vshrl.u32 %v1085, 16
      %v1151 = vrot.slane %v1149, 4
      %v1152 = vor.u32 %v1151, %v1147
      %v1153 = vrot.slane %v1152, 4
      %v1155 = vshll.u32 %v1086, 16
      %v1157 = vrot.slane %v1155, 5
      %v1158 = vsel %vm1134, %v1153, %v1157
      %v1160 = vshrl.u32 %v1087, 16
      %v1162 = vrot.slane %v1160, 4
      %v1163 = vshll.u32 %v1087, 16
      %v1165 = vrot.slane %v1163, 5
      %v1166 = vor.u32 %v1162, %v1165
      %v1167 = vrot.slane %v1166, 4
      %v1169 = vshll.u32 %v1088, 16
      %v1171 = vrot.slane %v1169, 5
      %v1172 = vsel %vm1134, %v1167, %v1171
      %v1173 = vshrl.u32 %v1088, 16
      %v1175 = vrot.slane %v1173, 4
      %v1176 = vor.u32 %v1175, %v1171
      %v1177 = vrot.slane %v1176, 4
      %v1179 = vshll.u32 %v1089, 16
      %v1181 = vrot.slane %v1179, 5
      %v1182 = vsel %vm1134, %v1177, %v1181
      %v1184 = vshrl.u32 %v1090, 16
      %v1186 = vrot.slane %v1184, 4
      %v1187 = vshll.u32 %v1090, 16
      %v1189 = vrot.slane %v1187, 5
      %v1190 = vor.u32 %v1186, %v1189
      %v1191 = vrot.slane %v1190, 4
      %v1193 = vshll.u32 %v1091, 16
      %v1195 = vrot.slane %v1193, 5
      %v1196 = vsel %vm1134, %v1191, %v1195
      %v1197 = vshrl.u32 %v1091, 16
      %v1199 = vrot.slane %v1197, 4
      %v1200 = vor.u32 %v1199, %v1195
      %v1201 = vrot.slane %v1200, 4
      %v1203 = vshll.u32 %v1092, 16
      %v1205 = vrot.slane %v1203, 5
      %v1206 = vsel %vm1134, %v1201, %v1205
      %v1208 = vshrl.u32 %v1093, 16
      %v1210 = vrot.slane %v1208, 4
      %v1211 = vshll.u32 %v1093, 16
      %v1213 = vrot.slane %v1211, 5
      %v1214 = vor.u32 %v1210, %v1213
      %v1215 = vrot.slane %v1214, 4
      %v1217 = vshll.u32 %v1094, 16
      %v1219 = vrot.slane %v1217, 5
      %v1220 = vsel %vm1134, %v1215, %v1219
      %v1221 = vshrl.u32 %v1094, 16
      %v1223 = vrot.slane %v1221, 4
      %v1224 = vor.u32 %v1223, %v1219
      %v1225 = vrot.slane %v1224, 4
      %v1227 = vshll.u32 %v1095, 16
      %v1229 = vrot.slane %v1227, 5
      %v1230 = vsel %vm1134, %v1225, %v1229
      %v1232 = vshrl.u32 %v1096, 16
      %v1234 = vrot.slane %v1232, 4
      %v1235 = vshll.u32 %v1096, 16
      %v1237 = vrot.slane %v1235, 5
      %v1238 = vor.u32 %v1234, %v1237
      %v1239 = vrot.slane %v1238, 4
      %v1241 = vshll.u32 %v1097, 16
      %v1243 = vrot.slane %v1241, 5
      %v1244 = vsel %vm1134, %v1239, %v1243
      %v1245 = vshrl.u32 %v1097, 16
      %v1247 = vrot.slane %v1245, 4
      %v1248 = vor.u32 %v1247, %v1243
      %v1249 = vrot.slane %v1248, 4
      %v1251 = vshll.u32 %v1098, 16
      %v1253 = vrot.slane %v1251, 5
      %v1254 = vsel %vm1134, %v1249, %v1253
      %v1256 = vshrl.u32 %v1099, 16
      %v1258 = vrot.slane %v1256, 4
      %v1259 = vshll.u32 %v1099, 16
      %v1261 = vrot.slane %v1259, 5
      %v1262 = vor.u32 %v1258, %v1261
      %v1263 = vrot.slane %v1262, 4
      %v1265 = vshll.u32 %v1100, 16
      %v1267 = vrot.slane %v1265, 5
      %v1268 = vsel %vm1134, %v1263, %v1267
      %v1269 = vshrl.u32 %v1100, 16
      %v1271 = vrot.slane %v1269, 4
      %v1272 = vor.u32 %v1271, %v1267
      %v1273 = vrot.slane %v1272, 4
      %v1275 = vshll.u32 %v1101, 16
      %v1277 = vrot.slane %v1275, 5
      %v1278 = vsel %vm1134, %v1273, %v1277
      %v1280 = vshrl.u32 %v1102, 16
      %v1282 = vrot.slane %v1280, 4
      %v1283 = vshll.u32 %v1102, 16
      %v1285 = vrot.slane %v1283, 5
      %v1286 = vor.u32 %v1282, %v1285
      %v1287 = vrot.slane %v1286, 4
      %v1289 = vshll.u32 %v1103, 16
      %v1291 = vrot.slane %v1289, 5
      %v1292 = vsel %vm1134, %v1287, %v1291
      %v1293 = vshrl.u32 %v1103, 16
      %v1295 = vrot.slane %v1293, 4
      %v1296 = vor.u32 %v1295, %v1291
      %v1297 = vrot.slane %v1296, 4
      %v1299 = vshll.u32 %v1104, 16
      %v1301 = vrot.slane %v1299, 5
      %v1302 = vsel %vm1134, %v1297, %v1301
      %v1304 = vshrl.u32 %v1105, 16
      %v1306 = vrot.slane %v1304, 4
      %v1307 = vshll.u32 %v1105, 16
      %v1309 = vrot.slane %v1307, 5
      %v1310 = vor.u32 %v1306, %v1309
      %v1311 = vrot.slane %v1310, 4
      %v1313 = vshll.u32 %v1106, 16
      %v1315 = vrot.slane %v1313, 5
      %v1316 = vsel %vm1134, %v1311, %v1315
      %v1317 = vshrl.u32 %v1106, 16
      %v1319 = vrot.slane %v1317, 4
      %v1320 = vor.u32 %v1319, %v1315
      %v1321 = vrot.slane %v1320, 4
      %v1323 = vshll.u32 %v1107, 16
      %v1325 = vrot.slane %v1323, 5
      %v1326 = vsel %vm1134, %v1321, %v1325
      %v1328 = vshrl.u32 %v1108, 16
      %v1330 = vrot.slane %v1328, 4
      %v1331 = vshll.u32 %v1108, 16
      %v1333 = vrot.slane %v1331, 5
      %v1334 = vor.u32 %v1330, %v1333
      %v1335 = vrot.slane %v1334, 4
      %v1337 = vshll.u32 %v1109, 16
      %v1339 = vrot.slane %v1337, 5
      %v1340 = vsel %vm1134, %v1335, %v1339
      %v1341 = vshrl.u32 %v1109, 16
      %v1343 = vrot.slane %v1341, 4
      %v1344 = vor.u32 %v1343, %v1339
      %v1345 = vrot.slane %v1344, 4
      %v1347 = vshll.u32 %v1110, 16
      %v1349 = vrot.slane %v1347, 5
      %v1350 = vsel %vm1134, %v1345, %v1349
      %v1352 = vshrl.u32 %v1111, 16
      %v1354 = vrot.slane %v1352, 4
      %v1355 = vshll.u32 %v1111, 16
      %v1357 = vrot.slane %v1355, 5
      %v1358 = vor.u32 %v1354, %v1357
      %v1359 = vrot.slane %v1358, 4
      %v1361 = vshll.u32 %v1112, 16
      %v1363 = vrot.slane %v1361, 5
      %v1364 = vsel %vm1134, %v1359, %v1363
      %v1365 = vshrl.u32 %v1112, 16
      %v1367 = vrot.slane %v1365, 4
      %v1368 = vor.u32 %v1367, %v1363
      %v1369 = vrot.slane %v1368, 4
      %v1371 = vshll.u32 %v1113, 16
      %v1373 = vrot.slane %v1371, 5
      %v1374 = vsel %vm1134, %v1369, %v1373
      %v1376 = vshrl.u32 %v1114, 16
      %v1378 = vrot.slane %v1376, 4
      %v1379 = vshll.u32 %v1114, 16
      %v1381 = vrot.slane %v1379, 5
      %v1382 = vor.u32 %v1378, %v1381
      %v1383 = vrot.slane %v1382, 4
      %v1385 = vshll.u32 %v1115, 16
      %v1387 = vrot.slane %v1385, 5
      %v1388 = vsel %vm1134, %v1383, %v1387
      %v1389 = vshrl.u32 %v1115, 16
      %v1391 = vrot.slane %v1389, 4
      %v1392 = vor.u32 %v1391, %v1387
      %v1393 = vrot.slane %v1392, 4
      %v1395 = vshll.u32 %v1116, 16
      %v1397 = vrot.slane %v1395, 5
      %v1398 = vsel %vm1134, %v1393, %v1397
      %v1400 = vshrl.u32 %v1117, 16
      %v1402 = vrot.slane %v1400, 4
      %v1403 = vshll.u32 %v1117, 16
      %v1405 = vrot.slane %v1403, 5
      %v1406 = vor.u32 %v1402, %v1405
      %v1407 = vrot.slane %v1406, 4
      %v1409 = vshll.u32 %v1118, 16
      %v1411 = vrot.slane %v1409, 5
      %v1412 = vsel %vm1134, %v1407, %v1411
      %v1413 = vshrl.u32 %v1118, 16
      %v1415 = vrot.slane %v1413, 4
      %v1416 = vor.u32 %v1415, %v1411
      %v1417 = vrot.slane %v1416, 4
      %v1419 = vshll.u32 %v1119, 16
      %v1421 = vrot.slane %v1419, 5
      %v1422 = vsel %vm1134, %v1417, %v1421
      %v1424 = vshrl.u32 %v1120, 16
      %v1426 = vrot.slane %v1424, 4
      %v1427 = vshll.u32 %v1120, 16
      %v1429 = vrot.slane %v1427, 5
      %v1430 = vor.u32 %v1426, %v1429
      %v1431 = vrot.slane %v1430, 4
      %v1433 = vshll.u32 %v1121, 16
      %v1435 = vrot.slane %v1433, 5
      %v1436 = vsel %vm1134, %v1431, %v1435
      %v1437 = vshrl.u32 %v1121, 16
      %v1439 = vrot.slane %v1437, 4
      %v1440 = vor.u32 %v1439, %v1435
      %v1441 = vrot.slane %v1440, 4
      %v1443 = vshll.u32 %v1122, 16
      %v1445 = vrot.slane %v1443, 5
      %v1446 = vsel %vm1134, %v1441, %v1445
      %v1448 = vshrl.u32 %v1123, 16
      %v1450 = vrot.slane %v1448, 4
      %v1451 = vshll.u32 %v1123, 16
      %v1453 = vrot.slane %v1451, 5
      %v1454 = vor.u32 %v1450, %v1453
      %v1455 = vrot.slane %v1454, 4
      %v1457 = vshll.u32 %v1124, 16
      %v1459 = vrot.slane %v1457, 5
      %v1460 = vsel %vm1134, %v1455, %v1459
      %v1461 = vshrl.u32 %v1124, 16
      %v1463 = vrot.slane %v1461, 4
      %v1464 = vor.u32 %v1463, %v1459
      %v1465 = vrot.slane %v1464, 4
      %v1467 = vshll.u32 %v1125, 16
      %v1469 = vrot.slane %v1467, 5
      %v1470 = vsel %vm1134, %v1465, %v1469
      %v1472 = vshrl.u32 %v1126, 16
      %v1474 = vrot.slane %v1472, 4
      %v1475 = vshll.u32 %v1126, 16
      %v1477 = vrot.slane %v1475, 5
      %v1478 = vor.u32 %v1474, %v1477
      %v1479 = vrot.slane %v1478, 4
      %v1481 = vshll.u32 %v1127, 16
      %v1483 = vrot.slane %v1481, 5
      %v1484 = vsel %vm1134, %v1479, %v1483
      %v1485 = vshrl.u32 %v1127, 16
      %v1487 = vrot.slane %v1485, 4
      %v1488 = vor.u32 %v1487, %v1483
      %v1489 = vrot.slane %v1488, 4
      %v1491 = vshll.u32 %v1128, 16
      %v1493 = vrot.slane %v1491, 5
      %v1494 = vsel %vm1134, %v1489, %v1493
      %v1496 = vshrl.u32 %v1129, 16
      %v1498 = vrot.slane %v1496, 4
      %v1499 = vshll.u32 %v1129, 16
      %v1501 = vrot.slane %v1499, 5
      %v1502 = vor.u32 %v1498, %v1501
      %v1503 = vrot.slane %v1502, 4
      %v1505 = vshll.u32 %v1130, 16
      %v1507 = vrot.slane %v1505, 5
      %v1508 = vsel %vm1134, %v1503, %v1507
      %v1509 = vshrl.u32 %v1130, 16
      %v1511 = vrot.slane %v1509, 4
      %v1512 = vor.u32 %v1511, %v1507
      %v1513 = vrot.slane %v1512, 4
      %v1515 = vshll.u32 %v1131, 16
      %v1517 = vrot.slane %v1515, 5
      %v1518 = vsel %vm1134, %v1513, %v1517
      %v1519 = vunpack.c.l.b16 %v1148
      %v1520 = vunpack.c.l.b16 %v1158
      %v1521 = vunpack.c.l.b16 %v1172
      %v1522 = vunpack.c.l.b16 %v1182
      %v1523 = vunpack.c.l.b16 %v1196
      %v1524 = vunpack.c.l.b16 %v1206
      %v1525 = vunpack.c.l.b16 %v1220
      %v1526 = vunpack.c.l.b16 %v1230
      %v1527 = vunpack.c.l.b16 %v1244
      %v1528 = vunpack.c.l.b16 %v1254
      %v1529 = vunpack.c.l.b16 %v1268
      %v1530 = vunpack.c.l.b16 %v1278
      %v1531 = vunpack.c.l.b16 %v1292
      %v1532 = vunpack.c.l.b16 %v1302
      %v1533 = vunpack.c.l.b16 %v1316
      %v1534 = vunpack.c.l.b16 %v1326
      %v1535 = vunpack.c.l.b16 %v1340
      %v1536 = vunpack.c.l.b16 %v1350
      %v1537 = vunpack.c.l.b16 %v1364
      %v1538 = vunpack.c.l.b16 %v1374
      %v1539 = vunpack.c.l.b16 %v1388
      %v1540 = vunpack.c.l.b16 %v1398
      %v1541 = vunpack.c.l.b16 %v1412
      %v1542 = vunpack.c.l.b16 %v1422
      %v1543 = vunpack.c.l.b16 %v1436
      %v1544 = vunpack.c.l.b16 %v1446
      %v1545 = vunpack.c.l.b16 %v1460
      %v1546 = vunpack.c.l.b16 %v1470
      %v1547 = vunpack.c.l.b16 %v1484
      %v1548 = vunpack.c.l.b16 %v1494
      %v1549 = vunpack.c.l.b16 %v1508
      %v1550 = vunpack.c.l.b16 %v1518
      %v1551 = vpack.c.b16 %v1520, %v1519
      %v1552 = vpack.c.b16 %v1522, %v1521
      %v1553 = vpack.c.b16 %v1524, %v1523
      %v1554 = vpack.c.b16 %v1526, %v1525
      %v1555 = vpack.c.b16 %v1528, %v1527
      %v1556 = vpack.c.b16 %v1530, %v1529
      %v1557 = vpack.c.b16 %v1532, %v1531
      %v1558 = vpack.c.b16 %v1534, %v1533
      %v1559 = vpack.c.b16 %v1536, %v1535
      %v1560 = vpack.c.b16 %v1538, %v1537
      %v1561 = vpack.c.b16 %v1540, %v1539
      %v1562 = vpack.c.b16 %v1542, %v1541
      %v1563 = vpack.c.b16 %v1544, %v1543
      %v1564 = vpack.c.b16 %v1546, %v1545
      %v1565 = vpack.c.b16 %v1548, %v1547
      %v1566 = vpack.c.b16 %v1550, %v1549
      %1567 = vrot.lane.b32.xlu0 %v1551, 4
      %v1568 = vpop.permute.xlu0 %1567
      %1569 = vrot.lane.b32.xlu0 %v1552, 4
      %v1570 = vpop.permute.xlu0 %1569
      %1571 = vrot.lane.b32.xlu0 %v1553, 4
      %v1572 = vpop.permute.xlu0 %1571
      %1573 = vrot.lane.b32.xlu0 %v1554, 4
      %v1574 = vpop.permute.xlu0 %1573
      %1575 = vrot.lane.b32.xlu0 %v1555, 4
      %v1576 = vpop.permute.xlu0 %1575
      %1577 = vrot.lane.b32.xlu0 %v1556, 4
      %v1578 = vpop.permute.xlu0 %1577
      %1579 = vrot.lane.b32.xlu0 %v1557, 4
      %v1580 = vpop.permute.xlu0 %1579
      %1581 = vrot.lane.b32.xlu0 %v1558, 4
      %v1582 = vpop.permute.xlu0 %1581
      %1583 = vrot.lane.b32.xlu0 %v1559, 4
      %v1584 = vpop.permute.xlu0 %1583
      %1585 = vrot.lane.b32.xlu0 %v1560, 4
      %v1586 = vpop.permute.xlu0 %1585
      %1587 = vrot.lane.b32.xlu0 %v1561, 4
      %v1588 = vpop.permute.xlu0 %1587
      %1589 = vrot.lane.b32.xlu0 %v1562, 4
      %v1590 = vpop.permute.xlu0 %1589
      %1591 = vrot.lane.b32.xlu0 %v1563, 4
      %v1592 = vpop.permute.xlu0 %1591
      %1593 = vrot.lane.b32.xlu0 %v1564, 4
      %v1594 = vpop.permute.xlu0 %1593
      %1595 = vrot.lane.b32.xlu0 %v1565, 4
      %v1596 = vpop.permute.xlu0 %1595
      %1597 = vrot.lane.b32.xlu0 %v1566, 4
      %v1598 = vpop.permute.xlu0 %1597
      %vm1615 = vcmask 64544
      %1616 = vst.msk [vmem:[#allocation3] sm:$0xff] %vm1615, %v1568
      %1617 = vst.msk [vmem:[#allocation3 + $0x8] sm:$0xff] %vm1615, %v1570
      %1618 = vst.msk [vmem:[#allocation3 + $0x10] sm:$0xff] %vm1615, %v1572
      %1619 = vst.msk [vmem:[#allocation3 + $0x18] sm:$0xff] %vm1615, %v1574
      %1620 = vst.msk [vmem:[#allocation3 + $0x20] sm:$0xff] %vm1615, %v1576
      %1621 = vst.msk [vmem:[#allocation3 + $0x28] sm:$0xff] %vm1615, %v1578
      %1622 = vst.msk [vmem:[#allocation3 + $0x30] sm:$0xff] %vm1615, %v1580
      %1623 = vst.msk [vmem:[#allocation3 + $0x38] sm:$0xff] %vm1615, %v1582
      %1624 = vst.msk [vmem:[#allocation3 + $0x40] sm:$0xff] %vm1615, %v1584
      %1625 = vst.msk [vmem:[#allocation3 + $0x48] sm:$0xff] %vm1615, %v1586
      %1626 = vst.msk [vmem:[#allocation3 + $0x50] sm:$0xff] %vm1615, %v1588
      %1627 = vst.msk [vmem:[#allocation3 + $0x58] sm:$0xff] %vm1615, %v1590
      %1628 = vst.msk [vmem:[#allocation3 + $0x60] sm:$0xff] %vm1615, %v1592
      %1629 = vst.msk [vmem:[#allocation3 + $0x68] sm:$0xff] %vm1615, %v1594
      %1630 = vst.msk [vmem:[#allocation3 + $0x70] sm:$0xff] %vm1615, %v1596
      %1631 = vst.msk [vmem:[#allocation3 + $0x78] sm:$0xff] %vm1615, %v1598
      %v1632 = vld [vmem:[#allocation2] sm:$0xe]
      %v1633 = vld [vmem:[#allocation2 + $0x4] sm:$0xf]
      %v1634 = vld [vmem:[#allocation2 + $0x8] sm:$0x1]
      %v1635 = vld [vmem:[#allocation2 + $0xc] sm:$0xe]
      %v1636 = vld [vmem:[#allocation2 + $0x10] sm:$0xf]
      %v1637 = vld [vmem:[#allocation2 + $0x14] sm:$0x1]
      %v1638 = vld [vmem:[#allocation2 + $0x18] sm:$0xe]
      %v1639 = vld [vmem:[#allocation2 + $0x1c] sm:$0xf]
      %v1640 = vld [vmem:[#allocation2 + $0x20] sm:$0x1]
      %v1641 = vld [vmem:[#allocation2 + $0x24] sm:$0xe]
      %v1642 = vld [vmem:[#allocation2 + $0x28] sm:$0xf]
      %v1643 = vld [vmem:[#allocation2 + $0x2c] sm:$0x1]
      %v1644 = vld [vmem:[#allocation2 + $0x30] sm:$0xe]
      %v1645 = vld [vmem:[#allocation2 + $0x34] sm:$0xf]
      %v1646 = vld [vmem:[#allocation2 + $0x38] sm:$0x1]
      %v1647 = vld [vmem:[#allocation2 + $0x3c] sm:$0xe]
      %v1648 = vld [vmem:[#allocation2 + $0x40] sm:$0xf]
      %v1649 = vld [vmem:[#allocation2 + $0x44] sm:$0x1]
      %v1650 = vld [vmem:[#allocation2 + $0x48] sm:$0xe]
      %v1651 = vld [vmem:[#allocation2 + $0x4c] sm:$0xf]
      %v1652 = vld [vmem:[#allocation2 + $0x50] sm:$0x1]
      %v1653 = vld [vmem:[#allocation2 + $0x54] sm:$0xe]
      %v1654 = vld [vmem:[#allocation2 + $0x58] sm:$0xf]
      %v1655 = vld [vmem:[#allocation2 + $0x5c] sm:$0x1]
      %v1656 = vld [vmem:[#allocation2 + $0x60] sm:$0xe]
      %v1657 = vld [vmem:[#allocation2 + $0x64] sm:$0xf]
      %v1658 = vld [vmem:[#allocation2 + $0x68] sm:$0x1]
      %v1659 = vld [vmem:[#allocation2 + $0x6c] sm:$0xe]
      %v1660 = vld [vmem:[#allocation2 + $0x70] sm:$0xf]
      %v1661 = vld [vmem:[#allocation2 + $0x74] sm:$0x1]
      %v1662 = vld [vmem:[#allocation2 + $0x78] sm:$0xe]
      %v1663 = vld [vmem:[#allocation2 + $0x7c] sm:$0xf]
      %v1664 = vld [vmem:[#allocation2 + $0x80] sm:$0x1]
      %v1665 = vld [vmem:[#allocation2 + $0x84] sm:$0xe]
      %v1666 = vld [vmem:[#allocation2 + $0x88] sm:$0xf]
      %v1667 = vld [vmem:[#allocation2 + $0x8c] sm:$0x1]
      %v1668 = vld [vmem:[#allocation2 + $0x90] sm:$0xe]
      %v1669 = vld [vmem:[#allocation2 + $0x94] sm:$0xf]
      %v1670 = vld [vmem:[#allocation2 + $0x98] sm:$0x1]
      %v1671 = vld [vmem:[#allocation2 + $0x9c] sm:$0xe]
      %v1672 = vld [vmem:[#allocation2 + $0xa0] sm:$0xf]
      %v1673 = vld [vmem:[#allocation2 + $0xa4] sm:$0x1]
      %v1674 = vld [vmem:[#allocation2 + $0xa8] sm:$0xe]
      %v1675 = vld [vmem:[#allocation2 + $0xac] sm:$0xf]
      %v1676 = vld [vmem:[#allocation2 + $0xb0] sm:$0x1]
      %v1677 = vld [vmem:[#allocation2 + $0xb4] sm:$0xe]
      %v1678 = vld [vmem:[#allocation2 + $0xb8] sm:$0xf]
      %v1679 = vld [vmem:[#allocation2 + $0xbc] sm:$0x1]
      %vm1728 = vcmask 1042432
      %vm1729 = vcmask 1046532
      %vm1730 = vmor %vm1728, %vm1729
      %v1731 = vrot.slane %v1632, 5
      %v1732 = vrot.slane %v1731, 4
      %v1733 = vrot.slane %v1633, 5
      %v1734 = vsel %vm1730, %v1732, %v1733
      %v1735 = vrot.slane %v1733, 4
      %v1736 = vrot.slane %v1634, 5
      %v1737 = vsel %vm1730, %v1735, %v1736
      %v1738 = vrot.slane %v1635, 5
      %v1739 = vrot.slane %v1738, 4
      %v1740 = vrot.slane %v1636, 5
      %v1741 = vsel %vm1730, %v1739, %v1740
      %v1742 = vrot.slane %v1740, 4
      %v1743 = vrot.slane %v1637, 5
      %v1744 = vsel %vm1730, %v1742, %v1743
      %v1745 = vrot.slane %v1638, 5
      %v1746 = vrot.slane %v1745, 4
      %v1747 = vrot.slane %v1639, 5
      %v1748 = vsel %vm1730, %v1746, %v1747
      %v1749 = vrot.slane %v1747, 4
      %v1750 = vrot.slane %v1640, 5
      %v1751 = vsel %vm1730, %v1749, %v1750
      %v1752 = vrot.slane %v1641, 5
      %v1753 = vrot.slane %v1752, 4
      %v1754 = vrot.slane %v1642, 5
      %v1755 = vsel %vm1730, %v1753, %v1754
      %v1756 = vrot.slane %v1754, 4
      %v1757 = vrot.slane %v1643, 5
      %v1758 = vsel %vm1730, %v1756, %v1757
      %v1759 = vrot.slane %v1644, 5
      %v1760 = vrot.slane %v1759, 4
      %v1761 = vrot.slane %v1645, 5
      %v1762 = vsel %vm1730, %v1760, %v1761
      %v1763 = vrot.slane %v1761, 4
      %v1764 = vrot.slane %v1646, 5
      %v1765 = vsel %vm1730, %v1763, %v1764
      %v1766 = vrot.slane %v1647, 5
      %v1767 = vrot.slane %v1766, 4
      %v1768 = vrot.slane %v1648, 5
      %v1769 = vsel %vm1730, %v1767, %v1768
      %v1770 = vrot.slane %v1768, 4
      %v1771 = vrot.slane %v1649, 5
      %v1772 = vsel %vm1730, %v1770, %v1771
      %v1773 = vrot.slane %v1650, 5
      %v1774 = vrot.slane %v1773, 4
      %v1775 = vrot.slane %v1651, 5
      %v1776 = vsel %vm1730, %v1774, %v1775
      %v1777 = vrot.slane %v1775, 4
      %v1778 = vrot.slane %v1652, 5
      %v1779 = vsel %vm1730, %v1777, %v1778
      %v1780 = vrot.slane %v1653, 5
      %v1781 = vrot.slane %v1780, 4
      %v1782 = vrot.slane %v1654, 5
      %v1783 = vsel %vm1730, %v1781, %v1782
      %v1784 = vrot.slane %v1782, 4
      %v1785 = vrot.slane %v1655, 5
      %v1786 = vsel %vm1730, %v1784, %v1785
      %v1787 = vrot.slane %v1656, 5
      %v1788 = vrot.slane %v1787, 4
      %v1789 = vrot.slane %v1657, 5
      %v1790 = vsel %vm1730, %v1788, %v1789
      %v1791 = vrot.slane %v1789, 4
      %v1792 = vrot.slane %v1658, 5
      %v1793 = vsel %vm1730, %v1791, %v1792
      %v1794 = vrot.slane %v1659, 5
      %v1795 = vrot.slane %v1794, 4
      %v1796 = vrot.slane %v1660, 5
      %v1797 = vsel %vm1730, %v1795, %v1796
      %v1798 = vrot.slane %v1796, 4
      %v1799 = vrot.slane %v1661, 5
      %v1800 = vsel %vm1730, %v1798, %v1799
      %v1801 = vrot.slane %v1662, 5
      %v1802 = vrot.slane %v1801, 4
      %v1803 = vrot.slane %v1663, 5
      %v1804 = vsel %vm1730, %v1802, %v1803
      %v1805 = vrot.slane %v1803, 4
      %v1806 = vrot.slane %v1664, 5
      %v1807 = vsel %vm1730, %v1805, %v1806
      %v1808 = vrot.slane %v1665, 5
      %v1809 = vrot.slane %v1808, 4
      %v1810 = vrot.slane %v1666, 5
      %v1811 = vsel %vm1730, %v1809, %v1810
      %v1812 = vrot.slane %v1810, 4
      %v1813 = vrot.slane %v1667, 5
      %v1814 = vsel %vm1730, %v1812, %v1813
      %v1815 = vrot.slane %v1668, 5
      %v1816 = vrot.slane %v1815, 4
      %v1817 = vrot.slane %v1669, 5
      %v1818 = vsel %vm1730, %v1816, %v1817
      %v1819 = vrot.slane %v1817, 4
      %v1820 = vrot.slane %v1670, 5
      %v1821 = vsel %vm1730, %v1819, %v1820
      %v1822 = vrot.slane %v1671, 5
      %v1823 = vrot.slane %v1822, 4
      %v1824 = vrot.slane %v1672, 5
      %v1825 = vsel %vm1730, %v1823, %v1824
      %v1826 = vrot.slane %v1824, 4
      %v1827 = vrot.slane %v1673, 5
      %v1828 = vsel %vm1730, %v1826, %v1827
      %v1829 = vrot.slane %v1674, 5
      %v1830 = vrot.slane %v1829, 4
      %v1831 = vrot.slane %v1675, 5
      %v1832 = vsel %vm1730, %v1830, %v1831
      %v1833 = vrot.slane %v1831, 4
      %v1834 = vrot.slane %v1676, 5
      %v1835 = vsel %vm1730, %v1833, %v1834
      %v1836 = vrot.slane %v1677, 5
      %v1837 = vrot.slane %v1836, 4
      %v1838 = vrot.slane %v1678, 5
      %v1839 = vsel %vm1730, %v1837, %v1838
      %v1840 = vrot.slane %v1838, 4
      %v1841 = vrot.slane %v1679, 5
      %v1842 = vsel %vm1730, %v1840, %v1841
      %v1843 = vunpack.c.l.b16 %v1734
      %v1844 = vunpack.c.l.b16 %v1737
      %v1845 = vunpack.c.l.b16 %v1741
      %v1846 = vunpack.c.l.b16 %v1744
      %v1847 = vunpack.c.l.b16 %v1748
      %v1848 = vunpack.c.l.b16 %v1751
      %v1849 = vunpack.c.l.b16 %v1755
      %v1850 = vunpack.c.l.b16 %v1758
      %v1851 = vunpack.c.l.b16 %v1762
      %v1852 = vunpack.c.l.b16 %v1765
      %v1853 = vunpack.c.l.b16 %v1769
      %v1854 = vunpack.c.l.b16 %v1772
      %v1855 = vunpack.c.l.b16 %v1776
      %v1856 = vunpack.c.l.b16 %v1779
      %v1857 = vunpack.c.l.b16 %v1783
      %v1858 = vunpack.c.l.b16 %v1786
      %v1859 = vunpack.c.l.b16 %v1790
      %v1860 = vunpack.c.l.b16 %v1793
      %v1861 = vunpack.c.l.b16 %v1797
      %v1862 = vunpack.c.l.b16 %v1800
      %v1863 = vunpack.c.l.b16 %v1804
      %v1864 = vunpack.c.l.b16 %v1807
      %v1865 = vunpack.c.l.b16 %v1811
      %v1866 = vunpack.c.l.b16 %v1814
      %v1867 = vunpack.c.l.b16 %v1818
      %v1868 = vunpack.c.l.b16 %v1821
      %v1869 = vunpack.c.l.b16 %v1825
      %v1870 = vunpack.c.l.b16 %v1828
      %v1871 = vunpack.c.l.b16 %v1832
      %v1872 = vunpack.c.l.b16 %v1835
      %v1873 = vunpack.c.l.b16 %v1839
      %v1874 = vunpack.c.l.b16 %v1842
      %v1875 = vpack.c.b16 %v1844, %v1843
      %v1876 = vpack.c.b16 %v1846, %v1845
      %v1877 = vpack.c.b16 %v1848, %v1847
      %v1878 = vpack.c.b16 %v1850, %v1849
      %v1879 = vpack.c.b16 %v1852, %v1851
      %v1880 = vpack.c.b16 %v1854, %v1853
      %v1881 = vpack.c.b16 %v1856, %v1855
      %v1882 = vpack.c.b16 %v1858, %v1857
      %v1883 = vpack.c.b16 %v1860, %v1859
      %v1884 = vpack.c.b16 %v1862, %v1861
      %v1885 = vpack.c.b16 %v1864, %v1863
      %v1886 = vpack.c.b16 %v1866, %v1865
      %v1887 = vpack.c.b16 %v1868, %v1867
      %v1888 = vpack.c.b16 %v1870, %v1869
      %v1889 = vpack.c.b16 %v1872, %v1871
      %v1890 = vpack.c.b16 %v1874, %v1873
      %1891 = vrot.lane.b32.xlu0 %v1875, 8
      %v1892 = vpop.permute.xlu0 %1891
      %1893 = vrot.lane.b32.xlu0 %v1876, 8
      %v1894 = vpop.permute.xlu0 %1893
      %1895 = vrot.lane.b32.xlu0 %v1877, 8
      %v1896 = vpop.permute.xlu0 %1895
      %1897 = vrot.lane.b32.xlu0 %v1878, 8
      %v1898 = vpop.permute.xlu0 %1897
      %1899 = vrot.lane.b32.xlu0 %v1879, 8
      %v1900 = vpop.permute.xlu0 %1899
      %1901 = vrot.lane.b32.xlu0 %v1880, 8
      %v1902 = vpop.permute.xlu0 %1901
      %1903 = vrot.lane.b32.xlu0 %v1881, 8
      %v1904 = vpop.permute.xlu0 %1903
      %1905 = vrot.lane.b32.xlu0 %v1882, 8
      %v1906 = vpop.permute.xlu0 %1905
      %1907 = vrot.lane.b32.xlu0 %v1883, 8
      %v1908 = vpop.permute.xlu0 %1907
      %1909 = vrot.lane.b32.xlu0 %v1884, 8
      %v1910 = vpop.permute.xlu0 %1909
      %1911 = vrot.lane.b32.xlu0 %v1885, 8
      %v1912 = vpop.permute.xlu0 %1911
      %1913 = vrot.lane.b32.xlu0 %v1886, 8
      %v1914 = vpop.permute.xlu0 %1913
      %1915 = vrot.lane.b32.xlu0 %v1887, 8
      %v1916 = vpop.permute.xlu0 %1915
      %1917 = vrot.lane.b32.xlu0 %v1888, 8
      %v1918 = vpop.permute.xlu0 %1917
      %1919 = vrot.lane.b32.xlu0 %v1889, 8
      %v1920 = vpop.permute.xlu0 %1919
      %1921 = vrot.lane.b32.xlu0 %v1890, 8
      %v1922 = vpop.permute.xlu0 %1921
      %vm1939 = vcmask 97344
      %1940 = vst.msk [vmem:[#allocation3] sm:$0xff] %vm1939, %v1892
      %1941 = vst.msk [vmem:[#allocation3 + $0x8] sm:$0xff] %vm1939, %v1894
      %1942 = vst.msk [vmem:[#allocation3 + $0x10] sm:$0xff] %vm1939, %v1896
      %1943 = vst.msk [vmem:[#allocation3 + $0x18] sm:$0xff] %vm1939, %v1898
      %1944 = vst.msk [vmem:[#allocation3 + $0x20] sm:$0xff] %vm1939, %v1900
      %1945 = vst.msk [vmem:[#allocation3 + $0x28] sm:$0xff] %vm1939, %v1902
      %1946 = vst.msk [vmem:[#allocation3 + $0x30] sm:$0xff] %vm1939, %v1904
      %1947 = vst.msk [vmem:[#allocation3 + $0x38] sm:$0xff] %vm1939, %v1906
      %1948 = vst.msk [vmem:[#allocation3 + $0x40] sm:$0xff] %vm1939, %v1908
      %1949 = vst.msk [vmem:[#allocation3 + $0x48] sm:$0xff] %vm1939, %v1910
      %1950 = vst.msk [vmem:[#allocation3 + $0x50] sm:$0xff] %vm1939, %v1912
      %1951 = vst.msk [vmem:[#allocation3 + $0x58] sm:$0xff] %vm1939, %v1914
      %1952 = vst.msk [vmem:[#allocation3 + $0x60] sm:$0xff] %vm1939, %v1916
      %1953 = vst.msk [vmem:[#allocation3 + $0x68] sm:$0xff] %vm1939, %v1918
      %1954 = vst.msk [vmem:[#allocation3 + $0x70] sm:$0xff] %vm1939, %v1920
      %1955 = vst.msk [vmem:[#allocation3 + $0x78] sm:$0xff] %vm1939, %v1922
      %v1956 = vld [vmem:[%s826] sm:$0xf]
      %v1957 = vld [vmem:[%s826 + $0x4] sm:$0xf]
      %v1958 = vld [vmem:[%s826 + $0xc] sm:$0xf]
      %v1959 = vld [vmem:[%s826 + $0x10] sm:$0xf]
      %v1960 = vld [vmem:[%s826 + $0x18] sm:$0xf]
      %v1961 = vld [vmem:[%s826 + $0x1c] sm:$0xf]
      %v1962 = vld [vmem:[%s826 + $0x24] sm:$0xf]
      %v1963 = vld [vmem:[%s826 + $0x28] sm:$0xf]
      %v1964 = vld [vmem:[%s826 + $0x30] sm:$0xf]
      %v1965 = vld [vmem:[%s826 + $0x34] sm:$0xf]
      %v1966 = vld [vmem:[%s826 + $0x3c] sm:$0xf]
      %v1967 = vld [vmem:[%s826 + $0x40] sm:$0xf]
      %v1968 = vld [vmem:[%s826 + $0x48] sm:$0xf]
      %v1969 = vld [vmem:[%s826 + $0x4c] sm:$0xf]
      %v1970 = vld [vmem:[%s826 + $0x54] sm:$0xf]
      %v1971 = vld [vmem:[%s826 + $0x58] sm:$0xf]
      %v1972 = vld [vmem:[%s826 + $0x60] sm:$0xf]
      %v1973 = vld [vmem:[%s826 + $0x64] sm:$0xf]
      %v1974 = vld [vmem:[%s826 + $0x6c] sm:$0xf]
      %v1975 = vld [vmem:[%s826 + $0x70] sm:$0xf]
      %v1976 = vld [vmem:[%s826 + $0x78] sm:$0xf]
      %v1977 = vld [vmem:[%s826 + $0x7c] sm:$0xf]
      %v1978 = vld [vmem:[%s826 + $0x84] sm:$0xf]
      %v1979 = vld [vmem:[%s826 + $0x88] sm:$0xf]
      %v1980 = vld [vmem:[%s826 + $0x90] sm:$0xf]
      %v1981 = vld [vmem:[%s826 + $0x94] sm:$0xf]
      %v1982 = vld [vmem:[%s826 + $0x9c] sm:$0xf]
      %v1983 = vld [vmem:[%s826 + $0xa0] sm:$0xf]
      %v1984 = vld [vmem:[%s826 + $0xa8] sm:$0xf]
      %v1985 = vld [vmem:[%s826 + $0xac] sm:$0xf]
      %v1986 = vld [vmem:[%s826 + $0xb4] sm:$0xf]
      %v1987 = vld [vmem:[%s826 + $0xb8] sm:$0xf]
      %v2020 = vunpack.c.l.b16 %v1956
      %v2021 = vunpack.c.l.b16 %v1957
      %v2022 = vunpack.c.l.b16 %v1958
      %v2023 = vunpack.c.l.b16 %v1959
      %v2024 = vunpack.c.l.b16 %v1960
      %v2025 = vunpack.c.l.b16 %v1961
      %v2026 = vunpack.c.l.b16 %v1962
      %v2027 = vunpack.c.l.b16 %v1963
      %v2028 = vunpack.c.l.b16 %v1964
      %v2029 = vunpack.c.l.b16 %v1965
      %v2030 = vunpack.c.l.b16 %v1966
      %v2031 = vunpack.c.l.b16 %v1967
      %v2032 = vunpack.c.l.b16 %v1968
      %v2033 = vunpack.c.l.b16 %v1969
      %v2034 = vunpack.c.l.b16 %v1970
      %v2035 = vunpack.c.l.b16 %v1971
      %v2036 = vunpack.c.l.b16 %v1972
      %v2037 = vunpack.c.l.b16 %v1973
      %v2038 = vunpack.c.l.b16 %v1974
      %v2039 = vunpack.c.l.b16 %v1975
      %v2040 = vunpack.c.l.b16 %v1976
      %v2041 = vunpack.c.l.b16 %v1977
      %v2042 = vunpack.c.l.b16 %v1978
      %v2043 = vunpack.c.l.b16 %v1979
      %v2044 = vunpack.c.l.b16 %v1980
      %v2045 = vunpack.c.l.b16 %v1981
      %v2046 = vunpack.c.l.b16 %v1982
      %v2047 = vunpack.c.l.b16 %v1983
      %v2048 = vunpack.c.l.b16 %v1984
      %v2049 = vunpack.c.l.b16 %v1985
      %v2050 = vunpack.c.l.b16 %v1986
      %v2051 = vunpack.c.l.b16 %v1987
      %v2052 = vpack.c.b16 %v2021, %v2020
      %v2053 = vpack.c.b16 %v2023, %v2022
      %v2054 = vpack.c.b16 %v2025, %v2024
      %v2055 = vpack.c.b16 %v2027, %v2026
      %v2056 = vpack.c.b16 %v2029, %v2028
      %v2057 = vpack.c.b16 %v2031, %v2030
      %v2058 = vpack.c.b16 %v2033, %v2032
      %v2059 = vpack.c.b16 %v2035, %v2034
      %v2060 = vpack.c.b16 %v2037, %v2036
      %v2061 = vpack.c.b16 %v2039, %v2038
      %v2062 = vpack.c.b16 %v2041, %v2040
      %v2063 = vpack.c.b16 %v2043, %v2042
      %v2064 = vpack.c.b16 %v2045, %v2044
      %v2065 = vpack.c.b16 %v2047, %v2046
      %v2066 = vpack.c.b16 %v2049, %v2048
      %v2067 = vpack.c.b16 %v2051, %v2050
      %2068 = vrot.lane.b32.xlu0 %v2052, 12
      %v2069 = vpop.permute.xlu0 %2068
      %2070 = vrot.lane.b32.xlu0 %v2053, 12
      %v2071 = vpop.permute.xlu0 %2070
      %2072 = vrot.lane.b32.xlu0 %v2054, 12
      %v2073 = vpop.permute.xlu0 %2072
      %2074 = vrot.lane.b32.xlu0 %v2055, 12
      %v2075 = vpop.permute.xlu0 %2074
      %2076 = vrot.lane.b32.xlu0 %v2056, 12
      %v2077 = vpop.permute.xlu0 %2076
      %2078 = vrot.lane.b32.xlu0 %v2057, 12
      %v2079 = vpop.permute.xlu0 %2078
      %2080 = vrot.lane.b32.xlu0 %v2058, 12
      %v2081 = vpop.permute.xlu0 %2080
      %2082 = vrot.lane.b32.xlu0 %v2059, 12
      %v2083 = vpop.permute.xlu0 %2082
      %2084 = vrot.lane.b32.xlu0 %v2060, 12
      %v2085 = vpop.permute.xlu0 %2084
      %2086 = vrot.lane.b32.xlu0 %v2061, 12
      %v2087 = vpop.permute.xlu0 %2086
      %2088 = vrot.lane.b32.xlu0 %v2062, 12
      %v2089 = vpop.permute.xlu0 %2088
      %2090 = vrot.lane.b32.xlu0 %v2063, 12
      %v2091 = vpop.permute.xlu0 %2090
      %2092 = vrot.lane.b32.xlu0 %v2064, 12
      %v2093 = vpop.permute.xlu0 %2092
      %2094 = vrot.lane.b32.xlu0 %v2065, 12
      %v2095 = vpop.permute.xlu0 %2094
      %2096 = vrot.lane.b32.xlu0 %v2066, 12
      %v2097 = vpop.permute.xlu0 %2096
      %2098 = vrot.lane.b32.xlu0 %v2067, 12
      %v2099 = vpop.permute.xlu0 %2098
      %vm2116 = vcmask 130144
      %2117 = vst.msk [vmem:[#allocation3] sm:$0xff] %vm2116, %v2069
      %2118 = vst.msk [vmem:[#allocation3 + $0x8] sm:$0xff] %vm2116, %v2071
      %2119 = vst.msk [vmem:[#allocation3 + $0x10] sm:$0xff] %vm2116, %v2073
      %2120 = vst.msk [vmem:[#allocation3 + $0x18] sm:$0xff] %vm2116, %v2075
      %2121 = vst.msk [vmem:[#allocation3 + $0x20] sm:$0xff] %vm2116, %v2077
      %2122 = vst.msk [vmem:[#allocation3 + $0x28] sm:$0xff] %vm2116, %v2079
      %2123 = vst.msk [vmem:[#allocation3 + $0x30] sm:$0xff] %vm2116, %v2081
      %2124 = vst.msk [vmem:[#allocation3 + $0x38] sm:$0xff] %vm2116, %v2083
      %2125 = vst.msk [vmem:[#allocation3 + $0x40] sm:$0xff] %vm2116, %v2085
      %2126 = vst.msk [vmem:[#allocation3 + $0x48] sm:$0xff] %vm2116, %v2087
      %2127 = vst.msk [vmem:[#allocation3 + $0x50] sm:$0xff] %vm2116, %v2089
      %2128 = vst.msk [vmem:[#allocation3 + $0x58] sm:$0xff] %vm2116, %v2091
      %2129 = vst.msk [vmem:[#allocation3 + $0x60] sm:$0xff] %vm2116, %v2093
      %2130 = vst.msk [vmem:[#allocation3 + $0x68] sm:$0xff] %vm2116, %v2095
      %2131 = vst.msk [vmem:[#allocation3 + $0x70] sm:$0xff] %vm2116, %v2097
      %2132 = vst.msk [vmem:[#allocation3 + $0x78] sm:$0xff] %vm2116, %v2099
      %v2133 = vld [vmem:[%s826] sm:$0xf]
      %v2134 = vld [vmem:[%s826 + $0x4] sm:$0xf]
      %v2135 = vld [vmem:[%s826 + $0x8] sm:$0x1]
      %v2136 = vld [vmem:[%s826 + $0xc] sm:$0xf]
      %v2137 = vld [vmem:[%s826 + $0x10] sm:$0xf]
      %v2138 = vld [vmem:[%s826 + $0x14] sm:$0x1]
      %v2139 = vld [vmem:[%s826 + $0x18] sm:$0xf]
      %v2140 = vld [vmem:[%s826 + $0x1c] sm:$0xf]
      %v2141 = vld [vmem:[%s826 + $0x20] sm:$0x1]
      %v2142 = vld [vmem:[%s826 + $0x24] sm:$0xf]
      %v2143 = vld [vmem:[%s826 + $0x28] sm:$0xf]
      %v2144 = vld [vmem:[%s826 + $0x2c] sm:$0x1]
      %v2145 = vld [vmem:[%s826 + $0x30] sm:$0xf]
      %v2146 = vld [vmem:[%s826 + $0x34] sm:$0xf]
      %v2147 = vld [vmem:[%s826 + $0x38] sm:$0x1]
      %v2148 = vld [vmem:[%s826 + $0x3c] sm:$0xf]
      %v2149 = vld [vmem:[%s826 + $0x40] sm:$0xf]
      %v2150 = vld [vmem:[%s826 + $0x44] sm:$0x1]
      %v2151 = vld [vmem:[%s826 + $0x48] sm:$0xf]
      %v2152 = vld [vmem:[%s826 + $0x4c] sm:$0xf]
      %v2153 = vld [vmem:[%s826 + $0x50] sm:$0x1]
      %v2154 = vld [vmem:[%s826 + $0x54] sm:$0xf]
      %v2155 = vld [vmem:[%s826 + $0x58] sm:$0xf]
      %v2156 = vld [vmem:[%s826 + $0x5c] sm:$0x1]
      %v2157 = vld [vmem:[%s826 + $0x60] sm:$0xf]
      %v2158 = vld [vmem:[%s826 + $0x64] sm:$0xf]
      %v2159 = vld [vmem:[%s826 + $0x68] sm:$0x1]
      %v2160 = vld [vmem:[%s826 + $0x6c] sm:$0xf]
      %v2161 = vld [vmem:[%s826 + $0x70] sm:$0xf]
      %v2162 = vld [vmem:[%s826 + $0x74] sm:$0x1]
      %v2163 = vld [vmem:[%s826 + $0x78] sm:$0xf]
      %v2164 = vld [vmem:[%s826 + $0x7c] sm:$0xf]
      %v2165 = vld [vmem:[%s826 + $0x80] sm:$0x1]
      %v2166 = vld [vmem:[%s826 + $0x84] sm:$0xf]
      %v2167 = vld [vmem:[%s826 + $0x88] sm:$0xf]
      %v2168 = vld [vmem:[%s826 + $0x8c] sm:$0x1]
      %v2169 = vld [vmem:[%s826 + $0x90] sm:$0xf]
      %v2170 = vld [vmem:[%s826 + $0x94] sm:$0xf]
      %v2171 = vld [vmem:[%s826 + $0x98] sm:$0x1]
      %v2172 = vld [vmem:[%s826 + $0x9c] sm:$0xf]
      %v2173 = vld [vmem:[%s826 + $0xa0] sm:$0xf]
      %v2174 = vld [vmem:[%s826 + $0xa4] sm:$0x1]
      %v2175 = vld [vmem:[%s826 + $0xa8] sm:$0xf]
      %v2176 = vld [vmem:[%s826 + $0xac] sm:$0xf]
      %v2177 = vld [vmem:[%s826 + $0xb0] sm:$0x1]
      %v2178 = vld [vmem:[%s826 + $0xb4] sm:$0xf]
      %v2179 = vld [vmem:[%s826 + $0xb8] sm:$0xf]
      %v2180 = vld [vmem:[%s826 + $0xbc] sm:$0x1]
      %v2182 = vshrl.u32 %v2133, 16
      %v2184 = vrot.slane %v2182, 4
      %v2185 = vshll.u32 %v2133, 16
      %v2187 = vrot.slane %v2185, 5
      %v2188 = vor.u32 %v2184, %v2187
      %v2189 = vrot.slane %v2188, 4
      %v2191 = vshll.u32 %v2134, 16
      %v2193 = vrot.slane %v2191, 5
      %v2194 = vsel %vm1134, %v2189, %v2193
      %v2195 = vshrl.u32 %v2134, 16
      %v2197 = vrot.slane %v2195, 4
      %v2198 = vor.u32 %v2197, %v2193
      %v2199 = vrot.slane %v2198, 4
      %v2201 = vshll.u32 %v2135, 16
      %v2203 = vrot.slane %v2201, 5
      %v2204 = vsel %vm1134, %v2199, %v2203
      %v2206 = vshrl.u32 %v2136, 16
      %v2208 = vrot.slane %v2206, 4
      %v2209 = vshll.u32 %v2136, 16
      %v2211 = vrot.slane %v2209, 5
      %v2212 = vor.u32 %v2208, %v2211
      %v2213 = vrot.slane %v2212, 4
      %v2215 = vshll.u32 %v2137, 16
      %v2217 = vrot.slane %v2215, 5
      %v2218 = vsel %vm1134, %v2213, %v2217
      %v2219 = vshrl.u32 %v2137, 16
      %v2221 = vrot.slane %v2219, 4
      %v2222 = vor.u32 %v2221, %v2217
      %v2223 = vrot.slane %v2222, 4
      %v2225 = vshll.u32 %v2138, 16
      %v2227 = vrot.slane %v2225, 5
      %v2228 = vsel %vm1134, %v2223, %v2227
      %v2230 = vshrl.u32 %v2139, 16
      %v2232 = vrot.slane %v2230, 4
      %v2233 = vshll.u32 %v2139, 16
      %v2235 = vrot.slane %v2233, 5
      %v2236 = vor.u32 %v2232, %v2235
      %v2237 = vrot.slane %v2236, 4
      %v2239 = vshll.u32 %v2140, 16
      %v2241 = vrot.slane %v2239, 5
      %v2242 = vsel %vm1134, %v2237, %v2241
      %v2243 = vshrl.u32 %v2140, 16
      %v2245 = vrot.slane %v2243, 4
      %v2246 = vor.u32 %v2245, %v2241
      %v2247 = vrot.slane %v2246, 4
      %v2249 = vshll.u32 %v2141, 16
      %v2251 = vrot.slane %v2249, 5
      %v2252 = vsel %vm1134, %v2247, %v2251
      %v2254 = vshrl.u32 %v2142, 16
      %v2256 = vrot.slane %v2254, 4
      %v2257 = vshll.u32 %v2142, 16
      %v2259 = vrot.slane %v2257, 5
      %v2260 = vor.u32 %v2256, %v2259
      %v2261 = vrot.slane %v2260, 4
      %v2263 = vshll.u32 %v2143, 16
      %v2265 = vrot.slane %v2263, 5
      %v2266 = vsel %vm1134, %v2261, %v2265
      %v2267 = vshrl.u32 %v2143, 16
      %v2269 = vrot.slane %v2267, 4
      %v2270 = vor.u32 %v2269, %v2265
      %v2271 = vrot.slane %v2270, 4
      %v2273 = vshll.u32 %v2144, 16
      %v2275 = vrot.slane %v2273, 5
      %v2276 = vsel %vm1134, %v2271, %v2275
      %v2278 = vshrl.u32 %v2145, 16
      %v2280 = vrot.slane %v2278, 4
      %v2281 = vshll.u32 %v2145, 16
      %v2283 = vrot.slane %v2281, 5
      %v2284 = vor.u32 %v2280, %v2283
      %v2285 = vrot.slane %v2284, 4
      %v2287 = vshll.u32 %v2146, 16
      %v2289 = vrot.slane %v2287, 5
      %v2290 = vsel %vm1134, %v2285, %v2289
      %v2291 = vshrl.u32 %v2146, 16
      %v2293 = vrot.slane %v2291, 4
      %v2294 = vor.u32 %v2293, %v2289
      %v2295 = vrot.slane %v2294, 4
      %v2297 = vshll.u32 %v2147, 16
      %v2299 = vrot.slane %v2297, 5
      %v2300 = vsel %vm1134, %v2295, %v2299
      %v2302 = vshrl.u32 %v2148, 16
      %v2304 = vrot.slane %v2302, 4
      %v2305 = vshll.u32 %v2148, 16
      %v2307 = vrot.slane %v2305, 5
      %v2308 = vor.u32 %v2304, %v2307
      %v2309 = vrot.slane %v2308, 4
      %v2311 = vshll.u32 %v2149, 16
      %v2313 = vrot.slane %v2311, 5
      %v2314 = vsel %vm1134, %v2309, %v2313
      %v2315 = vshrl.u32 %v2149, 16
      %v2317 = vrot.slane %v2315, 4
      %v2318 = vor.u32 %v2317, %v2313
      %v2319 = vrot.slane %v2318, 4
      %v2321 = vshll.u32 %v2150, 16
      %v2323 = vrot.slane %v2321, 5
      %v2324 = vsel %vm1134, %v2319, %v2323
      %v2326 = vshrl.u32 %v2151, 16
      %v2328 = vrot.slane %v2326, 4
      %v2329 = vshll.u32 %v2151, 16
      %v2331 = vrot.slane %v2329, 5
      %v2332 = vor.u32 %v2328, %v2331
      %v2333 = vrot.slane %v2332, 4
      %v2335 = vshll.u32 %v2152, 16
      %v2337 = vrot.slane %v2335, 5
      %v2338 = vsel %vm1134, %v2333, %v2337
      %v2339 = vshrl.u32 %v2152, 16
      %v2341 = vrot.slane %v2339, 4
      %v2342 = vor.u32 %v2341, %v2337
      %v2343 = vrot.slane %v2342, 4
      %v2345 = vshll.u32 %v2153, 16
      %v2347 = vrot.slane %v2345, 5
      %v2348 = vsel %vm1134, %v2343, %v2347
      %v2350 = vshrl.u32 %v2154, 16
      %v2352 = vrot.slane %v2350, 4
      %v2353 = vshll.u32 %v2154, 16
      %v2355 = vrot.slane %v2353, 5
      %v2356 = vor.u32 %v2352, %v2355
      %v2357 = vrot.slane %v2356, 4
      %v2359 = vshll.u32 %v2155, 16
      %v2361 = vrot.slane %v2359, 5
      %v2362 = vsel %vm1134, %v2357, %v2361
      %v2363 = vshrl.u32 %v2155, 16
      %v2365 = vrot.slane %v2363, 4
      %v2366 = vor.u32 %v2365, %v2361
      %v2367 = vrot.slane %v2366, 4
      %v2369 = vshll.u32 %v2156, 16
      %v2371 = vrot.slane %v2369, 5
      %v2372 = vsel %vm1134, %v2367, %v2371
      %v2374 = vshrl.u32 %v2157, 16
      %v2376 = vrot.slane %v2374, 4
      %v2377 = vshll.u32 %v2157, 16
      %v2379 = vrot.slane %v2377, 5
      %v2380 = vor.u32 %v2376, %v2379
      %v2381 = vrot.slane %v2380, 4
      %v2383 = vshll.u32 %v2158, 16
      %v2385 = vrot.slane %v2383, 5
      %v2386 = vsel %vm1134, %v2381, %v2385
      %v2387 = vshrl.u32 %v2158, 16
      %v2389 = vrot.slane %v2387, 4
      %v2390 = vor.u32 %v2389, %v2385
      %v2391 = vrot.slane %v2390, 4
      %v2393 = vshll.u32 %v2159, 16
      %v2395 = vrot.slane %v2393, 5
      %v2396 = vsel %vm1134, %v2391, %v2395
      %v2398 = vshrl.u32 %v2160, 16
      %v2400 = vrot.slane %v2398, 4
      %v2401 = vshll.u32 %v2160, 16
      %v2403 = vrot.slane %v2401, 5
      %v2404 = vor.u32 %v2400, %v2403
      %v2405 = vrot.slane %v2404, 4
      %v2407 = vshll.u32 %v2161, 16
      %v2409 = vrot.slane %v2407, 5
      %v2410 = vsel %vm1134, %v2405, %v2409
      %v2411 = vshrl.u32 %v2161, 16
      %v2413 = vrot.slane %v2411, 4
      %v2414 = vor.u32 %v2413, %v2409
      %v2415 = vrot.slane %v2414, 4
      %v2417 = vshll.u32 %v2162, 16
      %v2419 = vrot.slane %v2417, 5
      %v2420 = vsel %vm1134, %v2415, %v2419
      %v2422 = vshrl.u32 %v2163, 16
      %v2424 = vrot.slane %v2422, 4
      %v2425 = vshll.u32 %v2163, 16
      %v2427 = vrot.slane %v2425, 5
      %v2428 = vor.u32 %v2424, %v2427
      %v2429 = vrot.slane %v2428, 4
      %v2431 = vshll.u32 %v2164, 16
      %v2433 = vrot.slane %v2431, 5
      %v2434 = vsel %vm1134, %v2429, %v2433
      %v2435 = vshrl.u32 %v2164, 16
      %v2437 = vrot.slane %v2435, 4
      %v2438 = vor.u32 %v2437, %v2433
      %v2439 = vrot.slane %v2438, 4
      %v2441 = vshll.u32 %v2165, 16
      %v2443 = vrot.slane %v2441, 5
      %v2444 = vsel %vm1134, %v2439, %v2443
      %v2446 = vshrl.u32 %v2166, 16
      %v2448 = vrot.slane %v2446, 4
      %v2449 = vshll.u32 %v2166, 16
      %v2451 = vrot.slane %v2449, 5
      %v2452 = vor.u32 %v2448, %v2451
      %v2453 = vrot.slane %v2452, 4
      %v2455 = vshll.u32 %v2167, 16
      %v2457 = vrot.slane %v2455, 5
      %v2458 = vsel %vm1134, %v2453, %v2457
      %v2459 = vshrl.u32 %v2167, 16
      %v2461 = vrot.slane %v2459, 4
      %v2462 = vor.u32 %v2461, %v2457
      %v2463 = vrot.slane %v2462, 4
      %v2465 = vshll.u32 %v2168, 16
      %v2467 = vrot.slane %v2465, 5
      %v2468 = vsel %vm1134, %v2463, %v2467
      %v2470 = vshrl.u32 %v2169, 16
      %v2472 = vrot.slane %v2470, 4
      %v2473 = vshll.u32 %v2169, 16
      %v2475 = vrot.slane %v2473, 5
      %v2476 = vor.u32 %v2472, %v2475
      %v2477 = vrot.slane %v2476, 4
      %v2479 = vshll.u32 %v2170, 16
      %v2481 = vrot.slane %v2479, 5
      %v2482 = vsel %vm1134, %v2477, %v2481
      %v2483 = vshrl.u32 %v2170, 16
      %v2485 = vrot.slane %v2483, 4
      %v2486 = vor.u32 %v2485, %v2481
      %v2487 = vrot.slane %v2486, 4
      %v2489 = vshll.u32 %v2171, 16
      %v2491 = vrot.slane %v2489, 5
      %v2492 = vsel %vm1134, %v2487, %v2491
      %v2494 = vshrl.u32 %v2172, 16
      %v2496 = vrot.slane %v2494, 4
      %v2497 = vshll.u32 %v2172, 16
      %v2499 = vrot.slane %v2497, 5
      %v2500 = vor.u32 %v2496, %v2499
      %v2501 = vrot.slane %v2500, 4
      %v2503 = vshll.u32 %v2173, 16
      %v2505 = vrot.slane %v2503, 5
      %v2506 = vsel %vm1134, %v2501, %v2505
      %v2507 = vshrl.u32 %v2173, 16
      %v2509 = vrot.slane %v2507, 4
      %v2510 = vor.u32 %v2509, %v2505
      %v2511 = vrot.slane %v2510, 4
      %v2513 = vshll.u32 %v2174, 16
      %v2515 = vrot.slane %v2513, 5
      %v2516 = vsel %vm1134, %v2511, %v2515
      %v2518 = vshrl.u32 %v2175, 16
      %v2520 = vrot.slane %v2518, 4
      %v2521 = vshll.u32 %v2175, 16
      %v2523 = vrot.slane %v2521, 5
      %v2524 = vor.u32 %v2520, %v2523
      %v2525 = vrot.slane %v2524, 4
      %v2527 = vshll.u32 %v2176, 16
      %v2529 = vrot.slane %v2527, 5
      %v2530 = vsel %vm1134, %v2525, %v2529
      %v2531 = vshrl.u32 %v2176, 16
      %v2533 = vrot.slane %v2531, 4
      %v2534 = vor.u32 %v2533, %v2529
      %v2535 = vrot.slane %v2534, 4
      %v2537 = vshll.u32 %v2177, 16
      %v2539 = vrot.slane %v2537, 5
      %v2540 = vsel %vm1134, %v2535, %v2539
      %v2542 = vshrl.u32 %v2178, 16
      %v2544 = vrot.slane %v2542, 4
      %v2545 = vshll.u32 %v2178, 16
      %v2547 = vrot.slane %v2545, 5
      %v2548 = vor.u32 %v2544, %v2547
      %v2549 = vrot.slane %v2548, 4
      %v2551 = vshll.u32 %v2179, 16
      %v2553 = vrot.slane %v2551, 5
      %v2554 = vsel %vm1134, %v2549, %v2553
      %v2555 = vshrl.u32 %v2179, 16
      %v2557 = vrot.slane %v2555, 4
      %v2558 = vor.u32 %v2557, %v2553
      %v2559 = vrot.slane %v2558, 4
      %v2561 = vshll.u32 %v2180, 16
      %v2563 = vrot.slane %v2561, 5
      %v2564 = vsel %vm1134, %v2559, %v2563
      %v2565 = vunpack.c.l.b16 %v2194
      %v2566 = vunpack.c.l.b16 %v2204
      %v2567 = vunpack.c.l.b16 %v2218
      %v2568 = vunpack.c.l.b16 %v2228
      %v2569 = vunpack.c.l.b16 %v2242
      %v2570 = vunpack.c.l.b16 %v2252
      %v2571 = vunpack.c.l.b16 %v2266
      %v2572 = vunpack.c.l.b16 %v2276
      %v2573 = vunpack.c.l.b16 %v2290
      %v2574 = vunpack.c.l.b16 %v2300
      %v2575 = vunpack.c.l.b16 %v2314
      %v2576 = vunpack.c.l.b16 %v2324
      %v2577 = vunpack.c.l.b16 %v2338
      %v2578 = vunpack.c.l.b16 %v2348
      %v2579 = vunpack.c.l.b16 %v2362
      %v2580 = vunpack.c.l.b16 %v2372
      %v2581 = vunpack.c.l.b16 %v2386
      %v2582 = vunpack.c.l.b16 %v2396
      %v2583 = vunpack.c.l.b16 %v2410
      %v2584 = vunpack.c.l.b16 %v2420
      %v2585 = vunpack.c.l.b16 %v2434
      %v2586 = vunpack.c.l.b16 %v2444
      %v2587 = vunpack.c.l.b16 %v2458
      %v2588 = vunpack.c.l.b16 %v2468
      %v2589 = vunpack.c.l.b16 %v2482
      %v2590 = vunpack.c.l.b16 %v2492
      %v2591 = vunpack.c.l.b16 %v2506
      %v2592 = vunpack.c.l.b16 %v2516
      %v2593 = vunpack.c.l.b16 %v2530
      %v2594 = vunpack.c.l.b16 %v2540
      %v2595 = vunpack.c.l.b16 %v2554
      %v2596 = vunpack.c.l.b16 %v2564
      %v2597 = vpack.c.b16 %v2566, %v2565
      %v2598 = vpack.c.b16 %v2568, %v2567
      %v2599 = vpack.c.b16 %v2570, %v2569
      %v2600 = vpack.c.b16 %v2572, %v2571
      %v2601 = vpack.c.b16 %v2574, %v2573
      %v2602 = vpack.c.b16 %v2576, %v2575
      %v2603 = vpack.c.b16 %v2578, %v2577
      %v2604 = vpack.c.b16 %v2580, %v2579
      %v2605 = vpack.c.b16 %v2582, %v2581
      %v2606 = vpack.c.b16 %v2584, %v2583
      %v2607 = vpack.c.b16 %v2586, %v2585
      %v2608 = vpack.c.b16 %v2588, %v2587
      %v2609 = vpack.c.b16 %v2590, %v2589
      %v2610 = vpack.c.b16 %v2592, %v2591
      %v2611 = vpack.c.b16 %v2594, %v2593
      %v2612 = vpack.c.b16 %v2596, %v2595
      %2613 = vrot.lane.b32.xlu0 %v2597, 16
      %v2614 = vpop.permute.xlu0 %2613
      %2615 = vrot.lane.b32.xlu0 %v2598, 16
      %v2616 = vpop.permute.xlu0 %2615
      %2617 = vrot.lane.b32.xlu0 %v2599, 16
      %v2618 = vpop.permute.xlu0 %2617
      %2619 = vrot.lane.b32.xlu0 %v2600, 16
      %v2620 = vpop.permute.xlu0 %2619
      %2621 = vrot.lane.b32.xlu0 %v2601, 16
      %v2622 = vpop.permute.xlu0 %2621
      %2623 = vrot.lane.b32.xlu0 %v2602, 16
      %v2624 = vpop.permute.xlu0 %2623
      %2625 = vrot.lane.b32.xlu0 %v2603, 16
      %v2626 = vpop.permute.xlu0 %2625
      %2627 = vrot.lane.b32.xlu0 %v2604, 16
      %v2628 = vpop.permute.xlu0 %2627
      %2629 = vrot.lane.b32.xlu0 %v2605, 16
      %v2630 = vpop.permute.xlu0 %2629
      %2631 = vrot.lane.b32.xlu0 %v2606, 16
      %v2632 = vpop.permute.xlu0 %2631
      %2633 = vrot.lane.b32.xlu0 %v2607, 16
      %v2634 = vpop.permute.xlu0 %2633
      %2635 = vrot.lane.b32.xlu0 %v2608, 16
      %v2636 = vpop.permute.xlu0 %2635
      %2637 = vrot.lane.b32.xlu0 %v2609, 16
      %v2638 = vpop.permute.xlu0 %2637
      %2639 = vrot.lane.b32.xlu0 %v2610, 16
      %v2640 = vpop.permute.xlu0 %2639
      %2641 = vrot.lane.b32.xlu0 %v2611, 16
      %v2642 = vpop.permute.xlu0 %2641
      %2643 = vrot.lane.b32.xlu0 %v2612, 16
      %v2644 = vpop.permute.xlu0 %2643
      %vm2661 = vcmask 162944
      %2662 = vst.msk [vmem:[#allocation3] sm:$0xff] %vm2661, %v2614
      %2663 = vst.msk [vmem:[#allocation3 + $0x8] sm:$0xff] %vm2661, %v2616
      %2664 = vst.msk [vmem:[#allocation3 + $0x10] sm:$0xff] %vm2661, %v2618
      %2665 = vst.msk [vmem:[#allocation3 + $0x18] sm:$0xff] %vm2661, %v2620
      %2666 = vst.msk [vmem:[#allocation3 + $0x20] sm:$0xff] %vm2661, %v2622
      %2667 = vst.msk [vmem:[#allocation3 + $0x28] sm:$0xff] %vm2661, %v2624
      %2668 = vst.msk [vmem:[#allocation3 + $0x30] sm:$0xff] %vm2661, %v2626
      %2669 = vst.msk [vmem:[#allocation3 + $0x38] sm:$0xff] %vm2661, %v2628
      %2670 = vst.msk [vmem:[#allocation3 + $0x40] sm:$0xff] %vm2661, %v2630
      %2671 = vst.msk [vmem:[#allocation3 + $0x48] sm:$0xff] %vm2661, %v2632
      %2672 = vst.msk [vmem:[#allocation3 + $0x50] sm:$0xff] %vm2661, %v2634
      %2673 = vst.msk [vmem:[#allocation3 + $0x58] sm:$0xff] %vm2661, %v2636
      %2674 = vst.msk [vmem:[#allocation3 + $0x60] sm:$0xff] %vm2661, %v2638
      %2675 = vst.msk [vmem:[#allocation3 + $0x68] sm:$0xff] %vm2661, %v2640
      %2676 = vst.msk [vmem:[#allocation3 + $0x70] sm:$0xff] %vm2661, %v2642
      %2677 = vst.msk [vmem:[#allocation3 + $0x78] sm:$0xff] %vm2661, %v2644
      %v2678 = vld [vmem:[%s826] sm:$0xe]
      %v2679 = vld [vmem:[%s826 + $0x4] sm:$0xf]
      %v2680 = vld [vmem:[%s826 + $0x8] sm:$0x1]
      %v2681 = vld [vmem:[%s826 + $0xc] sm:$0xe]
      %v2682 = vld [vmem:[%s826 + $0x10] sm:$0xf]
      %v2683 = vld [vmem:[%s826 + $0x14] sm:$0x1]
      %v2684 = vld [vmem:[%s826 + $0x18] sm:$0xe]
      %v2685 = vld [vmem:[%s826 + $0x1c] sm:$0xf]
      %v2686 = vld [vmem:[%s826 + $0x20] sm:$0x1]
      %v2687 = vld [vmem:[%s826 + $0x24] sm:$0xe]
      %v2688 = vld [vmem:[%s826 + $0x28] sm:$0xf]
      %v2689 = vld [vmem:[%s826 + $0x2c] sm:$0x1]
      %v2690 = vld [vmem:[%s826 + $0x30] sm:$0xe]
      %v2691 = vld [vmem:[%s826 + $0x34] sm:$0xf]
      %v2692 = vld [vmem:[%s826 + $0x38] sm:$0x1]
      %v2693 = vld [vmem:[%s826 + $0x3c] sm:$0xe]
      %v2694 = vld [vmem:[%s826 + $0x40] sm:$0xf]
      %v2695 = vld [vmem:[%s826 + $0x44] sm:$0x1]
      %v2696 = vld [vmem:[%s826 + $0x48] sm:$0xe]
      %v2697 = vld [vmem:[%s826 + $0x4c] sm:$0xf]
      %v2698 = vld [vmem:[%s826 + $0x50] sm:$0x1]
      %v2699 = vld [vmem:[%s826 + $0x54] sm:$0xe]
      %v2700 = vld [vmem:[%s826 + $0x58] sm:$0xf]
      %v2701 = vld [vmem:[%s826 + $0x5c] sm:$0x1]
      %v2702 = vld [vmem:[%s826 + $0x60] sm:$0xe]
      %v2703 = vld [vmem:[%s826 + $0x64] sm:$0xf]
      %v2704 = vld [vmem:[%s826 + $0x68] sm:$0x1]
      %v2705 = vld [vmem:[%s826 + $0x6c] sm:$0xe]
      %v2706 = vld [vmem:[%s826 + $0x70] sm:$0xf]
      %v2707 = vld [vmem:[%s826 + $0x74] sm:$0x1]
      %v2708 = vld [vmem:[%s826 + $0x78] sm:$0xe]
      %v2709 = vld [vmem:[%s826 + $0x7c] sm:$0xf]
      %v2710 = vld [vmem:[%s826 + $0x80] sm:$0x1]
      %v2711 = vld [vmem:[%s826 + $0x84] sm:$0xe]
      %v2712 = vld [vmem:[%s826 + $0x88] sm:$0xf]
      %v2713 = vld [vmem:[%s826 + $0x8c] sm:$0x1]
      %v2714 = vld [vmem:[%s826 + $0x90] sm:$0xe]
      %v2715 = vld [vmem:[%s826 + $0x94] sm:$0xf]
      %v2716 = vld [vmem:[%s826 + $0x98] sm:$0x1]
      %v2717 = vld [vmem:[%s826 + $0x9c] sm:$0xe]
      %v2718 = vld [vmem:[%s826 + $0xa0] sm:$0xf]
      %v2719 = vld [vmem:[%s826 + $0xa4] sm:$0x1]
      %v2720 = vld [vmem:[%s826 + $0xa8] sm:$0xe]
      %v2721 = vld [vmem:[%s826 + $0xac] sm:$0xf]
      %v2722 = vld [vmem:[%s826 + $0xb0] sm:$0x1]
      %v2723 = vld [vmem:[%s826 + $0xb4] sm:$0xe]
      %v2724 = vld [vmem:[%s826 + $0xb8] sm:$0xf]
      %v2725 = vld [vmem:[%s826 + $0xbc] sm:$0x1]
      %v2774 = vrot.slane %v2678, 5
      %v2775 = vrot.slane %v2774, 4
      %v2776 = vrot.slane %v2679, 5
      %v2777 = vsel %vm1730, %v2775, %v2776
      %v2778 = vrot.slane %v2776, 4
      %v2779 = vrot.slane %v2680, 5
      %v2780 = vsel %vm1730, %v2778, %v2779
      %v2781 = vrot.slane %v2681, 5
      %v2782 = vrot.slane %v2781, 4
      %v2783 = vrot.slane %v2682, 5
      %v2784 = vsel %vm1730, %v2782, %v2783
      %v2785 = vrot.slane %v2783, 4
      %v2786 = vrot.slane %v2683, 5
      %v2787 = vsel %vm1730, %v2785, %v2786
      %v2788 = vrot.slane %v2684, 5
      %v2789 = vrot.slane %v2788, 4
      %v2790 = vrot.slane %v2685, 5
      %v2791 = vsel %vm1730, %v2789, %v2790
      %v2792 = vrot.slane %v2790, 4
      %v2793 = vrot.slane %v2686, 5
      %v2794 = vsel %vm1730, %v2792, %v2793
      %v2795 = vrot.slane %v2687, 5
      %v2796 = vrot.slane %v2795, 4
      %v2797 = vrot.slane %v2688, 5
      %v2798 = vsel %vm1730, %v2796, %v2797
      %v2799 = vrot.slane %v2797, 4
      %v2800 = vrot.slane %v2689, 5
      %v2801 = vsel %vm1730, %v2799, %v2800
      %v2802 = vrot.slane %v2690, 5
      %v2803 = vrot.slane %v2802, 4
      %v2804 = vrot.slane %v2691, 5
      %v2805 = vsel %vm1730, %v2803, %v2804
      %v2806 = vrot.slane %v2804, 4
      %v2807 = vrot.slane %v2692, 5
      %v2808 = vsel %vm1730, %v2806, %v2807
      %v2809 = vrot.slane %v2693, 5
      %v2810 = vrot.slane %v2809, 4
      %v2811 = vrot.slane %v2694, 5
      %v2812 = vsel %vm1730, %v2810, %v2811
      %v2813 = vrot.slane %v2811, 4
      %v2814 = vrot.slane %v2695, 5
      %v2815 = vsel %vm1730, %v2813, %v2814
      %v2816 = vrot.slane %v2696, 5
      %v2817 = vrot.slane %v2816, 4
      %v2818 = vrot.slane %v2697, 5
      %v2819 = vsel %vm1730, %v2817, %v2818
      %v2820 = vrot.slane %v2818, 4
      %v2821 = vrot.slane %v2698, 5
      %v2822 = vsel %vm1730, %v2820, %v2821
      %v2823 = vrot.slane %v2699, 5
      %v2824 = vrot.slane %v2823, 4
      %v2825 = vrot.slane %v2700, 5
      %v2826 = vsel %vm1730, %v2824, %v2825
      %v2827 = vrot.slane %v2825, 4
      %v2828 = vrot.slane %v2701, 5
      %v2829 = vsel %vm1730, %v2827, %v2828
      %v2830 = vrot.slane %v2702, 5
      %v2831 = vrot.slane %v2830, 4
      %v2832 = vrot.slane %v2703, 5
      %v2833 = vsel %vm1730, %v2831, %v2832
      %v2834 = vrot.slane %v2832, 4
      %v2835 = vrot.slane %v2704, 5
      %v2836 = vsel %vm1730, %v2834, %v2835
      %v2837 = vrot.slane %v2705, 5
      %v2838 = vrot.slane %v2837, 4
      %v2839 = vrot.slane %v2706, 5
      %v2840 = vsel %vm1730, %v2838, %v2839
      %v2841 = vrot.slane %v2839, 4
      %v2842 = vrot.slane %v2707, 5
      %v2843 = vsel %vm1730, %v2841, %v2842
      %v2844 = vrot.slane %v2708, 5
      %v2845 = vrot.slane %v2844, 4
      %v2846 = vrot.slane %v2709, 5
      %v2847 = vsel %vm1730, %v2845, %v2846
      %v2848 = vrot.slane %v2846, 4
      %v2849 = vrot.slane %v2710, 5
      %v2850 = vsel %vm1730, %v2848, %v2849
      %v2851 = vrot.slane %v2711, 5
      %v2852 = vrot.slane %v2851, 4
      %v2853 = vrot.slane %v2712, 5
      %v2854 = vsel %vm1730, %v2852, %v2853
      %v2855 = vrot.slane %v2853, 4
      %v2856 = vrot.slane %v2713, 5
      %v2857 = vsel %vm1730, %v2855, %v2856
      %v2858 = vrot.slane %v2714, 5
      %v2859 = vrot.slane %v2858, 4
      %v2860 = vrot.slane %v2715, 5
      %v2861 = vsel %vm1730, %v2859, %v2860
      %v2862 = vrot.slane %v2860, 4
      %v2863 = vrot.slane %v2716, 5
      %v2864 = vsel %vm1730, %v2862, %v2863
      %v2865 = vrot.slane %v2717, 5
      %v2866 = vrot.slane %v2865, 4
      %v2867 = vrot.slane %v2718, 5
      %v2868 = vsel %vm1730, %v2866, %v2867
      %v2869 = vrot.slane %v2867, 4
      %v2870 = vrot.slane %v2719, 5
      %v2871 = vsel %vm1730, %v2869, %v2870
      %v2872 = vrot.slane %v2720, 5
      %v2873 = vrot.slane %v2872, 4
      %v2874 = vrot.slane %v2721, 5
      %v2875 = vsel %vm1730, %v2873, %v2874
      %v2876 = vrot.slane %v2874, 4
      %v2877 = vrot.slane %v2722, 5
      %v2878 = vsel %vm1730, %v2876, %v2877
      %v2879 = vrot.slane %v2723, 5
      %v2880 = vrot.slane %v2879, 4
      %v2881 = vrot.slane %v2724, 5
      %v2882 = vsel %vm1730, %v2880, %v2881
      %v2883 = vrot.slane %v2881, 4
      %v2884 = vrot.slane %v2725, 5
      %v2885 = vsel %vm1730, %v2883, %v2884
      %v2886 = vunpack.c.l.b16 %v2777
      %v2887 = vunpack.c.l.b16 %v2780
      %v2888 = vunpack.c.l.b16 %v2784
      %v2889 = vunpack.c.l.b16 %v2787
      %v2890 = vunpack.c.l.b16 %v2791
      %v2891 = vunpack.c.l.b16 %v2794
      %v2892 = vunpack.c.l.b16 %v2798
      %v2893 = vunpack.c.l.b16 %v2801
      %v2894 = vunpack.c.l.b16 %v2805
      %v2895 = vunpack.c.l.b16 %v2808
      %v2896 = vunpack.c.l.b16 %v2812
      %v2897 = vunpack.c.l.b16 %v2815
      %v2898 = vunpack.c.l.b16 %v2819
      %v2899 = vunpack.c.l.b16 %v2822
      %v2900 = vunpack.c.l.b16 %v2826
      %v2901 = vunpack.c.l.b16 %v2829
      %v2902 = vunpack.c.l.b16 %v2833
      %v2903 = vunpack.c.l.b16 %v2836
      %v2904 = vunpack.c.l.b16 %v2840
      %v2905 = vunpack.c.l.b16 %v2843
      %v2906 = vunpack.c.l.b16 %v2847
      %v2907 = vunpack.c.l.b16 %v2850
      %v2908 = vunpack.c.l.b16 %v2854
      %v2909 = vunpack.c.l.b16 %v2857
      %v2910 = vunpack.c.l.b16 %v2861
      %v2911 = vunpack.c.l.b16 %v2864
      %v2912 = vunpack.c.l.b16 %v2868
      %v2913 = vunpack.c.l.b16 %v2871
      %v2914 = vunpack.c.l.b16 %v2875
      %v2915 = vunpack.c.l.b16 %v2878
      %v2916 = vunpack.c.l.b16 %v2882
      %v2917 = vunpack.c.l.b16 %v2885
      %v2918 = vpack.c.b16 %v2887, %v2886
      %v2919 = vpack.c.b16 %v2889, %v2888
      %v2920 = vpack.c.b16 %v2891, %v2890
      %v2921 = vpack.c.b16 %v2893, %v2892
      %v2922 = vpack.c.b16 %v2895, %v2894
      %v2923 = vpack.c.b16 %v2897, %v2896
      %v2924 = vpack.c.b16 %v2899, %v2898
      %v2925 = vpack.c.b16 %v2901, %v2900
      %v2926 = vpack.c.b16 %v2903, %v2902
      %v2927 = vpack.c.b16 %v2905, %v2904
      %v2928 = vpack.c.b16 %v2907, %v2906
      %v2929 = vpack.c.b16 %v2909, %v2908
      %v2930 = vpack.c.b16 %v2911, %v2910
      %v2931 = vpack.c.b16 %v2913, %v2912
      %v2932 = vpack.c.b16 %v2915, %v2914
      %v2933 = vpack.c.b16 %v2917, %v2916
      %2934 = vrot.lane.b32.xlu0 %v2918, 20
      %v2935 = vpop.permute.xlu0 %2934
      %2936 = vrot.lane.b32.xlu0 %v2919, 20
      %v2937 = vpop.permute.xlu0 %2936
      %2938 = vrot.lane.b32.xlu0 %v2920, 20
      %v2939 = vpop.permute.xlu0 %2938
      %2940 = vrot.lane.b32.xlu0 %v2921, 20
      %v2941 = vpop.permute.xlu0 %2940
      %2942 = vrot.lane.b32.xlu0 %v2922, 20
      %v2943 = vpop.permute.xlu0 %2942
      %2944 = vrot.lane.b32.xlu0 %v2923, 20
      %v2945 = vpop.permute.xlu0 %2944
      %2946 = vrot.lane.b32.xlu0 %v2924, 20
      %v2947 = vpop.permute.xlu0 %2946
      %2948 = vrot.lane.b32.xlu0 %v2925, 20
      %v2949 = vpop.permute.xlu0 %2948
      %2950 = vrot.lane.b32.xlu0 %v2926, 20
      %v2951 = vpop.permute.xlu0 %2950
      %2952 = vrot.lane.b32.xlu0 %v2927, 20
      %v2953 = vpop.permute.xlu0 %2952
      %2954 = vrot.lane.b32.xlu0 %v2928, 20
      %v2955 = vpop.permute.xlu0 %2954
      %2956 = vrot.lane.b32.xlu0 %v2929, 20
      %v2957 = vpop.permute.xlu0 %2956
      %2958 = vrot.lane.b32.xlu0 %v2930, 20
      %v2959 = vpop.permute.xlu0 %2958
      %2960 = vrot.lane.b32.xlu0 %v2931, 20
      %v2961 = vpop.permute.xlu0 %2960
      %2962 = vrot.lane.b32.xlu0 %v2932, 20
      %v2963 = vpop.permute.xlu0 %2962
      %2964 = vrot.lane.b32.xlu0 %v2933, 20
      %v2965 = vpop.permute.xlu0 %2964
      %vm2982 = vcmask 195744
      %2983 = vst.msk [vmem:[#allocation3] sm:$0xff] %vm2982, %v2935
      %2984 = vst.msk [vmem:[#allocation3 + $0x8] sm:$0xff] %vm2982, %v2937
      %2985 = vst.msk [vmem:[#allocation3 + $0x10] sm:$0xff] %vm2982, %v2939
      %2986 = vst.msk [vmem:[#allocation3 + $0x18] sm:$0xff] %vm2982, %v2941
      %2987 = vst.msk [vmem:[#allocation3 + $0x20] sm:$0xff] %vm2982, %v2943
      %2988 = vst.msk [vmem:[#allocation3 + $0x28] sm:$0xff] %vm2982, %v2945
      %2989 = vst.msk [vmem:[#allocation3 + $0x30] sm:$0xff] %vm2982, %v2947
      %2990 = vst.msk [vmem:[#allocation3 + $0x38] sm:$0xff] %vm2982, %v2949
      %2991 = vst.msk [vmem:[#allocation3 + $0x40] sm:$0xff] %vm2982, %v2951
      %2992 = vst.msk [vmem:[#allocation3 + $0x48] sm:$0xff] %vm2982, %v2953
      %2993 = vst.msk [vmem:[#allocation3 + $0x50] sm:$0xff] %vm2982, %v2955
      %2994 = vst.msk [vmem:[#allocation3 + $0x58] sm:$0xff] %vm2982, %v2957
      %2995 = vst.msk [vmem:[#allocation3 + $0x60] sm:$0xff] %vm2982, %v2959
      %2996 = vst.msk [vmem:[#allocation3 + $0x68] sm:$0xff] %vm2982, %v2961
      %2997 = vst.msk [vmem:[#allocation3 + $0x70] sm:$0xff] %vm2982, %v2963
      %2998 = vst.msk [vmem:[#allocation3 + $0x78] sm:$0xff] %vm2982, %v2965
      %s2999 = scalar_lea.vmem [#allocation2], 24
      %v3000 = vld [vmem:[%s2999] sm:$0xf]
      %v3001 = vld [vmem:[%s2999 + $0x4] sm:$0xf]
      %v3002 = vld [vmem:[%s2999 + $0xc] sm:$0xf]
      %v3003 = vld [vmem:[%s2999 + $0x10] sm:$0xf]
      %v3004 = vld [vmem:[%s2999 + $0x18] sm:$0xf]
      %v3005 = vld [vmem:[%s2999 + $0x1c] sm:$0xf]
      %v3006 = vld [vmem:[%s2999 + $0x24] sm:$0xf]
      %v3007 = vld [vmem:[%s2999 + $0x28] sm:$0xf]
      %v3008 = vld [vmem:[%s2999 + $0x30] sm:$0xf]
      %v3009 = vld [vmem:[%s2999 + $0x34] sm:$0xf]
      %v3010 = vld [vmem:[%s2999 + $0x3c] sm:$0xf]
      %v3011 = vld [vmem:[%s2999 + $0x40] sm:$0xf]
      %v3012 = vld [vmem:[%s2999 + $0x48] sm:$0xf]
      %v3013 = vld [vmem:[%s2999 + $0x4c] sm:$0xf]
      %v3014 = vld [vmem:[%s2999 + $0x54] sm:$0xf]
      %v3015 = vld [vmem:[%s2999 + $0x58] sm:$0xf]
      %v3016 = vld [vmem:[%s2999 + $0x60] sm:$0xf]
      %v3017 = vld [vmem:[%s2999 + $0x64] sm:$0xf]
      %v3018 = vld [vmem:[%s2999 + $0x6c] sm:$0xf]
      %v3019 = vld [vmem:[%s2999 + $0x70] sm:$0xf]
      %v3020 = vld [vmem:[%s2999 + $0x78] sm:$0xf]
      %v3021 = vld [vmem:[%s2999 + $0x7c] sm:$0xf]
      %v3022 = vld [vmem:[%s2999 + $0x84] sm:$0xf]
      %v3023 = vld [vmem:[%s2999 + $0x88] sm:$0xf]
      %v3024 = vld [vmem:[%s2999 + $0x90] sm:$0xf]
      %v3025 = vld [vmem:[%s2999 + $0x94] sm:$0xf]
      %v3026 = vld [vmem:[%s2999 + $0x9c] sm:$0xf]
      %v3027 = vld [vmem:[%s2999 + $0xa0] sm:$0xf]
      %v3028 = vld [vmem:[%s2999 + $0xa8] sm:$0xf]
      %v3029 = vld [vmem:[%s2999 + $0xac] sm:$0xf]
      %v3030 = vld [vmem:[%s2999 + $0xb4] sm:$0xf]
      %v3031 = vld [vmem:[%s2999 + $0xb8] sm:$0xf]
      %v3064 = vunpack.c.l.b16 %v3000
      %v3065 = vunpack.c.l.b16 %v3001
      %v3066 = vunpack.c.l.b16 %v3002
      %v3067 = vunpack.c.l.b16 %v3003
      %v3068 = vunpack.c.l.b16 %v3004
      %v3069 = vunpack.c.l.b16 %v3005
      %v3070 = vunpack.c.l.b16 %v3006
      %v3071 = vunpack.c.l.b16 %v3007
      %v3072 = vunpack.c.l.b16 %v3008
      %v3073 = vunpack.c.l.b16 %v3009
      %v3074 = vunpack.c.l.b16 %v3010
      %v3075 = vunpack.c.l.b16 %v3011
      %v3076 = vunpack.c.l.b16 %v3012
      %v3077 = vunpack.c.l.b16 %v3013
      %v3078 = vunpack.c.l.b16 %v3014
      %v3079 = vunpack.c.l.b16 %v3015
      %v3080 = vunpack.c.l.b16 %v3016
      %v3081 = vunpack.c.l.b16 %v3017
      %v3082 = vunpack.c.l.b16 %v3018
      %v3083 = vunpack.c.l.b16 %v3019
      %v3084 = vunpack.c.l.b16 %v3020
      %v3085 = vunpack.c.l.b16 %v3021
      %v3086 = vunpack.c.l.b16 %v3022
      %v3087 = vunpack.c.l.b16 %v3023
      %v3088 = vunpack.c.l.b16 %v3024
      %v3089 = vunpack.c.l.b16 %v3025
      %v3090 = vunpack.c.l.b16 %v3026
      %v3091 = vunpack.c.l.b16 %v3027
      %v3092 = vunpack.c.l.b16 %v3028
      %v3093 = vunpack.c.l.b16 %v3029
      %v3094 = vunpack.c.l.b16 %v3030
      %v3095 = vunpack.c.l.b16 %v3031
      %v3096 = vpack.c.b16 %v3065, %v3064
      %v3097 = vpack.c.b16 %v3067, %v3066
      %v3098 = vpack.c.b16 %v3069, %v3068
      %v3099 = vpack.c.b16 %v3071, %v3070
      %v3100 = vpack.c.b16 %v3073, %v3072
      %v3101 = vpack.c.b16 %v3075, %v3074
      %v3102 = vpack.c.b16 %v3077, %v3076
      %v3103 = vpack.c.b16 %v3079, %v3078
      %v3104 = vpack.c.b16 %v3081, %v3080
      %v3105 = vpack.c.b16 %v3083, %v3082
      %v3106 = vpack.c.b16 %v3085, %v3084
      %v3107 = vpack.c.b16 %v3087, %v3086
      %v3108 = vpack.c.b16 %v3089, %v3088
      %v3109 = vpack.c.b16 %v3091, %v3090
      %v3110 = vpack.c.b16 %v3093, %v3092
      %v3111 = vpack.c.b16 %v3095, %v3094
      %3112 = vrot.lane.b32.xlu0 %v3096, 24
      %v3113 = vpop.permute.xlu0 %3112
      %3114 = vrot.lane.b32.xlu0 %v3097, 24
      %v3115 = vpop.permute.xlu0 %3114
      %3116 = vrot.lane.b32.xlu0 %v3098, 24
      %v3117 = vpop.permute.xlu0 %3116
      %3118 = vrot.lane.b32.xlu0 %v3099, 24
      %v3119 = vpop.permute.xlu0 %3118
      %3120 = vrot.lane.b32.xlu0 %v3100, 24
      %v3121 = vpop.permute.xlu0 %3120
      %3122 = vrot.lane.b32.xlu0 %v3101, 24
      %v3123 = vpop.permute.xlu0 %3122
      %3124 = vrot.lane.b32.xlu0 %v3102, 24
      %v3125 = vpop.permute.xlu0 %3124
      %3126 = vrot.lane.b32.xlu0 %v3103, 24
      %v3127 = vpop.permute.xlu0 %3126
      %3128 = vrot.lane.b32.xlu0 %v3104, 24
      %v3129 = vpop.permute.xlu0 %3128
      %3130 = vrot.lane.b32.xlu0 %v3105, 24
      %v3131 = vpop.permute.xlu0 %3130
      %3132 = vrot.lane.b32.xlu0 %v3106, 24
      %v3133 = vpop.permute.xlu0 %3132
      %3134 = vrot.lane.b32.xlu0 %v3107, 24
      %v3135 = vpop.permute.xlu0 %3134
      %3136 = vrot.lane.b32.xlu0 %v3108, 24
      %v3137 = vpop.permute.xlu0 %3136
      %3138 = vrot.lane.b32.xlu0 %v3109, 24
      %v3139 = vpop.permute.xlu0 %3138
      %3140 = vrot.lane.b32.xlu0 %v3110, 24
      %v3141 = vpop.permute.xlu0 %3140
      %3142 = vrot.lane.b32.xlu0 %v3111, 24
      %v3143 = vpop.permute.xlu0 %3142
      %vm3160 = vcmask 228544
      %3161 = vst.msk [vmem:[#allocation3] sm:$0xff] %vm3160, %v3113
      %3162 = vst.msk [vmem:[#allocation3 + $0x8] sm:$0xff] %vm3160, %v3115
      %3163 = vst.msk [vmem:[#allocation3 + $0x10] sm:$0xff] %vm3160, %v3117
      %3164 = vst.msk [vmem:[#allocation3 + $0x18] sm:$0xff] %vm3160, %v3119
      %3165 = vst.msk [vmem:[#allocation3 + $0x20] sm:$0xff] %vm3160, %v3121
      %3166 = vst.msk [vmem:[#allocation3 + $0x28] sm:$0xff] %vm3160, %v3123
      %3167 = vst.msk [vmem:[#allocation3 + $0x30] sm:$0xff] %vm3160, %v3125
      %3168 = vst.msk [vmem:[#allocation3 + $0x38] sm:$0xff] %vm3160, %v3127
      %3169 = vst.msk [vmem:[#allocation3 + $0x40] sm:$0xff] %vm3160, %v3129
      %3170 = vst.msk [vmem:[#allocation3 + $0x48] sm:$0xff] %vm3160, %v3131
      %3171 = vst.msk [vmem:[#allocation3 + $0x50] sm:$0xff] %vm3160, %v3133
      %3172 = vst.msk [vmem:[#allocation3 + $0x58] sm:$0xff] %vm3160, %v3135
      %3173 = vst.msk [vmem:[#allocation3 + $0x60] sm:$0xff] %vm3160, %v3137
      %3174 = vst.msk [vmem:[#allocation3 + $0x68] sm:$0xff] %vm3160, %v3139
      %3175 = vst.msk [vmem:[#allocation3 + $0x70] sm:$0xff] %vm3160, %v3141
      %3176 = vst.msk [vmem:[#allocation3 + $0x78] sm:$0xff] %vm3160, %v3143
      %v3177 = vld [vmem:[%s2999] sm:$0xf]
      %v3178 = vld [vmem:[%s2999 + $0x4] sm:$0xf]
      %v3179 = vld [vmem:[%s2999 + $0x8] sm:$0x1]
      %v3180 = vld [vmem:[%s2999 + $0xc] sm:$0xf]
      %v3181 = vld [vmem:[%s2999 + $0x10] sm:$0xf]
      %v3182 = vld [vmem:[%s2999 + $0x14] sm:$0x1]
      %v3183 = vld [vmem:[%s2999 + $0x18] sm:$0xf]
      %v3184 = vld [vmem:[%s2999 + $0x1c] sm:$0xf]
      %v3185 = vld [vmem:[%s2999 + $0x20] sm:$0x1]
      %v3186 = vld [vmem:[%s2999 + $0x24] sm:$0xf]
      %v3187 = vld [vmem:[%s2999 + $0x28] sm:$0xf]
      %v3188 = vld [vmem:[%s2999 + $0x2c] sm:$0x1]
      %v3189 = vld [vmem:[%s2999 + $0x30] sm:$0xf]
      %v3190 = vld [vmem:[%s2999 + $0x34] sm:$0xf]
      %v3191 = vld [vmem:[%s2999 + $0x38] sm:$0x1]
      %v3192 = vld [vmem:[%s2999 + $0x3c] sm:$0xf]
      %v3193 = vld [vmem:[%s2999 + $0x40] sm:$0xf]
      %v3194 = vld [vmem:[%s2999 + $0x44] sm:$0x1]
      %v3195 = vld [vmem:[%s2999 + $0x48] sm:$0xf]
      %v3196 = vld [vmem:[%s2999 + $0x4c] sm:$0xf]
      %v3197 = vld [vmem:[%s2999 + $0x50] sm:$0x1]
      %v3198 = vld [vmem:[%s2999 + $0x54] sm:$0xf]
      %v3199 = vld [vmem:[%s2999 + $0x58] sm:$0xf]
      %v3200 = vld [vmem:[%s2999 + $0x5c] sm:$0x1]
      %v3201 = vld [vmem:[%s2999 + $0x60] sm:$0xf]
      %v3202 = vld [vmem:[%s2999 + $0x64] sm:$0xf]
      %v3203 = vld [vmem:[%s2999 + $0x68] sm:$0x1]
      %v3204 = vld [vmem:[%s2999 + $0x6c] sm:$0xf]
      %v3205 = vld [vmem:[%s2999 + $0x70] sm:$0xf]
      %v3206 = vld [vmem:[%s2999 + $0x74] sm:$0x1]
      %v3207 = vld [vmem:[%s2999 + $0x78] sm:$0xf]
      %v3208 = vld [vmem:[%s2999 + $0x7c] sm:$0xf]
      %v3209 = vld [vmem:[%s2999 + $0x80] sm:$0x1]
      %v3210 = vld [vmem:[%s2999 + $0x84] sm:$0xf]
      %v3211 = vld [vmem:[%s2999 + $0x88] sm:$0xf]
      %v3212 = vld [vmem:[%s2999 + $0x8c] sm:$0x1]
      %v3213 = vld [vmem:[%s2999 + $0x90] sm:$0xf]
      %v3214 = vld [vmem:[%s2999 + $0x94] sm:$0xf]
      %v3215 = vld [vmem:[%s2999 + $0x98] sm:$0x1]
      %v3216 = vld [vmem:[%s2999 + $0x9c] sm:$0xf]
      %v3217 = vld [vmem:[%s2999 + $0xa0] sm:$0xf]
      %v3218 = vld [vmem:[%s2999 + $0xa4] sm:$0x1]
      %v3219 = vld [vmem:[%s2999 + $0xa8] sm:$0xf]
      %v3220 = vld [vmem:[%s2999 + $0xac] sm:$0xf]
      %v3221 = vld [vmem:[%s2999 + $0xb0] sm:$0x1]
      %v3222 = vld [vmem:[%s2999 + $0xb4] sm:$0xf]
      %v3223 = vld [vmem:[%s2999 + $0xb8] sm:$0xf]
      %v3224 = vld [vmem:[%s2999 + $0xbc] sm:$0x1]
      %v3226 = vshrl.u32 %v3177, 16
      %v3228 = vrot.slane %v3226, 4
      %v3229 = vshll.u32 %v3177, 16
      %v3231 = vrot.slane %v3229, 5
      %v3232 = vor.u32 %v3228, %v3231
      %v3233 = vrot.slane %v3232, 4
      %v3235 = vshll.u32 %v3178, 16
      %v3237 = vrot.slane %v3235, 5
      %v3238 = vsel %vm1134, %v3233, %v3237
      %v3239 = vshrl.u32 %v3178, 16
      %v3241 = vrot.slane %v3239, 4
      %v3242 = vor.u32 %v3241, %v3237
      %v3243 = vrot.slane %v3242, 4
      %v3245 = vshll.u32 %v3179, 16
      %v3247 = vrot.slane %v3245, 5
      %v3248 = vsel %vm1134, %v3243, %v3247
      %v3250 = vshrl.u32 %v3180, 16
      %v3252 = vrot.slane %v3250, 4
      %v3253 = vshll.u32 %v3180, 16
      %v3255 = vrot.slane %v3253, 5
      %v3256 = vor.u32 %v3252, %v3255
      %v3257 = vrot.slane %v3256, 4
      %v3259 = vshll.u32 %v3181, 16
      %v3261 = vrot.slane %v3259, 5
      %v3262 = vsel %vm1134, %v3257, %v3261
      %v3263 = vshrl.u32 %v3181, 16
      %v3265 = vrot.slane %v3263, 4
      %v3266 = vor.u32 %v3265, %v3261
      %v3267 = vrot.slane %v3266, 4
      %v3269 = vshll.u32 %v3182, 16
      %v3271 = vrot.slane %v3269, 5
      %v3272 = vsel %vm1134, %v3267, %v3271
      %v3274 = vshrl.u32 %v3183, 16
      %v3276 = vrot.slane %v3274, 4
      %v3277 = vshll.u32 %v3183, 16
      %v3279 = vrot.slane %v3277, 5
      %v3280 = vor.u32 %v3276, %v3279
      %v3281 = vrot.slane %v3280, 4
      %v3283 = vshll.u32 %v3184, 16
      %v3285 = vrot.slane %v3283, 5
      %v3286 = vsel %vm1134, %v3281, %v3285
      %v3287 = vshrl.u32 %v3184, 16
      %v3289 = vrot.slane %v3287, 4
      %v3290 = vor.u32 %v3289, %v3285
      %v3291 = vrot.slane %v3290, 4
      %v3293 = vshll.u32 %v3185, 16
      %v3295 = vrot.slane %v3293, 5
      %v3296 = vsel %vm1134, %v3291, %v3295
      %v3298 = vshrl.u32 %v3186, 16
      %v3300 = vrot.slane %v3298, 4
      %v3301 = vshll.u32 %v3186, 16
      %v3303 = vrot.slane %v3301, 5
      %v3304 = vor.u32 %v3300, %v3303
      %v3305 = vrot.slane %v3304, 4
      %v3307 = vshll.u32 %v3187, 16
      %v3309 = vrot.slane %v3307, 5
      %v3310 = vsel %vm1134, %v3305, %v3309
      %v3311 = vshrl.u32 %v3187, 16
      %v3313 = vrot.slane %v3311, 4
      %v3314 = vor.u32 %v3313, %v3309
      %v3315 = vrot.slane %v3314, 4
      %v3317 = vshll.u32 %v3188, 16
      %v3319 = vrot.slane %v3317, 5
      %v3320 = vsel %vm1134, %v3315, %v3319
      %v3322 = vshrl.u32 %v3189, 16
      %v3324 = vrot.slane %v3322, 4
      %v3325 = vshll.u32 %v3189, 16
      %v3327 = vrot.slane %v3325, 5
      %v3328 = vor.u32 %v3324, %v3327
      %v3329 = vrot.slane %v3328, 4
      %v3331 = vshll.u32 %v3190, 16
      %v3333 = vrot.slane %v3331, 5
      %v3334 = vsel %vm1134, %v3329, %v3333
      %v3335 = vshrl.u32 %v3190, 16
      %v3337 = vrot.slane %v3335, 4
      %v3338 = vor.u32 %v3337, %v3333
      %v3339 = vrot.slane %v3338, 4
      %v3341 = vshll.u32 %v3191, 16
      %v3343 = vrot.slane %v3341, 5
      %v3344 = vsel %vm1134, %v3339, %v3343
      %v3346 = vshrl.u32 %v3192, 16
      %v3348 = vrot.slane %v3346, 4
      %v3349 = vshll.u32 %v3192, 16
      %v3351 = vrot.slane %v3349, 5
      %v3352 = vor.u32 %v3348, %v3351
      %v3353 = vrot.slane %v3352, 4
      %v3355 = vshll.u32 %v3193, 16
      %v3357 = vrot.slane %v3355, 5
      %v3358 = vsel %vm1134, %v3353, %v3357
      %v3359 = vshrl.u32 %v3193, 16
      %v3361 = vrot.slane %v3359, 4
      %v3362 = vor.u32 %v3361, %v3357
      %v3363 = vrot.slane %v3362, 4
      %v3365 = vshll.u32 %v3194, 16
      %v3367 = vrot.slane %v3365, 5
      %v3368 = vsel %vm1134, %v3363, %v3367
      %v3370 = vshrl.u32 %v3195, 16
      %v3372 = vrot.slane %v3370, 4
      %v3373 = vshll.u32 %v3195, 16
      %v3375 = vrot.slane %v3373, 5
      %v3376 = vor.u32 %v3372, %v3375
      %v3377 = vrot.slane %v3376, 4
      %v3379 = vshll.u32 %v3196, 16
      %v3381 = vrot.slane %v3379, 5
      %v3382 = vsel %vm1134, %v3377, %v3381
      %v3383 = vshrl.u32 %v3196, 16
      %v3385 = vrot.slane %v3383, 4
      %v3386 = vor.u32 %v3385, %v3381
      %v3387 = vrot.slane %v3386, 4
      %v3389 = vshll.u32 %v3197, 16
      %v3391 = vrot.slane %v3389, 5
      %v3392 = vsel %vm1134, %v3387, %v3391
      %v3394 = vshrl.u32 %v3198, 16
      %v3396 = vrot.slane %v3394, 4
      %v3397 = vshll.u32 %v3198, 16
      %v3399 = vrot.slane %v3397, 5
      %v3400 = vor.u32 %v3396, %v3399
      %v3401 = vrot.slane %v3400, 4
      %v3403 = vshll.u32 %v3199, 16
      %v3405 = vrot.slane %v3403, 5
      %v3406 = vsel %vm1134, %v3401, %v3405
      %v3407 = vshrl.u32 %v3199, 16
      %v3409 = vrot.slane %v3407, 4
      %v3410 = vor.u32 %v3409, %v3405
      %v3411 = vrot.slane %v3410, 4
      %v3413 = vshll.u32 %v3200, 16
      %v3415 = vrot.slane %v3413, 5
      %v3416 = vsel %vm1134, %v3411, %v3415
      %v3418 = vshrl.u32 %v3201, 16
      %v3420 = vrot.slane %v3418, 4
      %v3421 = vshll.u32 %v3201, 16
      %v3423 = vrot.slane %v3421, 5
      %v3424 = vor.u32 %v3420, %v3423
      %v3425 = vrot.slane %v3424, 4
      %v3427 = vshll.u32 %v3202, 16
      %v3429 = vrot.slane %v3427, 5
      %v3430 = vsel %vm1134, %v3425, %v3429
      %v3431 = vshrl.u32 %v3202, 16
      %v3433 = vrot.slane %v3431, 4
      %v3434 = vor.u32 %v3433, %v3429
      %v3435 = vrot.slane %v3434, 4
      %v3437 = vshll.u32 %v3203, 16
      %v3439 = vrot.slane %v3437, 5
      %v3440 = vsel %vm1134, %v3435, %v3439
      %v3442 = vshrl.u32 %v3204, 16
      %v3444 = vrot.slane %v3442, 4
      %v3445 = vshll.u32 %v3204, 16
      %v3447 = vrot.slane %v3445, 5
      %v3448 = vor.u32 %v3444, %v3447
      %v3449 = vrot.slane %v3448, 4
      %v3451 = vshll.u32 %v3205, 16
      %v3453 = vrot.slane %v3451, 5
      %v3454 = vsel %vm1134, %v3449, %v3453
      %v3455 = vshrl.u32 %v3205, 16
      %v3457 = vrot.slane %v3455, 4
      %v3458 = vor.u32 %v3457, %v3453
      %v3459 = vrot.slane %v3458, 4
      %v3461 = vshll.u32 %v3206, 16
      %v3463 = vrot.slane %v3461, 5
      %v3464 = vsel %vm1134, %v3459, %v3463
      %v3466 = vshrl.u32 %v3207, 16
      %v3468 = vrot.slane %v3466, 4
      %v3469 = vshll.u32 %v3207, 16
      %v3471 = vrot.slane %v3469, 5
      %v3472 = vor.u32 %v3468, %v3471
      %v3473 = vrot.slane %v3472, 4
      %v3475 = vshll.u32 %v3208, 16
      %v3477 = vrot.slane %v3475, 5
      %v3478 = vsel %vm1134, %v3473, %v3477
      %v3479 = vshrl.u32 %v3208, 16
      %v3481 = vrot.slane %v3479, 4
      %v3482 = vor.u32 %v3481, %v3477
      %v3483 = vrot.slane %v3482, 4
      %v3485 = vshll.u32 %v3209, 16
      %v3487 = vrot.slane %v3485, 5
      %v3488 = vsel %vm1134, %v3483, %v3487
      %v3490 = vshrl.u32 %v3210, 16
      %v3492 = vrot.slane %v3490, 4
      %v3493 = vshll.u32 %v3210, 16
      %v3495 = vrot.slane %v3493, 5
      %v3496 = vor.u32 %v3492, %v3495
      %v3497 = vrot.slane %v3496, 4
      %v3499 = vshll.u32 %v3211, 16
      %v3501 = vrot.slane %v3499, 5
      %v3502 = vsel %vm1134, %v3497, %v3501
      %v3503 = vshrl.u32 %v3211, 16
      %v3505 = vrot.slane %v3503, 4
      %v3506 = vor.u32 %v3505, %v3501
      %v3507 = vrot.slane %v3506, 4
      %v3509 = vshll.u32 %v3212, 16
      %v3511 = vrot.slane %v3509, 5
      %v3512 = vsel %vm1134, %v3507, %v3511
      %v3514 = vshrl.u32 %v3213, 16
      %v3516 = vrot.slane %v3514, 4
      %v3517 = vshll.u32 %v3213, 16
      %v3519 = vrot.slane %v3517, 5
      %v3520 = vor.u32 %v3516, %v3519
      %v3521 = vrot.slane %v3520, 4
      %v3523 = vshll.u32 %v3214, 16
      %v3525 = vrot.slane %v3523, 5
      %v3526 = vsel %vm1134, %v3521, %v3525
      %v3527 = vshrl.u32 %v3214, 16
      %v3529 = vrot.slane %v3527, 4
      %v3530 = vor.u32 %v3529, %v3525
      %v3531 = vrot.slane %v3530, 4
      %v3533 = vshll.u32 %v3215, 16
      %v3535 = vrot.slane %v3533, 5
      %v3536 = vsel %vm1134, %v3531, %v3535
      %v3538 = vshrl.u32 %v3216, 16
      %v3540 = vrot.slane %v3538, 4
      %v3541 = vshll.u32 %v3216, 16
      %v3543 = vrot.slane %v3541, 5
      %v3544 = vor.u32 %v3540, %v3543
      %v3545 = vrot.slane %v3544, 4
      %v3547 = vshll.u32 %v3217, 16
      %v3549 = vrot.slane %v3547, 5
      %v3550 = vsel %vm1134, %v3545, %v3549
      %v3551 = vshrl.u32 %v3217, 16
      %v3553 = vrot.slane %v3551, 4
      %v3554 = vor.u32 %v3553, %v3549
      %v3555 = vrot.slane %v3554, 4
      %v3557 = vshll.u32 %v3218, 16
      %v3559 = vrot.slane %v3557, 5
      %v3560 = vsel %vm1134, %v3555, %v3559
      %v3562 = vshrl.u32 %v3219, 16
      %v3564 = vrot.slane %v3562, 4
      %v3565 = vshll.u32 %v3219, 16
      %v3567 = vrot.slane %v3565, 5
      %v3568 = vor.u32 %v3564, %v3567
      %v3569 = vrot.slane %v3568, 4
      %v3571 = vshll.u32 %v3220, 16
      %v3573 = vrot.slane %v3571, 5
      %v3574 = vsel %vm1134, %v3569, %v3573
      %v3575 = vshrl.u32 %v3220, 16
      %v3577 = vrot.slane %v3575, 4
      %v3578 = vor.u32 %v3577, %v3573
      %v3579 = vrot.slane %v3578, 4
      %v3581 = vshll.u32 %v3221, 16
      %v3583 = vrot.slane %v3581, 5
      %v3584 = vsel %vm1134, %v3579, %v3583
      %v3586 = vshrl.u32 %v3222, 16
      %v3588 = vrot.slane %v3586, 4
      %v3589 = vshll.u32 %v3222, 16
      %v3591 = vrot.slane %v3589, 5
      %v3592 = vor.u32 %v3588, %v3591
      %v3593 = vrot.slane %v3592, 4
      %v3595 = vshll.u32 %v3223, 16
      %v3597 = vrot.slane %v3595, 5
      %v3598 = vsel %vm1134, %v3593, %v3597
      %v3599 = vshrl.u32 %v3223, 16
      %v3601 = vrot.slane %v3599, 4
      %v3602 = vor.u32 %v3601, %v3597
      %v3603 = vrot.slane %v3602, 4
      %v3605 = vshll.u32 %v3224, 16
      %v3607 = vrot.slane %v3605, 5
      %v3608 = vsel %vm1134, %v3603, %v3607
      %v3609 = vunpack.c.l.b16 %v3238
      %v3610 = vunpack.c.l.b16 %v3248
      %v3611 = vunpack.c.l.b16 %v3262
      %v3612 = vunpack.c.l.b16 %v3272
      %v3613 = vunpack.c.l.b16 %v3286
      %v3614 = vunpack.c.l.b16 %v3296
      %v3615 = vunpack.c.l.b16 %v3310
      %v3616 = vunpack.c.l.b16 %v3320
      %v3617 = vunpack.c.l.b16 %v3334
      %v3618 = vunpack.c.l.b16 %v3344
      %v3619 = vunpack.c.l.b16 %v3358
      %v3620 = vunpack.c.l.b16 %v3368
      %v3621 = vunpack.c.l.b16 %v3382
      %v3622 = vunpack.c.l.b16 %v3392
      %v3623 = vunpack.c.l.b16 %v3406
      %v3624 = vunpack.c.l.b16 %v3416
      %v3625 = vunpack.c.l.b16 %v3430
      %v3626 = vunpack.c.l.b16 %v3440
      %v3627 = vunpack.c.l.b16 %v3454
      %v3628 = vunpack.c.l.b16 %v3464
      %v3629 = vunpack.c.l.b16 %v3478
      %v3630 = vunpack.c.l.b16 %v3488
      %v3631 = vunpack.c.l.b16 %v3502
      %v3632 = vunpack.c.l.b16 %v3512
      %v3633 = vunpack.c.l.b16 %v3526
      %v3634 = vunpack.c.l.b16 %v3536
      %v3635 = vunpack.c.l.b16 %v3550
      %v3636 = vunpack.c.l.b16 %v3560
      %v3637 = vunpack.c.l.b16 %v3574
      %v3638 = vunpack.c.l.b16 %v3584
      %v3639 = vunpack.c.l.b16 %v3598
      %v3640 = vunpack.c.l.b16 %v3608
      %v3641 = vpack.c.b16 %v3610, %v3609
      %v3642 = vpack.c.b16 %v3612, %v3611
      %v3643 = vpack.c.b16 %v3614, %v3613
      %v3644 = vpack.c.b16 %v3616, %v3615
      %v3645 = vpack.c.b16 %v3618, %v3617
      %v3646 = vpack.c.b16 %v3620, %v3619
      %v3647 = vpack.c.b16 %v3622, %v3621
      %v3648 = vpack.c.b16 %v3624, %v3623
      %v3649 = vpack.c.b16 %v3626, %v3625
      %v3650 = vpack.c.b16 %v3628, %v3627
      %v3651 = vpack.c.b16 %v3630, %v3629
      %v3652 = vpack.c.b16 %v3632, %v3631
      %v3653 = vpack.c.b16 %v3634, %v3633
      %v3654 = vpack.c.b16 %v3636, %v3635
      %v3655 = vpack.c.b16 %v3638, %v3637
      %v3656 = vpack.c.b16 %v3640, %v3639
      %3657 = vrot.lane.b32.xlu0 %v3641, 28
      %v3658 = vpop.permute.xlu0 %3657
      %3659 = vrot.lane.b32.xlu0 %v3642, 28
      %v3660 = vpop.permute.xlu0 %3659
      %3661 = vrot.lane.b32.xlu0 %v3643, 28
      %v3662 = vpop.permute.xlu0 %3661
      %3663 = vrot.lane.b32.xlu0 %v3644, 28
      %v3664 = vpop.permute.xlu0 %3663
      %3665 = vrot.lane.b32.xlu0 %v3645, 28
      %v3666 = vpop.permute.xlu0 %3665
      %3667 = vrot.lane.b32.xlu0 %v3646, 28
      %v3668 = vpop.permute.xlu0 %3667
      %3669 = vrot.lane.b32.xlu0 %v3647, 28
      %v3670 = vpop.permute.xlu0 %3669
      %3671 = vrot.lane.b32.xlu0 %v3648, 28
      %v3672 = vpop.permute.xlu0 %3671
      %3673 = vrot.lane.b32.xlu0 %v3649, 28
      %v3674 = vpop.permute.xlu0 %3673
      %3675 = vrot.lane.b32.xlu0 %v3650, 28
      %v3676 = vpop.permute.xlu0 %3675
      %3677 = vrot.lane.b32.xlu0 %v3651, 28
      %v3678 = vpop.permute.xlu0 %3677
      %3679 = vrot.lane.b32.xlu0 %v3652, 28
      %v3680 = vpop.permute.xlu0 %3679
      %3681 = vrot.lane.b32.xlu0 %v3653, 28
      %v3682 = vpop.permute.xlu0 %3681
      %3683 = vrot.lane.b32.xlu0 %v3654, 28
      %v3684 = vpop.permute.xlu0 %3683
      %3685 = vrot.lane.b32.xlu0 %v3655, 28
      %v3686 = vpop.permute.xlu0 %3685
      %3687 = vrot.lane.b32.xlu0 %v3656, 28
      %v3688 = vpop.permute.xlu0 %3687
      %vm3705 = vcmask 261344
      %3706 = vst.msk [vmem:[#allocation3] sm:$0xff] %vm3705, %v3658
      %3707 = vst.msk [vmem:[#allocation3 + $0x8] sm:$0xff] %vm3705, %v3660
      %3708 = vst.msk [vmem:[#allocation3 + $0x10] sm:$0xff] %vm3705, %v3662
      %3709 = vst.msk [vmem:[#allocation3 + $0x18] sm:$0xff] %vm3705, %v3664
      %3710 = vst.msk [vmem:[#allocation3 + $0x20] sm:$0xff] %vm3705, %v3666
      %3711 = vst.msk [vmem:[#allocation3 + $0x28] sm:$0xff] %vm3705, %v3668
      %3712 = vst.msk [vmem:[#allocation3 + $0x30] sm:$0xff] %vm3705, %v3670
      %3713 = vst.msk [vmem:[#allocation3 + $0x38] sm:$0xff] %vm3705, %v3672
      %3714 = vst.msk [vmem:[#allocation3 + $0x40] sm:$0xff] %vm3705, %v3674
      %3715 = vst.msk [vmem:[#allocation3 + $0x48] sm:$0xff] %vm3705, %v3676
      %3716 = vst.msk [vmem:[#allocation3 + $0x50] sm:$0xff] %vm3705, %v3678
      %3717 = vst.msk [vmem:[#allocation3 + $0x58] sm:$0xff] %vm3705, %v3680
      %3718 = vst.msk [vmem:[#allocation3 + $0x60] sm:$0xff] %vm3705, %v3682
      %3719 = vst.msk [vmem:[#allocation3 + $0x68] sm:$0xff] %vm3705, %v3684
      %3720 = vst.msk [vmem:[#allocation3 + $0x70] sm:$0xff] %vm3705, %v3686
      %3721 = vst.msk [vmem:[#allocation3 + $0x78] sm:$0xff] %vm3705, %v3688
      %v3722 = vld [vmem:[%s2999] sm:$0xe]
      %v3723 = vld [vmem:[%s2999 + $0x4] sm:$0xf]
      %v3724 = vld [vmem:[%s2999 + $0x8] sm:$0x1]
      %v3725 = vld [vmem:[%s2999 + $0xc] sm:$0xe]
      %v3726 = vld [vmem:[%s2999 + $0x10] sm:$0xf]
      %v3727 = vld [vmem:[%s2999 + $0x14] sm:$0x1]
      %v3728 = vld [vmem:[%s2999 + $0x18] sm:$0xe]
      %v3729 = vld [vmem:[%s2999 + $0x1c] sm:$0xf]
      %v3730 = vld [vmem:[%s2999 + $0x20] sm:$0x1]
      %v3731 = vld [vmem:[%s2999 + $0x24] sm:$0xe]
      %v3732 = vld [vmem:[%s2999 + $0x28] sm:$0xf]
      %v3733 = vld [vmem:[%s2999 + $0x2c] sm:$0x1]
      %v3734 = vld [vmem:[%s2999 + $0x30] sm:$0xe]
      %v3735 = vld [vmem:[%s2999 + $0x34] sm:$0xf]
      %v3736 = vld [vmem:[%s2999 + $0x38] sm:$0x1]
      %v3737 = vld [vmem:[%s2999 + $0x3c] sm:$0xe]
      %v3738 = vld [vmem:[%s2999 + $0x40] sm:$0xf]
      %v3739 = vld [vmem:[%s2999 + $0x44] sm:$0x1]
      %v3740 = vld [vmem:[%s2999 + $0x48] sm:$0xe]
      %v3741 = vld [vmem:[%s2999 + $0x4c] sm:$0xf]
      %v3742 = vld [vmem:[%s2999 + $0x50] sm:$0x1]
      %v3743 = vld [vmem:[%s2999 + $0x54] sm:$0xe]
      %v3744 = vld [vmem:[%s2999 + $0x58] sm:$0xf]
      %v3745 = vld [vmem:[%s2999 + $0x5c] sm:$0x1]
      %v3746 = vld [vmem:[%s2999 + $0x60] sm:$0xe]
      %v3747 = vld [vmem:[%s2999 + $0x64] sm:$0xf]
      %v3748 = vld [vmem:[%s2999 + $0x68] sm:$0x1]
      %v3749 = vld [vmem:[%s2999 + $0x6c] sm:$0xe]
      %v3750 = vld [vmem:[%s2999 + $0x70] sm:$0xf]
      %v3751 = vld [vmem:[%s2999 + $0x74] sm:$0x1]
      %v3752 = vld [vmem:[%s2999 + $0x78] sm:$0xe]
      %v3753 = vld [vmem:[%s2999 + $0x7c] sm:$0xf]
      %v3754 = vld [vmem:[%s2999 + $0x80] sm:$0x1]
      %v3755 = vld [vmem:[%s2999 + $0x84] sm:$0xe]
      %v3756 = vld [vmem:[%s2999 + $0x88] sm:$0xf]
      %v3757 = vld [vmem:[%s2999 + $0x8c] sm:$0x1]
      %v3758 = vld [vmem:[%s2999 + $0x90] sm:$0xe]
      %v3759 = vld [vmem:[%s2999 + $0x94] sm:$0xf]
      %v3760 = vld [vmem:[%s2999 + $0x98] sm:$0x1]
      %v3761 = vld [vmem:[%s2999 + $0x9c] sm:$0xe]
      %v3762 = vld [vmem:[%s2999 + $0xa0] sm:$0xf]
      %v3763 = vld [vmem:[%s2999 + $0xa4] sm:$0x1]
      %v3764 = vld [vmem:[%s2999 + $0xa8] sm:$0xe]
      %v3765 = vld [vmem:[%s2999 + $0xac] sm:$0xf]
      %v3766 = vld [vmem:[%s2999 + $0xb0] sm:$0x1]
      %v3767 = vld [vmem:[%s2999 + $0xb4] sm:$0xe]
      %v3768 = vld [vmem:[%s2999 + $0xb8] sm:$0xf]
      %v3769 = vld [vmem:[%s2999 + $0xbc] sm:$0x1]
      %v3818 = vrot.slane %v3722, 5
      %v3819 = vrot.slane %v3818, 4
      %v3820 = vrot.slane %v3723, 5
      %v3821 = vsel %vm1730, %v3819, %v3820
      %v3822 = vrot.slane %v3820, 4
      %v3823 = vrot.slane %v3724, 5
      %v3824 = vsel %vm1730, %v3822, %v3823
      %v3825 = vrot.slane %v3725, 5
      %v3826 = vrot.slane %v3825, 4
      %v3827 = vrot.slane %v3726, 5
      %v3828 = vsel %vm1730, %v3826, %v3827
      %v3829 = vrot.slane %v3827, 4
      %v3830 = vrot.slane %v3727, 5
      %v3831 = vsel %vm1730, %v3829, %v3830
      %v3832 = vrot.slane %v3728, 5
      %v3833 = vrot.slane %v3832, 4
      %v3834 = vrot.slane %v3729, 5
      %v3835 = vsel %vm1730, %v3833, %v3834
      %v3836 = vrot.slane %v3834, 4
      %v3837 = vrot.slane %v3730, 5
      %v3838 = vsel %vm1730, %v3836, %v3837
      %v3839 = vrot.slane %v3731, 5
      %v3840 = vrot.slane %v3839, 4
      %v3841 = vrot.slane %v3732, 5
      %v3842 = vsel %vm1730, %v3840, %v3841
      %v3843 = vrot.slane %v3841, 4
      %v3844 = vrot.slane %v3733, 5
      %v3845 = vsel %vm1730, %v3843, %v3844
      %v3846 = vrot.slane %v3734, 5
      %v3847 = vrot.slane %v3846, 4
      %v3848 = vrot.slane %v3735, 5
      %v3849 = vsel %vm1730, %v3847, %v3848
      %v3850 = vrot.slane %v3848, 4
      %v3851 = vrot.slane %v3736, 5
      %v3852 = vsel %vm1730, %v3850, %v3851
      %v3853 = vrot.slane %v3737, 5
      %v3854 = vrot.slane %v3853, 4
      %v3855 = vrot.slane %v3738, 5
      %v3856 = vsel %vm1730, %v3854, %v3855
      %v3857 = vrot.slane %v3855, 4
      %v3858 = vrot.slane %v3739, 5
      %v3859 = vsel %vm1730, %v3857, %v3858
      %v3860 = vrot.slane %v3740, 5
      %v3861 = vrot.slane %v3860, 4
      %v3862 = vrot.slane %v3741, 5
      %v3863 = vsel %vm1730, %v3861, %v3862
      %v3864 = vrot.slane %v3862, 4
      %v3865 = vrot.slane %v3742, 5
      %v3866 = vsel %vm1730, %v3864, %v3865
      %v3867 = vrot.slane %v3743, 5
      %v3868 = vrot.slane %v3867, 4
      %v3869 = vrot.slane %v3744, 5
      %v3870 = vsel %vm1730, %v3868, %v3869
      %v3871 = vrot.slane %v3869, 4
      %v3872 = vrot.slane %v3745, 5
      %v3873 = vsel %vm1730, %v3871, %v3872
      %v3874 = vrot.slane %v3746, 5
      %v3875 = vrot.slane %v3874, 4
      %v3876 = vrot.slane %v3747, 5
      %v3877 = vsel %vm1730, %v3875, %v3876
      %v3878 = vrot.slane %v3876, 4
      %v3879 = vrot.slane %v3748, 5
      %v3880 = vsel %vm1730, %v3878, %v3879
      %v3881 = vrot.slane %v3749, 5
      %v3882 = vrot.slane %v3881, 4
      %v3883 = vrot.slane %v3750, 5
      %v3884 = vsel %vm1730, %v3882, %v3883
      %v3885 = vrot.slane %v3883, 4
      %v3886 = vrot.slane %v3751, 5
      %v3887 = vsel %vm1730, %v3885, %v3886
      %v3888 = vrot.slane %v3752, 5
      %v3889 = vrot.slane %v3888, 4
      %v3890 = vrot.slane %v3753, 5
      %v3891 = vsel %vm1730, %v3889, %v3890
      %v3892 = vrot.slane %v3890, 4
      %v3893 = vrot.slane %v3754, 5
      %v3894 = vsel %vm1730, %v3892, %v3893
      %v3895 = vrot.slane %v3755, 5
      %v3896 = vrot.slane %v3895, 4
      %v3897 = vrot.slane %v3756, 5
      %v3898 = vsel %vm1730, %v3896, %v3897
      %v3899 = vrot.slane %v3897, 4
      %v3900 = vrot.slane %v3757, 5
      %v3901 = vsel %vm1730, %v3899, %v3900
      %v3902 = vrot.slane %v3758, 5
      %v3903 = vrot.slane %v3902, 4
      %v3904 = vrot.slane %v3759, 5
      %v3905 = vsel %vm1730, %v3903, %v3904
      %v3906 = vrot.slane %v3904, 4
      %v3907 = vrot.slane %v3760, 5
      %v3908 = vsel %vm1730, %v3906, %v3907
      %v3909 = vrot.slane %v3761, 5
      %v3910 = vrot.slane %v3909, 4
      %v3911 = vrot.slane %v3762, 5
      %v3912 = vsel %vm1730, %v3910, %v3911
      %v3913 = vrot.slane %v3911, 4
      %v3914 = vrot.slane %v3763, 5
      %v3915 = vsel %vm1730, %v3913, %v3914
      %v3916 = vrot.slane %v3764, 5
      %v3917 = vrot.slane %v3916, 4
      %v3918 = vrot.slane %v3765, 5
      %v3919 = vsel %vm1730, %v3917, %v3918
      %v3920 = vrot.slane %v3918, 4
      %v3921 = vrot.slane %v3766, 5
      %v3922 = vsel %vm1730, %v3920, %v3921
      %v3923 = vrot.slane %v3767, 5
      %v3924 = vrot.slane %v3923, 4
      %v3925 = vrot.slane %v3768, 5
      %v3926 = vsel %vm1730, %v3924, %v3925
      %v3927 = vrot.slane %v3925, 4
      %v3928 = vrot.slane %v3769, 5
      %v3929 = vsel %vm1730, %v3927, %v3928
      %v3930 = vunpack.c.l.b16 %v3821
      %v3931 = vunpack.c.l.b16 %v3824
      %v3932 = vunpack.c.l.b16 %v3828
      %v3933 = vunpack.c.l.b16 %v3831
      %v3934 = vunpack.c.l.b16 %v3835
      %v3935 = vunpack.c.l.b16 %v3838
      %v3936 = vunpack.c.l.b16 %v3842
      %v3937 = vunpack.c.l.b16 %v3845
      %v3938 = vunpack.c.l.b16 %v3849
      %v3939 = vunpack.c.l.b16 %v3852
      %v3940 = vunpack.c.l.b16 %v3856
      %v3941 = vunpack.c.l.b16 %v3859
      %v3942 = vunpack.c.l.b16 %v3863
      %v3943 = vunpack.c.l.b16 %v3866
      %v3944 = vunpack.c.l.b16 %v3870
      %v3945 = vunpack.c.l.b16 %v3873
      %v3946 = vunpack.c.l.b16 %v3877
      %v3947 = vunpack.c.l.b16 %v3880
      %v3948 = vunpack.c.l.b16 %v3884
      %v3949 = vunpack.c.l.b16 %v3887
      %v3950 = vunpack.c.l.b16 %v3891
      %v3951 = vunpack.c.l.b16 %v3894
      %v3952 = vunpack.c.l.b16 %v3898
      %v3953 = vunpack.c.l.b16 %v3901
      %v3954 = vunpack.c.l.b16 %v3905
      %v3955 = vunpack.c.l.b16 %v3908
      %v3956 = vunpack.c.l.b16 %v3912
      %v3957 = vunpack.c.l.b16 %v3915
      %v3958 = vunpack.c.l.b16 %v3919
      %v3959 = vunpack.c.l.b16 %v3922
      %v3960 = vunpack.c.l.b16 %v3926
      %v3961 = vunpack.c.l.b16 %v3929
      %v3962 = vpack.c.b16 %v3931, %v3930
      %v3963 = vpack.c.b16 %v3933, %v3932
      %v3964 = vpack.c.b16 %v3935, %v3934
      %v3965 = vpack.c.b16 %v3937, %v3936
      %v3966 = vpack.c.b16 %v3939, %v3938
      %v3967 = vpack.c.b16 %v3941, %v3940
      %v3968 = vpack.c.b16 %v3943, %v3942
      %v3969 = vpack.c.b16 %v3945, %v3944
      %v3970 = vpack.c.b16 %v3947, %v3946
      %v3971 = vpack.c.b16 %v3949, %v3948
      %v3972 = vpack.c.b16 %v3951, %v3950
      %v3973 = vpack.c.b16 %v3953, %v3952
      %v3974 = vpack.c.b16 %v3955, %v3954
      %v3975 = vpack.c.b16 %v3957, %v3956
      %v3976 = vpack.c.b16 %v3959, %v3958
      %v3977 = vpack.c.b16 %v3961, %v3960
      %3978 = vrot.lane.b32.xlu0 %v3962, 32
      %v3979 = vpop.permute.xlu0 %3978
      %3980 = vrot.lane.b32.xlu0 %v3963, 32
      %v3981 = vpop.permute.xlu0 %3980
      %3982 = vrot.lane.b32.xlu0 %v3964, 32
      %v3983 = vpop.permute.xlu0 %3982
      %3984 = vrot.lane.b32.xlu0 %v3965, 32
      %v3985 = vpop.permute.xlu0 %3984
      %3986 = vrot.lane.b32.xlu0 %v3966, 32
      %v3987 = vpop.permute.xlu0 %3986
      %3988 = vrot.lane.b32.xlu0 %v3967, 32
      %v3989 = vpop.permute.xlu0 %3988
      %3990 = vrot.lane.b32.xlu0 %v3968, 32
      %v3991 = vpop.permute.xlu0 %3990
      %3992 = vrot.lane.b32.xlu0 %v3969, 32
      %v3993 = vpop.permute.xlu0 %3992
      %3994 = vrot.lane.b32.xlu0 %v3970, 32
      %v3995 = vpop.permute.xlu0 %3994
      %3996 = vrot.lane.b32.xlu0 %v3971, 32
      %v3997 = vpop.permute.xlu0 %3996
      %3998 = vrot.lane.b32.xlu0 %v3972, 32
      %v3999 = vpop.permute.xlu0 %3998
      %4000 = vrot.lane.b32.xlu0 %v3973, 32
      %v4001 = vpop.permute.xlu0 %4000
      %4002 = vrot.lane.b32.xlu0 %v3974, 32
      %v4003 = vpop.permute.xlu0 %4002
      %4004 = vrot.lane.b32.xlu0 %v3975, 32
      %v4005 = vpop.permute.xlu0 %4004
      %4006 = vrot.lane.b32.xlu0 %v3976, 32
      %v4007 = vpop.permute.xlu0 %4006
      %4008 = vrot.lane.b32.xlu0 %v3977, 32
      %v4009 = vpop.permute.xlu0 %4008
      %vm4026 = vcmask 294144
      %4027 = vst.msk [vmem:[#allocation3] sm:$0xff] %vm4026, %v3979
      %4028 = vst.msk [vmem:[#allocation3 + $0x8] sm:$0xff] %vm4026, %v3981
      %4029 = vst.msk [vmem:[#allocation3 + $0x10] sm:$0xff] %vm4026, %v3983
      %4030 = vst.msk [vmem:[#allocation3 + $0x18] sm:$0xff] %vm4026, %v3985
      %4031 = vst.msk [vmem:[#allocation3 + $0x20] sm:$0xff] %vm4026, %v3987
      %4032 = vst.msk [vmem:[#allocation3 + $0x28] sm:$0xff] %vm4026, %v3989
      %4033 = vst.msk [vmem:[#allocation3 + $0x30] sm:$0xff] %vm4026, %v3991
      %4034 = vst.msk [vmem:[#allocation3 + $0x38] sm:$0xff] %vm4026, %v3993
      %4035 = vst.msk [vmem:[#allocation3 + $0x40] sm:$0xff] %vm4026, %v3995
      %4036 = vst.msk [vmem:[#allocation3 + $0x48] sm:$0xff] %vm4026, %v3997
      %4037 = vst.msk [vmem:[#allocation3 + $0x50] sm:$0xff] %vm4026, %v3999
      %4038 = vst.msk [vmem:[#allocation3 + $0x58] sm:$0xff] %vm4026, %v4001
      %4039 = vst.msk [vmem:[#allocation3 + $0x60] sm:$0xff] %vm4026, %v4003
      %4040 = vst.msk [vmem:[#allocation3 + $0x68] sm:$0xff] %vm4026, %v4005
      %4041 = vst.msk [vmem:[#allocation3 + $0x70] sm:$0xff] %vm4026, %v4007
      %4042 = vst.msk [vmem:[#allocation3 + $0x78] sm:$0xff] %vm4026, %v4009
      %v4043 = vld [vmem:[#allocation3] sm:$0xff]
      %v4044 = vld [vmem:[#allocation3 + $0x8] sm:$0xff]
      %v4045 = vld [vmem:[#allocation3 + $0x10] sm:$0xff]
      %v4046 = vld [vmem:[#allocation3 + $0x18] sm:$0xff]
      %v4047 = vld [vmem:[#allocation3 + $0x20] sm:$0xff]
      %v4048 = vld [vmem:[#allocation3 + $0x28] sm:$0xff]
      %v4049 = vld [vmem:[#allocation3 + $0x30] sm:$0xff]
      %v4050 = vld [vmem:[#allocation3 + $0x38] sm:$0xff]
      %v4051 = vld [vmem:[#allocation3 + $0x40] sm:$0xff]
      %v4052 = vld [vmem:[#allocation3 + $0x48] sm:$0xff]
      %v4053 = vld [vmem:[#allocation3 + $0x50] sm:$0xff]
      %v4054 = vld [vmem:[#allocation3 + $0x58] sm:$0xff]
      %v4055 = vld [vmem:[#allocation3 + $0x60] sm:$0xff]
      %v4056 = vld [vmem:[#allocation3 + $0x68] sm:$0xff]
      %v4057 = vld [vmem:[#allocation3 + $0x70] sm:$0xff]
      %v4058 = vld [vmem:[#allocation3 + $0x78] sm:$0xff]
      %v4059 = vld [vmem:[%s1] sm:$0xf]
      %v4060 = vld [vmem:[%s1 + $0x4] sm:$0xf]
      %v4061 = vld [vmem:[%s1 + $0x8] sm:$0xf]
      %v4062 = vld [vmem:[%s1 + $0xc] sm:$0xf]
      %v4063 = vld [vmem:[%s1 + $0x10] sm:$0x3]
      %v4064 = vld [vmem:[%s2] sm:$0x1]
      %v4066 = vlaneseq
      %v4067 = vshrl.u32 %v4066, 7
      %v4068 = vsub.s32 0, %v4067
      %v4069 = vrot.slane %v4064, %v4068
      %v4076 = vunpack.c.l.b16 %v4059
      %v4077 = vunpack.c.l.b16 %v4060
      %v4078 = vunpack.c.l.b16 %v4061
      %v4079 = vunpack.c.l.b16 %v4062
      %v4080 = vunpack.c.l.b16 %v4063
      %v4081 = vpack.c.b16 %v4077, %v4076
      %v4082 = vpack.c.b16 %v4079, %v4078
      %v4083 = vpack.c.b16 %v4080, %v4080
      %vm4086 = vcmask 293888
      %v4088 = vsel %vm4086, %v4043, 0
      %v4091 = vsel %vm4086, %v4044, 0
      %v4094 = vsel %vm4086, %v4045, 0
      %v4097 = vsel %vm4086, %v4046, 0
      %v4100 = vsel %vm4086, %v4047, 0
      %v4103 = vsel %vm4086, %v4048, 0
      %v4106 = vsel %vm4086, %v4049, 0
      %v4109 = vsel %vm4086, %v4050, 0
      %v4112 = vsel %vm4086, %v4051, 0
      %v4115 = vsel %vm4086, %v4052, 0
      %v4118 = vsel %vm4086, %v4053, 0
      %v4121 = vsel %vm4086, %v4054, 0
      %v4124 = vsel %vm4086, %v4055, 0
      %v4127 = vsel %vm4086, %v4056, 0
      %v4130 = vsel %vm4086, %v4057, 0
      %v4133 = vsel %vm4086, %v4058, 0
      %vm4135 = vcmask 1041408
      %v4137 = vsel %vm4135, %v4083, 0
      %4139 = vmatprep.subr.bf16.mxu0 0
      %4140 = vmatpush1.bf16.msra.mxu0 %v4081
      %4141 = vmatprep.subr.bf16.mxu0 0
      %4142 = vmatpush1.bf16.msra.mxu0 %v4082
      %4143 = vmatprep.subr.bf16.mxu0 0
      %4144 = vmatpush1.bf16.msra.mxu0 %v4137
      %4145 = vmatprep.subr.bf16.mxu0 0
      %4146 = vmatpush1.bf16.msra.mxu0 0
      %4147 = vmatprep.subr.bf16.mxu0 0
      %4148 = vmatpush1.bf16.msra.mxu0 0
      %4149 = vmatprep.subr.bf16.mxu0 0
      %4150 = vmatpush1.bf16.msra.mxu0 0
      %4151 = vmatprep.subr.bf16.mxu0 0
      %4152 = vmatpush1.bf16.msra.mxu0 0
      %4153 = vmatprep.subr.bf16.mxu0 0
      %4154 = vmatpush1.bf16.msra.mxu0 0
      %4155 = vmatprep.subr.bf16.mxu0 0
      %4156 = vmatpush1.bf16.msra.mxu0 0
      %4157 = vmatprep.subr.bf16.mxu0 0
      %4158 = vmatpush1.bf16.msra.mxu0 0
      %4159 = vmatprep.subr.bf16.mxu0 0
      %4160 = vmatpush1.bf16.msra.mxu0 0
      %4161 = vmatprep.subr.bf16.mxu0 0
      %4162 = vmatpush1.bf16.msra.mxu0 0
      %4163 = vmatprep.subr.bf16.mxu0 0
      %4164 = vmatpush1.bf16.msra.mxu0 0
      %4165 = vmatprep.subr.bf16.mxu0 0
      %4166 = vmatpush1.bf16.msra.mxu0 0
      %4167 = vmatprep.subr.bf16.mxu0 0
      %4168 = vmatpush1.bf16.msra.mxu0 0
      %4169 = vmatprep.subr.bf16.mxu0 0
      %4170 = vmatpush1.bf16.msra.mxu0 0
      %4171 = vmatprep.mubr.bf16.mxu0 0
      %4172 = vmatmul.mubr.bf16.gmra.mrb[0].mxu0 %v4088
      %v4173 = vpop.f32.mrb[0].mxu0
      %v4174 = vadd.f32 %v4069, %v4173
      %v4175 = vpop.f32.mrb[0].mxu0
      %v4176 = vpop.f32.mrb[0].mxu0
      %v4177 = vadd.f32 %v4069, %v4176
      %v4178 = vpop.f32.mrb[0].mxu0
      %4179 = vmatprep.mubr.bf16.mxu0 0
      %4180 = vmatmul.mubr.bf16.gmra.mrb[0].mxu0 %v4091
      %v4181 = vpop.f32.mrb[0].mxu0
      %v4182 = vadd.f32 %v4069, %v4181
      %v4183 = vpop.f32.mrb[0].mxu0
      %v4184 = vpop.f32.mrb[0].mxu0
      %v4185 = vadd.f32 %v4069, %v4184
      %v4186 = vpop.f32.mrb[0].mxu0
      %4187 = vmatprep.mubr.bf16.mxu0 0
      %4188 = vmatmul.mubr.bf16.gmra.mrb[0].mxu0 %v4094
      %v4189 = vpop.f32.mrb[0].mxu0
      %v4190 = vadd.f32 %v4069, %v4189
      %v4191 = vpop.f32.mrb[0].mxu0
      %v4192 = vpop.f32.mrb[0].mxu0
      %v4193 = vadd.f32 %v4069, %v4192
      %v4194 = vpop.f32.mrb[0].mxu0
      %4195 = vmatprep.mubr.bf16.mxu0 0
      %4196 = vmatmul.mubr.bf16.gmra.mrb[0].mxu0 %v4097
      %v4197 = vpop.f32.mrb[0].mxu0
      %v4198 = vadd.f32 %v4069, %v4197
      %v4199 = vpop.f32.mrb[0].mxu0
      %v4200 = vpop.f32.mrb[0].mxu0
      %v4201 = vadd.f32 %v4069, %v4200
      %v4202 = vpop.f32.mrb[0].mxu0
      %4203 = vmatprep.mubr.bf16.mxu0 0
      %4204 = vmatmul.mubr.bf16.gmra.mrb[0].mxu0 %v4100
      %v4205 = vpop.f32.mrb[0].mxu0
      %v4206 = vadd.f32 %v4069, %v4205
      %v4207 = vpop.f32.mrb[0].mxu0
      %v4208 = vpop.f32.mrb[0].mxu0
      %v4209 = vadd.f32 %v4069, %v4208
      %v4210 = vpop.f32.mrb[0].mxu0
      %4211 = vmatprep.mubr.bf16.mxu0 0
      %4212 = vmatmul.mubr.bf16.gmra.mrb[0].mxu0 %v4103
      %v4213 = vpop.f32.mrb[0].mxu0
      %v4214 = vadd.f32 %v4069, %v4213
      %v4215 = vpop.f32.mrb[0].mxu0
      %v4216 = vpop.f32.mrb[0].mxu0
      %v4217 = vadd.f32 %v4069, %v4216
      %v4218 = vpop.f32.mrb[0].mxu0
      %4219 = vmatprep.mubr.bf16.mxu0 0
      %4220 = vmatmul.mubr.bf16.gmra.mrb[0].mxu0 %v4106
      %v4221 = vpop.f32.mrb[0].mxu0
      %v4222 = vadd.f32 %v4069, %v4221
      %v4223 = vpop.f32.mrb[0].mxu0
      %v4224 = vpop.f32.mrb[0].mxu0
      %v4225 = vadd.f32 %v4069, %v4224
      %v4226 = vpop.f32.mrb[0].mxu0
      %4227 = vmatprep.mubr.bf16.mxu0 0
      %4228 = vmatmul.mubr.bf16.gmra.mrb[0].mxu0 %v4109
      %v4229 = vpop.f32.mrb[0].mxu0
      %v4230 = vadd.f32 %v4069, %v4229
      %v4231 = vpop.f32.mrb[0].mxu0
      %v4232 = vpop.f32.mrb[0].mxu0
      %v4233 = vadd.f32 %v4069, %v4232
      %v4234 = vpop.f32.mrb[0].mxu0
      %4235 = vmatprep.mubr.bf16.mxu0 0
      %4236 = vmatmul.mubr.bf16.gmra.mrb[0].mxu0 %v4112
      %v4237 = vpop.f32.mrb[0].mxu0
      %v4238 = vadd.f32 %v4069, %v4237
      %v4239 = vpop.f32.mrb[0].mxu0
      %v4240 = vpop.f32.mrb[0].mxu0
      %v4241 = vadd.f32 %v4069, %v4240
      %v4242 = vpop.f32.mrb[0].mxu0
      %4243 = vmatprep.mubr.bf16.mxu0 0
      %4244 = vmatmul.mubr.bf16.gmra.mrb[0].mxu0 %v4115
      %v4245 = vpop.f32.mrb[0].mxu0
      %v4246 = vadd.f32 %v4069, %v4245
      %v4247 = vpop.f32.mrb[0].mxu0
      %v4248 = vpop.f32.mrb[0].mxu0
      %v4249 = vadd.f32 %v4069, %v4248
      %v4250 = vpop.f32.mrb[0].mxu0
      %4251 = vmatprep.mubr.bf16.mxu0 0
      %4252 = vmatmul.mubr.bf16.gmra.mrb[0].mxu0 %v4118
      %v4253 = vpop.f32.mrb[0].mxu0
      %v4254 = vadd.f32 %v4069, %v4253
      %v4255 = vpop.f32.mrb[0].mxu0
      %v4256 = vpop.f32.mrb[0].mxu0
      %v4257 = vadd.f32 %v4069, %v4256
      %v4258 = vpop.f32.mrb[0].mxu0
      %4259 = vmatprep.mubr.bf16.mxu0 0
      %4260 = vmatmul.mubr.bf16.gmra.mrb[0].mxu0 %v4121
      %v4261 = vpop.f32.mrb[0].mxu0
      %v4262 = vadd.f32 %v4069, %v4261
      %v4263 = vpop.f32.mrb[0].mxu0
      %v4264 = vpop.f32.mrb[0].mxu0
      %v4265 = vadd.f32 %v4069, %v4264
      %v4266 = vpop.f32.mrb[0].mxu0
      %4267 = vmatprep.mubr.bf16.mxu0 0
      %4268 = vmatmul.mubr.bf16.gmra.mrb[0].mxu0 %v4124
      %v4269 = vpop.f32.mrb[0].mxu0
      %v4270 = vadd.f32 %v4069, %v4269
      %v4271 = vpop.f32.mrb[0].mxu0
      %v4272 = vpop.f32.mrb[0].mxu0
      %v4273 = vadd.f32 %v4069, %v4272
      %v4274 = vpop.f32.mrb[0].mxu0
      %4275 = vmatprep.mubr.bf16.mxu0 0
      %4276 = vmatmul.mubr.bf16.gmra.mrb[0].mxu0 %v4127
      %v4277 = vpop.f32.mrb[0].mxu0
      %v4278 = vadd.f32 %v4069, %v4277
      %v4279 = vpop.f32.mrb[0].mxu0
      %v4280 = vpop.f32.mrb[0].mxu0
      %v4281 = vadd.f32 %v4069, %v4280
      %v4282 = vpop.f32.mrb[0].mxu0
      %4283 = vmatprep.mubr.bf16.mxu0 0
      %4284 = vmatmul.mubr.bf16.gmra.mrb[0].mxu0 %v4130
      %v4285 = vpop.f32.mrb[0].mxu0
      %v4286 = vadd.f32 %v4069, %v4285
      %v4287 = vpop.f32.mrb[0].mxu0
      %v4288 = vpop.f32.mrb[0].mxu0
      %v4289 = vadd.f32 %v4069, %v4288
      %v4290 = vpop.f32.mrb[0].mxu0
      %4291 = vmatprep.mubr.bf16.mxu0 0
      %4292 = vmatmul.mubr.bf16.gmra.mrb[0].mxu0 %v4133
      %v4293 = vpop.f32.mrb[0].mxu0
      %v4294 = vadd.f32 %v4069, %v4293
      %v4295 = vpop.f32.mrb[0].mxu0
      %v4296 = vpop.f32.mrb[0].mxu0
      %v4297 = vadd.f32 %v4069, %v4296
      %v4298 = vpop.f32.mrb[0].mxu0
      %4299 = vdwg.mxu0
      %s4300 = sld [smem:[#allocation4]]
      %vm4301 = vcmp.gt.f32.partialorder %v4174, 0.0
      %vm4302 = vcmp.gt.f32.partialorder %v4177, 0.0
      %vm4303 = vcmp.gt.f32.partialorder %v4182, 0.0
      %vm4304 = vcmp.gt.f32.partialorder %v4185, 0.0
      %vm4305 = vcmp.gt.f32.partialorder %v4190, 0.0
      %vm4306 = vcmp.gt.f32.partialorder %v4193, 0.0
      %vm4307 = vcmp.gt.f32.partialorder %v4198, 0.0
      %vm4308 = vcmp.gt.f32.partialorder %v4201, 0.0
      %vm4309 = vcmp.gt.f32.partialorder %v4206, 0.0
      %vm4310 = vcmp.gt.f32.partialorder %v4209, 0.0
      %vm4311 = vcmp.gt.f32.partialorder %v4214, 0.0
      %vm4312 = vcmp.gt.f32.partialorder %v4217, 0.0
      %vm4313 = vcmp.gt.f32.partialorder %v4222, 0.0
      %vm4314 = vcmp.gt.f32.partialorder %v4225, 0.0
      %vm4315 = vcmp.gt.f32.partialorder %v4230, 0.0
      %vm4316 = vcmp.gt.f32.partialorder %v4233, 0.0
      %vm4317 = vcmp.gt.f32.partialorder %v4238, 0.0
      %vm4318 = vcmp.gt.f32.partialorder %v4241, 0.0
      %vm4319 = vcmp.gt.f32.partialorder %v4246, 0.0
      %vm4320 = vcmp.gt.f32.partialorder %v4249, 0.0
      %vm4321 = vcmp.gt.f32.partialorder %v4254, 0.0
      %vm4322 = vcmp.gt.f32.partialorder %v4257, 0.0
      %vm4323 = vcmp.gt.f32.partialorder %v4262, 0.0
      %vm4324 = vcmp.gt.f32.partialorder %v4265, 0.0
      %vm4325 = vcmp.gt.f32.partialorder %v4270, 0.0
      %vm4326 = vcmp.gt.f32.partialorder %v4273, 0.0
      %vm4327 = vcmp.gt.f32.partialorder %v4278, 0.0
      %vm4328 = vcmp.gt.f32.partialorder %v4281, 0.0
      %vm4329 = vcmp.gt.f32.partialorder %v4286, 0.0
      %vm4330 = vcmp.gt.f32.partialorder %v4289, 0.0
      %vm4331 = vcmp.gt.f32.partialorder %v4294, 0.0
      %vm4332 = vcmp.gt.f32.partialorder %v4297, 0.0
      %v4333 = vstv %s4300
      %v4334 = vmul.f32 %v4333, %v4174
      %v4335 = vmul.f32 %v4333, %v4177
      %v4336 = vmul.f32 %v4333, %v4182
      %v4337 = vmul.f32 %v4333, %v4185
      %v4338 = vmul.f32 %v4333, %v4190
      %v4339 = vmul.f32 %v4333, %v4193
      %v4340 = vmul.f32 %v4333, %v4198
      %v4341 = vmul.f32 %v4333, %v4201
      %v4342 = vmul.f32 %v4333, %v4206
      %v4343 = vmul.f32 %v4333, %v4209
      %v4344 = vmul.f32 %v4333, %v4214
      %v4345 = vmul.f32 %v4333, %v4217
      %v4346 = vmul.f32 %v4333, %v4222
      %v4347 = vmul.f32 %v4333, %v4225
      %v4348 = vmul.f32 %v4333, %v4230
      %v4349 = vmul.f32 %v4333, %v4233
      %v4350 = vmul.f32 %v4333, %v4238
      %v4351 = vmul.f32 %v4333, %v4241
      %v4352 = vmul.f32 %v4333, %v4246
      %v4353 = vmul.f32 %v4333, %v4249
      %v4354 = vmul.f32 %v4333, %v4254
      %v4355 = vmul.f32 %v4333, %v4257
      %v4356 = vmul.f32 %v4333, %v4262
      %v4357 = vmul.f32 %v4333, %v4265
      %v4358 = vmul.f32 %v4333, %v4270
      %v4359 = vmul.f32 %v4333, %v4273
      %v4360 = vmul.f32 %v4333, %v4278
      %v4361 = vmul.f32 %v4333, %v4281
      %v4362 = vmul.f32 %v4333, %v4286
      %v4363 = vmul.f32 %v4333, %v4289
      %v4364 = vmul.f32 %v4333, %v4294
      %v4365 = vmul.f32 %v4333, %v4297
      %v4366 = vsel %vm4301, %v4174, %v4334
      %v4367 = vsel %vm4302, %v4177, %v4335
      %v4368 = vsel %vm4303, %v4182, %v4336
      %v4369 = vsel %vm4304, %v4185, %v4337
      %v4370 = vsel %vm4305, %v4190, %v4338
      %v4371 = vsel %vm4306, %v4193, %v4339
      %v4372 = vsel %vm4307, %v4198, %v4340
      %v4373 = vsel %vm4308, %v4201, %v4341
      %v4374 = vsel %vm4309, %v4206, %v4342
      %v4375 = vsel %vm4310, %v4209, %v4343
      %v4376 = vsel %vm4311, %v4214, %v4344
      %v4377 = vsel %vm4312, %v4217, %v4345
      %v4378 = vsel %vm4313, %v4222, %v4346
      %v4379 = vsel %vm4314, %v4225, %v4347
      %v4380 = vsel %vm4315, %v4230, %v4348
      %v4381 = vsel %vm4316, %v4233, %v4349
      %v4382 = vsel %vm4317, %v4238, %v4350
      %v4383 = vsel %vm4318, %v4241, %v4351
      %v4384 = vsel %vm4319, %v4246, %v4352
      %v4385 = vsel %vm4320, %v4249, %v4353
      %v4386 = vsel %vm4321, %v4254, %v4354
      %v4387 = vsel %vm4322, %v4257, %v4355
      %v4388 = vsel %vm4323, %v4262, %v4356
      %v4389 = vsel %vm4324, %v4265, %v4357
      %v4390 = vsel %vm4325, %v4270, %v4358
      %v4391 = vsel %vm4326, %v4273, %v4359
      %v4392 = vsel %vm4327, %v4278, %v4360
      %v4393 = vsel %vm4328, %v4281, %v4361
      %v4394 = vsel %vm4329, %v4286, %v4362
      %v4395 = vsel %vm4330, %v4289, %v4363
      %v4396 = vsel %vm4331, %v4294, %v4364
      %v4397 = vsel %vm4332, %v4297, %v4365
      %v4398 = vpack.c.bf16 %v4367, %v4366
      %v4399 = vpack.c.bf16 %v4369, %v4368
      %v4400 = vpack.c.bf16 %v4371, %v4370
      %v4401 = vpack.c.bf16 %v4373, %v4372
      %v4402 = vpack.c.bf16 %v4375, %v4374
      %v4403 = vpack.c.bf16 %v4377, %v4376
      %v4404 = vpack.c.bf16 %v4379, %v4378
      %v4405 = vpack.c.bf16 %v4381, %v4380
      %v4406 = vpack.c.bf16 %v4383, %v4382
      %v4407 = vpack.c.bf16 %v4385, %v4384
      %v4408 = vpack.c.bf16 %v4387, %v4386
      %v4409 = vpack.c.bf16 %v4389, %v4388
      %v4410 = vpack.c.bf16 %v4391, %v4390
      %v4411 = vpack.c.bf16 %v4393, %v4392
      %v4412 = vpack.c.bf16 %v4395, %v4394
      %v4413 = vpack.c.bf16 %v4397, %v4396
      %v4430 = vunpack.c.l.b16 %v4398
      %v4431 = vunpack.c.h.b16 %v4398
      %v4432 = vunpack.c.l.b16 %v4399
      %v4433 = vunpack.c.h.b16 %v4399
      %v4434 = vunpack.c.l.b16 %v4400
      %v4435 = vunpack.c.h.b16 %v4400
      %v4436 = vunpack.c.l.b16 %v4401
      %v4437 = vunpack.c.h.b16 %v4401
      %v4438 = vunpack.c.l.b16 %v4402
      %v4439 = vunpack.c.h.b16 %v4402
      %v4440 = vunpack.c.l.b16 %v4403
      %v4441 = vunpack.c.h.b16 %v4403
      %v4442 = vunpack.c.l.b16 %v4404
      %v4443 = vunpack.c.h.b16 %v4404
      %v4444 = vunpack.c.l.b16 %v4405
      %v4445 = vunpack.c.h.b16 %v4405
      %v4446 = vunpack.c.l.b16 %v4406
      %v4447 = vunpack.c.h.b16 %v4406
      %v4448 = vunpack.c.l.b16 %v4407
      %v4449 = vunpack.c.h.b16 %v4407
      %v4450 = vunpack.c.l.b16 %v4408
      %v4451 = vunpack.c.h.b16 %v4408
      %v4452 = vunpack.c.l.b16 %v4409
      %v4453 = vunpack.c.h.b16 %v4409
      %v4454 = vunpack.c.l.b16 %v4410
      %v4455 = vunpack.c.h.b16 %v4410
      %v4456 = vunpack.c.l.b16 %v4411
      %v4457 = vunpack.c.h.b16 %v4411
      %v4458 = vunpack.c.l.b16 %v4412
      %v4459 = vunpack.c.h.b16 %v4412
      %v4460 = vunpack.c.l.b16 %v4413
      %v4461 = vunpack.c.h.b16 %v4413
      %v4462 = vpack.c.b16 %v4430, %v4430
      %v4463 = vpack.c.b16 %v4431, %v4431
      %v4464 = vpack.c.b16 %v4432, %v4432
      %v4465 = vpack.c.b16 %v4433, %v4433
      %v4466 = vpack.c.b16 %v4434, %v4434
      %v4467 = vpack.c.b16 %v4435, %v4435
      %v4468 = vpack.c.b16 %v4436, %v4436
      %v4469 = vpack.c.b16 %v4437, %v4437
      %v4470 = vpack.c.b16 %v4438, %v4438
      %v4471 = vpack.c.b16 %v4439, %v4439
      %v4472 = vpack.c.b16 %v4440, %v4440
      %v4473 = vpack.c.b16 %v4441, %v4441
      %v4474 = vpack.c.b16 %v4442, %v4442
      %v4475 = vpack.c.b16 %v4443, %v4443
      %v4476 = vpack.c.b16 %v4444, %v4444
      %v4477 = vpack.c.b16 %v4445, %v4445
      %v4478 = vpack.c.b16 %v4446, %v4446
      %v4479 = vpack.c.b16 %v4447, %v4447
      %v4480 = vpack.c.b16 %v4448, %v4448
      %v4481 = vpack.c.b16 %v4449, %v4449
      %v4482 = vpack.c.b16 %v4450, %v4450
      %v4483 = vpack.c.b16 %v4451, %v4451
      %v4484 = vpack.c.b16 %v4452, %v4452
      %v4485 = vpack.c.b16 %v4453, %v4453
      %v4486 = vpack.c.b16 %v4454, %v4454
      %v4487 = vpack.c.b16 %v4455, %v4455
      %v4488 = vpack.c.b16 %v4456, %v4456
      %v4489 = vpack.c.b16 %v4457, %v4457
      %v4490 = vpack.c.b16 %v4458, %v4458
      %v4491 = vpack.c.b16 %v4459, %v4459
      %v4492 = vpack.c.b16 %v4460, %v4460
      %v4493 = vpack.c.b16 %v4461, %v4461
      %v4495 = vshrl.u32 %v4462, 16
      %v4497 = vrot.slane %v4495, 7
      %v4498 = vshll.u32 %v4462, 16
      %v4500 = vor.u32 %v4497, %v4498
      %v4501 = vrot.slane %v4497, 4
      %v4503 = vshrl.u32 %v4463, 16
      %v4505 = vrot.slane %v4503, 7
      %v4506 = vshll.u32 %v4463, 16
      %v4508 = vor.u32 %v4505, %v4506
      %v4509 = vsel %vm505, %v4501, %v4508
      %v4510 = vrot.slane %v4505, 4
      %v4512 = vshrl.u32 %v4464, 16
      %v4514 = vrot.slane %v4512, 7
      %v4515 = vshll.u32 %v4464, 16
      %v4517 = vor.u32 %v4514, %v4515
      %v4518 = vrot.slane %v4514, 4
      %v4520 = vshrl.u32 %v4465, 16
      %v4522 = vrot.slane %v4520, 7
      %v4523 = vshll.u32 %v4465, 16
      %v4525 = vor.u32 %v4522, %v4523
      %v4526 = vsel %vm505, %v4518, %v4525
      %v4527 = vrot.slane %v4522, 4
      %v4529 = vshrl.u32 %v4466, 16
      %v4531 = vrot.slane %v4529, 7
      %v4532 = vshll.u32 %v4466, 16
      %v4534 = vor.u32 %v4531, %v4532
      %v4535 = vrot.slane %v4531, 4
      %v4537 = vshrl.u32 %v4467, 16
      %v4539 = vrot.slane %v4537, 7
      %v4540 = vshll.u32 %v4467, 16
      %v4542 = vor.u32 %v4539, %v4540
      %v4543 = vsel %vm505, %v4535, %v4542
      %v4544 = vrot.slane %v4539, 4
      %v4546 = vshrl.u32 %v4468, 16
      %v4548 = vrot.slane %v4546, 7
      %v4549 = vshll.u32 %v4468, 16
      %v4551 = vor.u32 %v4548, %v4549
      %v4552 = vrot.slane %v4548, 4
      %v4554 = vshrl.u32 %v4469, 16
      %v4556 = vrot.slane %v4554, 7
      %v4557 = vshll.u32 %v4469, 16
      %v4559 = vor.u32 %v4556, %v4557
      %v4560 = vsel %vm505, %v4552, %v4559
      %v4561 = vrot.slane %v4556, 4
      %v4563 = vshrl.u32 %v4470, 16
      %v4565 = vrot.slane %v4563, 7
      %v4566 = vshll.u32 %v4470, 16
      %v4568 = vor.u32 %v4565, %v4566
      %v4569 = vrot.slane %v4565, 4
      %v4571 = vshrl.u32 %v4471, 16
      %v4573 = vrot.slane %v4571, 7
      %v4574 = vshll.u32 %v4471, 16
      %v4576 = vor.u32 %v4573, %v4574
      %v4577 = vsel %vm505, %v4569, %v4576
      %v4578 = vrot.slane %v4573, 4
      %v4580 = vshrl.u32 %v4472, 16
      %v4582 = vrot.slane %v4580, 7
      %v4583 = vshll.u32 %v4472, 16
      %v4585 = vor.u32 %v4582, %v4583
      %v4586 = vrot.slane %v4582, 4
      %v4588 = vshrl.u32 %v4473, 16
      %v4590 = vrot.slane %v4588, 7
      %v4591 = vshll.u32 %v4473, 16
      %v4593 = vor.u32 %v4590, %v4591
      %v4594 = vsel %vm505, %v4586, %v4593
      %v4595 = vrot.slane %v4590, 4
      %v4597 = vshrl.u32 %v4474, 16
      %v4599 = vrot.slane %v4597, 7
      %v4600 = vshll.u32 %v4474, 16
      %v4602 = vor.u32 %v4599, %v4600
      %v4603 = vrot.slane %v4599, 4
      %v4605 = vshrl.u32 %v4475, 16
      %v4607 = vrot.slane %v4605, 7
      %v4608 = vshll.u32 %v4475, 16
      %v4610 = vor.u32 %v4607, %v4608
      %v4611 = vsel %vm505, %v4603, %v4610
      %v4612 = vrot.slane %v4607, 4
      %v4614 = vshrl.u32 %v4476, 16
      %v4616 = vrot.slane %v4614, 7
      %v4617 = vshll.u32 %v4476, 16
      %v4619 = vor.u32 %v4616, %v4617
      %v4620 = vrot.slane %v4616, 4
      %v4622 = vshrl.u32 %v4477, 16
      %v4624 = vrot.slane %v4622, 7
      %v4625 = vshll.u32 %v4477, 16
      %v4627 = vor.u32 %v4624, %v4625
      %v4628 = vsel %vm505, %v4620, %v4627
      %v4629 = vrot.slane %v4624, 4
      %v4631 = vshrl.u32 %v4478, 16
      %v4633 = vrot.slane %v4631, 7
      %v4634 = vshll.u32 %v4478, 16
      %v4636 = vor.u32 %v4633, %v4634
      %v4637 = vrot.slane %v4633, 4
      %v4639 = vshrl.u32 %v4479, 16
      %v4641 = vrot.slane %v4639, 7
      %v4642 = vshll.u32 %v4479, 16
      %v4644 = vor.u32 %v4641, %v4642
      %v4645 = vsel %vm505, %v4637, %v4644
      %v4646 = vrot.slane %v4641, 4
      %v4648 = vshrl.u32 %v4480, 16
      %v4650 = vrot.slane %v4648, 7
      %v4651 = vshll.u32 %v4480, 16
      %v4653 = vor.u32 %v4650, %v4651
      %v4654 = vrot.slane %v4650, 4
      %v4656 = vshrl.u32 %v4481, 16
      %v4658 = vrot.slane %v4656, 7
      %v4659 = vshll.u32 %v4481, 16
      %v4661 = vor.u32 %v4658, %v4659
      %v4662 = vsel %vm505, %v4654, %v4661
      %v4663 = vrot.slane %v4658, 4
      %v4665 = vshrl.u32 %v4482, 16
      %v4667 = vrot.slane %v4665, 7
      %v4668 = vshll.u32 %v4482, 16
      %v4670 = vor.u32 %v4667, %v4668
      %v4671 = vrot.slane %v4667, 4
      %v4673 = vshrl.u32 %v4483, 16
      %v4675 = vrot.slane %v4673, 7
      %v4676 = vshll.u32 %v4483, 16
      %v4678 = vor.u32 %v4675, %v4676
      %v4679 = vsel %vm505, %v4671, %v4678
      %v4680 = vrot.slane %v4675, 4
      %v4682 = vshrl.u32 %v4484, 16
      %v4684 = vrot.slane %v4682, 7
      %v4685 = vshll.u32 %v4484, 16
      %v4687 = vor.u32 %v4684, %v4685
      %v4688 = vrot.slane %v4684, 4
      %v4690 = vshrl.u32 %v4485, 16
      %v4692 = vrot.slane %v4690, 7
      %v4693 = vshll.u32 %v4485, 16
      %v4695 = vor.u32 %v4692, %v4693
      %v4696 = vsel %vm505, %v4688, %v4695
      %v4697 = vrot.slane %v4692, 4
      %v4699 = vshrl.u32 %v4486, 16
      %v4701 = vrot.slane %v4699, 7
      %v4702 = vshll.u32 %v4486, 16
      %v4704 = vor.u32 %v4701, %v4702
      %v4705 = vrot.slane %v4701, 4
      %v4707 = vshrl.u32 %v4487, 16
      %v4709 = vrot.slane %v4707, 7
      %v4710 = vshll.u32 %v4487, 16
      %v4712 = vor.u32 %v4709, %v4710
      %v4713 = vsel %vm505, %v4705, %v4712
      %v4714 = vrot.slane %v4709, 4
      %v4716 = vshrl.u32 %v4488, 16
      %v4718 = vrot.slane %v4716, 7
      %v4719 = vshll.u32 %v4488, 16
      %v4721 = vor.u32 %v4718, %v4719
      %v4722 = vrot.slane %v4718, 4
      %v4724 = vshrl.u32 %v4489, 16
      %v4726 = vrot.slane %v4724, 7
      %v4727 = vshll.u32 %v4489, 16
      %v4729 = vor.u32 %v4726, %v4727
      %v4730 = vsel %vm505, %v4722, %v4729
      %v4731 = vrot.slane %v4726, 4
      %v4733 = vshrl.u32 %v4490, 16
      %v4735 = vrot.slane %v4733, 7
      %v4736 = vshll.u32 %v4490, 16
      %v4738 = vor.u32 %v4735, %v4736
      %v4739 = vrot.slane %v4735, 4
      %v4741 = vshrl.u32 %v4491, 16
      %v4743 = vrot.slane %v4741, 7
      %v4744 = vshll.u32 %v4491, 16
      %v4746 = vor.u32 %v4743, %v4744
      %v4747 = vsel %vm505, %v4739, %v4746
      %v4748 = vrot.slane %v4743, 4
      %v4750 = vshrl.u32 %v4492, 16
      %v4752 = vrot.slane %v4750, 7
      %v4753 = vshll.u32 %v4492, 16
      %v4755 = vor.u32 %v4752, %v4753
      %v4756 = vrot.slane %v4752, 4
      %v4758 = vshrl.u32 %v4493, 16
      %v4760 = vrot.slane %v4758, 7
      %v4761 = vshll.u32 %v4493, 16
      %v4763 = vor.u32 %v4760, %v4761
      %v4764 = vsel %vm505, %v4756, %v4763
      %v4765 = vrot.slane %v4760, 4
      %v4814 = vld [vmem:[%s826] sm:$0xf]
      %v4815 = vsel %vm321, %v4500, %v4814
      %4816 = vst [vmem:[%s826] sm:$0xf] %v4815
      %4817 = vst.msk [vmem:[%s826 + $0x4] sm:$0xf] %vm254, %v4509
      %v4818 = vld [vmem:[%s826 + $0x8] sm:$0x1]
      %v4819 = vsel %vm264, %v4510, %v4818
      %4820 = vst [vmem:[%s826 + $0x8] sm:$0x1] %v4819
      %v4821 = vld [vmem:[%s826 + $0xc] sm:$0xf]
      %v4822 = vsel %vm321, %v4517, %v4821
      %4823 = vst [vmem:[%s826 + $0xc] sm:$0xf] %v4822
      %4824 = vst.msk [vmem:[%s826 + $0x10] sm:$0xf] %vm254, %v4526
      %v4825 = vld [vmem:[%s826 + $0x14] sm:$0x1]
      %v4826 = vsel %vm264, %v4527, %v4825
      %4827 = vst [vmem:[%s826 + $0x14] sm:$0x1] %v4826
      %v4828 = vld [vmem:[%s826 + $0x18] sm:$0xf]
      %v4829 = vsel %vm321, %v4534, %v4828
      %4830 = vst [vmem:[%s826 + $0x18] sm:$0xf] %v4829
      %4831 = vst.msk [vmem:[%s826 + $0x1c] sm:$0xf] %vm254, %v4543
      %v4832 = vld [vmem:[%s826 + $0x20] sm:$0x1]
      %v4833 = vsel %vm264, %v4544, %v4832
      %4834 = vst [vmem:[%s826 + $0x20] sm:$0x1] %v4833
      %v4835 = vld [vmem:[%s826 + $0x24] sm:$0xf]
      %v4836 = vsel %vm321, %v4551, %v4835
      %4837 = vst [vmem:[%s826 + $0x24] sm:$0xf] %v4836
      %4838 = vst.msk [vmem:[%s826 + $0x28] sm:$0xf] %vm254, %v4560
      %v4839 = vld [vmem:[%s826 + $0x2c] sm:$0x1]
      %v4840 = vsel %vm264, %v4561, %v4839
      %4841 = vst [vmem:[%s826 + $0x2c] sm:$0x1] %v4840
      %v4842 = vld [vmem:[%s826 + $0x30] sm:$0xf]
      %v4843 = vsel %vm321, %v4568, %v4842
      %4844 = vst [vmem:[%s826 + $0x30] sm:$0xf] %v4843
      %4845 = vst.msk [vmem:[%s826 + $0x34] sm:$0xf] %vm254, %v4577
      %v4846 = vld [vmem:[%s826 + $0x38] sm:$0x1]
      %v4847 = vsel %vm264, %v4578, %v4846
      %4848 = vst [vmem:[%s826 + $0x38] sm:$0x1] %v4847
      %v4849 = vld [vmem:[%s826 + $0x3c] sm:$0xf]
      %v4850 = vsel %vm321, %v4585, %v4849
      %4851 = vst [vmem:[%s826 + $0x3c] sm:$0xf] %v4850
      %4852 = vst.msk [vmem:[%s826 + $0x40] sm:$0xf] %vm254, %v4594
      %v4853 = vld [vmem:[%s826 + $0x44] sm:$0x1]
      %v4854 = vsel %vm264, %v4595, %v4853
      %4855 = vst [vmem:[%s826 + $0x44] sm:$0x1] %v4854
      %v4856 = vld [vmem:[%s826 + $0x48] sm:$0xf]
      %v4857 = vsel %vm321, %v4602, %v4856
      %4858 = vst [vmem:[%s826 + $0x48] sm:$0xf] %v4857
      %4859 = vst.msk [vmem:[%s826 + $0x4c] sm:$0xf] %vm254, %v4611
      %v4860 = vld [vmem:[%s826 + $0x50] sm:$0x1]
      %v4861 = vsel %vm264, %v4612, %v4860
      %4862 = vst [vmem:[%s826 + $0x50] sm:$0x1] %v4861
      %v4863 = vld [vmem:[%s826 + $0x54] sm:$0xf]
      %v4864 = vsel %vm321, %v4619, %v4863
      %4865 = vst [vmem:[%s826 + $0x54] sm:$0xf] %v4864
      %4866 = vst.msk [vmem:[%s826 + $0x58] sm:$0xf] %vm254, %v4628
      %v4867 = vld [vmem:[%s826 + $0x5c] sm:$0x1]
      %v4868 = vsel %vm264, %v4629, %v4867
      %4869 = vst [vmem:[%s826 + $0x5c] sm:$0x1] %v4868
      %v4870 = vld [vmem:[%s826 + $0x60] sm:$0xf]
      %v4871 = vsel %vm321, %v4636, %v4870
      %4872 = vst [vmem:[%s826 + $0x60] sm:$0xf] %v4871
      %4873 = vst.msk [vmem:[%s826 + $0x64] sm:$0xf] %vm254, %v4645
      %v4874 = vld [vmem:[%s826 + $0x68] sm:$0x1]
      %v4875 = vsel %vm264, %v4646, %v4874
      %4876 = vst [vmem:[%s826 + $0x68] sm:$0x1] %v4875
      %v4877 = vld [vmem:[%s826 + $0x6c] sm:$0xf]
      %v4878 = vsel %vm321, %v4653, %v4877
      %4879 = vst [vmem:[%s826 + $0x6c] sm:$0xf] %v4878
      %4880 = vst.msk [vmem:[%s826 + $0x70] sm:$0xf] %vm254, %v4662
      %v4881 = vld [vmem:[%s826 + $0x74] sm:$0x1]
      %v4882 = vsel %vm264, %v4663, %v4881
      %4883 = vst [vmem:[%s826 + $0x74] sm:$0x1] %v4882
      %v4884 = vld [vmem:[%s826 + $0x78] sm:$0xf]
      %v4885 = vsel %vm321, %v4670, %v4884
      %4886 = vst [vmem:[%s826 + $0x78] sm:$0xf] %v4885
      %4887 = vst.msk [vmem:[%s826 + $0x7c] sm:$0xf] %vm254, %v4679
      %v4888 = vld [vmem:[%s826 + $0x80] sm:$0x1]
      %v4889 = vsel %vm264, %v4680, %v4888
      %4890 = vst [vmem:[%s826 + $0x80] sm:$0x1] %v4889
      %v4891 = vld [vmem:[%s826 + $0x84] sm:$0xf]
      %v4892 = vsel %vm321, %v4687, %v4891
      %4893 = vst [vmem:[%s826 + $0x84] sm:$0xf] %v4892
      %4894 = vst.msk [vmem:[%s826 + $0x88] sm:$0xf] %vm254, %v4696
      %v4895 = vld [vmem:[%s826 + $0x8c] sm:$0x1]
      %v4896 = vsel %vm264, %v4697, %v4895
      %4897 = vst [vmem:[%s826 + $0x8c] sm:$0x1] %v4896
      %v4898 = vld [vmem:[%s826 + $0x90] sm:$0xf]
      %v4899 = vsel %vm321, %v4704, %v4898
      %4900 = vst [vmem:[%s826 + $0x90] sm:$0xf] %v4899
      %4901 = vst.msk [vmem:[%s826 + $0x94] sm:$0xf] %vm254, %v4713
      %v4902 = vld [vmem:[%s826 + $0x98] sm:$0x1]
      %v4903 = vsel %vm264, %v4714, %v4902
      %4904 = vst [vmem:[%s826 + $0x98] sm:$0x1] %v4903
      %v4905 = vld [vmem:[%s826 + $0x9c] sm:$0xf]
      %v4906 = vsel %vm321, %v4721, %v4905
      %4907 = vst [vmem:[%s826 + $0x9c] sm:$0xf] %v4906
      %4908 = vst.msk [vmem:[%s826 + $0xa0] sm:$0xf] %vm254, %v4730
      %v4909 = vld [vmem:[%s826 + $0xa4] sm:$0x1]
      %v4910 = vsel %vm264, %v4731, %v4909
      %4911 = vst [vmem:[%s826 + $0xa4] sm:$0x1] %v4910
      %v4912 = vld [vmem:[%s826 + $0xa8] sm:$0xf]
      %v4913 = vsel %vm321, %v4738, %v4912
      %4914 = vst [vmem:[%s826 + $0xa8] sm:$0xf] %v4913
      %4915 = vst.msk [vmem:[%s826 + $0xac] sm:$0xf] %vm254, %v4747
      %v4916 = vld [vmem:[%s826 + $0xb0] sm:$0x1]
      %v4917 = vsel %vm264, %v4748, %v4916
      %4918 = vst [vmem:[%s826 + $0xb0] sm:$0x1] %v4917
      %v4919 = vld [vmem:[%s826 + $0xb4] sm:$0xf]
      %v4920 = vsel %vm321, %v4755, %v4919
      %4921 = vst [vmem:[%s826 + $0xb4] sm:$0xf] %v4920
      %4922 = vst.msk [vmem:[%s826 + $0xb8] sm:$0xf] %vm254, %v4764
      %v4923 = vld [vmem:[%s826 + $0xbc] sm:$0x1]
      %v4924 = vsel %vm264, %v4765, %v4923
      %4925 = vst [vmem:[%s826 + $0xbc] sm:$0x1] %v4924
      %v4926 = vld [vmem:[#allocation2] sm:$0xf]
      %v4927 = vld [vmem:[#allocation2 + $0x4] sm:$0xf]
      %v4928 = vld [vmem:[#allocation2 + $0xc] sm:$0xf]
      %v4929 = vld [vmem:[#allocation2 + $0x10] sm:$0xf]
      %v4930 = vld [vmem:[#allocation2 + $0x18] sm:$0xf]
      %v4931 = vld [vmem:[#allocation2 + $0x1c] sm:$0xf]
      %v4932 = vld [vmem:[#allocation2 + $0x24] sm:$0xf]
      %v4933 = vld [vmem:[#allocation2 + $0x28] sm:$0xf]
      %v4934 = vld [vmem:[#allocation2 + $0x30] sm:$0xf]
      %v4935 = vld [vmem:[#allocation2 + $0x34] sm:$0xf]
      %v4936 = vld [vmem:[#allocation2 + $0x3c] sm:$0xf]
      %v4937 = vld [vmem:[#allocation2 + $0x40] sm:$0xf]
      %v4938 = vld [vmem:[#allocation2 + $0x48] sm:$0xf]
      %v4939 = vld [vmem:[#allocation2 + $0x4c] sm:$0xf]
      %v4940 = vld [vmem:[#allocation2 + $0x54] sm:$0xf]
      %v4941 = vld [vmem:[#allocation2 + $0x58] sm:$0xf]
      %v4942 = vld [vmem:[#allocation2 + $0x60] sm:$0xf]
      %v4943 = vld [vmem:[#allocation2 + $0x64] sm:$0xf]
      %v4944 = vld [vmem:[#allocation2 + $0x6c] sm:$0xf]
      %v4945 = vld [vmem:[#allocation2 + $0x70] sm:$0xf]
      %v4946 = vld [vmem:[#allocation2 + $0x78] sm:$0xf]
      %v4947 = vld [vmem:[#allocation2 + $0x7c] sm:$0xf]
      %v4948 = vld [vmem:[#allocation2 + $0x84] sm:$0xf]
      %v4949 = vld [vmem:[#allocation2 + $0x88] sm:$0xf]
      %v4950 = vld [vmem:[#allocation2 + $0x90] sm:$0xf]
      %v4951 = vld [vmem:[#allocation2 + $0x94] sm:$0xf]
      %v4952 = vld [vmem:[#allocation2 + $0x9c] sm:$0xf]
      %v4953 = vld [vmem:[#allocation2 + $0xa0] sm:$0xf]
      %v4954 = vld [vmem:[#allocation2 + $0xa8] sm:$0xf]
      %v4955 = vld [vmem:[#allocation2 + $0xac] sm:$0xf]
      %v4956 = vld [vmem:[#allocation2 + $0xb4] sm:$0xf]
      %v4957 = vld [vmem:[#allocation2 + $0xb8] sm:$0xf]
      %v4990 = vunpack.c.l.b16 %v4926
      %v4991 = vunpack.c.l.b16 %v4927
      %v4992 = vunpack.c.l.b16 %v4928
      %v4993 = vunpack.c.l.b16 %v4929
      %v4994 = vunpack.c.l.b16 %v4930
      %v4995 = vunpack.c.l.b16 %v4931
      %v4996 = vunpack.c.l.b16 %v4932
      %v4997 = vunpack.c.l.b16 %v4933
      %v4998 = vunpack.c.l.b16 %v4934
      %v4999 = vunpack.c.l.b16 %v4935
      %v5000 = vunpack.c.l.b16 %v4936
      %v5001 = vunpack.c.l.b16 %v4937
      %v5002 = vunpack.c.l.b16 %v4938
      %v5003 = vunpack.c.l.b16 %v4939
      %v5004 = vunpack.c.l.b16 %v4940
      %v5005 = vunpack.c.l.b16 %v4941
      %v5006 = vunpack.c.l.b16 %v4942
      %v5007 = vunpack.c.l.b16 %v4943
      %v5008 = vunpack.c.l.b16 %v4944
      %v5009 = vunpack.c.l.b16 %v4945
      %v5010 = vunpack.c.l.b16 %v4946
      %v5011 = vunpack.c.l.b16 %v4947
      %v5012 = vunpack.c.l.b16 %v4948
      %v5013 = vunpack.c.l.b16 %v4949
      %v5014 = vunpack.c.l.b16 %v4950
      %v5015 = vunpack.c.l.b16 %v4951
      %v5016 = vunpack.c.l.b16 %v4952
      %v5017 = vunpack.c.l.b16 %v4953
      %v5018 = vunpack.c.l.b16 %v4954
      %v5019 = vunpack.c.l.b16 %v4955
      %v5020 = vunpack.c.l.b16 %v4956
      %v5021 = vunpack.c.l.b16 %v4957
      %v5022 = vpack.c.b16 %v4991, %v4990
      %v5023 = vpack.c.b16 %v4993, %v4992
      %v5024 = vpack.c.b16 %v4995, %v4994
      %v5025 = vpack.c.b16 %v4997, %v4996
      %v5026 = vpack.c.b16 %v4999, %v4998
      %v5027 = vpack.c.b16 %v5001, %v5000
      %v5028 = vpack.c.b16 %v5003, %v5002
      %v5029 = vpack.c.b16 %v5005, %v5004
      %v5030 = vpack.c.b16 %v5007, %v5006
      %v5031 = vpack.c.b16 %v5009, %v5008
      %v5032 = vpack.c.b16 %v5011, %v5010
      %v5033 = vpack.c.b16 %v5013, %v5012
      %v5034 = vpack.c.b16 %v5015, %v5014
      %v5035 = vpack.c.b16 %v5017, %v5016
      %v5036 = vpack.c.b16 %v5019, %v5018
      %v5037 = vpack.c.b16 %v5021, %v5020
      %5054 = vst.msk [vmem:[#allocation3] sm:$0xff] %vm1067, %v5022
      %5055 = vst.msk [vmem:[#allocation3 + $0x8] sm:$0xff] %vm1067, %v5023
      %5056 = vst.msk [vmem:[#allocation3 + $0x10] sm:$0xff] %vm1067, %v5024
      %5057 = vst.msk [vmem:[#allocation3 + $0x18] sm:$0xff] %vm1067, %v5025
      %5058 = vst.msk [vmem:[#allocation3 + $0x20] sm:$0xff] %vm1067, %v5026
      %5059 = vst.msk [vmem:[#allocation3 + $0x28] sm:$0xff] %vm1067, %v5027
      %5060 = vst.msk [vmem:[#allocation3 + $0x30] sm:$0xff] %vm1067, %v5028
      %5061 = vst.msk [vmem:[#allocation3 + $0x38] sm:$0xff] %vm1067, %v5029
      %5062 = vst.msk [vmem:[#allocation3 + $0x40] sm:$0xff] %vm1067, %v5030
      %5063 = vst.msk [vmem:[#allocation3 + $0x48] sm:$0xff] %vm1067, %v5031
      %5064 = vst.msk [vmem:[#allocation3 + $0x50] sm:$0xff] %vm1067, %v5032
      %5065 = vst.msk [vmem:[#allocation3 + $0x58] sm:$0xff] %vm1067, %v5033
      %5066 = vst.msk [vmem:[#allocation3 + $0x60] sm:$0xff] %vm1067, %v5034
      %5067 = vst.msk [vmem:[#allocation3 + $0x68] sm:$0xff] %vm1067, %v5035
      %5068 = vst.msk [vmem:[#allocation3 + $0x70] sm:$0xff] %vm1067, %v5036
      %5069 = vst.msk [vmem:[#allocation3 + $0x78] sm:$0xff] %vm1067, %v5037
      %v5070 = vld [vmem:[#allocation2] sm:$0xf]
      %v5071 = vld [vmem:[#allocation2 + $0x4] sm:$0xf]
      %v5072 = vld [vmem:[#allocation2 + $0x8] sm:$0x1]
      %v5073 = vld [vmem:[#allocation2 + $0xc] sm:$0xf]
      %v5074 = vld [vmem:[#allocation2 + $0x10] sm:$0xf]
      %v5075 = vld [vmem:[#allocation2 + $0x14] sm:$0x1]
      %v5076 = vld [vmem:[#allocation2 + $0x18] sm:$0xf]
      %v5077 = vld [vmem:[#allocation2 + $0x1c] sm:$0xf]
      %v5078 = vld [vmem:[#allocation2 + $0x20] sm:$0x1]
      %v5079 = vld [vmem:[#allocation2 + $0x24] sm:$0xf]
      %v5080 = vld [vmem:[#allocation2 + $0x28] sm:$0xf]
      %v5081 = vld [vmem:[#allocation2 + $0x2c] sm:$0x1]
      %v5082 = vld [vmem:[#allocation2 + $0x30] sm:$0xf]
      %v5083 = vld [vmem:[#allocation2 + $0x34] sm:$0xf]
      %v5084 = vld [vmem:[#allocation2 + $0x38] sm:$0x1]
      %v5085 = vld [vmem:[#allocation2 + $0x3c] sm:$0xf]
      %v5086 = vld [vmem:[#allocation2 + $0x40] sm:$0xf]
      %v5087 = vld [vmem:[#allocation2 + $0x44] sm:$0x1]
      %v5088 = vld [vmem:[#allocation2 + $0x48] sm:$0xf]
      %v5089 = vld [vmem:[#allocation2 + $0x4c] sm:$0xf]
      %v5090 = vld [vmem:[#allocation2 + $0x50] sm:$0x1]
      %v5091 = vld [vmem:[#allocation2 + $0x54] sm:$0xf]
      %v5092 = vld [vmem:[#allocation2 + $0x58] sm:$0xf]
      %v5093 = vld [vmem:[#allocation2 + $0x5c] sm:$0x1]
      %v5094 = vld [vmem:[#allocation2 + $0x60] sm:$0xf]
      %v5095 = vld [vmem:[#allocation2 + $0x64] sm:$0xf]
      %v5096 = vld [vmem:[#allocation2 + $0x68] sm:$0x1]
      %v5097 = vld [vmem:[#allocation2 + $0x6c] sm:$0xf]
      %v5098 = vld [vmem:[#allocation2 + $0x70] sm:$0xf]
      %v5099 = vld [vmem:[#allocation2 + $0x74] sm:$0x1]
      %v5100 = vld [vmem:[#allocation2 + $0x78] sm:$0xf]
      %v5101 = vld [vmem:[#allocation2 + $0x7c] sm:$0xf]
      %v5102 = vld [vmem:[#allocation2 + $0x80] sm:$0x1]
      %v5103 = vld [vmem:[#allocation2 + $0x84] sm:$0xf]
      %v5104 = vld [vmem:[#allocation2 + $0x88] sm:$0xf]
      %v5105 = vld [vmem:[#allocation2 + $0x8c] sm:$0x1]
      %v5106 = vld [vmem:[#allocation2 + $0x90] sm:$0xf]
      %v5107 = vld [vmem:[#allocation2 + $0x94] sm:$0xf]
      %v5108 = vld [vmem:[#allocation2 + $0x98] sm:$0x1]
      %v5109 = vld [vmem:[#allocation2 + $0x9c] sm:$0xf]
      %v5110 = vld [vmem:[#allocation2 + $0xa0] sm:$0xf]
      %v5111 = vld [vmem:[#allocation2 + $0xa4] sm:$0x1]
      %v5112 = vld [vmem:[#allocation2 + $0xa8] sm:$0xf]
      %v5113 = vld [vmem:[#allocation2 + $0xac] sm:$0xf]
      %v5114 = vld [vmem:[#allocation2 + $0xb0] sm:$0x1]
      %v5115 = vld [vmem:[#allocation2 + $0xb4] sm:$0xf]
      %v5116 = vld [vmem:[#allocation2 + $0xb8] sm:$0xf]
      %v5117 = vld [vmem:[#allocation2 + $0xbc] sm:$0x1]
      %v5119 = vshrl.u32 %v5070, 16
      %v5121 = vrot.slane %v5119, 4
      %v5122 = vshll.u32 %v5070, 16
      %v5124 = vrot.slane %v5122, 5
      %v5125 = vor.u32 %v5121, %v5124
      %v5126 = vrot.slane %v5125, 4
      %v5128 = vshll.u32 %v5071, 16
      %v5130 = vrot.slane %v5128, 5
      %v5131 = vsel %vm1134, %v5126, %v5130
      %v5132 = vshrl.u32 %v5071, 16
      %v5134 = vrot.slane %v5132, 4
      %v5135 = vor.u32 %v5134, %v5130
      %v5136 = vrot.slane %v5135, 4
      %v5138 = vshll.u32 %v5072, 16
      %v5140 = vrot.slane %v5138, 5
      %v5141 = vsel %vm1134, %v5136, %v5140
      %v5143 = vshrl.u32 %v5073, 16
      %v5145 = vrot.slane %v5143, 4
      %v5146 = vshll.u32 %v5073, 16
      %v5148 = vrot.slane %v5146, 5
      %v5149 = vor.u32 %v5145, %v5148
      %v5150 = vrot.slane %v5149, 4
      %v5152 = vshll.u32 %v5074, 16
      %v5154 = vrot.slane %v5152, 5
      %v5155 = vsel %vm1134, %v5150, %v5154
      %v5156 = vshrl.u32 %v5074, 16
      %v5158 = vrot.slane %v5156, 4
      %v5159 = vor.u32 %v5158, %v5154
      %v5160 = vrot.slane %v5159, 4
      %v5162 = vshll.u32 %v5075, 16
      %v5164 = vrot.slane %v5162, 5
      %v5165 = vsel %vm1134, %v5160, %v5164
      %v5167 = vshrl.u32 %v5076, 16
      %v5169 = vrot.slane %v5167, 4
      %v5170 = vshll.u32 %v5076, 16
      %v5172 = vrot.slane %v5170, 5
      %v5173 = vor.u32 %v5169, %v5172
      %v5174 = vrot.slane %v5173, 4
      %v5176 = vshll.u32 %v5077, 16
      %v5178 = vrot.slane %v5176, 5
      %v5179 = vsel %vm1134, %v5174, %v5178
      %v5180 = vshrl.u32 %v5077, 16
      %v5182 = vrot.slane %v5180, 4
      %v5183 = vor.u32 %v5182, %v5178
      %v5184 = vrot.slane %v5183, 4
      %v5186 = vshll.u32 %v5078, 16
      %v5188 = vrot.slane %v5186, 5
      %v5189 = vsel %vm1134, %v5184, %v5188
      %v5191 = vshrl.u32 %v5079, 16
      %v5193 = vrot.slane %v5191, 4
      %v5194 = vshll.u32 %v5079, 16
      %v5196 = vrot.slane %v5194, 5
      %v5197 = vor.u32 %v5193, %v5196
      %v5198 = vrot.slane %v5197, 4
      %v5200 = vshll.u32 %v5080, 16
      %v5202 = vrot.slane %v5200, 5
      %v5203 = vsel %vm1134, %v5198, %v5202
      %v5204 = vshrl.u32 %v5080, 16
      %v5206 = vrot.slane %v5204, 4
      %v5207 = vor.u32 %v5206, %v5202
      %v5208 = vrot.slane %v5207, 4
      %v5210 = vshll.u32 %v5081, 16
      %v5212 = vrot.slane %v5210, 5
      %v5213 = vsel %vm1134, %v5208, %v5212
      %v5215 = vshrl.u32 %v5082, 16
      %v5217 = vrot.slane %v5215, 4
      %v5218 = vshll.u32 %v5082, 16
      %v5220 = vrot.slane %v5218, 5
      %v5221 = vor.u32 %v5217, %v5220
      %v5222 = vrot.slane %v5221, 4
      %v5224 = vshll.u32 %v5083, 16
      %v5226 = vrot.slane %v5224, 5
      %v5227 = vsel %vm1134, %v5222, %v5226
      %v5228 = vshrl.u32 %v5083, 16
      %v5230 = vrot.slane %v5228, 4
      %v5231 = vor.u32 %v5230, %v5226
      %v5232 = vrot.slane %v5231, 4
      %v5234 = vshll.u32 %v5084, 16
      %v5236 = vrot.slane %v5234, 5
      %v5237 = vsel %vm1134, %v5232, %v5236
      %v5239 = vshrl.u32 %v5085, 16
      %v5241 = vrot.slane %v5239, 4
      %v5242 = vshll.u32 %v5085, 16
      %v5244 = vrot.slane %v5242, 5
      %v5245 = vor.u32 %v5241, %v5244
      %v5246 = vrot.slane %v5245, 4
      %v5248 = vshll.u32 %v5086, 16
      %v5250 = vrot.slane %v5248, 5
      %v5251 = vsel %vm1134, %v5246, %v5250
      %v5252 = vshrl.u32 %v5086, 16
      %v5254 = vrot.slane %v5252, 4
      %v5255 = vor.u32 %v5254, %v5250
      %v5256 = vrot.slane %v5255, 4
      %v5258 = vshll.u32 %v5087, 16
      %v5260 = vrot.slane %v5258, 5
      %v5261 = vsel %vm1134, %v5256, %v5260
      %v5263 = vshrl.u32 %v5088, 16
      %v5265 = vrot.slane %v5263, 4
      %v5266 = vshll.u32 %v5088, 16
      %v5268 = vrot.slane %v5266, 5
      %v5269 = vor.u32 %v5265, %v5268
      %v5270 = vrot.slane %v5269, 4
      %v5272 = vshll.u32 %v5089, 16
      %v5274 = vrot.slane %v5272, 5
      %v5275 = vsel %vm1134, %v5270, %v5274
      %v5276 = vshrl.u32 %v5089, 16
      %v5278 = vrot.slane %v5276, 4
      %v5279 = vor.u32 %v5278, %v5274
      %v5280 = vrot.slane %v5279, 4
      %v5282 = vshll.u32 %v5090, 16
      %v5284 = vrot.slane %v5282, 5
      %v5285 = vsel %vm1134, %v5280, %v5284
      %v5287 = vshrl.u32 %v5091, 16
      %v5289 = vrot.slane %v5287, 4
      %v5290 = vshll.u32 %v5091, 16
      %v5292 = vrot.slane %v5290, 5
      %v5293 = vor.u32 %v5289, %v5292
      %v5294 = vrot.slane %v5293, 4
      %v5296 = vshll.u32 %v5092, 16
      %v5298 = vrot.slane %v5296, 5
      %v5299 = vsel %vm1134, %v5294, %v5298
      %v5300 = vshrl.u32 %v5092, 16
      %v5302 = vrot.slane %v5300, 4
      %v5303 = vor.u32 %v5302, %v5298
      %v5304 = vrot.slane %v5303, 4
      %v5306 = vshll.u32 %v5093, 16
      %v5308 = vrot.slane %v5306, 5
      %v5309 = vsel %vm1134, %v5304, %v5308
      %v5311 = vshrl.u32 %v5094, 16
      %v5313 = vrot.slane %v5311, 4
      %v5314 = vshll.u32 %v5094, 16
      %v5316 = vrot.slane %v5314, 5
      %v5317 = vor.u32 %v5313, %v5316
      %v5318 = vrot.slane %v5317, 4
      %v5320 = vshll.u32 %v5095, 16
      %v5322 = vrot.slane %v5320, 5
      %v5323 = vsel %vm1134, %v5318, %v5322
      %v5324 = vshrl.u32 %v5095, 16
      %v5326 = vrot.slane %v5324, 4
      %v5327 = vor.u32 %v5326, %v5322
      %v5328 = vrot.slane %v5327, 4
      %v5330 = vshll.u32 %v5096, 16
      %v5332 = vrot.slane %v5330, 5
      %v5333 = vsel %vm1134, %v5328, %v5332
      %v5335 = vshrl.u32 %v5097, 16
      %v5337 = vrot.slane %v5335, 4
      %v5338 = vshll.u32 %v5097, 16
      %v5340 = vrot.slane %v5338, 5
      %v5341 = vor.u32 %v5337, %v5340
      %v5342 = vrot.slane %v5341, 4
      %v5344 = vshll.u32 %v5098, 16
      %v5346 = vrot.slane %v5344, 5
      %v5347 = vsel %vm1134, %v5342, %v5346
      %v5348 = vshrl.u32 %v5098, 16
      %v5350 = vrot.slane %v5348, 4
      %v5351 = vor.u32 %v5350, %v5346
      %v5352 = vrot.slane %v5351, 4
      %v5354 = vshll.u32 %v5099, 16
      %v5356 = vrot.slane %v5354, 5
      %v5357 = vsel %vm1134, %v5352, %v5356
      %v5359 = vshrl.u32 %v5100, 16
      %v5361 = vrot.slane %v5359, 4
      %v5362 = vshll.u32 %v5100, 16
      %v5364 = vrot.slane %v5362, 5
      %v5365 = vor.u32 %v5361, %v5364
      %v5366 = vrot.slane %v5365, 4
      %v5368 = vshll.u32 %v5101, 16
      %v5370 = vrot.slane %v5368, 5
      %v5371 = vsel %vm1134, %v5366, %v5370
      %v5372 = vshrl.u32 %v5101, 16
      %v5374 = vrot.slane %v5372, 4
      %v5375 = vor.u32 %v5374, %v5370
      %v5376 = vrot.slane %v5375, 4
      %v5378 = vshll.u32 %v5102, 16
      %v5380 = vrot.slane %v5378, 5
      %v5381 = vsel %vm1134, %v5376, %v5380
      %v5383 = vshrl.u32 %v5103, 16
      %v5385 = vrot.slane %v5383, 4
      %v5386 = vshll.u32 %v5103, 16
      %v5388 = vrot.slane %v5386, 5
      %v5389 = vor.u32 %v5385, %v5388
      %v5390 = vrot.slane %v5389, 4
      %v5392 = vshll.u32 %v5104, 16
      %v5394 = vrot.slane %v5392, 5
      %v5395 = vsel %vm1134, %v5390, %v5394
      %v5396 = vshrl.u32 %v5104, 16
      %v5398 = vrot.slane %v5396, 4
      %v5399 = vor.u32 %v5398, %v5394
      %v5400 = vrot.slane %v5399, 4
      %v5402 = vshll.u32 %v5105, 16
      %v5404 = vrot.slane %v5402, 5
      %v5405 = vsel %vm1134, %v5400, %v5404
      %v5407 = vshrl.u32 %v5106, 16
      %v5409 = vrot.slane %v5407, 4
      %v5410 = vshll.u32 %v5106, 16
      %v5412 = vrot.slane %v5410, 5
      %v5413 = vor.u32 %v5409, %v5412
      %v5414 = vrot.slane %v5413, 4
      %v5416 = vshll.u32 %v5107, 16
      %v5418 = vrot.slane %v5416, 5
      %v5419 = vsel %vm1134, %v5414, %v5418
      %v5420 = vshrl.u32 %v5107, 16
      %v5422 = vrot.slane %v5420, 4
      %v5423 = vor.u32 %v5422, %v5418
      %v5424 = vrot.slane %v5423, 4
      %v5426 = vshll.u32 %v5108, 16
      %v5428 = vrot.slane %v5426, 5
      %v5429 = vsel %vm1134, %v5424, %v5428
      %v5431 = vshrl.u32 %v5109, 16
      %v5433 = vrot.slane %v5431, 4
      %v5434 = vshll.u32 %v5109, 16
      %v5436 = vrot.slane %v5434, 5
      %v5437 = vor.u32 %v5433, %v5436
      %v5438 = vrot.slane %v5437, 4
      %v5440 = vshll.u32 %v5110, 16
      %v5442 = vrot.slane %v5440, 5
      %v5443 = vsel %vm1134, %v5438, %v5442
      %v5444 = vshrl.u32 %v5110, 16
      %v5446 = vrot.slane %v5444, 4
      %v5447 = vor.u32 %v5446, %v5442
      %v5448 = vrot.slane %v5447, 4
      %v5450 = vshll.u32 %v5111, 16
      %v5452 = vrot.slane %v5450, 5
      %v5453 = vsel %vm1134, %v5448, %v5452
      %v5455 = vshrl.u32 %v5112, 16
      %v5457 = vrot.slane %v5455, 4
      %v5458 = vshll.u32 %v5112, 16
      %v5460 = vrot.slane %v5458, 5
      %v5461 = vor.u32 %v5457, %v5460
      %v5462 = vrot.slane %v5461, 4
      %v5464 = vshll.u32 %v5113, 16
      %v5466 = vrot.slane %v5464, 5
      %v5467 = vsel %vm1134, %v5462, %v5466
      %v5468 = vshrl.u32 %v5113, 16
      %v5470 = vrot.slane %v5468, 4
      %v5471 = vor.u32 %v5470, %v5466
      %v5472 = vrot.slane %v5471, 4
      %v5474 = vshll.u32 %v5114, 16
      %v5476 = vrot.slane %v5474, 5
      %v5477 = vsel %vm1134, %v5472, %v5476
      %v5479 = vshrl.u32 %v5115, 16
      %v5481 = vrot.slane %v5479, 4
      %v5482 = vshll.u32 %v5115, 16
      %v5484 = vrot.slane %v5482, 5
      %v5485 = vor.u32 %v5481, %v5484
      %v5486 = vrot.slane %v5485, 4
      %v5488 = vshll.u32 %v5116, 16
      %v5490 = vrot.slane %v5488, 5
      %v5491 = vsel %vm1134, %v5486, %v5490
      %v5492 = vshrl.u32 %v5116, 16
      %v5494 = vrot.slane %v5492, 4
      %v5495 = vor.u32 %v5494, %v5490
      %v5496 = vrot.slane %v5495, 4
      %v5498 = vshll.u32 %v5117, 16
      %v5500 = vrot.slane %v5498, 5
      %v5501 = vsel %vm1134, %v5496, %v5500
      %v5502 = vunpack.c.l.b16 %v5131
      %v5503 = vunpack.c.l.b16 %v5141
      %v5504 = vunpack.c.l.b16 %v5155
      %v5505 = vunpack.c.l.b16 %v5165
      %v5506 = vunpack.c.l.b16 %v5179
      %v5507 = vunpack.c.l.b16 %v5189
      %v5508 = vunpack.c.l.b16 %v5203
      %v5509 = vunpack.c.l.b16 %v5213
      %v5510 = vunpack.c.l.b16 %v5227
      %v5511 = vunpack.c.l.b16 %v5237
      %v5512 = vunpack.c.l.b16 %v5251
      %v5513 = vunpack.c.l.b16 %v5261
      %v5514 = vunpack.c.l.b16 %v5275
      %v5515 = vunpack.c.l.b16 %v5285
      %v5516 = vunpack.c.l.b16 %v5299
      %v5517 = vunpack.c.l.b16 %v5309
      %v5518 = vunpack.c.l.b16 %v5323
      %v5519 = vunpack.c.l.b16 %v5333
      %v5520 = vunpack.c.l.b16 %v5347
      %v5521 = vunpack.c.l.b16 %v5357
      %v5522 = vunpack.c.l.b16 %v5371
      %v5523 = vunpack.c.l.b16 %v5381
      %v5524 = vunpack.c.l.b16 %v5395
      %v5525 = vunpack.c.l.b16 %v5405
      %v5526 = vunpack.c.l.b16 %v5419
      %v5527 = vunpack.c.l.b16 %v5429
      %v5528 = vunpack.c.l.b16 %v5443
      %v5529 = vunpack.c.l.b16 %v5453
      %v5530 = vunpack.c.l.b16 %v5467
      %v5531 = vunpack.c.l.b16 %v5477
      %v5532 = vunpack.c.l.b16 %v5491
      %v5533 = vunpack.c.l.b16 %v5501
      %v5534 = vpack.c.b16 %v5503, %v5502
      %v5535 = vpack.c.b16 %v5505, %v5504
      %v5536 = vpack.c.b16 %v5507, %v5506
      %v5537 = vpack.c.b16 %v5509, %v5508
      %v5538 = vpack.c.b16 %v5511, %v5510
      %v5539 = vpack.c.b16 %v5513, %v5512
      %v5540 = vpack.c.b16 %v5515, %v5514
      %v5541 = vpack.c.b16 %v5517, %v5516
      %v5542 = vpack.c.b16 %v5519, %v5518
      %v5543 = vpack.c.b16 %v5521, %v5520
      %v5544 = vpack.c.b16 %v5523, %v5522
      %v5545 = vpack.c.b16 %v5525, %v5524
      %v5546 = vpack.c.b16 %v5527, %v5526
      %v5547 = vpack.c.b16 %v5529, %v5528
      %v5548 = vpack.c.b16 %v5531, %v5530
      %v5549 = vpack.c.b16 %v5533, %v5532
      %5550 = vrot.lane.b32.xlu0 %v5534, 4
      %v5551 = vpop.permute.xlu0 %5550
      %5552 = vrot.lane.b32.xlu0 %v5535, 4
      %v5553 = vpop.permute.xlu0 %5552
      %5554 = vrot.lane.b32.xlu0 %v5536, 4
      %v5555 = vpop.permute.xlu0 %5554
      %5556 = vrot.lane.b32.xlu0 %v5537, 4
      %v5557 = vpop.permute.xlu0 %5556
      %5558 = vrot.lane.b32.xlu0 %v5538, 4
      %v5559 = vpop.permute.xlu0 %5558
      %5560 = vrot.lane.b32.xlu0 %v5539, 4
      %v5561 = vpop.permute.xlu0 %5560
      %5562 = vrot.lane.b32.xlu0 %v5540, 4
      %v5563 = vpop.permute.xlu0 %5562
      %5564 = vrot.lane.b32.xlu0 %v5541, 4
      %v5565 = vpop.permute.xlu0 %5564
      %5566 = vrot.lane.b32.xlu0 %v5542, 4
      %v5567 = vpop.permute.xlu0 %5566
      %5568 = vrot.lane.b32.xlu0 %v5543, 4
      %v5569 = vpop.permute.xlu0 %5568
      %5570 = vrot.lane.b32.xlu0 %v5544, 4
      %v5571 = vpop.permute.xlu0 %5570
      %5572 = vrot.lane.b32.xlu0 %v5545, 4
      %v5573 = vpop.permute.xlu0 %5572
      %5574 = vrot.lane.b32.xlu0 %v5546, 4
      %v5575 = vpop.permute.xlu0 %5574
      %5576 = vrot.lane.b32.xlu0 %v5547, 4
      %v5577 = vpop.permute.xlu0 %5576
      %5578 = vrot.lane.b32.xlu0 %v5548, 4
      %v5579 = vpop.permute.xlu0 %5578
      %5580 = vrot.lane.b32.xlu0 %v5549, 4
      %v5581 = vpop.permute.xlu0 %5580
      %5598 = vst.msk [vmem:[#allocation3] sm:$0xff] %vm1615, %v5551
      %5599 = vst.msk [vmem:[#allocation3 + $0x8] sm:$0xff] %vm1615, %v5553
      %5600 = vst.msk [vmem:[#allocation3 + $0x10] sm:$0xff] %vm1615, %v5555
      %5601 = vst.msk [vmem:[#allocation3 + $0x18] sm:$0xff] %vm1615, %v5557
      %5602 = vst.msk [vmem:[#allocation3 + $0x20] sm:$0xff] %vm1615, %v5559
      %5603 = vst.msk [vmem:[#allocation3 + $0x28] sm:$0xff] %vm1615, %v5561
      %5604 = vst.msk [vmem:[#allocation3 + $0x30] sm:$0xff] %vm1615, %v5563
      %5605 = vst.msk [vmem:[#allocation3 + $0x38] sm:$0xff] %vm1615, %v5565
      %5606 = vst.msk [vmem:[#allocation3 + $0x40] sm:$0xff] %vm1615, %v5567
      %5607 = vst.msk [vmem:[#allocation3 + $0x48] sm:$0xff] %vm1615, %v5569
      %5608 = vst.msk [vmem:[#allocation3 + $0x50] sm:$0xff] %vm1615, %v5571
      %5609 = vst.msk [vmem:[#allocation3 + $0x58] sm:$0xff] %vm1615, %v5573
      %5610 = vst.msk [vmem:[#allocation3 + $0x60] sm:$0xff] %vm1615, %v5575
      %5611 = vst.msk [vmem:[#allocation3 + $0x68] sm:$0xff] %vm1615, %v5577
      %5612 = vst.msk [vmem:[#allocation3 + $0x70] sm:$0xff] %vm1615, %v5579
      %5613 = vst.msk [vmem:[#allocation3 + $0x78] sm:$0xff] %vm1615, %v5581
      %v5614 = vld [vmem:[#allocation2] sm:$0xe]
      %v5615 = vld [vmem:[#allocation2 + $0x4] sm:$0xf]
      %v5616 = vld [vmem:[#allocation2 + $0x8] sm:$0x1]
      %v5617 = vld [vmem:[#allocation2 + $0xc] sm:$0xe]
      %v5618 = vld [vmem:[#allocation2 + $0x10] sm:$0xf]
      %v5619 = vld [vmem:[#allocation2 + $0x14] sm:$0x1]
      %v5620 = vld [vmem:[#allocation2 + $0x18] sm:$0xe]
      %v5621 = vld [vmem:[#allocation2 + $0x1c] sm:$0xf]
      %v5622 = vld [vmem:[#allocation2 + $0x20] sm:$0x1]
      %v5623 = vld [vmem:[#allocation2 + $0x24] sm:$0xe]
      %v5624 = vld [vmem:[#allocation2 + $0x28] sm:$0xf]
      %v5625 = vld [vmem:[#allocation2 + $0x2c] sm:$0x1]
      %v5626 = vld [vmem:[#allocation2 + $0x30] sm:$0xe]
      %v5627 = vld [vmem:[#allocation2 + $0x34] sm:$0xf]
      %v5628 = vld [vmem:[#allocation2 + $0x38] sm:$0x1]
      %v5629 = vld [vmem:[#allocation2 + $0x3c] sm:$0xe]
      %v5630 = vld [vmem:[#allocation2 + $0x40] sm:$0xf]
      %v5631 = vld [vmem:[#allocation2 + $0x44] sm:$0x1]
      %v5632 = vld [vmem:[#allocation2 + $0x48] sm:$0xe]
      %v5633 = vld [vmem:[#allocation2 + $0x4c] sm:$0xf]
      %v5634 = vld [vmem:[#allocation2 + $0x50] sm:$0x1]
      %v5635 = vld [vmem:[#allocation2 + $0x54] sm:$0xe]
      %v5636 = vld [vmem:[#allocation2 + $0x58] sm:$0xf]
      %v5637 = vld [vmem:[#allocation2 + $0x5c] sm:$0x1]
      %v5638 = vld [vmem:[#allocation2 + $0x60] sm:$0xe]
      %v5639 = vld [vmem:[#allocation2 + $0x64] sm:$0xf]
      %v5640 = vld [vmem:[#allocation2 + $0x68] sm:$0x1]
      %v5641 = vld [vmem:[#allocation2 + $0x6c] sm:$0xe]
      %v5642 = vld [vmem:[#allocation2 + $0x70] sm:$0xf]
      %v5643 = vld [vmem:[#allocation2 + $0x74] sm:$0x1]
      %v5644 = vld [vmem:[#allocation2 + $0x78] sm:$0xe]
      %v5645 = vld [vmem:[#allocation2 + $0x7c] sm:$0xf]
      %v5646 = vld [vmem:[#allocation2 + $0x80] sm:$0x1]
      %v5647 = vld [vmem:[#allocation2 + $0x84] sm:$0xe]
      %v5648 = vld [vmem:[#allocation2 + $0x88] sm:$0xf]
      %v5649 = vld [vmem:[#allocation2 + $0x8c] sm:$0x1]
      %v5650 = vld [vmem:[#allocation2 + $0x90] sm:$0xe]
      %v5651 = vld [vmem:[#allocation2 + $0x94] sm:$0xf]
      %v5652 = vld [vmem:[#allocation2 + $0x98] sm:$0x1]
      %v5653 = vld [vmem:[#allocation2 + $0x9c] sm:$0xe]
      %v5654 = vld [vmem:[#allocation2 + $0xa0] sm:$0xf]
      %v5655 = vld [vmem:[#allocation2 + $0xa4] sm:$0x1]
      %v5656 = vld [vmem:[#allocation2 + $0xa8] sm:$0xe]
      %v5657 = vld [vmem:[#allocation2 + $0xac] sm:$0xf]
      %v5658 = vld [vmem:[#allocation2 + $0xb0] sm:$0x1]
      %v5659 = vld [vmem:[#allocation2 + $0xb4] sm:$0xe]
      %v5660 = vld [vmem:[#allocation2 + $0xb8] sm:$0xf]
      %v5661 = vld [vmem:[#allocation2 + $0xbc] sm:$0x1]
      %v5710 = vrot.slane %v5614, 5
      %v5711 = vrot.slane %v5710, 4
      %v5712 = vrot.slane %v5615, 5
      %v5713 = vsel %vm1730, %v5711, %v5712
      %v5714 = vrot.slane %v5712, 4
      %v5715 = vrot.slane %v5616, 5
      %v5716 = vsel %vm1730, %v5714, %v5715
      %v5717 = vrot.slane %v5617, 5
      %v5718 = vrot.slane %v5717, 4
      %v5719 = vrot.slane %v5618, 5
      %v5720 = vsel %vm1730, %v5718, %v5719
      %v5721 = vrot.slane %v5719, 4
      %v5722 = vrot.slane %v5619, 5
      %v5723 = vsel %vm1730, %v5721, %v5722
      %v5724 = vrot.slane %v5620, 5
      %v5725 = vrot.slane %v5724, 4
      %v5726 = vrot.slane %v5621, 5
      %v5727 = vsel %vm1730, %v5725, %v5726
      %v5728 = vrot.slane %v5726, 4
      %v5729 = vrot.slane %v5622, 5
      %v5730 = vsel %vm1730, %v5728, %v5729
      %v5731 = vrot.slane %v5623, 5
      %v5732 = vrot.slane %v5731, 4
      %v5733 = vrot.slane %v5624, 5
      %v5734 = vsel %vm1730, %v5732, %v5733
      %v5735 = vrot.slane %v5733, 4
      %v5736 = vrot.slane %v5625, 5
      %v5737 = vsel %vm1730, %v5735, %v5736
      %v5738 = vrot.slane %v5626, 5
      %v5739 = vrot.slane %v5738, 4
      %v5740 = vrot.slane %v5627, 5
      %v5741 = vsel %vm1730, %v5739, %v5740
      %v5742 = vrot.slane %v5740, 4
      %v5743 = vrot.slane %v5628, 5
      %v5744 = vsel %vm1730, %v5742, %v5743
      %v5745 = vrot.slane %v5629, 5
      %v5746 = vrot.slane %v5745, 4
      %v5747 = vrot.slane %v5630, 5
      %v5748 = vsel %vm1730, %v5746, %v5747
      %v5749 = vrot.slane %v5747, 4
      %v5750 = vrot.slane %v5631, 5
      %v5751 = vsel %vm1730, %v5749, %v5750
      %v5752 = vrot.slane %v5632, 5
      %v5753 = vrot.slane %v5752, 4
      %v5754 = vrot.slane %v5633, 5
      %v5755 = vsel %vm1730, %v5753, %v5754
      %v5756 = vrot.slane %v5754, 4
      %v5757 = vrot.slane %v5634, 5
      %v5758 = vsel %vm1730, %v5756, %v5757
      %v5759 = vrot.slane %v5635, 5
      %v5760 = vrot.slane %v5759, 4
      %v5761 = vrot.slane %v5636, 5
      %v5762 = vsel %vm1730, %v5760, %v5761
      %v5763 = vrot.slane %v5761, 4
      %v5764 = vrot.slane %v5637, 5
      %v5765 = vsel %vm1730, %v5763, %v5764
      %v5766 = vrot.slane %v5638, 5
      %v5767 = vrot.slane %v5766, 4
      %v5768 = vrot.slane %v5639, 5
      %v5769 = vsel %vm1730, %v5767, %v5768
      %v5770 = vrot.slane %v5768, 4
      %v5771 = vrot.slane %v5640, 5
      %v5772 = vsel %vm1730, %v5770, %v5771
      %v5773 = vrot.slane %v5641, 5
      %v5774 = vrot.slane %v5773, 4
      %v5775 = vrot.slane %v5642, 5
      %v5776 = vsel %vm1730, %v5774, %v5775
      %v5777 = vrot.slane %v5775, 4
      %v5778 = vrot.slane %v5643, 5
      %v5779 = vsel %vm1730, %v5777, %v5778
      %v5780 = vrot.slane %v5644, 5
      %v5781 = vrot.slane %v5780, 4
      %v5782 = vrot.slane %v5645, 5
      %v5783 = vsel %vm1730, %v5781, %v5782
      %v5784 = vrot.slane %v5782, 4
      %v5785 = vrot.slane %v5646, 5
      %v5786 = vsel %vm1730, %v5784, %v5785
      %v5787 = vrot.slane %v5647, 5
      %v5788 = vrot.slane %v5787, 4
      %v5789 = vrot.slane %v5648, 5
      %v5790 = vsel %vm1730, %v5788, %v5789
      %v5791 = vrot.slane %v5789, 4
      %v5792 = vrot.slane %v5649, 5
      %v5793 = vsel %vm1730, %v5791, %v5792
      %v5794 = vrot.slane %v5650, 5
      %v5795 = vrot.slane %v5794, 4
      %v5796 = vrot.slane %v5651, 5
      %v5797 = vsel %vm1730, %v5795, %v5796
      %v5798 = vrot.slane %v5796, 4
      %v5799 = vrot.slane %v5652, 5
      %v5800 = vsel %vm1730, %v5798, %v5799
      %v5801 = vrot.slane %v5653, 5
      %v5802 = vrot.slane %v5801, 4
      %v5803 = vrot.slane %v5654, 5
      %v5804 = vsel %vm1730, %v5802, %v5803
      %v5805 = vrot.slane %v5803, 4
      %v5806 = vrot.slane %v5655, 5
      %v5807 = vsel %vm1730, %v5805, %v5806
      %v5808 = vrot.slane %v5656, 5
      %v5809 = vrot.slane %v5808, 4
      %v5810 = vrot.slane %v5657, 5
      %v5811 = vsel %vm1730, %v5809, %v5810
      %v5812 = vrot.slane %v5810, 4
      %v5813 = vrot.slane %v5658, 5
      %v5814 = vsel %vm1730, %v5812, %v5813
      %v5815 = vrot.slane %v5659, 5
      %v5816 = vrot.slane %v5815, 4
      %v5817 = vrot.slane %v5660, 5
      %v5818 = vsel %vm1730, %v5816, %v5817
      %v5819 = vrot.slane %v5817, 4
      %v5820 = vrot.slane %v5661, 5
      %v5821 = vsel %vm1730, %v5819, %v5820
      %v5822 = vunpack.c.l.b16 %v5713
      %v5823 = vunpack.c.l.b16 %v5716
      %v5824 = vunpack.c.l.b16 %v5720
      %v5825 = vunpack.c.l.b16 %v5723
      %v5826 = vunpack.c.l.b16 %v5727
      %v5827 = vunpack.c.l.b16 %v5730
      %v5828 = vunpack.c.l.b16 %v5734
      %v5829 = vunpack.c.l.b16 %v5737
      %v5830 = vunpack.c.l.b16 %v5741
      %v5831 = vunpack.c.l.b16 %v5744
      %v5832 = vunpack.c.l.b16 %v5748
      %v5833 = vunpack.c.l.b16 %v5751
      %v5834 = vunpack.c.l.b16 %v5755
      %v5835 = vunpack.c.l.b16 %v5758
      %v5836 = vunpack.c.l.b16 %v5762
      %v5837 = vunpack.c.l.b16 %v5765
      %v5838 = vunpack.c.l.b16 %v5769
      %v5839 = vunpack.c.l.b16 %v5772
      %v5840 = vunpack.c.l.b16 %v5776
      %v5841 = vunpack.c.l.b16 %v5779
      %v5842 = vunpack.c.l.b16 %v5783
      %v5843 = vunpack.c.l.b16 %v5786
      %v5844 = vunpack.c.l.b16 %v5790
      %v5845 = vunpack.c.l.b16 %v5793
      %v5846 = vunpack.c.l.b16 %v5797
      %v5847 = vunpack.c.l.b16 %v5800
      %v5848 = vunpack.c.l.b16 %v5804
      %v5849 = vunpack.c.l.b16 %v5807
      %v5850 = vunpack.c.l.b16 %v5811
      %v5851 = vunpack.c.l.b16 %v5814
      %v5852 = vunpack.c.l.b16 %v5818
      %v5853 = vunpack.c.l.b16 %v5821
      %v5854 = vpack.c.b16 %v5823, %v5822
      %v5855 = vpack.c.b16 %v5825, %v5824
      %v5856 = vpack.c.b16 %v5827, %v5826
      %v5857 = vpack.c.b16 %v5829, %v5828
      %v5858 = vpack.c.b16 %v5831, %v5830
      %v5859 = vpack.c.b16 %v5833, %v5832
      %v5860 = vpack.c.b16 %v5835, %v5834
      %v5861 = vpack.c.b16 %v5837, %v5836
      %v5862 = vpack.c.b16 %v5839, %v5838
      %v5863 = vpack.c.b16 %v5841, %v5840
      %v5864 = vpack.c.b16 %v5843, %v5842
      %v5865 = vpack.c.b16 %v5845, %v5844
      %v5866 = vpack.c.b16 %v5847, %v5846
      %v5867 = vpack.c.b16 %v5849, %v5848
      %v5868 = vpack.c.b16 %v5851, %v5850
      %v5869 = vpack.c.b16 %v5853, %v5852
      %5870 = vrot.lane.b32.xlu0 %v5854, 8
      %v5871 = vpop.permute.xlu0 %5870
      %5872 = vrot.lane.b32.xlu0 %v5855, 8
      %v5873 = vpop.permute.xlu0 %5872
      %5874 = vrot.lane.b32.xlu0 %v5856, 8
      %v5875 = vpop.permute.xlu0 %5874
      %5876 = vrot.lane.b32.xlu0 %v5857, 8
      %v5877 = vpop.permute.xlu0 %5876
      %5878 = vrot.lane.b32.xlu0 %v5858, 8
      %v5879 = vpop.permute.xlu0 %5878
      %5880 = vrot.lane.b32.xlu0 %v5859, 8
      %v5881 = vpop.permute.xlu0 %5880
      %5882 = vrot.lane.b32.xlu0 %v5860, 8
      %v5883 = vpop.permute.xlu0 %5882
      %5884 = vrot.lane.b32.xlu0 %v5861, 8
      %v5885 = vpop.permute.xlu0 %5884
      %5886 = vrot.lane.b32.xlu0 %v5862, 8
      %v5887 = vpop.permute.xlu0 %5886
      %5888 = vrot.lane.b32.xlu0 %v5863, 8
      %v5889 = vpop.permute.xlu0 %5888
      %5890 = vrot.lane.b32.xlu0 %v5864, 8
      %v5891 = vpop.permute.xlu0 %5890
      %5892 = vrot.lane.b32.xlu0 %v5865, 8
      %v5893 = vpop.permute.xlu0 %5892
      %5894 = vrot.lane.b32.xlu0 %v5866, 8
      %v5895 = vpop.permute.xlu0 %5894
      %5896 = vrot.lane.b32.xlu0 %v5867, 8
      %v5897 = vpop.permute.xlu0 %5896
      %5898 = vrot.lane.b32.xlu0 %v5868, 8
      %v5899 = vpop.permute.xlu0 %5898
      %5900 = vrot.lane.b32.xlu0 %v5869, 8
      %v5901 = vpop.permute.xlu0 %5900
      %5918 = vst.msk [vmem:[#allocation3] sm:$0xff] %vm1939, %v5871
      %5919 = vst.msk [vmem:[#allocation3 + $0x8] sm:$0xff] %vm1939, %v5873
      %5920 = vst.msk [vmem:[#allocation3 + $0x10] sm:$0xff] %vm1939, %v5875
      %5921 = vst.msk [vmem:[#allocation3 + $0x18] sm:$0xff] %vm1939, %v5877
      %5922 = vst.msk [vmem:[#allocation3 + $0x20] sm:$0xff] %vm1939, %v5879
      %5923 = vst.msk [vmem:[#allocation3 + $0x28] sm:$0xff] %vm1939, %v5881
      %5924 = vst.msk [vmem:[#allocation3 + $0x30] sm:$0xff] %vm1939, %v5883
      %5925 = vst.msk [vmem:[#allocation3 + $0x38] sm:$0xff] %vm1939, %v5885
      %5926 = vst.msk [vmem:[#allocation3 + $0x40] sm:$0xff] %vm1939, %v5887
      %5927 = vst.msk [vmem:[#allocation3 + $0x48] sm:$0xff] %vm1939, %v5889
      %5928 = vst.msk [vmem:[#allocation3 + $0x50] sm:$0xff] %vm1939, %v5891
      %5929 = vst.msk [vmem:[#allocation3 + $0x58] sm:$0xff] %vm1939, %v5893
      %5930 = vst.msk [vmem:[#allocation3 + $0x60] sm:$0xff] %vm1939, %v5895
      %5931 = vst.msk [vmem:[#allocation3 + $0x68] sm:$0xff] %vm1939, %v5897
      %5932 = vst.msk [vmem:[#allocation3 + $0x70] sm:$0xff] %vm1939, %v5899
      %5933 = vst.msk [vmem:[#allocation3 + $0x78] sm:$0xff] %vm1939, %v5901
      %v5934 = vld [vmem:[%s826] sm:$0xf]
      %v5935 = vld [vmem:[%s826 + $0x4] sm:$0xf]
      %v5936 = vld [vmem:[%s826 + $0xc] sm:$0xf]
      %v5937 = vld [vmem:[%s826 + $0x10] sm:$0xf]
      %v5938 = vld [vmem:[%s826 + $0x18] sm:$0xf]
      %v5939 = vld [vmem:[%s826 + $0x1c] sm:$0xf]
      %v5940 = vld [vmem:[%s826 + $0x24] sm:$0xf]
      %v5941 = vld [vmem:[%s826 + $0x28] sm:$0xf]
      %v5942 = vld [vmem:[%s826 + $0x30] sm:$0xf]
      %v5943 = vld [vmem:[%s826 + $0x34] sm:$0xf]
      %v5944 = vld [vmem:[%s826 + $0x3c] sm:$0xf]
      %v5945 = vld [vmem:[%s826 + $0x40] sm:$0xf]
      %v5946 = vld [vmem:[%s826 + $0x48] sm:$0xf]
      %v5947 = vld [vmem:[%s826 + $0x4c] sm:$0xf]
      %v5948 = vld [vmem:[%s826 + $0x54] sm:$0xf]
      %v5949 = vld [vmem:[%s826 + $0x58] sm:$0xf]
      %v5950 = vld [vmem:[%s826 + $0x60] sm:$0xf]
      %v5951 = vld [vmem:[%s826 + $0x64] sm:$0xf]
      %v5952 = vld [vmem:[%s826 + $0x6c] sm:$0xf]
      %v5953 = vld [vmem:[%s826 + $0x70] sm:$0xf]
      %v5954 = vld [vmem:[%s826 + $0x78] sm:$0xf]
      %v5955 = vld [vmem:[%s826 + $0x7c] sm:$0xf]
      %v5956 = vld [vmem:[%s826 + $0x84] sm:$0xf]
      %v5957 = vld [vmem:[%s826 + $0x88] sm:$0xf]
      %v5958 = vld [vmem:[%s826 + $0x90] sm:$0xf]
      %v5959 = vld [vmem:[%s826 + $0x94] sm:$0xf]
      %v5960 = vld [vmem:[%s826 + $0x9c] sm:$0xf]
      %v5961 = vld [vmem:[%s826 + $0xa0] sm:$0xf]
      %v5962 = vld [vmem:[%s826 + $0xa8] sm:$0xf]
      %v5963 = vld [vmem:[%s826 + $0xac] sm:$0xf]
      %v5964 = vld [vmem:[%s826 + $0xb4] sm:$0xf]
      %v5965 = vld [vmem:[%s826 + $0xb8] sm:$0xf]
      %v5998 = vunpack.c.l.b16 %v5934
      %v5999 = vunpack.c.l.b16 %v5935
      %v6000 = vunpack.c.l.b16 %v5936
      %v6001 = vunpack.c.l.b16 %v5937
      %v6002 = vunpack.c.l.b16 %v5938
      %v6003 = vunpack.c.l.b16 %v5939
      %v6004 = vunpack.c.l.b16 %v5940
      %v6005 = vunpack.c.l.b16 %v5941
      %v6006 = vunpack.c.l.b16 %v5942
      %v6007 = vunpack.c.l.b16 %v5943
      %v6008 = vunpack.c.l.b16 %v5944
      %v6009 = vunpack.c.l.b16 %v5945
      %v6010 = vunpack.c.l.b16 %v5946
      %v6011 = vunpack.c.l.b16 %v5947
      %v6012 = vunpack.c.l.b16 %v5948
      %v6013 = vunpack.c.l.b16 %v5949
      %v6014 = vunpack.c.l.b16 %v5950
      %v6015 = vunpack.c.l.b16 %v5951
      %v6016 = vunpack.c.l.b16 %v5952
      %v6017 = vunpack.c.l.b16 %v5953
      %v6018 = vunpack.c.l.b16 %v5954
      %v6019 = vunpack.c.l.b16 %v5955
      %v6020 = vunpack.c.l.b16 %v5956
      %v6021 = vunpack.c.l.b16 %v5957
      %v6022 = vunpack.c.l.b16 %v5958
      %v6023 = vunpack.c.l.b16 %v5959
      %v6024 = vunpack.c.l.b16 %v5960
      %v6025 = vunpack.c.l.b16 %v5961
      %v6026 = vunpack.c.l.b16 %v5962
      %v6027 = vunpack.c.l.b16 %v5963
      %v6028 = vunpack.c.l.b16 %v5964
      %v6029 = vunpack.c.l.b16 %v5965
      %v6030 = vpack.c.b16 %v5999, %v5998
      %v6031 = vpack.c.b16 %v6001, %v6000
      %v6032 = vpack.c.b16 %v6003, %v6002
      %v6033 = vpack.c.b16 %v6005, %v6004
      %v6034 = vpack.c.b16 %v6007, %v6006
      %v6035 = vpack.c.b16 %v6009, %v6008
      %v6036 = vpack.c.b16 %v6011, %v6010
      %v6037 = vpack.c.b16 %v6013, %v6012
      %v6038 = vpack.c.b16 %v6015, %v6014
      %v6039 = vpack.c.b16 %v6017, %v6016
      %v6040 = vpack.c.b16 %v6019, %v6018
      %v6041 = vpack.c.b16 %v6021, %v6020
      %v6042 = vpack.c.b16 %v6023, %v6022
      %v6043 = vpack.c.b16 %v6025, %v6024
      %v6044 = vpack.c.b16 %v6027, %v6026
      %v6045 = vpack.c.b16 %v6029, %v6028
      %6046 = vrot.lane.b32.xlu0 %v6030, 12
      %v6047 = vpop.permute.xlu0 %6046
      %6048 = vrot.lane.b32.xlu0 %v6031, 12
      %v6049 = vpop.permute.xlu0 %6048
      %6050 = vrot.lane.b32.xlu0 %v6032, 12
      %v6051 = vpop.permute.xlu0 %6050
      %6052 = vrot.lane.b32.xlu0 %v6033, 12
      %v6053 = vpop.permute.xlu0 %6052
      %6054 = vrot.lane.b32.xlu0 %v6034, 12
      %v6055 = vpop.permute.xlu0 %6054
      %6056 = vrot.lane.b32.xlu0 %v6035, 12
      %v6057 = vpop.permute.xlu0 %6056
      %6058 = vrot.lane.b32.xlu0 %v6036, 12
      %v6059 = vpop.permute.xlu0 %6058
      %6060 = vrot.lane.b32.xlu0 %v6037, 12
      %v6061 = vpop.permute.xlu0 %6060
      %6062 = vrot.lane.b32.xlu0 %v6038, 12
      %v6063 = vpop.permute.xlu0 %6062
      %6064 = vrot.lane.b32.xlu0 %v6039, 12
      %v6065 = vpop.permute.xlu0 %6064
      %6066 = vrot.lane.b32.xlu0 %v6040, 12
      %v6067 = vpop.permute.xlu0 %6066
      %6068 = vrot.lane.b32.xlu0 %v6041, 12
      %v6069 = vpop.permute.xlu0 %6068
      %6070 = vrot.lane.b32.xlu0 %v6042, 12
      %v6071 = vpop.permute.xlu0 %6070
      %6072 = vrot.lane.b32.xlu0 %v6043, 12
      %v6073 = vpop.permute.xlu0 %6072
      %6074 = vrot.lane.b32.xlu0 %v6044, 12
      %v6075 = vpop.permute.xlu0 %6074
      %6076 = vrot.lane.b32.xlu0 %v6045, 12
      %v6077 = vpop.permute.xlu0 %6076
      %6094 = vst.msk [vmem:[#allocation3] sm:$0xff] %vm2116, %v6047
      %6095 = vst.msk [vmem:[#allocation3 + $0x8] sm:$0xff] %vm2116, %v6049
      %6096 = vst.msk [vmem:[#allocation3 + $0x10] sm:$0xff] %vm2116, %v6051
      %6097 = vst.msk [vmem:[#allocation3 + $0x18] sm:$0xff] %vm2116, %v6053
      %6098 = vst.msk [vmem:[#allocation3 + $0x20] sm:$0xff] %vm2116, %v6055
      %6099 = vst.msk [vmem:[#allocation3 + $0x28] sm:$0xff] %vm2116, %v6057
      %6100 = vst.msk [vmem:[#allocation3 + $0x30] sm:$0xff] %vm2116, %v6059
      %6101 = vst.msk [vmem:[#allocation3 + $0x38] sm:$0xff] %vm2116, %v6061
      %6102 = vst.msk [vmem:[#allocation3 + $0x40] sm:$0xff] %vm2116, %v6063
      %6103 = vst.msk [vmem:[#allocation3 + $0x48] sm:$0xff] %vm2116, %v6065
      %6104 = vst.msk [vmem:[#allocation3 + $0x50] sm:$0xff] %vm2116, %v6067
      %6105 = vst.msk [vmem:[#allocation3 + $0x58] sm:$0xff] %vm2116, %v6069
      %6106 = vst.msk [vmem:[#allocation3 + $0x60] sm:$0xff] %vm2116, %v6071
      %6107 = vst.msk [vmem:[#allocation3 + $0x68] sm:$0xff] %vm2116, %v6073
      %6108 = vst.msk [vmem:[#allocation3 + $0x70] sm:$0xff] %vm2116, %v6075
      %6109 = vst.msk [vmem:[#allocation3 + $0x78] sm:$0xff] %vm2116, %v6077
      %v6110 = vld [vmem:[%s826] sm:$0xf]
      %v6111 = vld [vmem:[%s826 + $0x4] sm:$0xf]
      %v6112 = vld [vmem:[%s826 + $0x8] sm:$0x1]
      %v6113 = vld [vmem:[%s826 + $0xc] sm:$0xf]
      %v6114 = vld [vmem:[%s826 + $0x10] sm:$0xf]
      %v6115 = vld [vmem:[%s826 + $0x14] sm:$0x1]
      %v6116 = vld [vmem:[%s826 + $0x18] sm:$0xf]
      %v6117 = vld [vmem:[%s826 + $0x1c] sm:$0xf]
      %v6118 = vld [vmem:[%s826 + $0x20] sm:$0x1]
      %v6119 = vld [vmem:[%s826 + $0x24] sm:$0xf]
      %v6120 = vld [vmem:[%s826 + $0x28] sm:$0xf]
      %v6121 = vld [vmem:[%s826 + $0x2c] sm:$0x1]
      %v6122 = vld [vmem:[%s826 + $0x30] sm:$0xf]
      %v6123 = vld [vmem:[%s826 + $0x34] sm:$0xf]
      %v6124 = vld [vmem:[%s826 + $0x38] sm:$0x1]
      %v6125 = vld [vmem:[%s826 + $0x3c] sm:$0xf]
      %v6126 = vld [vmem:[%s826 + $0x40] sm:$0xf]
      %v6127 = vld [vmem:[%s826 + $0x44] sm:$0x1]
      %v6128 = vld [vmem:[%s826 + $0x48] sm:$0xf]
      %v6129 = vld [vmem:[%s826 + $0x4c] sm:$0xf]
      %v6130 = vld [vmem:[%s826 + $0x50] sm:$0x1]
      %v6131 = vld [vmem:[%s826 + $0x54] sm:$0xf]
      %v6132 = vld [vmem:[%s826 + $0x58] sm:$0xf]
      %v6133 = vld [vmem:[%s826 + $0x5c] sm:$0x1]
      %v6134 = vld [vmem:[%s826 + $0x60] sm:$0xf]
      %v6135 = vld [vmem:[%s826 + $0x64] sm:$0xf]
      %v6136 = vld [vmem:[%s826 + $0x68] sm:$0x1]
      %v6137 = vld [vmem:[%s826 + $0x6c] sm:$0xf]
      %v6138 = vld [vmem:[%s826 + $0x70] sm:$0xf]
      %v6139 = vld [vmem:[%s826 + $0x74] sm:$0x1]
      %v6140 = vld [vmem:[%s826 + $0x78] sm:$0xf]
      %v6141 = vld [vmem:[%s826 + $0x7c] sm:$0xf]
      %v6142 = vld [vmem:[%s826 + $0x80] sm:$0x1]
      %v6143 = vld [vmem:[%s826 + $0x84] sm:$0xf]
      %v6144 = vld [vmem:[%s826 + $0x88] sm:$0xf]
      %v6145 = vld [vmem:[%s826 + $0x8c] sm:$0x1]
      %v6146 = vld [vmem:[%s826 + $0x90] sm:$0xf]
      %v6147 = vld [vmem:[%s826 + $0x94] sm:$0xf]
      %v6148 = vld [vmem:[%s826 + $0x98] sm:$0x1]
      %v6149 = vld [vmem:[%s826 + $0x9c] sm:$0xf]
      %v6150 = vld [vmem:[%s826 + $0xa0] sm:$0xf]
      %v6151 = vld [vmem:[%s826 + $0xa4] sm:$0x1]
      %v6152 = vld [vmem:[%s826 + $0xa8] sm:$0xf]
      %v6153 = vld [vmem:[%s826 + $0xac] sm:$0xf]
      %v6154 = vld [vmem:[%s826 + $0xb0] sm:$0x1]
      %v6155 = vld [vmem:[%s826 + $0xb4] sm:$0xf]
      %v6156 = vld [vmem:[%s826 + $0xb8] sm:$0xf]
      %v6157 = vld [vmem:[%s826 + $0xbc] sm:$0x1]
      %v6159 = vshrl.u32 %v6110, 16
      %v6161 = vrot.slane %v6159, 4
      %v6162 = vshll.u32 %v6110, 16
      %v6164 = vrot.slane %v6162, 5
      %v6165 = vor.u32 %v6161, %v6164
      %v6166 = vrot.slane %v6165, 4
      %v6168 = vshll.u32 %v6111, 16
      %v6170 = vrot.slane %v6168, 5
      %v6171 = vsel %vm1134, %v6166, %v6170
      %v6172 = vshrl.u32 %v6111, 16
      %v6174 = vrot.slane %v6172, 4
      %v6175 = vor.u32 %v6174, %v6170
      %v6176 = vrot.slane %v6175, 4
      %v6178 = vshll.u32 %v6112, 16
      %v6180 = vrot.slane %v6178, 5
      %v6181 = vsel %vm1134, %v6176, %v6180
      %v6183 = vshrl.u32 %v6113, 16
      %v6185 = vrot.slane %v6183, 4
      %v6186 = vshll.u32 %v6113, 16
      %v6188 = vrot.slane %v6186, 5
      %v6189 = vor.u32 %v6185, %v6188
      %v6190 = vrot.slane %v6189, 4
      %v6192 = vshll.u32 %v6114, 16
      %v6194 = vrot.slane %v6192, 5
      %v6195 = vsel %vm1134, %v6190, %v6194
      %v6196 = vshrl.u32 %v6114, 16
      %v6198 = vrot.slane %v6196, 4
      %v6199 = vor.u32 %v6198, %v6194
      %v6200 = vrot.slane %v6199, 4
      %v6202 = vshll.u32 %v6115, 16
      %v6204 = vrot.slane %v6202, 5
      %v6205 = vsel %vm1134, %v6200, %v6204
      %v6207 = vshrl.u32 %v6116, 16
      %v6209 = vrot.slane %v6207, 4
      %v6210 = vshll.u32 %v6116, 16
      %v6212 = vrot.slane %v6210, 5
      %v6213 = vor.u32 %v6209, %v6212
      %v6214 = vrot.slane %v6213, 4
      %v6216 = vshll.u32 %v6117, 16
      %v6218 = vrot.slane %v6216, 5
      %v6219 = vsel %vm1134, %v6214, %v6218
      %v6220 = vshrl.u32 %v6117, 16
      %v6222 = vrot.slane %v6220, 4
      %v6223 = vor.u32 %v6222, %v6218
      %v6224 = vrot.slane %v6223, 4
      %v6226 = vshll.u32 %v6118, 16
      %v6228 = vrot.slane %v6226, 5
      %v6229 = vsel %vm1134, %v6224, %v6228
      %v6231 = vshrl.u32 %v6119, 16
      %v6233 = vrot.slane %v6231, 4
      %v6234 = vshll.u32 %v6119, 16
      %v6236 = vrot.slane %v6234, 5
      %v6237 = vor.u32 %v6233, %v6236
      %v6238 = vrot.slane %v6237, 4
      %v6240 = vshll.u32 %v6120, 16
      %v6242 = vrot.slane %v6240, 5
      %v6243 = vsel %vm1134, %v6238, %v6242
      %v6244 = vshrl.u32 %v6120, 16
      %v6246 = vrot.slane %v6244, 4
      %v6247 = vor.u32 %v6246, %v6242
      %v6248 = vrot.slane %v6247, 4
      %v6250 = vshll.u32 %v6121, 16
      %v6252 = vrot.slane %v6250, 5
      %v6253 = vsel %vm1134, %v6248, %v6252
      %v6255 = vshrl.u32 %v6122, 16
      %v6257 = vrot.slane %v6255, 4
      %v6258 = vshll.u32 %v6122, 16
      %v6260 = vrot.slane %v6258, 5
      %v6261 = vor.u32 %v6257, %v6260
      %v6262 = vrot.slane %v6261, 4
      %v6264 = vshll.u32 %v6123, 16
      %v6266 = vrot.slane %v6264, 5
      %v6267 = vsel %vm1134, %v6262, %v6266
      %v6268 = vshrl.u32 %v6123, 16
      %v6270 = vrot.slane %v6268, 4
      %v6271 = vor.u32 %v6270, %v6266
      %v6272 = vrot.slane %v6271, 4
      %v6274 = vshll.u32 %v6124, 16
      %v6276 = vrot.slane %v6274, 5
      %v6277 = vsel %vm1134, %v6272, %v6276
      %v6279 = vshrl.u32 %v6125, 16
      %v6281 = vrot.slane %v6279, 4
      %v6282 = vshll.u32 %v6125, 16
      %v6284 = vrot.slane %v6282, 5
      %v6285 = vor.u32 %v6281, %v6284
      %v6286 = vrot.slane %v6285, 4
      %v6288 = vshll.u32 %v6126, 16
      %v6290 = vrot.slane %v6288, 5
      %v6291 = vsel %vm1134, %v6286, %v6290
      %v6292 = vshrl.u32 %v6126, 16
      %v6294 = vrot.slane %v6292, 4
      %v6295 = vor.u32 %v6294, %v6290
      %v6296 = vrot.slane %v6295, 4
      %v6298 = vshll.u32 %v6127, 16
      %v6300 = vrot.slane %v6298, 5
      %v6301 = vsel %vm1134, %v6296, %v6300
      %v6303 = vshrl.u32 %v6128, 16
      %v6305 = vrot.slane %v6303, 4
      %v6306 = vshll.u32 %v6128, 16
      %v6308 = vrot.slane %v6306, 5
      %v6309 = vor.u32 %v6305, %v6308
      %v6310 = vrot.slane %v6309, 4
      %v6312 = vshll.u32 %v6129, 16
      %v6314 = vrot.slane %v6312, 5
      %v6315 = vsel %vm1134, %v6310, %v6314
      %v6316 = vshrl.u32 %v6129, 16
      %v6318 = vrot.slane %v6316, 4
      %v6319 = vor.u32 %v6318, %v6314
      %v6320 = vrot.slane %v6319, 4
      %v6322 = vshll.u32 %v6130, 16
      %v6324 = vrot.slane %v6322, 5
      %v6325 = vsel %vm1134, %v6320, %v6324
      %v6327 = vshrl.u32 %v6131, 16
      %v6329 = vrot.slane %v6327, 4
      %v6330 = vshll.u32 %v6131, 16
      %v6332 = vrot.slane %v6330, 5
      %v6333 = vor.u32 %v6329, %v6332
      %v6334 = vrot.slane %v6333, 4
      %v6336 = vshll.u32 %v6132, 16
      %v6338 = vrot.slane %v6336, 5
      %v6339 = vsel %vm1134, %v6334, %v6338
      %v6340 = vshrl.u32 %v6132, 16
      %v6342 = vrot.slane %v6340, 4
      %v6343 = vor.u32 %v6342, %v6338
      %v6344 = vrot.slane %v6343, 4
      %v6346 = vshll.u32 %v6133, 16
      %v6348 = vrot.slane %v6346, 5
      %v6349 = vsel %vm1134, %v6344, %v6348
      %v6351 = vshrl.u32 %v6134, 16
      %v6353 = vrot.slane %v6351, 4
      %v6354 = vshll.u32 %v6134, 16
      %v6356 = vrot.slane %v6354, 5
      %v6357 = vor.u32 %v6353, %v6356
      %v6358 = vrot.slane %v6357, 4
      %v6360 = vshll.u32 %v6135, 16
      %v6362 = vrot.slane %v6360, 5
      %v6363 = vsel %vm1134, %v6358, %v6362
      %v6364 = vshrl.u32 %v6135, 16
      %v6366 = vrot.slane %v6364, 4
      %v6367 = vor.u32 %v6366, %v6362
      %v6368 = vrot.slane %v6367, 4
      %v6370 = vshll.u32 %v6136, 16
      %v6372 = vrot.slane %v6370, 5
      %v6373 = vsel %vm1134, %v6368, %v6372
      %v6375 = vshrl.u32 %v6137, 16
      %v6377 = vrot.slane %v6375, 4
      %v6378 = vshll.u32 %v6137, 16
      %v6380 = vrot.slane %v6378, 5
      %v6381 = vor.u32 %v6377, %v6380
      %v6382 = vrot.slane %v6381, 4
      %v6384 = vshll.u32 %v6138, 16
      %v6386 = vrot.slane %v6384, 5
      %v6387 = vsel %vm1134, %v6382, %v6386
      %v6388 = vshrl.u32 %v6138, 16
      %v6390 = vrot.slane %v6388, 4
      %v6391 = vor.u32 %v6390, %v6386
      %v6392 = vrot.slane %v6391, 4
      %v6394 = vshll.u32 %v6139, 16
      %v6396 = vrot.slane %v6394, 5
      %v6397 = vsel %vm1134, %v6392, %v6396
      %v6399 = vshrl.u32 %v6140, 16
      %v6401 = vrot.slane %v6399, 4
      %v6402 = vshll.u32 %v6140, 16
      %v6404 = vrot.slane %v6402, 5
      %v6405 = vor.u32 %v6401, %v6404
      %v6406 = vrot.slane %v6405, 4
      %v6408 = vshll.u32 %v6141, 16
      %v6410 = vrot.slane %v6408, 5
      %v6411 = vsel %vm1134, %v6406, %v6410
      %v6412 = vshrl.u32 %v6141, 16
      %v6414 = vrot.slane %v6412, 4
      %v6415 = vor.u32 %v6414, %v6410
      %v6416 = vrot.slane %v6415, 4
      %v6418 = vshll.u32 %v6142, 16
      %v6420 = vrot.slane %v6418, 5
      %v6421 = vsel %vm1134, %v6416, %v6420
      %v6423 = vshrl.u32 %v6143, 16
      %v6425 = vrot.slane %v6423, 4
      %v6426 = vshll.u32 %v6143, 16
      %v6428 = vrot.slane %v6426, 5
      %v6429 = vor.u32 %v6425, %v6428
      %v6430 = vrot.slane %v6429, 4
      %v6432 = vshll.u32 %v6144, 16
      %v6434 = vrot.slane %v6432, 5
      %v6435 = vsel %vm1134, %v6430, %v6434
      %v6436 = vshrl.u32 %v6144, 16
      %v6438 = vrot.slane %v6436, 4
      %v6439 = vor.u32 %v6438, %v6434
      %v6440 = vrot.slane %v6439, 4
      %v6442 = vshll.u32 %v6145, 16
      %v6444 = vrot.slane %v6442, 5
      %v6445 = vsel %vm1134, %v6440, %v6444
      %v6447 = vshrl.u32 %v6146, 16
      %v6449 = vrot.slane %v6447, 4
      %v6450 = vshll.u32 %v6146, 16
      %v6452 = vrot.slane %v6450, 5
      %v6453 = vor.u32 %v6449, %v6452
      %v6454 = vrot.slane %v6453, 4
      %v6456 = vshll.u32 %v6147, 16
      %v6458 = vrot.slane %v6456, 5
      %v6459 = vsel %vm1134, %v6454, %v6458
      %v6460 = vshrl.u32 %v6147, 16
      %v6462 = vrot.slane %v6460, 4
      %v6463 = vor.u32 %v6462, %v6458
      %v6464 = vrot.slane %v6463, 4
      %v6466 = vshll.u32 %v6148, 16
      %v6468 = vrot.slane %v6466, 5
      %v6469 = vsel %vm1134, %v6464, %v6468
      %v6471 = vshrl.u32 %v6149, 16
      %v6473 = vrot.slane %v6471, 4
      %v6474 = vshll.u32 %v6149, 16
      %v6476 = vrot.slane %v6474, 5
      %v6477 = vor.u32 %v6473, %v6476
      %v6478 = vrot.slane %v6477, 4
      %v6480 = vshll.u32 %v6150, 16
      %v6482 = vrot.slane %v6480, 5
      %v6483 = vsel %vm1134, %v6478, %v6482
      %v6484 = vshrl.u32 %v6150, 16
      %v6486 = vrot.slane %v6484, 4
      %v6487 = vor.u32 %v6486, %v6482
      %v6488 = vrot.slane %v6487, 4
      %v6490 = vshll.u32 %v6151, 16
      %v6492 = vrot.slane %v6490, 5
      %v6493 = vsel %vm1134, %v6488, %v6492
      %v6495 = vshrl.u32 %v6152, 16
      %v6497 = vrot.slane %v6495, 4
      %v6498 = vshll.u32 %v6152, 16
      %v6500 = vrot.slane %v6498, 5
      %v6501 = vor.u32 %v6497, %v6500
      %v6502 = vrot.slane %v6501, 4
      %v6504 = vshll.u32 %v6153, 16
      %v6506 = vrot.slane %v6504, 5
      %v6507 = vsel %vm1134, %v6502, %v6506
      %v6508 = vshrl.u32 %v6153, 16
      %v6510 = vrot.slane %v6508, 4
      %v6511 = vor.u32 %v6510, %v6506
      %v6512 = vrot.slane %v6511, 4
      %v6514 = vshll.u32 %v6154, 16
      %v6516 = vrot.slane %v6514, 5
      %v6517 = vsel %vm1134, %v6512, %v6516
      %v6519 = vshrl.u32 %v6155, 16
      %v6521 = vrot.slane %v6519, 4
      %v6522 = vshll.u32 %v6155, 16
      %v6524 = vrot.slane %v6522, 5
      %v6525 = vor.u32 %v6521, %v6524
      %v6526 = vrot.slane %v6525, 4
      %v6528 = vshll.u32 %v6156, 16
      %v6530 = vrot.slane %v6528, 5
      %v6531 = vsel %vm1134, %v6526, %v6530
      %v6532 = vshrl.u32 %v6156, 16
      %v6534 = vrot.slane %v6532, 4
      %v6535 = vor.u32 %v6534, %v6530
      %v6536 = vrot.slane %v6535, 4
      %v6538 = vshll.u32 %v6157, 16
      %v6540 = vrot.slane %v6538, 5
      %v6541 = vsel %vm1134, %v6536, %v6540
      %v6542 = vunpack.c.l.b16 %v6171
      %v6543 = vunpack.c.l.b16 %v6181
      %v6544 = vunpack.c.l.b16 %v6195
      %v6545 = vunpack.c.l.b16 %v6205
      %v6546 = vunpack.c.l.b16 %v6219
      %v6547 = vunpack.c.l.b16 %v6229
      %v6548 = vunpack.c.l.b16 %v6243
      %v6549 = vunpack.c.l.b16 %v6253
      %v6550 = vunpack.c.l.b16 %v6267
      %v6551 = vunpack.c.l.b16 %v6277
      %v6552 = vunpack.c.l.b16 %v6291
      %v6553 = vunpack.c.l.b16 %v6301
      %v6554 = vunpack.c.l.b16 %v6315
      %v6555 = vunpack.c.l.b16 %v6325
      %v6556 = vunpack.c.l.b16 %v6339
      %v6557 = vunpack.c.l.b16 %v6349
      %v6558 = vunpack.c.l.b16 %v6363
      %v6559 = vunpack.c.l.b16 %v6373
      %v6560 = vunpack.c.l.b16 %v6387
      %v6561 = vunpack.c.l.b16 %v6397
      %v6562 = vunpack.c.l.b16 %v6411
      %v6563 = vunpack.c.l.b16 %v6421
      %v6564 = vunpack.c.l.b16 %v6435
      %v6565 = vunpack.c.l.b16 %v6445
      %v6566 = vunpack.c.l.b16 %v6459
      %v6567 = vunpack.c.l.b16 %v6469
      %v6568 = vunpack.c.l.b16 %v6483
      %v6569 = vunpack.c.l.b16 %v6493
      %v6570 = vunpack.c.l.b16 %v6507
      %v6571 = vunpack.c.l.b16 %v6517
      %v6572 = vunpack.c.l.b16 %v6531
      %v6573 = vunpack.c.l.b16 %v6541
      %v6574 = vpack.c.b16 %v6543, %v6542
      %v6575 = vpack.c.b16 %v6545, %v6544
      %v6576 = vpack.c.b16 %v6547, %v6546
      %v6577 = vpack.c.b16 %v6549, %v6548
      %v6578 = vpack.c.b16 %v6551, %v6550
      %v6579 = vpack.c.b16 %v6553, %v6552
      %v6580 = vpack.c.b16 %v6555, %v6554
      %v6581 = vpack.c.b16 %v6557, %v6556
      %v6582 = vpack.c.b16 %v6559, %v6558
      %v6583 = vpack.c.b16 %v6561, %v6560
      %v6584 = vpack.c.b16 %v6563, %v6562
      %v6585 = vpack.c.b16 %v6565, %v6564
      %v6586 = vpack.c.b16 %v6567, %v6566
      %v6587 = vpack.c.b16 %v6569, %v6568
      %v6588 = vpack.c.b16 %v6571, %v6570
      %v6589 = vpack.c.b16 %v6573, %v6572
      %6590 = vrot.lane.b32.xlu0 %v6574, 16
      %v6591 = vpop.permute.xlu0 %6590
      %6592 = vrot.lane.b32.xlu0 %v6575, 16
      %v6593 = vpop.permute.xlu0 %6592
      %6594 = vrot.lane.b32.xlu0 %v6576, 16
      %v6595 = vpop.permute.xlu0 %6594
      %6596 = vrot.lane.b32.xlu0 %v6577, 16
      %v6597 = vpop.permute.xlu0 %6596
      %6598 = vrot.lane.b32.xlu0 %v6578, 16
      %v6599 = vpop.permute.xlu0 %6598
      %6600 = vrot.lane.b32.xlu0 %v6579, 16
      %v6601 = vpop.permute.xlu0 %6600
      %6602 = vrot.lane.b32.xlu0 %v6580, 16
      %v6603 = vpop.permute.xlu0 %6602
      %6604 = vrot.lane.b32.xlu0 %v6581, 16
      %v6605 = vpop.permute.xlu0 %6604
      %6606 = vrot.lane.b32.xlu0 %v6582, 16
      %v6607 = vpop.permute.xlu0 %6606
      %6608 = vrot.lane.b32.xlu0 %v6583, 16
      %v6609 = vpop.permute.xlu0 %6608
      %6610 = vrot.lane.b32.xlu0 %v6584, 16
      %v6611 = vpop.permute.xlu0 %6610
      %6612 = vrot.lane.b32.xlu0 %v6585, 16
      %v6613 = vpop.permute.xlu0 %6612
      %6614 = vrot.lane.b32.xlu0 %v6586, 16
      %v6615 = vpop.permute.xlu0 %6614
      %6616 = vrot.lane.b32.xlu0 %v6587, 16
      %v6617 = vpop.permute.xlu0 %6616
      %6618 = vrot.lane.b32.xlu0 %v6588, 16
      %v6619 = vpop.permute.xlu0 %6618
      %6620 = vrot.lane.b32.xlu0 %v6589, 16
      %v6621 = vpop.permute.xlu0 %6620
      %6638 = vst.msk [vmem:[#allocation3] sm:$0xff] %vm2661, %v6591
      %6639 = vst.msk [vmem:[#allocation3 + $0x8] sm:$0xff] %vm2661, %v6593
      %6640 = vst.msk [vmem:[#allocation3 + $0x10] sm:$0xff] %vm2661, %v6595
      %6641 = vst.msk [vmem:[#allocation3 + $0x18] sm:$0xff] %vm2661, %v6597
      %6642 = vst.msk [vmem:[#allocation3 + $0x20] sm:$0xff] %vm2661, %v6599
      %6643 = vst.msk [vmem:[#allocation3 + $0x28] sm:$0xff] %vm2661, %v6601
      %6644 = vst.msk [vmem:[#allocation3 + $0x30] sm:$0xff] %vm2661, %v6603
      %6645 = vst.msk [vmem:[#allocation3 + $0x38] sm:$0xff] %vm2661, %v6605
      %6646 = vst.msk [vmem:[#allocation3 + $0x40] sm:$0xff] %vm2661, %v6607
      %6647 = vst.msk [vmem:[#allocation3 + $0x48] sm:$0xff] %vm2661, %v6609
      %6648 = vst.msk [vmem:[#allocation3 + $0x50] sm:$0xff] %vm2661, %v6611
      %6649 = vst.msk [vmem:[#allocation3 + $0x58] sm:$0xff] %vm2661, %v6613
      %6650 = vst.msk [vmem:[#allocation3 + $0x60] sm:$0xff] %vm2661, %v6615
      %6651 = vst.msk [vmem:[#allocation3 + $0x68] sm:$0xff] %vm2661, %v6617
      %6652 = vst.msk [vmem:[#allocation3 + $0x70] sm:$0xff] %vm2661, %v6619
      %6653 = vst.msk [vmem:[#allocation3 + $0x78] sm:$0xff] %vm2661, %v6621
      %v6654 = vld [vmem:[%s826] sm:$0xe]
      %v6655 = vld [vmem:[%s826 + $0x4] sm:$0xf]
      %v6656 = vld [vmem:[%s826 + $0x8] sm:$0x1]
      %v6657 = vld [vmem:[%s826 + $0xc] sm:$0xe]
      %v6658 = vld [vmem:[%s826 + $0x10] sm:$0xf]
      %v6659 = vld [vmem:[%s826 + $0x14] sm:$0x1]
      %v6660 = vld [vmem:[%s826 + $0x18] sm:$0xe]
      %v6661 = vld [vmem:[%s826 + $0x1c] sm:$0xf]
      %v6662 = vld [vmem:[%s826 + $0x20] sm:$0x1]
      %v6663 = vld [vmem:[%s826 + $0x24] sm:$0xe]
      %v6664 = vld [vmem:[%s826 + $0x28] sm:$0xf]
      %v6665 = vld [vmem:[%s826 + $0x2c] sm:$0x1]
      %v6666 = vld [vmem:[%s826 + $0x30] sm:$0xe]
      %v6667 = vld [vmem:[%s826 + $0x34] sm:$0xf]
      %v6668 = vld [vmem:[%s826 + $0x38] sm:$0x1]
      %v6669 = vld [vmem:[%s826 + $0x3c] sm:$0xe]
      %v6670 = vld [vmem:[%s826 + $0x40] sm:$0xf]
      %v6671 = vld [vmem:[%s826 + $0x44] sm:$0x1]
      %v6672 = vld [vmem:[%s826 + $0x48] sm:$0xe]
      %v6673 = vld [vmem:[%s826 + $0x4c] sm:$0xf]
      %v6674 = vld [vmem:[%s826 + $0x50] sm:$0x1]
      %v6675 = vld [vmem:[%s826 + $0x54] sm:$0xe]
      %v6676 = vld [vmem:[%s826 + $0x58] sm:$0xf]
      %v6677 = vld [vmem:[%s826 + $0x5c] sm:$0x1]
      %v6678 = vld [vmem:[%s826 + $0x60] sm:$0xe]
      %v6679 = vld [vmem:[%s826 + $0x64] sm:$0xf]
      %v6680 = vld [vmem:[%s826 + $0x68] sm:$0x1]
      %v6681 = vld [vmem:[%s826 + $0x6c] sm:$0xe]
      %v6682 = vld [vmem:[%s826 + $0x70] sm:$0xf]
      %v6683 = vld [vmem:[%s826 + $0x74] sm:$0x1]
      %v6684 = vld [vmem:[%s826 + $0x78] sm:$0xe]
      %v6685 = vld [vmem:[%s826 + $0x7c] sm:$0xf]
      %v6686 = vld [vmem:[%s826 + $0x80] sm:$0x1]
      %v6687 = vld [vmem:[%s826 + $0x84] sm:$0xe]
      %v6688 = vld [vmem:[%s826 + $0x88] sm:$0xf]
      %v6689 = vld [vmem:[%s826 + $0x8c] sm:$0x1]
      %v6690 = vld [vmem:[%s826 + $0x90] sm:$0xe]
      %v6691 = vld [vmem:[%s826 + $0x94] sm:$0xf]
      %v6692 = vld [vmem:[%s826 + $0x98] sm:$0x1]
      %v6693 = vld [vmem:[%s826 + $0x9c] sm:$0xe]
      %v6694 = vld [vmem:[%s826 + $0xa0] sm:$0xf]
      %v6695 = vld [vmem:[%s826 + $0xa4] sm:$0x1]
      %v6696 = vld [vmem:[%s826 + $0xa8] sm:$0xe]
      %v6697 = vld [vmem:[%s826 + $0xac] sm:$0xf]
      %v6698 = vld [vmem:[%s826 + $0xb0] sm:$0x1]
      %v6699 = vld [vmem:[%s826 + $0xb4] sm:$0xe]
      %v6700 = vld [vmem:[%s826 + $0xb8] sm:$0xf]
      %v6701 = vld [vmem:[%s826 + $0xbc] sm:$0x1]
      %v6750 = vrot.slane %v6654, 5
      %v6751 = vrot.slane %v6750, 4
      %v6752 = vrot.slane %v6655, 5
      %v6753 = vsel %vm1730, %v6751, %v6752
      %v6754 = vrot.slane %v6752, 4
      %v6755 = vrot.slane %v6656, 5
      %v6756 = vsel %vm1730, %v6754, %v6755
      %v6757 = vrot.slane %v6657, 5
      %v6758 = vrot.slane %v6757, 4
      %v6759 = vrot.slane %v6658, 5
      %v6760 = vsel %vm1730, %v6758, %v6759
      %v6761 = vrot.slane %v6759, 4
      %v6762 = vrot.slane %v6659, 5
      %v6763 = vsel %vm1730, %v6761, %v6762
      %v6764 = vrot.slane %v6660, 5
      %v6765 = vrot.slane %v6764, 4
      %v6766 = vrot.slane %v6661, 5
      %v6767 = vsel %vm1730, %v6765, %v6766
      %v6768 = vrot.slane %v6766, 4
      %v6769 = vrot.slane %v6662, 5
      %v6770 = vsel %vm1730, %v6768, %v6769
      %v6771 = vrot.slane %v6663, 5
      %v6772 = vrot.slane %v6771, 4
      %v6773 = vrot.slane %v6664, 5
      %v6774 = vsel %vm1730, %v6772, %v6773
      %v6775 = vrot.slane %v6773, 4
      %v6776 = vrot.slane %v6665, 5
      %v6777 = vsel %vm1730, %v6775, %v6776
      %v6778 = vrot.slane %v6666, 5
      %v6779 = vrot.slane %v6778, 4
      %v6780 = vrot.slane %v6667, 5
      %v6781 = vsel %vm1730, %v6779, %v6780
      %v6782 = vrot.slane %v6780, 4
      %v6783 = vrot.slane %v6668, 5
      %v6784 = vsel %vm1730, %v6782, %v6783
      %v6785 = vrot.slane %v6669, 5
      %v6786 = vrot.slane %v6785, 4
      %v6787 = vrot.slane %v6670, 5
      %v6788 = vsel %vm1730, %v6786, %v6787
      %v6789 = vrot.slane %v6787, 4
      %v6790 = vrot.slane %v6671, 5
      %v6791 = vsel %vm1730, %v6789, %v6790
      %v6792 = vrot.slane %v6672, 5
      %v6793 = vrot.slane %v6792, 4
      %v6794 = vrot.slane %v6673, 5
      %v6795 = vsel %vm1730, %v6793, %v6794
      %v6796 = vrot.slane %v6794, 4
      %v6797 = vrot.slane %v6674, 5
      %v6798 = vsel %vm1730, %v6796, %v6797
      %v6799 = vrot.slane %v6675, 5
      %v6800 = vrot.slane %v6799, 4
      %v6801 = vrot.slane %v6676, 5
      %v6802 = vsel %vm1730, %v6800, %v6801
      %v6803 = vrot.slane %v6801, 4
      %v6804 = vrot.slane %v6677, 5
      %v6805 = vsel %vm1730, %v6803, %v6804
      %v6806 = vrot.slane %v6678, 5
      %v6807 = vrot.slane %v6806, 4
      %v6808 = vrot.slane %v6679, 5
      %v6809 = vsel %vm1730, %v6807, %v6808
      %v6810 = vrot.slane %v6808, 4
      %v6811 = vrot.slane %v6680, 5
      %v6812 = vsel %vm1730, %v6810, %v6811
      %v6813 = vrot.slane %v6681, 5
      %v6814 = vrot.slane %v6813, 4
      %v6815 = vrot.slane %v6682, 5
      %v6816 = vsel %vm1730, %v6814, %v6815
      %v6817 = vrot.slane %v6815, 4
      %v6818 = vrot.slane %v6683, 5
      %v6819 = vsel %vm1730, %v6817, %v6818
      %v6820 = vrot.slane %v6684, 5
      %v6821 = vrot.slane %v6820, 4
      %v6822 = vrot.slane %v6685, 5
      %v6823 = vsel %vm1730, %v6821, %v6822
      %v6824 = vrot.slane %v6822, 4
      %v6825 = vrot.slane %v6686, 5
      %v6826 = vsel %vm1730, %v6824, %v6825
      %v6827 = vrot.slane %v6687, 5
      %v6828 = vrot.slane %v6827, 4
      %v6829 = vrot.slane %v6688, 5
      %v6830 = vsel %vm1730, %v6828, %v6829
      %v6831 = vrot.slane %v6829, 4
      %v6832 = vrot.slane %v6689, 5
      %v6833 = vsel %vm1730, %v6831, %v6832
      %v6834 = vrot.slane %v6690, 5
      %v6835 = vrot.slane %v6834, 4
      %v6836 = vrot.slane %v6691, 5
      %v6837 = vsel %vm1730, %v6835, %v6836
      %v6838 = vrot.slane %v6836, 4
      %v6839 = vrot.slane %v6692, 5
      %v6840 = vsel %vm1730, %v6838, %v6839
      %v6841 = vrot.slane %v6693, 5
      %v6842 = vrot.slane %v6841, 4
      %v6843 = vrot.slane %v6694, 5
      %v6844 = vsel %vm1730, %v6842, %v6843
      %v6845 = vrot.slane %v6843, 4
      %v6846 = vrot.slane %v6695, 5
      %v6847 = vsel %vm1730, %v6845, %v6846
      %v6848 = vrot.slane %v6696, 5
      %v6849 = vrot.slane %v6848, 4
      %v6850 = vrot.slane %v6697, 5
      %v6851 = vsel %vm1730, %v6849, %v6850
      %v6852 = vrot.slane %v6850, 4
      %v6853 = vrot.slane %v6698, 5
      %v6854 = vsel %vm1730, %v6852, %v6853
      %v6855 = vrot.slane %v6699, 5
      %v6856 = vrot.slane %v6855, 4
      %v6857 = vrot.slane %v6700, 5
      %v6858 = vsel %vm1730, %v6856, %v6857
      %v6859 = vrot.slane %v6857, 4
      %v6860 = vrot.slane %v6701, 5
      %v6861 = vsel %vm1730, %v6859, %v6860
      %v6862 = vunpack.c.l.b16 %v6753
      %v6863 = vunpack.c.l.b16 %v6756
      %v6864 = vunpack.c.l.b16 %v6760
      %v6865 = vunpack.c.l.b16 %v6763
      %v6866 = vunpack.c.l.b16 %v6767
      %v6867 = vunpack.c.l.b16 %v6770
      %v6868 = vunpack.c.l.b16 %v6774
      %v6869 = vunpack.c.l.b16 %v6777
      %v6870 = vunpack.c.l.b16 %v6781
      %v6871 = vunpack.c.l.b16 %v6784
      %v6872 = vunpack.c.l.b16 %v6788
      %v6873 = vunpack.c.l.b16 %v6791
      %v6874 = vunpack.c.l.b16 %v6795
      %v6875 = vunpack.c.l.b16 %v6798
      %v6876 = vunpack.c.l.b16 %v6802
      %v6877 = vunpack.c.l.b16 %v6805
      %v6878 = vunpack.c.l.b16 %v6809
      %v6879 = vunpack.c.l.b16 %v6812
      %v6880 = vunpack.c.l.b16 %v6816
      %v6881 = vunpack.c.l.b16 %v6819
      %v6882 = vunpack.c.l.b16 %v6823
      %v6883 = vunpack.c.l.b16 %v6826
      %v6884 = vunpack.c.l.b16 %v6830
      %v6885 = vunpack.c.l.b16 %v6833
      %v6886 = vunpack.c.l.b16 %v6837
      %v6887 = vunpack.c.l.b16 %v6840
      %v6888 = vunpack.c.l.b16 %v6844
      %v6889 = vunpack.c.l.b16 %v6847
      %v6890 = vunpack.c.l.b16 %v6851
      %v6891 = vunpack.c.l.b16 %v6854
      %v6892 = vunpack.c.l.b16 %v6858
      %v6893 = vunpack.c.l.b16 %v6861
      %v6894 = vpack.c.b16 %v6863, %v6862
      %v6895 = vpack.c.b16 %v6865, %v6864
      %v6896 = vpack.c.b16 %v6867, %v6866
      %v6897 = vpack.c.b16 %v6869, %v6868
      %v6898 = vpack.c.b16 %v6871, %v6870
      %v6899 = vpack.c.b16 %v6873, %v6872
      %v6900 = vpack.c.b16 %v6875, %v6874
      %v6901 = vpack.c.b16 %v6877, %v6876
      %v6902 = vpack.c.b16 %v6879, %v6878
      %v6903 = vpack.c.b16 %v6881, %v6880
      %v6904 = vpack.c.b16 %v6883, %v6882
      %v6905 = vpack.c.b16 %v6885, %v6884
      %v6906 = vpack.c.b16 %v6887, %v6886
      %v6907 = vpack.c.b16 %v6889, %v6888
      %v6908 = vpack.c.b16 %v6891, %v6890
      %v6909 = vpack.c.b16 %v6893, %v6892
      %6910 = vrot.lane.b32.xlu0 %v6894, 20
      %v6911 = vpop.permute.xlu0 %6910
      %6912 = vrot.lane.b32.xlu0 %v6895, 20
      %v6913 = vpop.permute.xlu0 %6912
      %6914 = vrot.lane.b32.xlu0 %v6896, 20
      %v6915 = vpop.permute.xlu0 %6914
      %6916 = vrot.lane.b32.xlu0 %v6897, 20
      %v6917 = vpop.permute.xlu0 %6916
      %6918 = vrot.lane.b32.xlu0 %v6898, 20
      %v6919 = vpop.permute.xlu0 %6918
      %6920 = vrot.lane.b32.xlu0 %v6899, 20
      %v6921 = vpop.permute.xlu0 %6920
      %6922 = vrot.lane.b32.xlu0 %v6900, 20
      %v6923 = vpop.permute.xlu0 %6922
      %6924 = vrot.lane.b32.xlu0 %v6901, 20
      %v6925 = vpop.permute.xlu0 %6924
      %6926 = vrot.lane.b32.xlu0 %v6902, 20
      %v6927 = vpop.permute.xlu0 %6926
      %6928 = vrot.lane.b32.xlu0 %v6903, 20
      %v6929 = vpop.permute.xlu0 %6928
      %6930 = vrot.lane.b32.xlu0 %v6904, 20
      %v6931 = vpop.permute.xlu0 %6930
      %6932 = vrot.lane.b32.xlu0 %v6905, 20
      %v6933 = vpop.permute.xlu0 %6932
      %6934 = vrot.lane.b32.xlu0 %v6906, 20
      %v6935 = vpop.permute.xlu0 %6934
      %6936 = vrot.lane.b32.xlu0 %v6907, 20
      %v6937 = vpop.permute.xlu0 %6936
      %6938 = vrot.lane.b32.xlu0 %v6908, 20
      %v6939 = vpop.permute.xlu0 %6938
      %6940 = vrot.lane.b32.xlu0 %v6909, 20
      %v6941 = vpop.permute.xlu0 %6940
      %6958 = vst.msk [vmem:[#allocation3] sm:$0xff] %vm2982, %v6911
      %6959 = vst.msk [vmem:[#allocation3 + $0x8] sm:$0xff] %vm2982, %v6913
      %6960 = vst.msk [vmem:[#allocation3 + $0x10] sm:$0xff] %vm2982, %v6915
      %6961 = vst.msk [vmem:[#allocation3 + $0x18] sm:$0xff] %vm2982, %v6917
      %6962 = vst.msk [vmem:[#allocation3 + $0x20] sm:$0xff] %vm2982, %v6919
      %6963 = vst.msk [vmem:[#allocation3 + $0x28] sm:$0xff] %vm2982, %v6921
      %6964 = vst.msk [vmem:[#allocation3 + $0x30] sm:$0xff] %vm2982, %v6923
      %6965 = vst.msk [vmem:[#allocation3 + $0x38] sm:$0xff] %vm2982, %v6925
      %6966 = vst.msk [vmem:[#allocation3 + $0x40] sm:$0xff] %vm2982, %v6927
      %6967 = vst.msk [vmem:[#allocation3 + $0x48] sm:$0xff] %vm2982, %v6929
      %6968 = vst.msk [vmem:[#allocation3 + $0x50] sm:$0xff] %vm2982, %v6931
      %6969 = vst.msk [vmem:[#allocation3 + $0x58] sm:$0xff] %vm2982, %v6933
      %6970 = vst.msk [vmem:[#allocation3 + $0x60] sm:$0xff] %vm2982, %v6935
      %6971 = vst.msk [vmem:[#allocation3 + $0x68] sm:$0xff] %vm2982, %v6937
      %6972 = vst.msk [vmem:[#allocation3 + $0x70] sm:$0xff] %vm2982, %v6939
      %6973 = vst.msk [vmem:[#allocation3 + $0x78] sm:$0xff] %vm2982, %v6941
      %v6974 = vld [vmem:[%s2999] sm:$0xf]
      %v6975 = vld [vmem:[%s2999 + $0x4] sm:$0xf]
      %v6976 = vld [vmem:[%s2999 + $0xc] sm:$0xf]
      %v6977 = vld [vmem:[%s2999 + $0x10] sm:$0xf]
      %v6978 = vld [vmem:[%s2999 + $0x18] sm:$0xf]
      %v6979 = vld [vmem:[%s2999 + $0x1c] sm:$0xf]
      %v6980 = vld [vmem:[%s2999 + $0x24] sm:$0xf]
      %v6981 = vld [vmem:[%s2999 + $0x28] sm:$0xf]
      %v6982 = vld [vmem:[%s2999 + $0x30] sm:$0xf]
      %v6983 = vld [vmem:[%s2999 + $0x34] sm:$0xf]
      %v6984 = vld [vmem:[%s2999 + $0x3c] sm:$0xf]
      %v6985 = vld [vmem:[%s2999 + $0x40] sm:$0xf]
      %v6986 = vld [vmem:[%s2999 + $0x48] sm:$0xf]
      %v6987 = vld [vmem:[%s2999 + $0x4c] sm:$0xf]
      %v6988 = vld [vmem:[%s2999 + $0x54] sm:$0xf]
      %v6989 = vld [vmem:[%s2999 + $0x58] sm:$0xf]
      %v6990 = vld [vmem:[%s2999 + $0x60] sm:$0xf]
      %v6991 = vld [vmem:[%s2999 + $0x64] sm:$0xf]
      %v6992 = vld [vmem:[%s2999 + $0x6c] sm:$0xf]
      %v6993 = vld [vmem:[%s2999 + $0x70] sm:$0xf]
      %v6994 = vld [vmem:[%s2999 + $0x78] sm:$0xf]
      %v6995 = vld [vmem:[%s2999 + $0x7c] sm:$0xf]
      %v6996 = vld [vmem:[%s2999 + $0x84] sm:$0xf]
      %v6997 = vld [vmem:[%s2999 + $0x88] sm:$0xf]
      %v6998 = vld [vmem:[%s2999 + $0x90] sm:$0xf]
      %v6999 = vld [vmem:[%s2999 + $0x94] sm:$0xf]
      %v7000 = vld [vmem:[%s2999 + $0x9c] sm:$0xf]
      %v7001 = vld [vmem:[%s2999 + $0xa0] sm:$0xf]
      %v7002 = vld [vmem:[%s2999 + $0xa8] sm:$0xf]
      %v7003 = vld [vmem:[%s2999 + $0xac] sm:$0xf]
      %v7004 = vld [vmem:[%s2999 + $0xb4] sm:$0xf]
      %v7005 = vld [vmem:[%s2999 + $0xb8] sm:$0xf]
      %v7038 = vunpack.c.l.b16 %v6974
      %v7039 = vunpack.c.l.b16 %v6975
      %v7040 = vunpack.c.l.b16 %v6976
      %v7041 = vunpack.c.l.b16 %v6977
      %v7042 = vunpack.c.l.b16 %v6978
      %v7043 = vunpack.c.l.b16 %v6979
      %v7044 = vunpack.c.l.b16 %v6980
      %v7045 = vunpack.c.l.b16 %v6981
      %v7046 = vunpack.c.l.b16 %v6982
      %v7047 = vunpack.c.l.b16 %v6983
      %v7048 = vunpack.c.l.b16 %v6984
      %v7049 = vunpack.c.l.b16 %v6985
      %v7050 = vunpack.c.l.b16 %v6986
      %v7051 = vunpack.c.l.b16 %v6987
      %v7052 = vunpack.c.l.b16 %v6988
      %v7053 = vunpack.c.l.b16 %v6989
      %v7054 = vunpack.c.l.b16 %v6990
      %v7055 = vunpack.c.l.b16 %v6991
      %v7056 = vunpack.c.l.b16 %v6992
      %v7057 = vunpack.c.l.b16 %v6993
      %v7058 = vunpack.c.l.b16 %v6994
      %v7059 = vunpack.c.l.b16 %v6995
      %v7060 = vunpack.c.l.b16 %v6996
      %v7061 = vunpack.c.l.b16 %v6997
      %v7062 = vunpack.c.l.b16 %v6998
      %v7063 = vunpack.c.l.b16 %v6999
      %v7064 = vunpack.c.l.b16 %v7000
      %v7065 = vunpack.c.l.b16 %v7001
      %v7066 = vunpack.c.l.b16 %v7002
      %v7067 = vunpack.c.l.b16 %v7003
      %v7068 = vunpack.c.l.b16 %v7004
      %v7069 = vunpack.c.l.b16 %v7005
      %v7070 = vpack.c.b16 %v7039, %v7038
      %v7071 = vpack.c.b16 %v7041, %v7040
      %v7072 = vpack.c.b16 %v7043, %v7042
      %v7073 = vpack.c.b16 %v7045, %v7044
      %v7074 = vpack.c.b16 %v7047, %v7046
      %v7075 = vpack.c.b16 %v7049, %v7048
      %v7076 = vpack.c.b16 %v7051, %v7050
      %v7077 = vpack.c.b16 %v7053, %v7052
      %v7078 = vpack.c.b16 %v7055, %v7054
      %v7079 = vpack.c.b16 %v7057, %v7056
      %v7080 = vpack.c.b16 %v7059, %v7058
      %v7081 = vpack.c.b16 %v7061, %v7060
      %v7082 = vpack.c.b16 %v7063, %v7062
      %v7083 = vpack.c.b16 %v7065, %v7064
      %v7084 = vpack.c.b16 %v7067, %v7066
      %v7085 = vpack.c.b16 %v7069, %v7068
      %7086 = vrot.lane.b32.xlu0 %v7070, 24
      %v7087 = vpop.permute.xlu0 %7086
      %7088 = vrot.lane.b32.xlu0 %v7071, 24
      %v7089 = vpop.permute.xlu0 %7088
      %7090 = vrot.lane.b32.xlu0 %v7072, 24
      %v7091 = vpop.permute.xlu0 %7090
      %7092 = vrot.lane.b32.xlu0 %v7073, 24
      %v7093 = vpop.permute.xlu0 %7092
      %7094 = vrot.lane.b32.xlu0 %v7074, 24
      %v7095 = vpop.permute.xlu0 %7094
      %7096 = vrot.lane.b32.xlu0 %v7075, 24
      %v7097 = vpop.permute.xlu0 %7096
      %7098 = vrot.lane.b32.xlu0 %v7076, 24
      %v7099 = vpop.permute.xlu0 %7098
      %7100 = vrot.lane.b32.xlu0 %v7077, 24
      %v7101 = vpop.permute.xlu0 %7100
      %7102 = vrot.lane.b32.xlu0 %v7078, 24
      %v7103 = vpop.permute.xlu0 %7102
      %7104 = vrot.lane.b32.xlu0 %v7079, 24
      %v7105 = vpop.permute.xlu0 %7104
      %7106 = vrot.lane.b32.xlu0 %v7080, 24
      %v7107 = vpop.permute.xlu0 %7106
      %7108 = vrot.lane.b32.xlu0 %v7081, 24
      %v7109 = vpop.permute.xlu0 %7108
      %7110 = vrot.lane.b32.xlu0 %v7082, 24
      %v7111 = vpop.permute.xlu0 %7110
      %7112 = vrot.lane.b32.xlu0 %v7083, 24
      %v7113 = vpop.permute.xlu0 %7112
      %7114 = vrot.lane.b32.xlu0 %v7084, 24
      %v7115 = vpop.permute.xlu0 %7114
      %7116 = vrot.lane.b32.xlu0 %v7085, 24
      %v7117 = vpop.permute.xlu0 %7116
      %7134 = vst.msk [vmem:[#allocation3] sm:$0xff] %vm3160, %v7087
      %7135 = vst.msk [vmem:[#allocation3 + $0x8] sm:$0xff] %vm3160, %v7089
      %7136 = vst.msk [vmem:[#allocation3 + $0x10] sm:$0xff] %vm3160, %v7091
      %7137 = vst.msk [vmem:[#allocation3 + $0x18] sm:$0xff] %vm3160, %v7093
      %7138 = vst.msk [vmem:[#allocation3 + $0x20] sm:$0xff] %vm3160, %v7095
      %7139 = vst.msk [vmem:[#allocation3 + $0x28] sm:$0xff] %vm3160, %v7097
      %7140 = vst.msk [vmem:[#allocation3 + $0x30] sm:$0xff] %vm3160, %v7099
      %7141 = vst.msk [vmem:[#allocation3 + $0x38] sm:$0xff] %vm3160, %v7101
      %7142 = vst.msk [vmem:[#allocation3 + $0x40] sm:$0xff] %vm3160, %v7103
      %7143 = vst.msk [vmem:[#allocation3 + $0x48] sm:$0xff] %vm3160, %v7105
      %7144 = vst.msk [vmem:[#allocation3 + $0x50] sm:$0xff] %vm3160, %v7107
      %7145 = vst.msk [vmem:[#allocation3 + $0x58] sm:$0xff] %vm3160, %v7109
      %7146 = vst.msk [vmem:[#allocation3 + $0x60] sm:$0xff] %vm3160, %v7111
      %7147 = vst.msk [vmem:[#allocation3 + $0x68] sm:$0xff] %vm3160, %v7113
      %7148 = vst.msk [vmem:[#allocation3 + $0x70] sm:$0xff] %vm3160, %v7115
      %7149 = vst.msk [vmem:[#allocation3 + $0x78] sm:$0xff] %vm3160, %v7117
      %v7150 = vld [vmem:[%s2999] sm:$0xf]
      %v7151 = vld [vmem:[%s2999 + $0x4] sm:$0xf]
      %v7152 = vld [vmem:[%s2999 + $0x8] sm:$0x1]
      %v7153 = vld [vmem:[%s2999 + $0xc] sm:$0xf]
      %v7154 = vld [vmem:[%s2999 + $0x10] sm:$0xf]
      %v7155 = vld [vmem:[%s2999 + $0x14] sm:$0x1]
      %v7156 = vld [vmem:[%s2999 + $0x18] sm:$0xf]
      %v7157 = vld [vmem:[%s2999 + $0x1c] sm:$0xf]
      %v7158 = vld [vmem:[%s2999 + $0x20] sm:$0x1]
      %v7159 = vld [vmem:[%s2999 + $0x24] sm:$0xf]
      %v7160 = vld [vmem:[%s2999 + $0x28] sm:$0xf]
      %v7161 = vld [vmem:[%s2999 + $0x2c] sm:$0x1]
      %v7162 = vld [vmem:[%s2999 + $0x30] sm:$0xf]
      %v7163 = vld [vmem:[%s2999 + $0x34] sm:$0xf]
      %v7164 = vld [vmem:[%s2999 + $0x38] sm:$0x1]
      %v7165 = vld [vmem:[%s2999 + $0x3c] sm:$0xf]
      %v7166 = vld [vmem:[%s2999 + $0x40] sm:$0xf]
      %v7167 = vld [vmem:[%s2999 + $0x44] sm:$0x1]
      %v7168 = vld [vmem:[%s2999 + $0x48] sm:$0xf]
      %v7169 = vld [vmem:[%s2999 + $0x4c] sm:$0xf]
      %v7170 = vld [vmem:[%s2999 + $0x50] sm:$0x1]
      %v7171 = vld [vmem:[%s2999 + $0x54] sm:$0xf]
      %v7172 = vld [vmem:[%s2999 + $0x58] sm:$0xf]
      %v7173 = vld [vmem:[%s2999 + $0x5c] sm:$0x1]
      %v7174 = vld [vmem:[%s2999 + $0x60] sm:$0xf]
      %v7175 = vld [vmem:[%s2999 + $0x64] sm:$0xf]
      %v7176 = vld [vmem:[%s2999 + $0x68] sm:$0x1]
      %v7177 = vld [vmem:[%s2999 + $0x6c] sm:$0xf]
      %v7178 = vld [vmem:[%s2999 + $0x70] sm:$0xf]
      %v7179 = vld [vmem:[%s2999 + $0x74] sm:$0x1]
      %v7180 = vld [vmem:[%s2999 + $0x78] sm:$0xf]
      %v7181 = vld [vmem:[%s2999 + $0x7c] sm:$0xf]
      %v7182 = vld [vmem:[%s2999 + $0x80] sm:$0x1]
      %v7183 = vld [vmem:[%s2999 + $0x84] sm:$0xf]
      %v7184 = vld [vmem:[%s2999 + $0x88] sm:$0xf]
      %v7185 = vld [vmem:[%s2999 + $0x8c] sm:$0x1]
      %v7186 = vld [vmem:[%s2999 + $0x90] sm:$0xf]
      %v7187 = vld [vmem:[%s2999 + $0x94] sm:$0xf]
      %v7188 = vld [vmem:[%s2999 + $0x98] sm:$0x1]
      %v7189 = vld [vmem:[%s2999 + $0x9c] sm:$0xf]
      %v7190 = vld [vmem:[%s2999 + $0xa0] sm:$0xf]
      %v7191 = vld [vmem:[%s2999 + $0xa4] sm:$0x1]
      %v7192 = vld [vmem:[%s2999 + $0xa8] sm:$0xf]
      %v7193 = vld [vmem:[%s2999 + $0xac] sm:$0xf]
      %v7194 = vld [vmem:[%s2999 + $0xb0] sm:$0x1]
      %v7195 = vld [vmem:[%s2999 + $0xb4] sm:$0xf]
      %v7196 = vld [vmem:[%s2999 + $0xb8] sm:$0xf]
      %v7197 = vld [vmem:[%s2999 + $0xbc] sm:$0x1]
      %v7199 = vshrl.u32 %v7150, 16
      %v7201 = vrot.slane %v7199, 4
      %v7202 = vshll.u32 %v7150, 16
      %v7204 = vrot.slane %v7202, 5
      %v7205 = vor.u32 %v7201, %v7204
      %v7206 = vrot.slane %v7205, 4
      %v7208 = vshll.u32 %v7151, 16
      %v7210 = vrot.slane %v7208, 5
      %v7211 = vsel %vm1134, %v7206, %v7210
      %v7212 = vshrl.u32 %v7151, 16
      %v7214 = vrot.slane %v7212, 4
      %v7215 = vor.u32 %v7214, %v7210
      %v7216 = vrot.slane %v7215, 4
      %v7218 = vshll.u32 %v7152, 16
      %v7220 = vrot.slane %v7218, 5
      %v7221 = vsel %vm1134, %v7216, %v7220
      %v7223 = vshrl.u32 %v7153, 16
      %v7225 = vrot.slane %v7223, 4
      %v7226 = vshll.u32 %v7153, 16
      %v7228 = vrot.slane %v7226, 5
      %v7229 = vor.u32 %v7225, %v7228
      %v7230 = vrot.slane %v7229, 4
      %v7232 = vshll.u32 %v7154, 16
      %v7234 = vrot.slane %v7232, 5
      %v7235 = vsel %vm1134, %v7230, %v7234
      %v7236 = vshrl.u32 %v7154, 16
      %v7238 = vrot.slane %v7236, 4
      %v7239 = vor.u32 %v7238, %v7234
      %v7240 = vrot.slane %v7239, 4
      %v7242 = vshll.u32 %v7155, 16
      %v7244 = vrot.slane %v7242, 5
      %v7245 = vsel %vm1134, %v7240, %v7244
      %v7247 = vshrl.u32 %v7156, 16
      %v7249 = vrot.slane %v7247, 4
      %v7250 = vshll.u32 %v7156, 16
      %v7252 = vrot.slane %v7250, 5
      %v7253 = vor.u32 %v7249, %v7252
      %v7254 = vrot.slane %v7253, 4
      %v7256 = vshll.u32 %v7157, 16
      %v7258 = vrot.slane %v7256, 5
      %v7259 = vsel %vm1134, %v7254, %v7258
      %v7260 = vshrl.u32 %v7157, 16
      %v7262 = vrot.slane %v7260, 4
      %v7263 = vor.u32 %v7262, %v7258
      %v7264 = vrot.slane %v7263, 4
      %v7266 = vshll.u32 %v7158, 16
      %v7268 = vrot.slane %v7266, 5
      %v7269 = vsel %vm1134, %v7264, %v7268
      %v7271 = vshrl.u32 %v7159, 16
      %v7273 = vrot.slane %v7271, 4
      %v7274 = vshll.u32 %v7159, 16
      %v7276 = vrot.slane %v7274, 5
      %v7277 = vor.u32 %v7273, %v7276
      %v7278 = vrot.slane %v7277, 4
      %v7280 = vshll.u32 %v7160, 16
      %v7282 = vrot.slane %v7280, 5
      %v7283 = vsel %vm1134, %v7278, %v7282
      %v7284 = vshrl.u32 %v7160, 16
      %v7286 = vrot.slane %v7284, 4
      %v7287 = vor.u32 %v7286, %v7282
      %v7288 = vrot.slane %v7287, 4
      %v7290 = vshll.u32 %v7161, 16
      %v7292 = vrot.slane %v7290, 5
      %v7293 = vsel %vm1134, %v7288, %v7292
      %v7295 = vshrl.u32 %v7162, 16
      %v7297 = vrot.slane %v7295, 4
      %v7298 = vshll.u32 %v7162, 16
      %v7300 = vrot.slane %v7298, 5
      %v7301 = vor.u32 %v7297, %v7300
      %v7302 = vrot.slane %v7301, 4
      %v7304 = vshll.u32 %v7163, 16
      %v7306 = vrot.slane %v7304, 5
      %v7307 = vsel %vm1134, %v7302, %v7306
      %v7308 = vshrl.u32 %v7163, 16
      %v7310 = vrot.slane %v7308, 4
      %v7311 = vor.u32 %v7310, %v7306
      %v7312 = vrot.slane %v7311, 4
      %v7314 = vshll.u32 %v7164, 16
      %v7316 = vrot.slane %v7314, 5
      %v7317 = vsel %vm1134, %v7312, %v7316
      %v7319 = vshrl.u32 %v7165, 16
      %v7321 = vrot.slane %v7319, 4
      %v7322 = vshll.u32 %v7165, 16
      %v7324 = vrot.slane %v7322, 5
      %v7325 = vor.u32 %v7321, %v7324
      %v7326 = vrot.slane %v7325, 4
      %v7328 = vshll.u32 %v7166, 16
      %v7330 = vrot.slane %v7328, 5
      %v7331 = vsel %vm1134, %v7326, %v7330
      %v7332 = vshrl.u32 %v7166, 16
      %v7334 = vrot.slane %v7332, 4
      %v7335 = vor.u32 %v7334, %v7330
      %v7336 = vrot.slane %v7335, 4
      %v7338 = vshll.u32 %v7167, 16
      %v7340 = vrot.slane %v7338, 5
      %v7341 = vsel %vm1134, %v7336, %v7340
      %v7343 = vshrl.u32 %v7168, 16
      %v7345 = vrot.slane %v7343, 4
      %v7346 = vshll.u32 %v7168, 16
      %v7348 = vrot.slane %v7346, 5
      %v7349 = vor.u32 %v7345, %v7348
      %v7350 = vrot.slane %v7349, 4
      %v7352 = vshll.u32 %v7169, 16
      %v7354 = vrot.slane %v7352, 5
      %v7355 = vsel %vm1134, %v7350, %v7354
      %v7356 = vshrl.u32 %v7169, 16
      %v7358 = vrot.slane %v7356, 4
      %v7359 = vor.u32 %v7358, %v7354
      %v7360 = vrot.slane %v7359, 4
      %v7362 = vshll.u32 %v7170, 16
      %v7364 = vrot.slane %v7362, 5
      %v7365 = vsel %vm1134, %v7360, %v7364
      %v7367 = vshrl.u32 %v7171, 16
      %v7369 = vrot.slane %v7367, 4
      %v7370 = vshll.u32 %v7171, 16
      %v7372 = vrot.slane %v7370, 5
      %v7373 = vor.u32 %v7369, %v7372
      %v7374 = vrot.slane %v7373, 4
      %v7376 = vshll.u32 %v7172, 16
      %v7378 = vrot.slane %v7376, 5
      %v7379 = vsel %vm1134, %v7374, %v7378
      %v7380 = vshrl.u32 %v7172, 16
      %v7382 = vrot.slane %v7380, 4
      %v7383 = vor.u32 %v7382, %v7378
      %v7384 = vrot.slane %v7383, 4
      %v7386 = vshll.u32 %v7173, 16
      %v7388 = vrot.slane %v7386, 5
      %v7389 = vsel %vm1134, %v7384, %v7388
      %v7391 = vshrl.u32 %v7174, 16
      %v7393 = vrot.slane %v7391, 4
      %v7394 = vshll.u32 %v7174, 16
      %v7396 = vrot.slane %v7394, 5
      %v7397 = vor.u32 %v7393, %v7396
      %v7398 = vrot.slane %v7397, 4
      %v7400 = vshll.u32 %v7175, 16
      %v7402 = vrot.slane %v7400, 5
      %v7403 = vsel %vm1134, %v7398, %v7402
      %v7404 = vshrl.u32 %v7175, 16
      %v7406 = vrot.slane %v7404, 4
      %v7407 = vor.u32 %v7406, %v7402
      %v7408 = vrot.slane %v7407, 4
      %v7410 = vshll.u32 %v7176, 16
      %v7412 = vrot.slane %v7410, 5
      %v7413 = vsel %vm1134, %v7408, %v7412
      %v7415 = vshrl.u32 %v7177, 16
      %v7417 = vrot.slane %v7415, 4
      %v7418 = vshll.u32 %v7177, 16
      %v7420 = vrot.slane %v7418, 5
      %v7421 = vor.u32 %v7417, %v7420
      %v7422 = vrot.slane %v7421, 4
      %v7424 = vshll.u32 %v7178, 16
      %v7426 = vrot.slane %v7424, 5
      %v7427 = vsel %vm1134, %v7422, %v7426
      %v7428 = vshrl.u32 %v7178, 16
      %v7430 = vrot.slane %v7428, 4
      %v7431 = vor.u32 %v7430, %v7426
      %v7432 = vrot.slane %v7431, 4
      %v7434 = vshll.u32 %v7179, 16
      %v7436 = vrot.slane %v7434, 5
      %v7437 = vsel %vm1134, %v7432, %v7436
      %v7439 = vshrl.u32 %v7180, 16
      %v7441 = vrot.slane %v7439, 4
      %v7442 = vshll.u32 %v7180, 16
      %v7444 = vrot.slane %v7442, 5
      %v7445 = vor.u32 %v7441, %v7444
      %v7446 = vrot.slane %v7445, 4
      %v7448 = vshll.u32 %v7181, 16
      %v7450 = vrot.slane %v7448, 5
      %v7451 = vsel %vm1134, %v7446, %v7450
      %v7452 = vshrl.u32 %v7181, 16
      %v7454 = vrot.slane %v7452, 4
      %v7455 = vor.u32 %v7454, %v7450
      %v7456 = vrot.slane %v7455, 4
      %v7458 = vshll.u32 %v7182, 16
      %v7460 = vrot.slane %v7458, 5
      %v7461 = vsel %vm1134, %v7456, %v7460
      %v7463 = vshrl.u32 %v7183, 16
      %v7465 = vrot.slane %v7463, 4
      %v7466 = vshll.u32 %v7183, 16
      %v7468 = vrot.slane %v7466, 5
      %v7469 = vor.u32 %v7465, %v7468
      %v7470 = vrot.slane %v7469, 4
      %v7472 = vshll.u32 %v7184, 16
      %v7474 = vrot.slane %v7472, 5
      %v7475 = vsel %vm1134, %v7470, %v7474
      %v7476 = vshrl.u32 %v7184, 16
      %v7478 = vrot.slane %v7476, 4
      %v7479 = vor.u32 %v7478, %v7474
      %v7480 = vrot.slane %v7479, 4
      %v7482 = vshll.u32 %v7185, 16
      %v7484 = vrot.slane %v7482, 5
      %v7485 = vsel %vm1134, %v7480, %v7484
      %v7487 = vshrl.u32 %v7186, 16
      %v7489 = vrot.slane %v7487, 4
      %v7490 = vshll.u32 %v7186, 16
      %v7492 = vrot.slane %v7490, 5
      %v7493 = vor.u32 %v7489, %v7492
      %v7494 = vrot.slane %v7493, 4
      %v7496 = vshll.u32 %v7187, 16
      %v7498 = vrot.slane %v7496, 5
      %v7499 = vsel %vm1134, %v7494, %v7498
      %v7500 = vshrl.u32 %v7187, 16
      %v7502 = vrot.slane %v7500, 4
      %v7503 = vor.u32 %v7502, %v7498
      %v7504 = vrot.slane %v7503, 4
      %v7506 = vshll.u32 %v7188, 16
      %v7508 = vrot.slane %v7506, 5
      %v7509 = vsel %vm1134, %v7504, %v7508
      %v7511 = vshrl.u32 %v7189, 16
      %v7513 = vrot.slane %v7511, 4
      %v7514 = vshll.u32 %v7189, 16
      %v7516 = vrot.slane %v7514, 5
      %v7517 = vor.u32 %v7513, %v7516
      %v7518 = vrot.slane %v7517, 4
      %v7520 = vshll.u32 %v7190, 16
      %v7522 = vrot.slane %v7520, 5
      %v7523 = vsel %vm1134, %v7518, %v7522
      %v7524 = vshrl.u32 %v7190, 16
      %v7526 = vrot.slane %v7524, 4
      %v7527 = vor.u32 %v7526, %v7522
      %v7528 = vrot.slane %v7527, 4
      %v7530 = vshll.u32 %v7191, 16
      %v7532 = vrot.slane %v7530, 5
      %v7533 = vsel %vm1134, %v7528, %v7532
      %v7535 = vshrl.u32 %v7192, 16
      %v7537 = vrot.slane %v7535, 4
      %v7538 = vshll.u32 %v7192, 16
      %v7540 = vrot.slane %v7538, 5
      %v7541 = vor.u32 %v7537, %v7540
      %v7542 = vrot.slane %v7541, 4
      %v7544 = vshll.u32 %v7193, 16
      %v7546 = vrot.slane %v7544, 5
      %v7547 = vsel %vm1134, %v7542, %v7546
      %v7548 = vshrl.u32 %v7193, 16
      %v7550 = vrot.slane %v7548, 4
      %v7551 = vor.u32 %v7550, %v7546
      %v7552 = vrot.slane %v7551, 4
      %v7554 = vshll.u32 %v7194, 16
      %v7556 = vrot.slane %v7554, 5
      %v7557 = vsel %vm1134, %v7552, %v7556
      %v7559 = vshrl.u32 %v7195, 16
      %v7561 = vrot.slane %v7559, 4
      %v7562 = vshll.u32 %v7195, 16
      %v7564 = vrot.slane %v7562, 5
      %v7565 = vor.u32 %v7561, %v7564
      %v7566 = vrot.slane %v7565, 4
      %v7568 = vshll.u32 %v7196, 16
      %v7570 = vrot.slane %v7568, 5
      %v7571 = vsel %vm1134, %v7566, %v7570
      %v7572 = vshrl.u32 %v7196, 16
      %v7574 = vrot.slane %v7572, 4
      %v7575 = vor.u32 %v7574, %v7570
      %v7576 = vrot.slane %v7575, 4
      %v7578 = vshll.u32 %v7197, 16
      %v7580 = vrot.slane %v7578, 5
      %v7581 = vsel %vm1134, %v7576, %v7580
      %v7582 = vunpack.c.l.b16 %v7211
      %v7583 = vunpack.c.l.b16 %v7221
      %v7584 = vunpack.c.l.b16 %v7235
      %v7585 = vunpack.c.l.b16 %v7245
      %v7586 = vunpack.c.l.b16 %v7259
      %v7587 = vunpack.c.l.b16 %v7269
      %v7588 = vunpack.c.l.b16 %v7283
      %v7589 = vunpack.c.l.b16 %v7293
      %v7590 = vunpack.c.l.b16 %v7307
      %v7591 = vunpack.c.l.b16 %v7317
      %v7592 = vunpack.c.l.b16 %v7331
      %v7593 = vunpack.c.l.b16 %v7341
      %v7594 = vunpack.c.l.b16 %v7355
      %v7595 = vunpack.c.l.b16 %v7365
      %v7596 = vunpack.c.l.b16 %v7379
      %v7597 = vunpack.c.l.b16 %v7389
      %v7598 = vunpack.c.l.b16 %v7403
      %v7599 = vunpack.c.l.b16 %v7413
      %v7600 = vunpack.c.l.b16 %v7427
      %v7601 = vunpack.c.l.b16 %v7437
      %v7602 = vunpack.c.l.b16 %v7451
      %v7603 = vunpack.c.l.b16 %v7461
      %v7604 = vunpack.c.l.b16 %v7475
      %v7605 = vunpack.c.l.b16 %v7485
      %v7606 = vunpack.c.l.b16 %v7499
      %v7607 = vunpack.c.l.b16 %v7509
      %v7608 = vunpack.c.l.b16 %v7523
      %v7609 = vunpack.c.l.b16 %v7533
      %v7610 = vunpack.c.l.b16 %v7547
      %v7611 = vunpack.c.l.b16 %v7557
      %v7612 = vunpack.c.l.b16 %v7571
      %v7613 = vunpack.c.l.b16 %v7581
      %v7614 = vpack.c.b16 %v7583, %v7582
      %v7615 = vpack.c.b16 %v7585, %v7584
      %v7616 = vpack.c.b16 %v7587, %v7586
      %v7617 = vpack.c.b16 %v7589, %v7588
      %v7618 = vpack.c.b16 %v7591, %v7590
      %v7619 = vpack.c.b16 %v7593, %v7592
      %v7620 = vpack.c.b16 %v7595, %v7594
      %v7621 = vpack.c.b16 %v7597, %v7596
      %v7622 = vpack.c.b16 %v7599, %v7598
      %v7623 = vpack.c.b16 %v7601, %v7600
      %v7624 = vpack.c.b16 %v7603, %v7602
      %v7625 = vpack.c.b16 %v7605, %v7604
      %v7626 = vpack.c.b16 %v7607, %v7606
      %v7627 = vpack.c.b16 %v7609, %v7608
      %v7628 = vpack.c.b16 %v7611, %v7610
      %v7629 = vpack.c.b16 %v7613, %v7612
      %7630 = vrot.lane.b32.xlu0 %v7614, 28
      %v7631 = vpop.permute.xlu0 %7630
      %7632 = vrot.lane.b32.xlu0 %v7615, 28
      %v7633 = vpop.permute.xlu0 %7632
      %7634 = vrot.lane.b32.xlu0 %v7616, 28
      %v7635 = vpop.permute.xlu0 %7634
      %7636 = vrot.lane.b32.xlu0 %v7617, 28
      %v7637 = vpop.permute.xlu0 %7636
      %7638 = vrot.lane.b32.xlu0 %v7618, 28
      %v7639 = vpop.permute.xlu0 %7638
      %7640 = vrot.lane.b32.xlu0 %v7619, 28
      %v7641 = vpop.permute.xlu0 %7640
      %7642 = vrot.lane.b32.xlu0 %v7620, 28
      %v7643 = vpop.permute.xlu0 %7642
      %7644 = vrot.lane.b32.xlu0 %v7621, 28
      %v7645 = vpop.permute.xlu0 %7644
      %7646 = vrot.lane.b32.xlu0 %v7622, 28
      %v7647 = vpop.permute.xlu0 %7646
      %7648 = vrot.lane.b32.xlu0 %v7623, 28
      %v7649 = vpop.permute.xlu0 %7648
      %7650 = vrot.lane.b32.xlu0 %v7624, 28
      %v7651 = vpop.permute.xlu0 %7650
      %7652 = vrot.lane.b32.xlu0 %v7625, 28
      %v7653 = vpop.permute.xlu0 %7652
      %7654 = vrot.lane.b32.xlu0 %v7626, 28
      %v7655 = vpop.permute.xlu0 %7654
      %7656 = vrot.lane.b32.xlu0 %v7627, 28
      %v7657 = vpop.permute.xlu0 %7656
      %7658 = vrot.lane.b32.xlu0 %v7628, 28
      %v7659 = vpop.permute.xlu0 %7658
      %7660 = vrot.lane.b32.xlu0 %v7629, 28
      %v7661 = vpop.permute.xlu0 %7660
      %7678 = vst.msk [vmem:[#allocation3] sm:$0xff] %vm3705, %v7631
      %7679 = vst.msk [vmem:[#allocation3 + $0x8] sm:$0xff] %vm3705, %v7633
      %7680 = vst.msk [vmem:[#allocation3 + $0x10] sm:$0xff] %vm3705, %v7635
      %7681 = vst.msk [vmem:[#allocation3 + $0x18] sm:$0xff] %vm3705, %v7637
      %7682 = vst.msk [vmem:[#allocation3 + $0x20] sm:$0xff] %vm3705, %v7639
      %7683 = vst.msk [vmem:[#allocation3 + $0x28] sm:$0xff] %vm3705, %v7641
      %7684 = vst.msk [vmem:[#allocation3 + $0x30] sm:$0xff] %vm3705, %v7643
      %7685 = vst.msk [vmem:[#allocation3 + $0x38] sm:$0xff] %vm3705, %v7645
      %7686 = vst.msk [vmem:[#allocation3 + $0x40] sm:$0xff] %vm3705, %v7647
      %7687 = vst.msk [vmem:[#allocation3 + $0x48] sm:$0xff] %vm3705, %v7649
      %7688 = vst.msk [vmem:[#allocation3 + $0x50] sm:$0xff] %vm3705, %v7651
      %7689 = vst.msk [vmem:[#allocation3 + $0x58] sm:$0xff] %vm3705, %v7653
      %7690 = vst.msk [vmem:[#allocation3 + $0x60] sm:$0xff] %vm3705, %v7655
      %7691 = vst.msk [vmem:[#allocation3 + $0x68] sm:$0xff] %vm3705, %v7657
      %7692 = vst.msk [vmem:[#allocation3 + $0x70] sm:$0xff] %vm3705, %v7659
      %7693 = vst.msk [vmem:[#allocation3 + $0x78] sm:$0xff] %vm3705, %v7661
      %v7694 = vld [vmem:[%s2999] sm:$0xe]
      %v7695 = vld [vmem:[%s2999 + $0x4] sm:$0xf]
      %v7696 = vld [vmem:[%s2999 + $0x8] sm:$0x1]
      %v7697 = vld [vmem:[%s2999 + $0xc] sm:$0xe]
      %v7698 = vld [vmem:[%s2999 + $0x10] sm:$0xf]
      %v7699 = vld [vmem:[%s2999 + $0x14] sm:$0x1]
      %v7700 = vld [vmem:[%s2999 + $0x18] sm:$0xe]
      %v7701 = vld [vmem:[%s2999 + $0x1c] sm:$0xf]
      %v7702 = vld [vmem:[%s2999 + $0x20] sm:$0x1]
      %v7703 = vld [vmem:[%s2999 + $0x24] sm:$0xe]
      %v7704 = vld [vmem:[%s2999 + $0x28] sm:$0xf]
      %v7705 = vld [vmem:[%s2999 + $0x2c] sm:$0x1]
      %v7706 = vld [vmem:[%s2999 + $0x30] sm:$0xe]
      %v7707 = vld [vmem:[%s2999 + $0x34] sm:$0xf]
      %v7708 = vld [vmem:[%s2999 + $0x38] sm:$0x1]
      %v7709 = vld [vmem:[%s2999 + $0x3c] sm:$0xe]
      %v7710 = vld [vmem:[%s2999 + $0x40] sm:$0xf]
      %v7711 = vld [vmem:[%s2999 + $0x44] sm:$0x1]
      %v7712 = vld [vmem:[%s2999 + $0x48] sm:$0xe]
      %v7713 = vld [vmem:[%s2999 + $0x4c] sm:$0xf]
      %v7714 = vld [vmem:[%s2999 + $0x50] sm:$0x1]
      %v7715 = vld [vmem:[%s2999 + $0x54] sm:$0xe]
      %v7716 = vld [vmem:[%s2999 + $0x58] sm:$0xf]
      %v7717 = vld [vmem:[%s2999 + $0x5c] sm:$0x1]
      %v7718 = vld [vmem:[%s2999 + $0x60] sm:$0xe]
      %v7719 = vld [vmem:[%s2999 + $0x64] sm:$0xf]
      %v7720 = vld [vmem:[%s2999 + $0x68] sm:$0x1]
      %v7721 = vld [vmem:[%s2999 + $0x6c] sm:$0xe]
      %v7722 = vld [vmem:[%s2999 + $0x70] sm:$0xf]
      %v7723 = vld [vmem:[%s2999 + $0x74] sm:$0x1]
      %v7724 = vld [vmem:[%s2999 + $0x78] sm:$0xe]
      %v7725 = vld [vmem:[%s2999 + $0x7c] sm:$0xf]
      %v7726 = vld [vmem:[%s2999 + $0x80] sm:$0x1]
      %v7727 = vld [vmem:[%s2999 + $0x84] sm:$0xe]
      %v7728 = vld [vmem:[%s2999 + $0x88] sm:$0xf]
      %v7729 = vld [vmem:[%s2999 + $0x8c] sm:$0x1]
      %v7730 = vld [vmem:[%s2999 + $0x90] sm:$0xe]
      %v7731 = vld [vmem:[%s2999 + $0x94] sm:$0xf]
      %v7732 = vld [vmem:[%s2999 + $0x98] sm:$0x1]
      %v7733 = vld [vmem:[%s2999 + $0x9c] sm:$0xe]
      %v7734 = vld [vmem:[%s2999 + $0xa0] sm:$0xf]
      %v7735 = vld [vmem:[%s2999 + $0xa4] sm:$0x1]
      %v7736 = vld [vmem:[%s2999 + $0xa8] sm:$0xe]
      %v7737 = vld [vmem:[%s2999 + $0xac] sm:$0xf]
      %v7738 = vld [vmem:[%s2999 + $0xb0] sm:$0x1]
      %v7739 = vld [vmem:[%s2999 + $0xb4] sm:$0xe]
      %v7740 = vld [vmem:[%s2999 + $0xb8] sm:$0xf]
      %v7741 = vld [vmem:[%s2999 + $0xbc] sm:$0x1]
      %v7790 = vrot.slane %v7694, 5
      %v7791 = vrot.slane %v7790, 4
      %v7792 = vrot.slane %v7695, 5
      %v7793 = vsel %vm1730, %v7791, %v7792
      %v7794 = vrot.slane %v7792, 4
      %v7795 = vrot.slane %v7696, 5
      %v7796 = vsel %vm1730, %v7794, %v7795
      %v7797 = vrot.slane %v7697, 5
      %v7798 = vrot.slane %v7797, 4
      %v7799 = vrot.slane %v7698, 5
      %v7800 = vsel %vm1730, %v7798, %v7799
      %v7801 = vrot.slane %v7799, 4
      %v7802 = vrot.slane %v7699, 5
      %v7803 = vsel %vm1730, %v7801, %v7802
      %v7804 = vrot.slane %v7700, 5
      %v7805 = vrot.slane %v7804, 4
      %v7806 = vrot.slane %v7701, 5
      %v7807 = vsel %vm1730, %v7805, %v7806
      %v7808 = vrot.slane %v7806, 4
      %v7809 = vrot.slane %v7702, 5
      %v7810 = vsel %vm1730, %v7808, %v7809
      %v7811 = vrot.slane %v7703, 5
      %v7812 = vrot.slane %v7811, 4
      %v7813 = vrot.slane %v7704, 5
      %v7814 = vsel %vm1730, %v7812, %v7813
      %v7815 = vrot.slane %v7813, 4
      %v7816 = vrot.slane %v7705, 5
      %v7817 = vsel %vm1730, %v7815, %v7816
      %v7818 = vrot.slane %v7706, 5
      %v7819 = vrot.slane %v7818, 4
      %v7820 = vrot.slane %v7707, 5
      %v7821 = vsel %vm1730, %v7819, %v7820
      %v7822 = vrot.slane %v7820, 4
      %v7823 = vrot.slane %v7708, 5
      %v7824 = vsel %vm1730, %v7822, %v7823
      %v7825 = vrot.slane %v7709, 5
      %v7826 = vrot.slane %v7825, 4
      %v7827 = vrot.slane %v7710, 5
      %v7828 = vsel %vm1730, %v7826, %v7827
      %v7829 = vrot.slane %v7827, 4
      %v7830 = vrot.slane %v7711, 5
      %v7831 = vsel %vm1730, %v7829, %v7830
      %v7832 = vrot.slane %v7712, 5
      %v7833 = vrot.slane %v7832, 4
      %v7834 = vrot.slane %v7713, 5
      %v7835 = vsel %vm1730, %v7833, %v7834
      %v7836 = vrot.slane %v7834, 4
      %v7837 = vrot.slane %v7714, 5
      %v7838 = vsel %vm1730, %v7836, %v7837
      %v7839 = vrot.slane %v7715, 5
      %v7840 = vrot.slane %v7839, 4
      %v7841 = vrot.slane %v7716, 5
      %v7842 = vsel %vm1730, %v7840, %v7841
      %v7843 = vrot.slane %v7841, 4
      %v7844 = vrot.slane %v7717, 5
      %v7845 = vsel %vm1730, %v7843, %v7844
      %v7846 = vrot.slane %v7718, 5
      %v7847 = vrot.slane %v7846, 4
      %v7848 = vrot.slane %v7719, 5
      %v7849 = vsel %vm1730, %v7847, %v7848
      %v7850 = vrot.slane %v7848, 4
      %v7851 = vrot.slane %v7720, 5
      %v7852 = vsel %vm1730, %v7850, %v7851
      %v7853 = vrot.slane %v7721, 5
      %v7854 = vrot.slane %v7853, 4
      %v7855 = vrot.slane %v7722, 5
      %v7856 = vsel %vm1730, %v7854, %v7855
      %v7857 = vrot.slane %v7855, 4
      %v7858 = vrot.slane %v7723, 5
      %v7859 = vsel %vm1730, %v7857, %v7858
      %v7860 = vrot.slane %v7724, 5
      %v7861 = vrot.slane %v7860, 4
      %v7862 = vrot.slane %v7725, 5
      %v7863 = vsel %vm1730, %v7861, %v7862
      %v7864 = vrot.slane %v7862, 4
      %v7865 = vrot.slane %v7726, 5
      %v7866 = vsel %vm1730, %v7864, %v7865
      %v7867 = vrot.slane %v7727, 5
      %v7868 = vrot.slane %v7867, 4
      %v7869 = vrot.slane %v7728, 5
      %v7870 = vsel %vm1730, %v7868, %v7869
      %v7871 = vrot.slane %v7869, 4
      %v7872 = vrot.slane %v7729, 5
      %v7873 = vsel %vm1730, %v7871, %v7872
      %v7874 = vrot.slane %v7730, 5
      %v7875 = vrot.slane %v7874, 4
      %v7876 = vrot.slane %v7731, 5
      %v7877 = vsel %vm1730, %v7875, %v7876
      %v7878 = vrot.slane %v7876, 4
      %v7879 = vrot.slane %v7732, 5
      %v7880 = vsel %vm1730, %v7878, %v7879
      %v7881 = vrot.slane %v7733, 5
      %v7882 = vrot.slane %v7881, 4
      %v7883 = vrot.slane %v7734, 5
      %v7884 = vsel %vm1730, %v7882, %v7883
      %v7885 = vrot.slane %v7883, 4
      %v7886 = vrot.slane %v7735, 5
      %v7887 = vsel %vm1730, %v7885, %v7886
      %v7888 = vrot.slane %v7736, 5
      %v7889 = vrot.slane %v7888, 4
      %v7890 = vrot.slane %v7737, 5
      %v7891 = vsel %vm1730, %v7889, %v7890
      %v7892 = vrot.slane %v7890, 4
      %v7893 = vrot.slane %v7738, 5
      %v7894 = vsel %vm1730, %v7892, %v7893
      %v7895 = vrot.slane %v7739, 5
      %v7896 = vrot.slane %v7895, 4
      %v7897 = vrot.slane %v7740, 5
      %v7898 = vsel %vm1730, %v7896, %v7897
      %v7899 = vrot.slane %v7897, 4
      %v7900 = vrot.slane %v7741, 5
      %v7901 = vsel %vm1730, %v7899, %v7900
      %v7902 = vunpack.c.l.b16 %v7793
      %v7903 = vunpack.c.l.b16 %v7796
      %v7904 = vunpack.c.l.b16 %v7800
      %v7905 = vunpack.c.l.b16 %v7803
      %v7906 = vunpack.c.l.b16 %v7807
      %v7907 = vunpack.c.l.b16 %v7810
      %v7908 = vunpack.c.l.b16 %v7814
      %v7909 = vunpack.c.l.b16 %v7817
      %v7910 = vunpack.c.l.b16 %v7821
      %v7911 = vunpack.c.l.b16 %v7824
      %v7912 = vunpack.c.l.b16 %v7828
      %v7913 = vunpack.c.l.b16 %v7831
      %v7914 = vunpack.c.l.b16 %v7835
      %v7915 = vunpack.c.l.b16 %v7838
      %v7916 = vunpack.c.l.b16 %v7842
      %v7917 = vunpack.c.l.b16 %v7845
      %v7918 = vunpack.c.l.b16 %v7849
      %v7919 = vunpack.c.l.b16 %v7852
      %v7920 = vunpack.c.l.b16 %v7856
      %v7921 = vunpack.c.l.b16 %v7859
      %v7922 = vunpack.c.l.b16 %v7863
      %v7923 = vunpack.c.l.b16 %v7866
      %v7924 = vunpack.c.l.b16 %v7870
      %v7925 = vunpack.c.l.b16 %v7873
      %v7926 = vunpack.c.l.b16 %v7877
      %v7927 = vunpack.c.l.b16 %v7880
      %v7928 = vunpack.c.l.b16 %v7884
      %v7929 = vunpack.c.l.b16 %v7887
      %v7930 = vunpack.c.l.b16 %v7891
      %v7931 = vunpack.c.l.b16 %v7894
      %v7932 = vunpack.c.l.b16 %v7898
      %v7933 = vunpack.c.l.b16 %v7901
      %v7934 = vpack.c.b16 %v7903, %v7902
      %v7935 = vpack.c.b16 %v7905, %v7904
      %v7936 = vpack.c.b16 %v7907, %v7906
      %v7937 = vpack.c.b16 %v7909, %v7908
      %v7938 = vpack.c.b16 %v7911, %v7910
      %v7939 = vpack.c.b16 %v7913, %v7912
      %v7940 = vpack.c.b16 %v7915, %v7914
      %v7941 = vpack.c.b16 %v7917, %v7916
      %v7942 = vpack.c.b16 %v7919, %v7918
      %v7943 = vpack.c.b16 %v7921, %v7920
      %v7944 = vpack.c.b16 %v7923, %v7922
      %v7945 = vpack.c.b16 %v7925, %v7924
      %v7946 = vpack.c.b16 %v7927, %v7926
      %v7947 = vpack.c.b16 %v7929, %v7928
      %v7948 = vpack.c.b16 %v7931, %v7930
      %v7949 = vpack.c.b16 %v7933, %v7932
      %7950 = vrot.lane.b32.xlu0 %v7934, 32
      %v7951 = vpop.permute.xlu0 %7950
      %7952 = vrot.lane.b32.xlu0 %v7935, 32
      %v7953 = vpop.permute.xlu0 %7952
      %7954 = vrot.lane.b32.xlu0 %v7936, 32
      %v7955 = vpop.permute.xlu0 %7954
      %7956 = vrot.lane.b32.xlu0 %v7937, 32
      %v7957 = vpop.permute.xlu0 %7956
      %7958 = vrot.lane.b32.xlu0 %v7938, 32
      %v7959 = vpop.permute.xlu0 %7958
      %7960 = vrot.lane.b32.xlu0 %v7939, 32
      %v7961 = vpop.permute.xlu0 %7960
      %7962 = vrot.lane.b32.xlu0 %v7940, 32
      %v7963 = vpop.permute.xlu0 %7962
      %7964 = vrot.lane.b32.xlu0 %v7941, 32
      %v7965 = vpop.permute.xlu0 %7964
      %7966 = vrot.lane.b32.xlu0 %v7942, 32
      %v7967 = vpop.permute.xlu0 %7966
      %7968 = vrot.lane.b32.xlu0 %v7943, 32
      %v7969 = vpop.permute.xlu0 %7968
      %7970 = vrot.lane.b32.xlu0 %v7944, 32
      %v7971 = vpop.permute.xlu0 %7970
      %7972 = vrot.lane.b32.xlu0 %v7945, 32
      %v7973 = vpop.permute.xlu0 %7972
      %7974 = vrot.lane.b32.xlu0 %v7946, 32
      %v7975 = vpop.permute.xlu0 %7974
      %7976 = vrot.lane.b32.xlu0 %v7947, 32
      %v7977 = vpop.permute.xlu0 %7976
      %7978 = vrot.lane.b32.xlu0 %v7948, 32
      %v7979 = vpop.permute.xlu0 %7978
      %7980 = vrot.lane.b32.xlu0 %v7949, 32
      %v7981 = vpop.permute.xlu0 %7980
      %7998 = vst.msk [vmem:[#allocation3] sm:$0xff] %vm4026, %v7951
      %7999 = vst.msk [vmem:[#allocation3 + $0x8] sm:$0xff] %vm4026, %v7953
      %8000 = vst.msk [vmem:[#allocation3 + $0x10] sm:$0xff] %vm4026, %v7955
      %8001 = vst.msk [vmem:[#allocation3 + $0x18] sm:$0xff] %vm4026, %v7957
      %8002 = vst.msk [vmem:[#allocation3 + $0x20] sm:$0xff] %vm4026, %v7959
      %8003 = vst.msk [vmem:[#allocation3 + $0x28] sm:$0xff] %vm4026, %v7961
      %8004 = vst.msk [vmem:[#allocation3 + $0x30] sm:$0xff] %vm4026, %v7963
      %8005 = vst.msk [vmem:[#allocation3 + $0x38] sm:$0xff] %vm4026, %v7965
      %8006 = vst.msk [vmem:[#allocation3 + $0x40] sm:$0xff] %vm4026, %v7967
      %8007 = vst.msk [vmem:[#allocation3 + $0x48] sm:$0xff] %vm4026, %v7969
      %8008 = vst.msk [vmem:[#allocation3 + $0x50] sm:$0xff] %vm4026, %v7971
      %8009 = vst.msk [vmem:[#allocation3 + $0x58] sm:$0xff] %vm4026, %v7973
      %8010 = vst.msk [vmem:[#allocation3 + $0x60] sm:$0xff] %vm4026, %v7975
      %8011 = vst.msk [vmem:[#allocation3 + $0x68] sm:$0xff] %vm4026, %v7977
      %8012 = vst.msk [vmem:[#allocation3 + $0x70] sm:$0xff] %vm4026, %v7979
      %8013 = vst.msk [vmem:[#allocation3 + $0x78] sm:$0xff] %vm4026, %v7981
      %v8014 = vld [vmem:[#allocation3] sm:$0xff]
      %v8015 = vld [vmem:[#allocation3 + $0x8] sm:$0xff]
      %v8016 = vld [vmem:[#allocation3 + $0x10] sm:$0xff]
      %v8017 = vld [vmem:[#allocation3 + $0x18] sm:$0xff]
      %v8018 = vld [vmem:[#allocation3 + $0x20] sm:$0xff]
      %v8019 = vld [vmem:[#allocation3 + $0x28] sm:$0xff]
      %v8020 = vld [vmem:[#allocation3 + $0x30] sm:$0xff]
      %v8021 = vld [vmem:[#allocation3 + $0x38] sm:$0xff]
      %v8022 = vld [vmem:[#allocation3 + $0x40] sm:$0xff]
      %v8023 = vld [vmem:[#allocation3 + $0x48] sm:$0xff]
      %v8024 = vld [vmem:[#allocation3 + $0x50] sm:$0xff]
      %v8025 = vld [vmem:[#allocation3 + $0x58] sm:$0xff]
      %v8026 = vld [vmem:[#allocation3 + $0x60] sm:$0xff]
      %v8027 = vld [vmem:[#allocation3 + $0x68] sm:$0xff]
      %v8028 = vld [vmem:[#allocation3 + $0x70] sm:$0xff]
      %v8029 = vld [vmem:[#allocation3 + $0x78] sm:$0xff]
      %v8030 = vld [vmem:[%s4] sm:$0xf]
      %v8031 = vld [vmem:[%s4 + $0x4] sm:$0xf]
      %v8032 = vld [vmem:[%s4 + $0x8] sm:$0xf]
      %v8033 = vld [vmem:[%s4 + $0xc] sm:$0xf]
      %v8034 = vld [vmem:[%s4 + $0x10] sm:$0x3]
      %v8035 = vld [vmem:[%s5] sm:$0x1]
      %v8037 = vlaneseq
      %v8038 = vshrl.u32 %v8037, 7
      %v8039 = vsub.s32 0, %v8038
      %v8040 = vrot.slane %v8035, %v8039
      %v8047 = vunpack.c.l.b16 %v8030
      %v8048 = vunpack.c.l.b16 %v8031
      %v8049 = vunpack.c.l.b16 %v8032
      %v8050 = vunpack.c.l.b16 %v8033
      %v8051 = vunpack.c.l.b16 %v8034
      %v8052 = vpack.c.b16 %v8048, %v8047
      %v8053 = vpack.c.b16 %v8050, %v8049
      %v8054 = vpack.c.b16 %v8051, %v8051
      %v8058 = vsel %vm4086, %v8014, 0
      %v8061 = vsel %vm4086, %v8015, 0
      %v8064 = vsel %vm4086, %v8016, 0
      %v8067 = vsel %vm4086, %v8017, 0
      %v8070 = vsel %vm4086, %v8018, 0
      %v8073 = vsel %vm4086, %v8019, 0
      %v8076 = vsel %vm4086, %v8020, 0
      %v8079 = vsel %vm4086, %v8021, 0
      %v8082 = vsel %vm4086, %v8022, 0
      %v8085 = vsel %vm4086, %v8023, 0
      %v8088 = vsel %vm4086, %v8024, 0
      %v8091 = vsel %vm4086, %v8025, 0
      %v8094 = vsel %vm4086, %v8026, 0
      %v8097 = vsel %vm4086, %v8027, 0
      %v8100 = vsel %vm4086, %v8028, 0
      %v8103 = vsel %vm4086, %v8029, 0
      %v8106 = vsel %vm4135, %v8054, 0
      %8108 = vmatprep.subr.bf16.mxu0 0
      %8109 = vmatpush1.bf16.msra.mxu0 %v8052
      %8110 = vmatprep.subr.bf16.mxu0 0
      %8111 = vmatpush1.bf16.msra.mxu0 %v8053
      %8112 = vmatprep.subr.bf16.mxu0 0
      %8113 = vmatpush1.bf16.msra.mxu0 %v8106
      %8114 = vmatprep.subr.bf16.mxu0 0
      %8115 = vmatpush1.bf16.msra.mxu0 0
      %8116 = vmatprep.subr.bf16.mxu0 0
      %8117 = vmatpush1.bf16.msra.mxu0 0
      %8118 = vmatprep.subr.bf16.mxu0 0
      %8119 = vmatpush1.bf16.msra.mxu0 0
      %8120 = vmatprep.subr.bf16.mxu0 0
      %8121 = vmatpush1.bf16.msra.mxu0 0
      %8122 = vmatprep.subr.bf16.mxu0 0
      %8123 = vmatpush1.bf16.msra.mxu0 0
      %8124 = vmatprep.subr.bf16.mxu0 0
      %8125 = vmatpush1.bf16.msra.mxu0 0
      %8126 = vmatprep.subr.bf16.mxu0 0
      %8127 = vmatpush1.bf16.msra.mxu0 0
      %8128 = vmatprep.subr.bf16.mxu0 0
      %8129 = vmatpush1.bf16.msra.mxu0 0
      %8130 = vmatprep.subr.bf16.mxu0 0
      %8131 = vmatpush1.bf16.msra.mxu0 0
      %8132 = vmatprep.subr.bf16.mxu0 0
      %8133 = vmatpush1.bf16.msra.mxu0 0
      %8134 = vmatprep.subr.bf16.mxu0 0
      %8135 = vmatpush1.bf16.msra.mxu0 0
      %8136 = vmatprep.subr.bf16.mxu0 0
      %8137 = vmatpush1.bf16.msra.mxu0 0
      %8138 = vmatprep.subr.bf16.mxu0 0
      %8139 = vmatpush1.bf16.msra.mxu0 0
      %8140 = vmatprep.mubr.bf16.mxu0 0
      %8141 = vmatmul.mubr.bf16.gmra.mrb[0].mxu0 %v8058
      %v8142 = vpop.f32.mrb[0].mxu0
      %v8143 = vadd.f32 %v8040, %v8142
      %v8144 = vpop.f32.mrb[0].mxu0
      %v8145 = vpop.f32.mrb[0].mxu0
      %v8146 = vadd.f32 %v8040, %v8145
      %v8147 = vpop.f32.mrb[0].mxu0
      %8148 = vmatprep.mubr.bf16.mxu0 0
      %8149 = vmatmul.mubr.bf16.gmra.mrb[0].mxu0 %v8061
      %v8150 = vpop.f32.mrb[0].mxu0
      %v8151 = vadd.f32 %v8040, %v8150
      %v8152 = vpop.f32.mrb[0].mxu0
      %v8153 = vpop.f32.mrb[0].mxu0
      %v8154 = vadd.f32 %v8040, %v8153
      %v8155 = vpop.f32.mrb[0].mxu0
      %8156 = vmatprep.mubr.bf16.mxu0 0
      %8157 = vmatmul.mubr.bf16.gmra.mrb[0].mxu0 %v8064
      %v8158 = vpop.f32.mrb[0].mxu0
      %v8159 = vadd.f32 %v8040, %v8158
      %v8160 = vpop.f32.mrb[0].mxu0
      %v8161 = vpop.f32.mrb[0].mxu0
      %v8162 = vadd.f32 %v8040, %v8161
      %v8163 = vpop.f32.mrb[0].mxu0
      %8164 = vmatprep.mubr.bf16.mxu0 0
      %8165 = vmatmul.mubr.bf16.gmra.mrb[0].mxu0 %v8067
      %v8166 = vpop.f32.mrb[0].mxu0
      %v8167 = vadd.f32 %v8040, %v8166
      %v8168 = vpop.f32.mrb[0].mxu0
      %v8169 = vpop.f32.mrb[0].mxu0
      %v8170 = vadd.f32 %v8040, %v8169
      %v8171 = vpop.f32.mrb[0].mxu0
      %8172 = vmatprep.mubr.bf16.mxu0 0
      %8173 = vmatmul.mubr.bf16.gmra.mrb[0].mxu0 %v8070
      %v8174 = vpop.f32.mrb[0].mxu0
      %v8175 = vadd.f32 %v8040, %v8174
      %v8176 = vpop.f32.mrb[0].mxu0
      %v8177 = vpop.f32.mrb[0].mxu0
      %v8178 = vadd.f32 %v8040, %v8177
      %v8179 = vpop.f32.mrb[0].mxu0
      %8180 = vmatprep.mubr.bf16.mxu0 0
      %8181 = vmatmul.mubr.bf16.gmra.mrb[0].mxu0 %v8073
      %v8182 = vpop.f32.mrb[0].mxu0
      %v8183 = vadd.f32 %v8040, %v8182
      %v8184 = vpop.f32.mrb[0].mxu0
      %v8185 = vpop.f32.mrb[0].mxu0
      %v8186 = vadd.f32 %v8040, %v8185
      %v8187 = vpop.f32.mrb[0].mxu0
      %8188 = vmatprep.mubr.bf16.mxu0 0
      %8189 = vmatmul.mubr.bf16.gmra.mrb[0].mxu0 %v8076
      %v8190 = vpop.f32.mrb[0].mxu0
      %v8191 = vadd.f32 %v8040, %v8190
      %v8192 = vpop.f32.mrb[0].mxu0
      %v8193 = vpop.f32.mrb[0].mxu0
      %v8194 = vadd.f32 %v8040, %v8193
      %v8195 = vpop.f32.mrb[0].mxu0
      %8196 = vmatprep.mubr.bf16.mxu0 0
      %8197 = vmatmul.mubr.bf16.gmra.mrb[0].mxu0 %v8079
      %v8198 = vpop.f32.mrb[0].mxu0
      %v8199 = vadd.f32 %v8040, %v8198
      %v8200 = vpop.f32.mrb[0].mxu0
      %v8201 = vpop.f32.mrb[0].mxu0
      %v8202 = vadd.f32 %v8040, %v8201
      %v8203 = vpop.f32.mrb[0].mxu0
      %8204 = vmatprep.mubr.bf16.mxu0 0
      %8205 = vmatmul.mubr.bf16.gmra.mrb[0].mxu0 %v8082
      %v8206 = vpop.f32.mrb[0].mxu0
      %v8207 = vadd.f32 %v8040, %v8206
      %v8208 = vpop.f32.mrb[0].mxu0
      %v8209 = vpop.f32.mrb[0].mxu0
      %v8210 = vadd.f32 %v8040, %v8209
      %v8211 = vpop.f32.mrb[0].mxu0
      %8212 = vmatprep.mubr.bf16.mxu0 0
      %8213 = vmatmul.mubr.bf16.gmra.mrb[0].mxu0 %v8085
      %v8214 = vpop.f32.mrb[0].mxu0
      %v8215 = vadd.f32 %v8040, %v8214
      %v8216 = vpop.f32.mrb[0].mxu0
      %v8217 = vpop.f32.mrb[0].mxu0
      %v8218 = vadd.f32 %v8040, %v8217
      %v8219 = vpop.f32.mrb[0].mxu0
      %8220 = vmatprep.mubr.bf16.mxu0 0
      %8221 = vmatmul.mubr.bf16.gmra.mrb[0].mxu0 %v8088
      %v8222 = vpop.f32.mrb[0].mxu0
      %v8223 = vadd.f32 %v8040, %v8222
      %v8224 = vpop.f32.mrb[0].mxu0
      %v8225 = vpop.f32.mrb[0].mxu0
      %v8226 = vadd.f32 %v8040, %v8225
      %v8227 = vpop.f32.mrb[0].mxu0
      %8228 = vmatprep.mubr.bf16.mxu0 0
      %8229 = vmatmul.mubr.bf16.gmra.mrb[0].mxu0 %v8091
      %v8230 = vpop.f32.mrb[0].mxu0
      %v8231 = vadd.f32 %v8040, %v8230
      %v8232 = vpop.f32.mrb[0].mxu0
      %v8233 = vpop.f32.mrb[0].mxu0
      %v8234 = vadd.f32 %v8040, %v8233
      %v8235 = vpop.f32.mrb[0].mxu0
      %8236 = vmatprep.mubr.bf16.mxu0 0
      %8237 = vmatmul.mubr.bf16.gmra.mrb[0].mxu0 %v8094
      %v8238 = vpop.f32.mrb[0].mxu0
      %v8239 = vadd.f32 %v8040, %v8238
      %v8240 = vpop.f32.mrb[0].mxu0
      %v8241 = vpop.f32.mrb[0].mxu0
      %v8242 = vadd.f32 %v8040, %v8241
      %v8243 = vpop.f32.mrb[0].mxu0
      %8244 = vmatprep.mubr.bf16.mxu0 0
      %8245 = vmatmul.mubr.bf16.gmra.mrb[0].mxu0 %v8097
      %v8246 = vpop.f32.mrb[0].mxu0
      %v8247 = vadd.f32 %v8040, %v8246
      %v8248 = vpop.f32.mrb[0].mxu0
      %v8249 = vpop.f32.mrb[0].mxu0
      %v8250 = vadd.f32 %v8040, %v8249
      %v8251 = vpop.f32.mrb[0].mxu0
      %8252 = vmatprep.mubr.bf16.mxu0 0
      %8253 = vmatmul.mubr.bf16.gmra.mrb[0].mxu0 %v8100
      %v8254 = vpop.f32.mrb[0].mxu0
      %v8255 = vadd.f32 %v8040, %v8254
      %v8256 = vpop.f32.mrb[0].mxu0
      %v8257 = vpop.f32.mrb[0].mxu0
      %v8258 = vadd.f32 %v8040, %v8257
      %v8259 = vpop.f32.mrb[0].mxu0
      %8260 = vmatprep.mubr.bf16.mxu0 0
      %8261 = vmatmul.mubr.bf16.gmra.mrb[0].mxu0 %v8103
      %v8262 = vpop.f32.mrb[0].mxu0
      %v8263 = vadd.f32 %v8040, %v8262
      %v8264 = vpop.f32.mrb[0].mxu0
      %v8265 = vpop.f32.mrb[0].mxu0
      %v8266 = vadd.f32 %v8040, %v8265
      %v8267 = vpop.f32.mrb[0].mxu0
      %8268 = vdwg.mxu0
      %v8269 = vld [vmem:[%s247] sm:$0xff]
      %v8270 = vld [vmem:[%s247 + $0x8] sm:$0xff]
      %v8271 = vld [vmem:[%s247 + $0x10] sm:$0xff]
      %v8272 = vld [vmem:[%s247 + $0x18] sm:$0xff]
      %v8273 = vld [vmem:[%s247 + $0x20] sm:$0xff]
      %v8274 = vld [vmem:[%s247 + $0x28] sm:$0xff]
      %v8275 = vld [vmem:[%s247 + $0x30] sm:$0xff]
      %v8276 = vld [vmem:[%s247 + $0x38] sm:$0xff]
      %v8277 = vld [vmem:[%s247 + $0x40] sm:$0xff]
      %v8278 = vld [vmem:[%s247 + $0x48] sm:$0xff]
      %v8279 = vld [vmem:[%s247 + $0x50] sm:$0xff]
      %v8280 = vld [vmem:[%s247 + $0x58] sm:$0xff]
      %v8281 = vld [vmem:[%s247 + $0x60] sm:$0xff]
      %v8282 = vld [vmem:[%s247 + $0x68] sm:$0xff]
      %v8283 = vld [vmem:[%s247 + $0x70] sm:$0xff]
      %v8284 = vld [vmem:[%s247 + $0x78] sm:$0xff]
      %v8285 = vld [vmem:[%s247 + $0x80] sm:$0xff]
      %v8286 = vld [vmem:[%s247 + $0x88] sm:$0xff]
      %v8287 = vld [vmem:[%s247 + $0x90] sm:$0xff]
      %v8288 = vld [vmem:[%s247 + $0x98] sm:$0xff]
      %v8289 = vld [vmem:[%s247 + $0xa0] sm:$0xff]
      %v8290 = vld [vmem:[%s247 + $0xa8] sm:$0xff]
      %v8291 = vld [vmem:[%s247 + $0xb0] sm:$0xff]
      %v8292 = vld [vmem:[%s247 + $0xb8] sm:$0xff]
      %v8293 = vld [vmem:[%s247 + $0xc0] sm:$0xff]
      %v8294 = vld [vmem:[%s247 + $0xc8] sm:$0xff]
      %v8295 = vld [vmem:[%s247 + $0xd0] sm:$0xff]
      %v8296 = vld [vmem:[%s247 + $0xd8] sm:$0xff]
      %v8297 = vld [vmem:[%s247 + $0xe0] sm:$0xff]
      %v8298 = vld [vmem:[%s247 + $0xe8] sm:$0xff]
      %v8299 = vld [vmem:[%s247 + $0xf0] sm:$0xff]
      %v8300 = vld [vmem:[%s247 + $0xf8] sm:$0xff]
      %v8301 = vadd.f32 %v8269, %v8143
      %v8302 = vadd.f32 %v8270, %v8146
      %v8303 = vadd.f32 %v8271, %v8151
      %v8304 = vadd.f32 %v8272, %v8154
      %v8305 = vadd.f32 %v8273, %v8159
      %v8306 = vadd.f32 %v8274, %v8162
      %v8307 = vadd.f32 %v8275, %v8167
      %v8308 = vadd.f32 %v8276, %v8170
      %v8309 = vadd.f32 %v8277, %v8175
      %v8310 = vadd.f32 %v8278, %v8178
      %v8311 = vadd.f32 %v8279, %v8183
      %v8312 = vadd.f32 %v8280, %v8186
      %v8313 = vadd.f32 %v8281, %v8191
      %v8314 = vadd.f32 %v8282, %v8194
      %v8315 = vadd.f32 %v8283, %v8199
      %v8316 = vadd.f32 %v8284, %v8202
      %v8317 = vadd.f32 %v8285, %v8207
      %v8318 = vadd.f32 %v8286, %v8210
      %v8319 = vadd.f32 %v8287, %v8215
      %v8320 = vadd.f32 %v8288, %v8218
      %v8321 = vadd.f32 %v8289, %v8223
      %v8322 = vadd.f32 %v8290, %v8226
      %v8323 = vadd.f32 %v8291, %v8231
      %v8324 = vadd.f32 %v8292, %v8234
      %v8325 = vadd.f32 %v8293, %v8239
      %v8326 = vadd.f32 %v8294, %v8242
      %v8327 = vadd.f32 %v8295, %v8247
      %v8328 = vadd.f32 %v8296, %v8250
      %v8329 = vadd.f32 %v8297, %v8255
      %v8330 = vadd.f32 %v8298, %v8258
      %v8331 = vadd.f32 %v8299, %v8263
      %v8332 = vadd.f32 %v8300, %v8266
      %8333 = vst.msk [vmem:[%s252] sm:$0xff] %vm1067, %v8301
      %8334 = vst.msk [vmem:[%s252 + $0x8] sm:$0xff] %vm1067, %v8302
      %8335 = vst.msk [vmem:[%s252 + $0x10] sm:$0xff] %vm1067, %v8303
      %8336 = vst.msk [vmem:[%s252 + $0x18] sm:$0xff] %vm1067, %v8304
      %8337 = vst.msk [vmem:[%s252 + $0x20] sm:$0xff] %vm1067, %v8305
      %8338 = vst.msk [vmem:[%s252 + $0x28] sm:$0xff] %vm1067, %v8306
      %8339 = vst.msk [vmem:[%s252 + $0x30] sm:$0xff] %vm1067, %v8307
      %8340 = vst.msk [vmem:[%s252 + $0x38] sm:$0xff] %vm1067, %v8308
      %8341 = vst.msk [vmem:[%s252 + $0x40] sm:$0xff] %vm1067, %v8309
      %8342 = vst.msk [vmem:[%s252 + $0x48] sm:$0xff] %vm1067, %v8310
      %8343 = vst.msk [vmem:[%s252 + $0x50] sm:$0xff] %vm1067, %v8311
      %8344 = vst.msk [vmem:[%s252 + $0x58] sm:$0xff] %vm1067, %v8312
      %8345 = vst.msk [vmem:[%s252 + $0x60] sm:$0xff] %vm1067, %v8313
      %8346 = vst.msk [vmem:[%s252 + $0x68] sm:$0xff] %vm1067, %v8314
      %8347 = vst.msk [vmem:[%s252 + $0x70] sm:$0xff] %vm1067, %v8315
      %8348 = vst.msk [vmem:[%s252 + $0x78] sm:$0xff] %vm1067, %v8316
      %8349 = vst.msk [vmem:[%s252 + $0x80] sm:$0xff] %vm1067, %v8317
      %8350 = vst.msk [vmem:[%s252 + $0x88] sm:$0xff] %vm1067, %v8318
      %8351 = vst.msk [vmem:[%s252 + $0x90] sm:$0xff] %vm1067, %v8319
      %8352 = vst.msk [vmem:[%s252 + $0x98] sm:$0xff] %vm1067, %v8320
      %8353 = vst.msk [vmem:[%s252 + $0xa0] sm:$0xff] %vm1067, %v8321
      %8354 = vst.msk [vmem:[%s252 + $0xa8] sm:$0xff] %vm1067, %v8322
      %8355 = vst.msk [vmem:[%s252 + $0xb0] sm:$0xff] %vm1067, %v8323
      %8356 = vst.msk [vmem:[%s252 + $0xb8] sm:$0xff] %vm1067, %v8324
      %8357 = vst.msk [vmem:[%s252 + $0xc0] sm:$0xff] %vm1067, %v8325
      %8358 = vst.msk [vmem:[%s252 + $0xc8] sm:$0xff] %vm1067, %v8326
      %8359 = vst.msk [vmem:[%s252 + $0xd0] sm:$0xff] %vm1067, %v8327
      %8360 = vst.msk [vmem:[%s252 + $0xd8] sm:$0xff] %vm1067, %v8328
      %8361 = vst.msk [vmem:[%s252 + $0xe0] sm:$0xff] %vm1067, %v8329
      %8362 = vst.msk [vmem:[%s252 + $0xe8] sm:$0xff] %vm1067, %v8330
      %8363 = vst.msk [vmem:[%s252 + $0xf0] sm:$0xff] %vm1067, %v8331
      %8364 = vst.msk [vmem:[%s252 + $0xf8] sm:$0xff] %vm1067, %v8332
      %p8365 = scmp.lt.s32.totalorder %s18, 1
      %s8366 = scalar_select %p8365, %s18, 1
      %s8367 = smul.addr %s8366, 32
      %s8368 = smul.addr %s8367, 8
      %s8369 = scalar_lea.vmem %s6, %s8368
      // Predicated region
      $region45: #{tpu_custom_call.1} parent=43 // pred_check
        %p8370 = pneg %p167
      $region46: #{tpu_custom_call.1} parent=43 // pred_check_branch
        %8372 = sbr.rel (%p8370) target = $region48
      $region47: #{tpu_custom_call.1} parent=43 // pred_region
        _
      $region48: #{tpu_custom_call.1} parent=43 // pred_fallthru
        _
    $region44: #{tpu_custom_call.1} parent=5 // pred_fallthru
      _
    %p8373 = scmp.le.s32.totalorder 2, %s13
    // Predicated region
    $region49: #{tpu_custom_call.1} parent=5 // pred_check
      %p8374 = pneg %p8373
    $region50: #{tpu_custom_call.1} parent=5 // pred_check_branch
      %8376 = sbr.rel (%p8374) target = $region52
    $region51: #{tpu_custom_call.1} parent=5 // pred_region
      %s8377 = ssub.s32 %s13, 2
      // Predicated region
      $region53: #{tpu_custom_call.1} parent=51 // pred_check
        %p8378 = pneg %p173
      $region54: #{tpu_custom_call.1} parent=51 // pred_check_branch
        %8380 = sbr.rel (%p8378) target = $region56
      $region55: #{tpu_custom_call.1} parent=51 // pred_region
        %p8381 = scmp.lt.s32.totalorder %s19, 1
        %s8382 = scalar_select %p8381, %s19, 1
        %s8383 = smul.addr %s8382, 32
        %s8384 = smul.addr %s8383, 8
        %s8385 = scalar_lea.vmem %s6, %s8384
      $region56: #{tpu_custom_call.1} parent=51 // pred_fallthru
        _
    $region52: #{tpu_custom_call.1} parent=5 // pred_fallthru
      _
  $region6: #{tpu_custom_call.1} parent=0 // loop_footer
    %s17 = sadd.s32 1, %s13
  $region7: #{tpu_custom_call.1} parent=0 // loop_footer_branch
    %12 = sbr.rel target = $region3
  $region8: #{tpu_custom_call.1} parent=0 // loop_exit
    _

</llo_original>
